<compile_context>
chip_gen: v7x
topology: tpu7x:2x2x1
jax: 0.10.0
libtpu: 0.0.40
codegen_flags: <defaults>
</compile_context>

<pallas_src>
import functools
import math

import jax
import jax.numpy as jnp
from jax import lax
from jax.experimental import pallas as pl
from jax.experimental.pallas import tpu as pltpu


def get_relative_position_index(win_h, win_w):
    """JAX port of the PyTorch helper (torch.meshgrid default = 'ij')."""
    coords = jnp.stack(
        jnp.meshgrid(jnp.arange(win_h), jnp.arange(win_w), indexing="ij"))
    coords_flat = coords.reshape(2, -1)                        # (2, N)
    rel = coords_flat[:, :, None] - coords_flat[:, None, :]    # (2, N, N)
    rel = rel.transpose(1, 2, 0)                               # (N, N, 2)
    rel = rel.at[:, :, 0].add(win_h - 1)
    rel = rel.at[:, :, 1].add(win_w - 1)
    rel = rel.at[:, :, 0].multiply(2 * win_w - 1)
    return rel.sum(-1)                                         # (N, N) int32


# ----------------------------------------------------------------------------
# Fused kernel: QKV proj -> per-(window, head) attention -> output proj
# ----------------------------------------------------------------------------
def _window_attn_kernel(x_ref, wqkv_ref, bqkv_ref, wproj_ref, bproj_ref,
                        bias_ref, o_ref, qkv_buf, ctx_buf, *,
                        num_heads, win_len, windows_per_block, attn_dim):
    N = win_len
    H = num_heads
    A = attn_dim
    D = A // H

    # 1) Fused QKV projection for all G windows of this block: (G*N, 3A).
    #    (Softmax scale is already folded into the q columns of wqkv/bqkv.)
    qkv_buf[...] = (
        jnp.dot(x_ref[...], wqkv_ref[...], preferred_element_type=jnp.float32)
        + bqkv_ref[...]
    )

    # 2) Per-window, per-head attention (static unrolled loops; G, H are small).
    for g in range(windows_per_block):
        r0 = g * N
        for h in range(H):
            q = qkv_buf[r0:r0 + N, h * D:(h + 1) * D]                 # (N, D)
            k = qkv_buf[r0:r0 + N, A + h * D:A + (h + 1) * D]         # (N, D)
            v = qkv_buf[r0:r0 + N, 2 * A + h * D:2 * A + (h + 1) * D]  # (N, D)

            # q @ k^T without an explicit in-kernel transpose
            # (contract the last dim of both operands).
            s = lax.dot_general(q, k, (((1,), (1,)), ((), ())),
                                preferred_element_type=jnp.float32)
            s = s + bias_ref[h]                                       # rel-pos bias
            s = s - jnp.max(s, axis=-1, keepdims=True)
            p = jnp.exp(s)
            p = p * pl.reciprocal(jnp.sum(p, axis=-1, keepdims=True),
                                  approx=True)
            ctx_buf[r0:r0 + N, h * D:(h + 1) * D] = jnp.dot(
                p, v, preferred_element_type=jnp.float32)

    # 3) Output projection for the whole block; lane-dense (G*N, C) store.
    y = (jnp.dot(ctx_buf[...].astype(wproj_ref.dtype), wproj_ref[...],
                 preferred_element_type=jnp.float32)
         + bproj_ref[...])
    o_ref[...] = y.astype(o_ref.dtype)


# ----------------------------------------------------------------------------
# Wrapper
# ----------------------------------------------------------------------------
def window_attention_forward(x, params, num_heads, mask=None,
                             block_windows=None):
    """Pallas forward of WindowAttention (attn_drop = proj_drop = 0.0)."""
    # TODO(synk): the optional shifted-window attention mask is not implemented
    # (mask must be None); support it by folding mask into the pre-softmax bias.
    assert mask is None

    B_, N, C = x.shape
    w_qkv, b_qkv = params["w_qkv"], params["b_qkv"]       # (3A, C), (3A,)
    w_proj, b_proj = params["w_proj"], params["b_proj"]   # (Cout, A), (Cout,)
    A = w_qkv.shape[0] // 3
    H = num_heads
    D = A // H
    C_out = w_proj.shape[0]
    scale = D ** (-0.5)

    # ---- wrapper-side (free) layout plumbing ----
    # Pre-transpose weights so the kernel computes x @ W (no in-kernel .T),
    # and fold the softmax scale into the q slice of the qkv projection.
    w_qkv_t = jnp.transpose(w_qkv)                        # (C, 3A)
    w_qkv_t = w_qkv_t.at[:, :A].multiply(scale)
    b_qkv_s = b_qkv.at[:A].multiply(scale).reshape(1, 3 * A)
    w_proj_t = jnp.transpose(w_proj)                      # (A, Cout)
    b_proj2 = b_proj.reshape(1, C_out)

    # Relative position bias gathered once: (H, N, N), added pre-softmax.
    bias = params["rel_pos_table"][params["rel_pos_index"].reshape(-1)]
    bias = bias.reshape(N, N, H).transpose(2, 0, 1).astype(jnp.float32)

    # Windows per grid step: biggest divisor of B_ that still leaves >= 2 grid
    # steps (pipelining + megacore split), falling back to 1.
    if block_windows is None:
        block_windows = 1
        for g in (8, 4, 2):
            if B_ % g == 0 and B_ // g >= 2:
                block_windows = g
                break
    G = block_windows
    assert B_ % G == 0
    grid = (B_ // G,)

    x2 = x.reshape(B_ * N, C)   # free reshape in the wrapper; lane-dense rows

    kernel = functools.partial(
        _window_attn_kernel, num_heads=H, win_len=N,
        windows_per_block=G, attn_dim=A)

    out = pl.pallas_call(
        kernel,
        out_shape=jax.ShapeDtypeStruct((B_ * N, C_out), x.dtype),
        grid=grid,
        in_specs=[
            pl.BlockSpec((G * N, C), lambda i: (i, 0)),      # x rows (tiled)
            pl.BlockSpec((C, 3 * A), lambda i: (0, 0)),      # qkv weight (resident)
            pl.BlockSpec((1, 3 * A), lambda i: (0, 0)),      # qkv bias
            pl.BlockSpec((A, C_out), lambda i: (0, 0)),      # proj weight
            pl.BlockSpec((1, C_out), lambda i: (0, 0)),      # proj bias
            pl.BlockSpec((H, N, N), lambda i: (0, 0, 0)),    # rel-pos bias
        ],
        out_specs=pl.BlockSpec((G * N, C_out), lambda i: (i, 0)),
        scratch_shapes=[
            pltpu.VMEM((G * N, 3 * A), jnp.float32),         # fused qkv
            pltpu.VMEM((G * N, A), jnp.float32),             # attention context
        ],
        compiler_params=pltpu.CompilerParams(
            dimension_semantics=("parallel",),
            vmem_limit_bytes=32 * 1024 * 1024,
        ),
    )(x2, w_qkv_t, b_qkv_s, w_proj_t, b_proj2, bias)

    return out.reshape(B_, N, C_out)


# ----------------------------------------------------------------------------
# Pure-JAX reference (mirrors the PyTorch forward exactly, mask=None)
# ----------------------------------------------------------------------------
def window_attention_reference(x, params, num_heads):
    B_, N, C = x.shape
    w_qkv, b_qkv = params["w_qkv"], params["b_qkv"]
    w_proj, b_proj = params["w_proj"], params["b_proj"]
    A = w_qkv.shape[0] // 3
    H = num_heads
    D = A // H
    scale = D ** (-0.5)

    qkv = x @ w_qkv.T + b_qkv                                    # (B_, N, 3A)
    qkv = qkv.reshape(B_, N, 3, H, D).transpose(2, 0, 3, 1, 4)   # (3, B_, H, N, D)
    q, k, v = qkv[0] * scale, qkv[1], qkv[2]

    attn = jnp.einsum("bhnd,bhmd->bhnm", q, k)
    bias = params["rel_pos_table"][params["rel_pos_index"].reshape(-1)]
    bias = bias.reshape(N, N, H).transpose(2, 0, 1)
    attn = attn + bias[None]
    attn = jax.nn.softmax(attn, axis=-1)
    out = jnp.einsum("bhnm,bhmd->bhnd", attn, v)
    out = out.transpose(0, 2, 1, 3).reshape(B_, N, A)
    return out @ w_proj.T + b_proj


# ----------------------------------------------------------------------------
# Main
# ----------------------------------------------------------------------------
if __name__ == "__main__":
    dim = 128
    num_heads = 4
    head_dim = dim // num_heads          # 32
    win_h, win_w = 8, 8
    N = win_h * win_w                    # 64 tokens per window
    B_ = 8                               # num_windows * batch

    attn_dim = head_dim * num_heads
    key = jax.random.PRNGKey(0)
    ks = jax.random.split(key, 7)

    bound_qkv = 1.0 / math.sqrt(dim)      # PyTorch nn.Linear default init range
    bound_proj = 1.0 / math.sqrt(attn_dim)
    params = {
        "w_qkv": jax.random.uniform(ks[0], (3 * attn_dim, dim), jnp.float32,
                                    -bound_qkv, bound_qkv),
        "b_qkv": jax.random.uniform(ks[1], (3 * attn_dim,), jnp.float32,
                                    -bound_qkv, bound_qkv),
        "w_proj": jax.random.uniform(ks[2], (dim, attn_dim), jnp.float32,
                                     -bound_proj, bound_proj),
        "b_proj": jax.random.uniform(ks[3], (dim,), jnp.float32,
                                     -bound_proj, bound_proj),
        # trunc_normal_(std=0.02) approximated by plain normal for the demo
        "rel_pos_table": 0.02 * jax.random.normal(
            ks[4], ((2 * win_h - 1) * (2 * win_w - 1), num_heads), jnp.float32),
        "rel_pos_index": get_relative_position_index(win_h, win_w),
    }

    x = jax.random.normal(ks[5], (B_, N, dim), jnp.float32)

    out = window_attention_forward(x, params, num_heads)
    out = jax.block_until_ready(out)

    ref = window_attention_reference(x, params, num_heads)
    assert out.shape == (B_, N, dim)
    max_err = float(jnp.max(jnp.abs(out - ref)))
    # approx=True EUP reciprocal in the softmax -> slightly looser tolerance
    assert jnp.allclose(out, ref, atol=2e-3, rtol=2e-3), (
        f"mismatch vs reference, max abs err {max_err}")

    print("KERNEL_OK")
</pallas_src>

<mosaic_0001>
module attributes {stable_mosaic.version = 11 : i64} {
  func.func @_window_attn_kernel(%arg0: i32, %arg1: memref<256x128xf32, #tpu.memory_space<vmem>>, %arg2: memref<128x384xf32, #tpu.memory_space<vmem>>, %arg3: memref<1x384xf32, #tpu.memory_space<vmem>>, %arg4: memref<128x128xf32, #tpu.memory_space<vmem>>, %arg5: memref<1x128xf32, #tpu.memory_space<vmem>>, %arg6: memref<4x64x64xf32, #tpu.memory_space<vmem>>, %arg7: memref<256x128xf32, #tpu.memory_space<vmem>>, %arg8: memref<256x384xf32, #tpu.memory_space<vmem>>, %arg9: memref<256x128xf32, #tpu.memory_space<vmem>>) attributes {dimension_semantics = [#tpu.dimension_semantics<parallel>], iteration_bounds = array<i64: 2>, scalar_prefetch = 0 : i64, scratch_operands = 2 : i64, tpu.core_type = #tpu.core_type<tc>, window_params = [{transform_indices = @transform_0, window_bounds = array<i64: 256, 128>}, {pipeline_mode = #tpu.pipeline_mode<synchronous>, transform_indices = @transform_1, window_bounds = array<i64: 128, 384>}, {pipeline_mode = #tpu.pipeline_mode<synchronous>, transform_indices = @transform_2, window_bounds = array<i64: 1, 384>}, {pipeline_mode = #tpu.pipeline_mode<synchronous>, transform_indices = @transform_3, window_bounds = array<i64: 128, 128>}, {pipeline_mode = #tpu.pipeline_mode<synchronous>, transform_indices = @transform_4, window_bounds = array<i64: 1, 128>}, {pipeline_mode = #tpu.pipeline_mode<synchronous>, transform_indices = @transform_5, window_bounds = array<i64: 4, 64, 64>}, {transform_indices = @transform_6, window_bounds = array<i64: 256, 128>}]} {
    %c0 = arith.constant 0 : index
    %c0_0 = arith.constant 0 : index
    %0 = vector.load %arg1[%c0, %c0_0] : memref<256x128xf32, #tpu.memory_space<vmem>>, vector<256x128xf32>
    %c0_1 = arith.constant 0 : index
    %c0_2 = arith.constant 0 : index
    %1 = vector.load %arg2[%c0_1, %c0_2] : memref<128x384xf32, #tpu.memory_space<vmem>>, vector<128x384xf32>
    %cst = arith.constant dense<0.000000e+00> : vector<256x384xf32>
    %2 = tpu.matmul %0, %1, %cst {dimension_numbers = #tpu.dot_dimension_numbers<[1], [0], [0], [1], [0, 0, 1, 1], [], []>} : vector<256x128xf32>, vector<128x384xf32>, vector<256x384xf32> -> vector<256x384xf32>
    %c0_3 = arith.constant 0 : index
    %c0_4 = arith.constant 0 : index
    %3 = vector.load %arg3[%c0_3, %c0_4] : memref<1x384xf32, #tpu.memory_space<vmem>>, vector<1x384xf32>
    %4 = vector.broadcast %3 : vector<1x384xf32> to vector<256x384xf32>
    %5 = arith.addf %2, %4 : vector<256x384xf32>
    %c0_5 = arith.constant 0 : index
    %c0_6 = arith.constant 0 : index
    %6 = vector.load %arg8[%c0_5, %c0_6] : memref<256x384xf32, #tpu.memory_space<vmem>>, vector<256x384xf32>
    tpu.vector_store %arg8[%c0_5, %c0_6], %5 {strides = array<i32>} : memref<256x384xf32, #tpu.memory_space<vmem>>, vector<256x384xf32>,
    %c0_7 = arith.constant 0 : index
    %c0_8 = arith.constant 0 : index
    %7 = vector.load %arg8[%c0_7, %c0_8] : memref<256x384xf32, #tpu.memory_space<vmem>>, vector<64x32xf32>
    %c0_9 = arith.constant 0 : index
    %c128 = arith.constant 128 : index
    %8 = vector.load %arg8[%c0_9, %c128] : memref<256x384xf32, #tpu.memory_space<vmem>>, vector<64x32xf32>
    %c0_10 = arith.constant 0 : index
    %c256 = arith.constant 256 : index
    %9 = vector.load %arg8[%c0_10, %c256] : memref<256x384xf32, #tpu.memory_space<vmem>>, vector<64x32xf32>
    %cst_11 = arith.constant dense<0.000000e+00> : vector<64x64xf32>
    %10 = tpu.matmul %7, %8, %cst_11 {dimension_numbers = #tpu.dot_dimension_numbers<[1], [1], [0], [0], [0, 0, 1, 0], [], []>} : vector<64x32xf32>, vector<64x32xf32>, vector<64x64xf32> -> vector<64x64xf32>
    %c0_12 = arith.constant 0 : index
    %c0_13 = arith.constant 0 : index
    %c0_14 = arith.constant 0 : index
    %11 = vector.load %arg6[%c0_12, %c0_13, %c0_14] : memref<4x64x64xf32, #tpu.memory_space<vmem>>, vector<1x64x64xf32>
    %12 = vector.shape_cast %11 : vector<1x64x64xf32> to vector<64x64xf32>
    %13 = arith.addf %10, %12 : vector<64x64xf32>
    %cst_15 = arith.constant dense<0xFF800000> : vector<64xf32>
    %14 = vector.multi_reduction <maximumf>, %13, %cst_15 [1] : vector<64x64xf32> to vector<64xf32>
    %15 = vector.shape_cast %14 : vector<64xf32> to vector<64x1xf32>
    %16 = vector.broadcast %15 : vector<64x1xf32> to vector<64x64xf32>
    %17 = arith.subf %13, %16 : vector<64x64xf32>
    %18 = math.exp %17 : vector<64x64xf32>
    %cst_16 = arith.constant dense<0.000000e+00> : vector<64xf32>
    %19 = vector.multi_reduction <add>, %18, %cst_16 [1] : vector<64x64xf32> to vector<64xf32>
    %20 = vector.shape_cast %19 : vector<64xf32> to vector<64x1xf32>
    %21 = tpu.reciprocal %20 {approx = true} : vector<64x1xf32> -> vector<64x1xf32>
    %22 = vector.broadcast %21 : vector<64x1xf32> to vector<64x64xf32>
    %23 = arith.mulf %18, %22 : vector<64x64xf32>
    %cst_17 = arith.constant dense<0.000000e+00> : vector<64x32xf32>
    %24 = tpu.matmul %23, %9, %cst_17 {dimension_numbers = #tpu.dot_dimension_numbers<[1], [0], [0], [1], [0, 0, 1, 1], [], []>} : vector<64x64xf32>, vector<64x32xf32>, vector<64x32xf32> -> vector<64x32xf32>
    %c0_18 = arith.constant 0 : index
    %c0_19 = arith.constant 0 : index
    %25 = vector.load %arg9[%c0_18, %c0_19] : memref<256x128xf32, #tpu.memory_space<vmem>>, vector<64x32xf32>
    tpu.vector_store %arg9[%c0_18, %c0_19], %24 {strides = array<i32>} : memref<256x128xf32, #tpu.memory_space<vmem>>, vector<64x32xf32>,
    %c0_20 = arith.constant 0 : index
    %c32 = arith.constant 32 : index
    %26 = vector.load %arg8[%c0_20, %c32] : memref<256x384xf32, #tpu.memory_space<vmem>>, vector<64x32xf32>
    %c0_21 = arith.constant 0 : index
    %c160 = arith.constant 160 : index
    %27 = vector.load %arg8[%c0_21, %c160] : memref<256x384xf32, #tpu.memory_space<vmem>>, vector<64x32xf32>
    %c0_22 = arith.constant 0 : index
    %c288 = arith.constant 288 : index
    %28 = vector.load %arg8[%c0_22, %c288] : memref<256x384xf32, #tpu.memory_space<vmem>>, vector<64x32xf32>
    %cst_23 = arith.constant dense<0.000000e+00> : vector<64x64xf32>
    %29 = tpu.matmul %26, %27, %cst_23 {dimension_numbers = #tpu.dot_dimension_numbers<[1], [1], [0], [0], [0, 0, 1, 0], [], []>} : vector<64x32xf32>, vector<64x32xf32>, vector<64x64xf32> -> vector<64x64xf32>
    %c1 = arith.constant 1 : index
    %c0_24 = arith.constant 0 : index
    %c0_25 = arith.constant 0 : index
    %30 = vector.load %arg6[%c1, %c0_24, %c0_25] : memref<4x64x64xf32, #tpu.memory_space<vmem>>, vector<1x64x64xf32>
    %31 = vector.shape_cast %30 : vector<1x64x64xf32> to vector<64x64xf32>
    %32 = arith.addf %29, %31 : vector<64x64xf32>
    %cst_26 = arith.constant dense<0xFF800000> : vector<64xf32>
    %33 = vector.multi_reduction <maximumf>, %32, %cst_26 [1] : vector<64x64xf32> to vector<64xf32>
    %34 = vector.shape_cast %33 : vector<64xf32> to vector<64x1xf32>
    %35 = vector.broadcast %34 : vector<64x1xf32> to vector<64x64xf32>
    %36 = arith.subf %32, %35 : vector<64x64xf32>
    %37 = math.exp %36 : vector<64x64xf32>
    %cst_27 = arith.constant dense<0.000000e+00> : vector<64xf32>
    %38 = vector.multi_reduction <add>, %37, %cst_27 [1] : vector<64x64xf32> to vector<64xf32>
    %39 = vector.shape_cast %38 : vector<64xf32> to vector<64x1xf32>
    %40 = tpu.reciprocal %39 {approx = true} : vector<64x1xf32> -> vector<64x1xf32>
    %41 = vector.broadcast %40 : vector<64x1xf32> to vector<64x64xf32>
    %42 = arith.mulf %37, %41 : vector<64x64xf32>
    %cst_28 = arith.constant dense<0.000000e+00> : vector<64x32xf32>
    %43 = tpu.matmul %42, %28, %cst_28 {dimension_numbers = #tpu.dot_dimension_numbers<[1], [0], [0], [1], [0, 0, 1, 1], [], []>} : vector<64x64xf32>, vector<64x32xf32>, vector<64x32xf32> -> vector<64x32xf32>
    %c0_29 = arith.constant 0 : index
    %c32_30 = arith.constant 32 : index
    %44 = vector.load %arg9[%c0_29, %c32_30] : memref<256x128xf32, #tpu.memory_space<vmem>>, vector<64x32xf32>
    tpu.vector_store %arg9[%c0_29, %c32_30], %43 {strides = array<i32>} : memref<256x128xf32, #tpu.memory_space<vmem>>, vector<64x32xf32>,
    %c0_31 = arith.constant 0 : index
    %c64 = arith.constant 64 : index
    %45 = vector.load %arg8[%c0_31, %c64] : memref<256x384xf32, #tpu.memory_space<vmem>>, vector<64x32xf32>
    %c0_32 = arith.constant 0 : index
    %c192 = arith.constant 192 : index
    %46 = vector.load %arg8[%c0_32, %c192] : memref<256x384xf32, #tpu.memory_space<vmem>>, vector<64x32xf32>
    %c0_33 = arith.constant 0 : index
    %c320 = arith.constant 320 : index
    %47 = vector.load %arg8[%c0_33, %c320] : memref<256x384xf32, #tpu.memory_space<vmem>>, vector<64x32xf32>
    %cst_34 = arith.constant dense<0.000000e+00> : vector<64x64xf32>
    %48 = tpu.matmul %45, %46, %cst_34 {dimension_numbers = #tpu.dot_dimension_numbers<[1], [1], [0], [0], [0, 0, 1, 0], [], []>} : vector<64x32xf32>, vector<64x32xf32>, vector<64x64xf32> -> vector<64x64xf32>
    %c2 = arith.constant 2 : index
    %c0_35 = arith.constant 0 : index
    %c0_36 = arith.constant 0 : index
    %49 = vector.load %arg6[%c2, %c0_35, %c0_36] : memref<4x64x64xf32, #tpu.memory_space<vmem>>, vector<1x64x64xf32>
    %50 = vector.shape_cast %49 : vector<1x64x64xf32> to vector<64x64xf32>
    %51 = arith.addf %48, %50 : vector<64x64xf32>
    %cst_37 = arith.constant dense<0xFF800000> : vector<64xf32>
    %52 = vector.multi_reduction <maximumf>, %51, %cst_37 [1] : vector<64x64xf32> to vector<64xf32>
    %53 = vector.shape_cast %52 : vector<64xf32> to vector<64x1xf32>
    %54 = vector.broadcast %53 : vector<64x1xf32> to vector<64x64xf32>
    %55 = arith.subf %51, %54 : vector<64x64xf32>
    %56 = math.exp %55 : vector<64x64xf32>
    %cst_38 = arith.constant dense<0.000000e+00> : vector<64xf32>
    %57 = vector.multi_reduction <add>, %56, %cst_38 [1] : vector<64x64xf32> to vector<64xf32>
    %58 = vector.shape_cast %57 : vector<64xf32> to vector<64x1xf32>
    %59 = tpu.reciprocal %58 {approx = true} : vector<64x1xf32> -> vector<64x1xf32>
    %60 = vector.broadcast %59 : vector<64x1xf32> to vector<64x64xf32>
    %61 = arith.mulf %56, %60 : vector<64x64xf32>
    %cst_39 = arith.constant dense<0.000000e+00> : vector<64x32xf32>
    %62 = tpu.matmul %61, %47, %cst_39 {dimension_numbers = #tpu.dot_dimension_numbers<[1], [0], [0], [1], [0, 0, 1, 1], [], []>} : vector<64x64xf32>, vector<64x32xf32>, vector<64x32xf32> -> vector<64x32xf32>
    %c0_40 = arith.constant 0 : index
    %c64_41 = arith.constant 64 : index
    %63 = vector.load %arg9[%c0_40, %c64_41] : memref<256x128xf32, #tpu.memory_space<vmem>>, vector<64x32xf32>
    tpu.vector_store %arg9[%c0_40, %c64_41], %62 {strides = array<i32>} : memref<256x128xf32, #tpu.memory_space<vmem>>, vector<64x32xf32>,
    %c0_42 = arith.constant 0 : index
    %c96 = arith.constant 96 : index
    %64 = vector.load %arg8[%c0_42, %c96] : memref<256x384xf32, #tpu.memory_space<vmem>>, vector<64x32xf32>
    %c0_43 = arith.constant 0 : index
    %c224 = arith.constant 224 : index
    %65 = vector.load %arg8[%c0_43, %c224] : memref<256x384xf32, #tpu.memory_space<vmem>>, vector<64x32xf32>
    %c0_44 = arith.constant 0 : index
    %c352 = arith.constant 352 : index
    %66 = vector.load %arg8[%c0_44, %c352] : memref<256x384xf32, #tpu.memory_space<vmem>>, vector<64x32xf32>
    %cst_45 = arith.constant dense<0.000000e+00> : vector<64x64xf32>
    %67 = tpu.matmul %64, %65, %cst_45 {dimension_numbers = #tpu.dot_dimension_numbers<[1], [1], [0], [0], [0, 0, 1, 0], [], []>} : vector<64x32xf32>, vector<64x32xf32>, vector<64x64xf32> -> vector<64x64xf32>
    %c3 = arith.constant 3 : index
    %c0_46 = arith.constant 0 : index
    %c0_47 = arith.constant 0 : index
    %68 = vector.load %arg6[%c3, %c0_46, %c0_47] : memref<4x64x64xf32, #tpu.memory_space<vmem>>, vector<1x64x64xf32>
    %69 = vector.shape_cast %68 : vector<1x64x64xf32> to vector<64x64xf32>
    %70 = arith.addf %67, %69 : vector<64x64xf32>
    %cst_48 = arith.constant dense<0xFF800000> : vector<64xf32>
    %71 = vector.multi_reduction <maximumf>, %70, %cst_48 [1] : vector<64x64xf32> to vector<64xf32>
    %72 = vector.shape_cast %71 : vector<64xf32> to vector<64x1xf32>
    %73 = vector.broadcast %72 : vector<64x1xf32> to vector<64x64xf32>
    %74 = arith.subf %70, %73 : vector<64x64xf32>
    %75 = math.exp %74 : vector<64x64xf32>
    %cst_49 = arith.constant dense<0.000000e+00> : vector<64xf32>
    %76 = vector.multi_reduction <add>, %75, %cst_49 [1] : vector<64x64xf32> to vector<64xf32>
    %77 = vector.shape_cast %76 : vector<64xf32> to vector<64x1xf32>
    %78 = tpu.reciprocal %77 {approx = true} : vector<64x1xf32> -> vector<64x1xf32>
    %79 = vector.broadcast %78 : vector<64x1xf32> to vector<64x64xf32>
    %80 = arith.mulf %75, %79 : vector<64x64xf32>
    %cst_50 = arith.constant dense<0.000000e+00> : vector<64x32xf32>
    %81 = tpu.matmul %80, %66, %cst_50 {dimension_numbers = #tpu.dot_dimension_numbers<[1], [0], [0], [1], [0, 0, 1, 1], [], []>} : vector<64x64xf32>, vector<64x32xf32>, vector<64x32xf32> -> vector<64x32xf32>
    %c0_51 = arith.constant 0 : index
    %c96_52 = arith.constant 96 : index
    %82 = vector.load %arg9[%c0_51, %c96_52] : memref<256x128xf32, #tpu.memory_space<vmem>>, vector<64x32xf32>
    tpu.vector_store %arg9[%c0_51, %c96_52], %81 {strides = array<i32>} : memref<256x128xf32, #tpu.memory_space<vmem>>, vector<64x32xf32>,
    %c64_53 = arith.constant 64 : index
    %c0_54 = arith.constant 0 : index
    %83 = vector.load %arg8[%c64_53, %c0_54] : memref<256x384xf32, #tpu.memory_space<vmem>>, vector<64x32xf32>
    %c64_55 = arith.constant 64 : index
    %c128_56 = arith.constant 128 : index
    %84 = vector.load %arg8[%c64_55, %c128_56] : memref<256x384xf32, #tpu.memory_space<vmem>>, vector<64x32xf32>
    %c64_57 = arith.constant 64 : index
    %c256_58 = arith.constant 256 : index
    %85 = vector.load %arg8[%c64_57, %c256_58] : memref<256x384xf32, #tpu.memory_space<vmem>>, vector<64x32xf32>
    %cst_59 = arith.constant dense<0.000000e+00> : vector<64x64xf32>
    %86 = tpu.matmul %83, %84, %cst_59 {dimension_numbers = #tpu.dot_dimension_numbers<[1], [1], [0], [0], [0, 0, 1, 0], [], []>} : vector<64x32xf32>, vector<64x32xf32>, vector<64x64xf32> -> vector<64x64xf32>
    %c0_60 = arith.constant 0 : index
    %c0_61 = arith.constant 0 : index
    %c0_62 = arith.constant 0 : index
    %87 = vector.load %arg6[%c0_60, %c0_61, %c0_62] : memref<4x64x64xf32, #tpu.memory_space<vmem>>, vector<1x64x64xf32>
    %88 = vector.shape_cast %87 : vector<1x64x64xf32> to vector<64x64xf32>
    %89 = arith.addf %86, %88 : vector<64x64xf32>
    %cst_63 = arith.constant dense<0xFF800000> : vector<64xf32>
    %90 = vector.multi_reduction <maximumf>, %89, %cst_63 [1] : vector<64x64xf32> to vector<64xf32>
    %91 = vector.shape_cast %90 : vector<64xf32> to vector<64x1xf32>
    %92 = vector.broadcast %91 : vector<64x1xf32> to vector<64x64xf32>
    %93 = arith.subf %89, %92 : vector<64x64xf32>
    %94 = math.exp %93 : vector<64x64xf32>
    %cst_64 = arith.constant dense<0.000000e+00> : vector<64xf32>
    %95 = vector.multi_reduction <add>, %94, %cst_64 [1] : vector<64x64xf32> to vector<64xf32>
    %96 = vector.shape_cast %95 : vector<64xf32> to vector<64x1xf32>
    %97 = tpu.reciprocal %96 {approx = true} : vector<64x1xf32> -> vector<64x1xf32>
    %98 = vector.broadcast %97 : vector<64x1xf32> to vector<64x64xf32>
    %99 = arith.mulf %94, %98 : vector<64x64xf32>
    %cst_65 = arith.constant dense<0.000000e+00> : vector<64x32xf32>
    %100 = tpu.matmul %99, %85, %cst_65 {dimension_numbers = #tpu.dot_dimension_numbers<[1], [0], [0], [1], [0, 0, 1, 1], [], []>} : vector<64x64xf32>, vector<64x32xf32>, vector<64x32xf32> -> vector<64x32xf32>
    %c64_66 = arith.constant 64 : index
    %c0_67 = arith.constant 0 : index
    %101 = vector.load %arg9[%c64_66, %c0_67] : memref<256x128xf32, #tpu.memory_space<vmem>>, vector<64x32xf32>
    tpu.vector_store %arg9[%c64_66, %c0_67], %100 {strides = array<i32>} : memref<256x128xf32, #tpu.memory_space<vmem>>, vector<64x32xf32>,
    %c64_68 = arith.constant 64 : index
    %c32_69 = arith.constant 32 : index
    %102 = vector.load %arg8[%c64_68, %c32_69] : memref<256x384xf32, #tpu.memory_space<vmem>>, vector<64x32xf32>
    %c64_70 = arith.constant 64 : index
    %c160_71 = arith.constant 160 : index
    %103 = vector.load %arg8[%c64_70, %c160_71] : memref<256x384xf32, #tpu.memory_space<vmem>>, vector<64x32xf32>
    %c64_72 = arith.constant 64 : index
    %c288_73 = arith.constant 288 : index
    %104 = vector.load %arg8[%c64_72, %c288_73] : memref<256x384xf32, #tpu.memory_space<vmem>>, vector<64x32xf32>
    %cst_74 = arith.constant dense<0.000000e+00> : vector<64x64xf32>
    %105 = tpu.matmul %102, %103, %cst_74 {dimension_numbers = #tpu.dot_dimension_numbers<[1], [1], [0], [0], [0, 0, 1, 0], [], []>} : vector<64x32xf32>, vector<64x32xf32>, vector<64x64xf32> -> vector<64x64xf32>
    %c1_75 = arith.constant 1 : index
    %c0_76 = arith.constant 0 : index
    %c0_77 = arith.constant 0 : index
    %106 = vector.load %arg6[%c1_75, %c0_76, %c0_77] : memref<4x64x64xf32, #tpu.memory_space<vmem>>, vector<1x64x64xf32>
    %107 = vector.shape_cast %106 : vector<1x64x64xf32> to vector<64x64xf32>
    %108 = arith.addf %105, %107 : vector<64x64xf32>
    %cst_78 = arith.constant dense<0xFF800000> : vector<64xf32>
    %109 = vector.multi_reduction <maximumf>, %108, %cst_78 [1] : vector<64x64xf32> to vector<64xf32>
    %110 = vector.shape_cast %109 : vector<64xf32> to vector<64x1xf32>
    %111 = vector.broadcast %110 : vector<64x1xf32> to vector<64x64xf32>
    %112 = arith.subf %108, %111 : vector<64x64xf32>
    %113 = math.exp %112 : vector<64x64xf32>
    %cst_79 = arith.constant dense<0.000000e+00> : vector<64xf32>
    %114 = vector.multi_reduction <add>, %113, %cst_79 [1] : vector<64x64xf32> to vector<64xf32>
    %115 = vector.shape_cast %114 : vector<64xf32> to vector<64x1xf32>
    %116 = tpu.reciprocal %115 {approx = true} : vector<64x1xf32> -> vector<64x1xf32>
    %117 = vector.broadcast %116 : vector<64x1xf32> to vector<64x64xf32>
    %118 = arith.mulf %113, %117 : vector<64x64xf32>
    %cst_80 = arith.constant dense<0.000000e+00> : vector<64x32xf32>
    %119 = tpu.matmul %118, %104, %cst_80 {dimension_numbers = #tpu.dot_dimension_numbers<[1], [0], [0], [1], [0, 0, 1, 1], [], []>} : vector<64x64xf32>, vector<64x32xf32>, vector<64x32xf32> -> vector<64x32xf32>
    %c64_81 = arith.constant 64 : index
    %c32_82 = arith.constant 32 : index
    %120 = vector.load %arg9[%c64_81, %c32_82] : memref<256x128xf32, #tpu.memory_space<vmem>>, vector<64x32xf32>
    tpu.vector_store %arg9[%c64_81, %c32_82], %119 {strides = array<i32>} : memref<256x128xf32, #tpu.memory_space<vmem>>, vector<64x32xf32>,
    %c64_83 = arith.constant 64 : index
    %c64_84 = arith.constant 64 : index
    %121 = vector.load %arg8[%c64_83, %c64_84] : memref<256x384xf32, #tpu.memory_space<vmem>>, vector<64x32xf32>
    %c64_85 = arith.constant 64 : index
    %c192_86 = arith.constant 192 : index
    %122 = vector.load %arg8[%c64_85, %c192_86] : memref<256x384xf32, #tpu.memory_space<vmem>>, vector<64x32xf32>
    %c64_87 = arith.constant 64 : index
    %c320_88 = arith.constant 320 : index
    %123 = vector.load %arg8[%c64_87, %c320_88] : memref<256x384xf32, #tpu.memory_space<vmem>>, vector<64x32xf32>
    %cst_89 = arith.constant dense<0.000000e+00> : vector<64x64xf32>
    %124 = tpu.matmul %121, %122, %cst_89 {dimension_numbers = #tpu.dot_dimension_numbers<[1], [1], [0], [0], [0, 0, 1, 0], [], []>} : vector<64x32xf32>, vector<64x32xf32>, vector<64x64xf32> -> vector<64x64xf32>
    %c2_90 = arith.constant 2 : index
    %c0_91 = arith.constant 0 : index
    %c0_92 = arith.constant 0 : index
    %125 = vector.load %arg6[%c2_90, %c0_91, %c0_92] : memref<4x64x64xf32, #tpu.memory_space<vmem>>, vector<1x64x64xf32>
    %126 = vector.shape_cast %125 : vector<1x64x64xf32> to vector<64x64xf32>
    %127 = arith.addf %124, %126 : vector<64x64xf32>
    %cst_93 = arith.constant dense<0xFF800000> : vector<64xf32>
    %128 = vector.multi_reduction <maximumf>, %127, %cst_93 [1] : vector<64x64xf32> to vector<64xf32>
    %129 = vector.shape_cast %128 : vector<64xf32> to vector<64x1xf32>
    %130 = vector.broadcast %129 : vector<64x1xf32> to vector<64x64xf32>
    %131 = arith.subf %127, %130 : vector<64x64xf32>
    %132 = math.exp %131 : vector<64x64xf32>
    %cst_94 = arith.constant dense<0.000000e+00> : vector<64xf32>
    %133 = vector.multi_reduction <add>, %132, %cst_94 [1] : vector<64x64xf32> to vector<64xf32>
    %134 = vector.shape_cast %133 : vector<64xf32> to vector<64x1xf32>
    %135 = tpu.reciprocal %134 {approx = true} : vector<64x1xf32> -> vector<64x1xf32>
    %136 = vector.broadcast %135 : vector<64x1xf32> to vector<64x64xf32>
    %137 = arith.mulf %132, %136 : vector<64x64xf32>
    %cst_95 = arith.constant dense<0.000000e+00> : vector<64x32xf32>
    %138 = tpu.matmul %137, %123, %cst_95 {dimension_numbers = #tpu.dot_dimension_numbers<[1], [0], [0], [1], [0, 0, 1, 1], [], []>} : vector<64x64xf32>, vector<64x32xf32>, vector<64x32xf32> -> vector<64x32xf32>
    %c64_96 = arith.constant 64 : index
    %c64_97 = arith.constant 64 : index
    %139 = vector.load %arg9[%c64_96, %c64_97] : memref<256x128xf32, #tpu.memory_space<vmem>>, vector<64x32xf32>
    tpu.vector_store %arg9[%c64_96, %c64_97], %138 {strides = array<i32>} : memref<256x128xf32, #tpu.memory_space<vmem>>, vector<64x32xf32>,
    %c64_98 = arith.constant 64 : index
    %c96_99 = arith.constant 96 : index
    %140 = vector.load %arg8[%c64_98, %c96_99] : memref<256x384xf32, #tpu.memory_space<vmem>>, vector<64x32xf32>
    %c64_100 = arith.constant 64 : index
    %c224_101 = arith.constant 224 : index
    %141 = vector.load %arg8[%c64_100, %c224_101] : memref<256x384xf32, #tpu.memory_space<vmem>>, vector<64x32xf32>
    %c64_102 = arith.constant 64 : index
    %c352_103 = arith.constant 352 : index
    %142 = vector.load %arg8[%c64_102, %c352_103] : memref<256x384xf32, #tpu.memory_space<vmem>>, vector<64x32xf32>
    %cst_104 = arith.constant dense<0.000000e+00> : vector<64x64xf32>
    %143 = tpu.matmul %140, %141, %cst_104 {dimension_numbers = #tpu.dot_dimension_numbers<[1], [1], [0], [0], [0, 0, 1, 0], [], []>} : vector<64x32xf32>, vector<64x32xf32>, vector<64x64xf32> -> vector<64x64xf32>
    %c3_105 = arith.constant 3 : index
    %c0_106 = arith.constant 0 : index
    %c0_107 = arith.constant 0 : index
    %144 = vector.load %arg6[%c3_105, %c0_106, %c0_107] : memref<4x64x64xf32, #tpu.memory_space<vmem>>, vector<1x64x64xf32>
    %145 = vector.shape_cast %144 : vector<1x64x64xf32> to vector<64x64xf32>
    %146 = arith.addf %143, %145 : vector<64x64xf32>
    %cst_108 = arith.constant dense<0xFF800000> : vector<64xf32>
    %147 = vector.multi_reduction <maximumf>, %146, %cst_108 [1] : vector<64x64xf32> to vector<64xf32>
    %148 = vector.shape_cast %147 : vector<64xf32> to vector<64x1xf32>
    %149 = vector.broadcast %148 : vector<64x1xf32> to vector<64x64xf32>
    %150 = arith.subf %146, %149 : vector<64x64xf32>
    %151 = math.exp %150 : vector<64x64xf32>
    %cst_109 = arith.constant dense<0.000000e+00> : vector<64xf32>
    %152 = vector.multi_reduction <add>, %151, %cst_109 [1] : vector<64x64xf32> to vector<64xf32>
    %153 = vector.shape_cast %152 : vector<64xf32> to vector<64x1xf32>
    %154 = tpu.reciprocal %153 {approx = true} : vector<64x1xf32> -> vector<64x1xf32>
    %155 = vector.broadcast %154 : vector<64x1xf32> to vector<64x64xf32>
    %156 = arith.mulf %151, %155 : vector<64x64xf32>
    %cst_110 = arith.constant dense<0.000000e+00> : vector<64x32xf32>
    %157 = tpu.matmul %156, %142, %cst_110 {dimension_numbers = #tpu.dot_dimension_numbers<[1], [0], [0], [1], [0, 0, 1, 1], [], []>} : vector<64x64xf32>, vector<64x32xf32>, vector<64x32xf32> -> vector<64x32xf32>
    %c64_111 = arith.constant 64 : index
    %c96_112 = arith.constant 96 : index
    %158 = vector.load %arg9[%c64_111, %c96_112] : memref<256x128xf32, #tpu.memory_space<vmem>>, vector<64x32xf32>
    tpu.vector_store %arg9[%c64_111, %c96_112], %157 {strides = array<i32>} : memref<256x128xf32, #tpu.memory_space<vmem>>, vector<64x32xf32>,
    %c128_113 = arith.constant 128 : index
    %c0_114 = arith.constant 0 : index
    %159 = vector.load %arg8[%c128_113, %c0_114] : memref<256x384xf32, #tpu.memory_space<vmem>>, vector<64x32xf32>
    %c128_115 = arith.constant 128 : index
    %c128_116 = arith.constant 128 : index
    %160 = vector.load %arg8[%c128_115, %c128_116] : memref<256x384xf32, #tpu.memory_space<vmem>>, vector<64x32xf32>
    %c128_117 = arith.constant 128 : index
    %c256_118 = arith.constant 256 : index
    %161 = vector.load %arg8[%c128_117, %c256_118] : memref<256x384xf32, #tpu.memory_space<vmem>>, vector<64x32xf32>
    %cst_119 = arith.constant dense<0.000000e+00> : vector<64x64xf32>
    %162 = tpu.matmul %159, %160, %cst_119 {dimension_numbers = #tpu.dot_dimension_numbers<[1], [1], [0], [0], [0, 0, 1, 0], [], []>} : vector<64x32xf32>, vector<64x32xf32>, vector<64x64xf32> -> vector<64x64xf32>
    %c0_120 = arith.constant 0 : index
    %c0_121 = arith.constant 0 : index
    %c0_122 = arith.constant 0 : index
    %163 = vector.load %arg6[%c0_120, %c0_121, %c0_122] : memref<4x64x64xf32, #tpu.memory_space<vmem>>, vector<1x64x64xf32>
    %164 = vector.shape_cast %163 : vector<1x64x64xf32> to vector<64x64xf32>
    %165 = arith.addf %162, %164 : vector<64x64xf32>
    %cst_123 = arith.constant dense<0xFF800000> : vector<64xf32>
    %166 = vector.multi_reduction <maximumf>, %165, %cst_123 [1] : vector<64x64xf32> to vector<64xf32>
    %167 = vector.shape_cast %166 : vector<64xf32> to vector<64x1xf32>
    %168 = vector.broadcast %167 : vector<64x1xf32> to vector<64x64xf32>
    %169 = arith.subf %165, %168 : vector<64x64xf32>
    %170 = math.exp %169 : vector<64x64xf32>
    %cst_124 = arith.constant dense<0.000000e+00> : vector<64xf32>
    %171 = vector.multi_reduction <add>, %170, %cst_124 [1] : vector<64x64xf32> to vector<64xf32>
    %172 = vector.shape_cast %171 : vector<64xf32> to vector<64x1xf32>
    %173 = tpu.reciprocal %172 {approx = true} : vector<64x1xf32> -> vector<64x1xf32>
    %174 = vector.broadcast %173 : vector<64x1xf32> to vector<64x64xf32>
    %175 = arith.mulf %170, %174 : vector<64x64xf32>
    %cst_125 = arith.constant dense<0.000000e+00> : vector<64x32xf32>
    %176 = tpu.matmul %175, %161, %cst_125 {dimension_numbers = #tpu.dot_dimension_numbers<[1], [0], [0], [1], [0, 0, 1, 1], [], []>} : vector<64x64xf32>, vector<64x32xf32>, vector<64x32xf32> -> vector<64x32xf32>
    %c128_126 = arith.constant 128 : index
    %c0_127 = arith.constant 0 : index
    %177 = vector.load %arg9[%c128_126, %c0_127] : memref<256x128xf32, #tpu.memory_space<vmem>>, vector<64x32xf32>
    tpu.vector_store %arg9[%c128_126, %c0_127], %176 {strides = array<i32>} : memref<256x128xf32, #tpu.memory_space<vmem>>, vector<64x32xf32>,
    %c128_128 = arith.constant 128 : index
    %c32_129 = arith.constant 32 : index
    %178 = vector.load %arg8[%c128_128, %c32_129] : memref<256x384xf32, #tpu.memory_space<vmem>>, vector<64x32xf32>
    %c128_130 = arith.constant 128 : index
    %c160_131 = arith.constant 160 : index
    %179 = vector.load %arg8[%c128_130, %c160_131] : memref<256x384xf32, #tpu.memory_space<vmem>>, vector<64x32xf32>
    %c128_132 = arith.constant 128 : index
    %c288_133 = arith.constant 288 : index
    %180 = vector.load %arg8[%c128_132, %c288_133] : memref<256x384xf32, #tpu.memory_space<vmem>>, vector<64x32xf32>
    %cst_134 = arith.constant dense<0.000000e+00> : vector<64x64xf32>
    %181 = tpu.matmul %178, %179, %cst_134 {dimension_numbers = #tpu.dot_dimension_numbers<[1], [1], [0], [0], [0, 0, 1, 0], [], []>} : vector<64x32xf32>, vector<64x32xf32>, vector<64x64xf32> -> vector<64x64xf32>
    %c1_135 = arith.constant 1 : index
    %c0_136 = arith.constant 0 : index
    %c0_137 = arith.constant 0 : index
    %182 = vector.load %arg6[%c1_135, %c0_136, %c0_137] : memref<4x64x64xf32, #tpu.memory_space<vmem>>, vector<1x64x64xf32>
    %183 = vector.shape_cast %182 : vector<1x64x64xf32> to vector<64x64xf32>
    %184 = arith.addf %181, %183 : vector<64x64xf32>
    %cst_138 = arith.constant dense<0xFF800000> : vector<64xf32>
    %185 = vector.multi_reduction <maximumf>, %184, %cst_138 [1] : vector<64x64xf32> to vector<64xf32>
    %186 = vector.shape_cast %185 : vector<64xf32> to vector<64x1xf32>
    %187 = vector.broadcast %186 : vector<64x1xf32> to vector<64x64xf32>
    %188 = arith.subf %184, %187 : vector<64x64xf32>
    %189 = math.exp %188 : vector<64x64xf32>
    %cst_139 = arith.constant dense<0.000000e+00> : vector<64xf32>
    %190 = vector.multi_reduction <add>, %189, %cst_139 [1] : vector<64x64xf32> to vector<64xf32>
    %191 = vector.shape_cast %190 : vector<64xf32> to vector<64x1xf32>
    %192 = tpu.reciprocal %191 {approx = true} : vector<64x1xf32> -> vector<64x1xf32>
    %193 = vector.broadcast %192 : vector<64x1xf32> to vector<64x64xf32>
    %194 = arith.mulf %189, %193 : vector<64x64xf32>
    %cst_140 = arith.constant dense<0.000000e+00> : vector<64x32xf32>
    %195 = tpu.matmul %194, %180, %cst_140 {dimension_numbers = #tpu.dot_dimension_numbers<[1], [0], [0], [1], [0, 0, 1, 1], [], []>} : vector<64x64xf32>, vector<64x32xf32>, vector<64x32xf32> -> vector<64x32xf32>
    %c128_141 = arith.constant 128 : index
    %c32_142 = arith.constant 32 : index
    %196 = vector.load %arg9[%c128_141, %c32_142] : memref<256x128xf32, #tpu.memory_space<vmem>>, vector<64x32xf32>
    tpu.vector_store %arg9[%c128_141, %c32_142], %195 {strides = array<i32>} : memref<256x128xf32, #tpu.memory_space<vmem>>, vector<64x32xf32>,
    %c128_143 = arith.constant 128 : index
    %c64_144 = arith.constant 64 : index
    %197 = vector.load %arg8[%c128_143, %c64_144] : memref<256x384xf32, #tpu.memory_space<vmem>>, vector<64x32xf32>
    %c128_145 = arith.constant 128 : index
    %c192_146 = arith.constant 192 : index
    %198 = vector.load %arg8[%c128_145, %c192_146] : memref<256x384xf32, #tpu.memory_space<vmem>>, vector<64x32xf32>
    %c128_147 = arith.constant 128 : index
    %c320_148 = arith.constant 320 : index
    %199 = vector.load %arg8[%c128_147, %c320_148] : memref<256x384xf32, #tpu.memory_space<vmem>>, vector<64x32xf32>
    %cst_149 = arith.constant dense<0.000000e+00> : vector<64x64xf32>
    %200 = tpu.matmul %197, %198, %cst_149 {dimension_numbers = #tpu.dot_dimension_numbers<[1], [1], [0], [0], [0, 0, 1, 0], [], []>} : vector<64x32xf32>, vector<64x32xf32>, vector<64x64xf32> -> vector<64x64xf32>
    %c2_150 = arith.constant 2 : index
    %c0_151 = arith.constant 0 : index
    %c0_152 = arith.constant 0 : index
    %201 = vector.load %arg6[%c2_150, %c0_151, %c0_152] : memref<4x64x64xf32, #tpu.memory_space<vmem>>, vector<1x64x64xf32>
    %202 = vector.shape_cast %201 : vector<1x64x64xf32> to vector<64x64xf32>
    %203 = arith.addf %200, %202 : vector<64x64xf32>
    %cst_153 = arith.constant dense<0xFF800000> : vector<64xf32>
    %204 = vector.multi_reduction <maximumf>, %203, %cst_153 [1] : vector<64x64xf32> to vector<64xf32>
    %205 = vector.shape_cast %204 : vector<64xf32> to vector<64x1xf32>
    %206 = vector.broadcast %205 : vector<64x1xf32> to vector<64x64xf32>
    %207 = arith.subf %203, %206 : vector<64x64xf32>
    %208 = math.exp %207 : vector<64x64xf32>
    %cst_154 = arith.constant dense<0.000000e+00> : vector<64xf32>
    %209 = vector.multi_reduction <add>, %208, %cst_154 [1] : vector<64x64xf32> to vector<64xf32>
    %210 = vector.shape_cast %209 : vector<64xf32> to vector<64x1xf32>
    %211 = tpu.reciprocal %210 {approx = true} : vector<64x1xf32> -> vector<64x1xf32>
    %212 = vector.broadcast %211 : vector<64x1xf32> to vector<64x64xf32>
    %213 = arith.mulf %208, %212 : vector<64x64xf32>
    %cst_155 = arith.constant dense<0.000000e+00> : vector<64x32xf32>
    %214 = tpu.matmul %213, %199, %cst_155 {dimension_numbers = #tpu.dot_dimension_numbers<[1], [0], [0], [1], [0, 0, 1, 1], [], []>} : vector<64x64xf32>, vector<64x32xf32>, vector<64x32xf32> -> vector<64x32xf32>
    %c128_156 = arith.constant 128 : index
    %c64_157 = arith.constant 64 : index
    %215 = vector.load %arg9[%c128_156, %c64_157] : memref<256x128xf32, #tpu.memory_space<vmem>>, vector<64x32xf32>
    tpu.vector_store %arg9[%c128_156, %c64_157], %214 {strides = array<i32>} : memref<256x128xf32, #tpu.memory_space<vmem>>, vector<64x32xf32>,
    %c128_158 = arith.constant 128 : index
    %c96_159 = arith.constant 96 : index
    %216 = vector.load %arg8[%c128_158, %c96_159] : memref<256x384xf32, #tpu.memory_space<vmem>>, vector<64x32xf32>
    %c128_160 = arith.constant 128 : index
    %c224_161 = arith.constant 224 : index
    %217 = vector.load %arg8[%c128_160, %c224_161] : memref<256x384xf32, #tpu.memory_space<vmem>>, vector<64x32xf32>
    %c128_162 = arith.constant 128 : index
    %c352_163 = arith.constant 352 : index
    %218 = vector.load %arg8[%c128_162, %c352_163] : memref<256x384xf32, #tpu.memory_space<vmem>>, vector<64x32xf32>
    %cst_164 = arith.constant dense<0.000000e+00> : vector<64x64xf32>
    %219 = tpu.matmul %216, %217, %cst_164 {dimension_numbers = #tpu.dot_dimension_numbers<[1], [1], [0], [0], [0, 0, 1, 0], [], []>} : vector<64x32xf32>, vector<64x32xf32>, vector<64x64xf32> -> vector<64x64xf32>
    %c3_165 = arith.constant 3 : index
    %c0_166 = arith.constant 0 : index
    %c0_167 = arith.constant 0 : index
    %220 = vector.load %arg6[%c3_165, %c0_166, %c0_167] : memref<4x64x64xf32, #tpu.memory_space<vmem>>, vector<1x64x64xf32>
    %221 = vector.shape_cast %220 : vector<1x64x64xf32> to vector<64x64xf32>
    %222 = arith.addf %219, %221 : vector<64x64xf32>
    %cst_168 = arith.constant dense<0xFF800000> : vector<64xf32>
    %223 = vector.multi_reduction <maximumf>, %222, %cst_168 [1] : vector<64x64xf32> to vector<64xf32>
    %224 = vector.shape_cast %223 : vector<64xf32> to vector<64x1xf32>
    %225 = vector.broadcast %224 : vector<64x1xf32> to vector<64x64xf32>
    %226 = arith.subf %222, %225 : vector<64x64xf32>
    %227 = math.exp %226 : vector<64x64xf32>
    %cst_169 = arith.constant dense<0.000000e+00> : vector<64xf32>
    %228 = vector.multi_reduction <add>, %227, %cst_169 [1] : vector<64x64xf32> to vector<64xf32>
    %229 = vector.shape_cast %228 : vector<64xf32> to vector<64x1xf32>
    %230 = tpu.reciprocal %229 {approx = true} : vector<64x1xf32> -> vector<64x1xf32>
    %231 = vector.broadcast %230 : vector<64x1xf32> to vector<64x64xf32>
    %232 = arith.mulf %227, %231 : vector<64x64xf32>
    %cst_170 = arith.constant dense<0.000000e+00> : vector<64x32xf32>
    %233 = tpu.matmul %232, %218, %cst_170 {dimension_numbers = #tpu.dot_dimension_numbers<[1], [0], [0], [1], [0, 0, 1, 1], [], []>} : vector<64x64xf32>, vector<64x32xf32>, vector<64x32xf32> -> vector<64x32xf32>
    %c128_171 = arith.constant 128 : index
    %c96_172 = arith.constant 96 : index
    %234 = vector.load %arg9[%c128_171, %c96_172] : memref<256x128xf32, #tpu.memory_space<vmem>>, vector<64x32xf32>
    tpu.vector_store %arg9[%c128_171, %c96_172], %233 {strides = array<i32>} : memref<256x128xf32, #tpu.memory_space<vmem>>, vector<64x32xf32>,
    %c192_173 = arith.constant 192 : index
    %c0_174 = arith.constant 0 : index
    %235 = vector.load %arg8[%c192_173, %c0_174] : memref<256x384xf32, #tpu.memory_space<vmem>>, vector<64x32xf32>
    %c192_175 = arith.constant 192 : index
    %c128_176 = arith.constant 128 : index
    %236 = vector.load %arg8[%c192_175, %c128_176] : memref<256x384xf32, #tpu.memory_space<vmem>>, vector<64x32xf32>
    %c192_177 = arith.constant 192 : index
    %c256_178 = arith.constant 256 : index
    %237 = vector.load %arg8[%c192_177, %c256_178] : memref<256x384xf32, #tpu.memory_space<vmem>>, vector<64x32xf32>
    %cst_179 = arith.constant dense<0.000000e+00> : vector<64x64xf32>
    %238 = tpu.matmul %235, %236, %cst_179 {dimension_numbers = #tpu.dot_dimension_numbers<[1], [1], [0], [0], [0, 0, 1, 0], [], []>} : vector<64x32xf32>, vector<64x32xf32>, vector<64x64xf32> -> vector<64x64xf32>
    %c0_180 = arith.constant 0 : index
    %c0_181 = arith.constant 0 : index
    %c0_182 = arith.constant 0 : index
    %239 = vector.load %arg6[%c0_180, %c0_181, %c0_182] : memref<4x64x64xf32, #tpu.memory_space<vmem>>, vector<1x64x64xf32>
    %240 = vector.shape_cast %239 : vector<1x64x64xf32> to vector<64x64xf32>
    %241 = arith.addf %238, %240 : vector<64x64xf32>
    %cst_183 = arith.constant dense<0xFF800000> : vector<64xf32>
    %242 = vector.multi_reduction <maximumf>, %241, %cst_183 [1] : vector<64x64xf32> to vector<64xf32>
    %243 = vector.shape_cast %242 : vector<64xf32> to vector<64x1xf32>
    %244 = vector.broadcast %243 : vector<64x1xf32> to vector<64x64xf32>
    %245 = arith.subf %241, %244 : vector<64x64xf32>
    %246 = math.exp %245 : vector<64x64xf32>
    %cst_184 = arith.constant dense<0.000000e+00> : vector<64xf32>
    %247 = vector.multi_reduction <add>, %246, %cst_184 [1] : vector<64x64xf32> to vector<64xf32>
    %248 = vector.shape_cast %247 : vector<64xf32> to vector<64x1xf32>
    %249 = tpu.reciprocal %248 {approx = true} : vector<64x1xf32> -> vector<64x1xf32>
    %250 = vector.broadcast %249 : vector<64x1xf32> to vector<64x64xf32>
    %251 = arith.mulf %246, %250 : vector<64x64xf32>
    %cst_185 = arith.constant dense<0.000000e+00> : vector<64x32xf32>
    %252 = tpu.matmul %251, %237, %cst_185 {dimension_numbers = #tpu.dot_dimension_numbers<[1], [0], [0], [1], [0, 0, 1, 1], [], []>} : vector<64x64xf32>, vector<64x32xf32>, vector<64x32xf32> -> vector<64x32xf32>
    %c192_186 = arith.constant 192 : index
    %c0_187 = arith.constant 0 : index
    %253 = vector.load %arg9[%c192_186, %c0_187] : memref<256x128xf32, #tpu.memory_space<vmem>>, vector<64x32xf32>
    tpu.vector_store %arg9[%c192_186, %c0_187], %252 {strides = array<i32>} : memref<256x128xf32, #tpu.memory_space<vmem>>, vector<64x32xf32>,
    %c192_188 = arith.constant 192 : index
    %c32_189 = arith.constant 32 : index
    %254 = vector.load %arg8[%c192_188, %c32_189] : memref<256x384xf32, #tpu.memory_space<vmem>>, vector<64x32xf32>
    %c192_190 = arith.constant 192 : index
    %c160_191 = arith.constant 160 : index
    %255 = vector.load %arg8[%c192_190, %c160_191] : memref<256x384xf32, #tpu.memory_space<vmem>>, vector<64x32xf32>
    %c192_192 = arith.constant 192 : index
    %c288_193 = arith.constant 288 : index
    %256 = vector.load %arg8[%c192_192, %c288_193] : memref<256x384xf32, #tpu.memory_space<vmem>>, vector<64x32xf32>
    %cst_194 = arith.constant dense<0.000000e+00> : vector<64x64xf32>
    %257 = tpu.matmul %254, %255, %cst_194 {dimension_numbers = #tpu.dot_dimension_numbers<[1], [1], [0], [0], [0, 0, 1, 0], [], []>} : vector<64x32xf32>, vector<64x32xf32>, vector<64x64xf32> -> vector<64x64xf32>
    %c1_195 = arith.constant 1 : index
    %c0_196 = arith.constant 0 : index
    %c0_197 = arith.constant 0 : index
    %258 = vector.load %arg6[%c1_195, %c0_196, %c0_197] : memref<4x64x64xf32, #tpu.memory_space<vmem>>, vector<1x64x64xf32>
    %259 = vector.shape_cast %258 : vector<1x64x64xf32> to vector<64x64xf32>
    %260 = arith.addf %257, %259 : vector<64x64xf32>
    %cst_198 = arith.constant dense<0xFF800000> : vector<64xf32>
    %261 = vector.multi_reduction <maximumf>, %260, %cst_198 [1] : vector<64x64xf32> to vector<64xf32>
    %262 = vector.shape_cast %261 : vector<64xf32> to vector<64x1xf32>
    %263 = vector.broadcast %262 : vector<64x1xf32> to vector<64x64xf32>
    %264 = arith.subf %260, %263 : vector<64x64xf32>
    %265 = math.exp %264 : vector<64x64xf32>
    %cst_199 = arith.constant dense<0.000000e+00> : vector<64xf32>
    %266 = vector.multi_reduction <add>, %265, %cst_199 [1] : vector<64x64xf32> to vector<64xf32>
    %267 = vector.shape_cast %266 : vector<64xf32> to vector<64x1xf32>
    %268 = tpu.reciprocal %267 {approx = true} : vector<64x1xf32> -> vector<64x1xf32>
    %269 = vector.broadcast %268 : vector<64x1xf32> to vector<64x64xf32>
    %270 = arith.mulf %265, %269 : vector<64x64xf32>
    %cst_200 = arith.constant dense<0.000000e+00> : vector<64x32xf32>
    %271 = tpu.matmul %270, %256, %cst_200 {dimension_numbers = #tpu.dot_dimension_numbers<[1], [0], [0], [1], [0, 0, 1, 1], [], []>} : vector<64x64xf32>, vector<64x32xf32>, vector<64x32xf32> -> vector<64x32xf32>
    %c192_201 = arith.constant 192 : index
    %c32_202 = arith.constant 32 : index
    %272 = vector.load %arg9[%c192_201, %c32_202] : memref<256x128xf32, #tpu.memory_space<vmem>>, vector<64x32xf32>
    tpu.vector_store %arg9[%c192_201, %c32_202], %271 {strides = array<i32>} : memref<256x128xf32, #tpu.memory_space<vmem>>, vector<64x32xf32>,
    %c192_203 = arith.constant 192 : index
    %c64_204 = arith.constant 64 : index
    %273 = vector.load %arg8[%c192_203, %c64_204] : memref<256x384xf32, #tpu.memory_space<vmem>>, vector<64x32xf32>
    %c192_205 = arith.constant 192 : index
    %c192_206 = arith.constant 192 : index
    %274 = vector.load %arg8[%c192_205, %c192_206] : memref<256x384xf32, #tpu.memory_space<vmem>>, vector<64x32xf32>
    %c192_207 = arith.constant 192 : index
    %c320_208 = arith.constant 320 : index
    %275 = vector.load %arg8[%c192_207, %c320_208] : memref<256x384xf32, #tpu.memory_space<vmem>>, vector<64x32xf32>
    %cst_209 = arith.constant dense<0.000000e+00> : vector<64x64xf32>
    %276 = tpu.matmul %273, %274, %cst_209 {dimension_numbers = #tpu.dot_dimension_numbers<[1], [1], [0], [0], [0, 0, 1, 0], [], []>} : vector<64x32xf32>, vector<64x32xf32>, vector<64x64xf32> -> vector<64x64xf32>
    %c2_210 = arith.constant 2 : index
    %c0_211 = arith.constant 0 : index
    %c0_212 = arith.constant 0 : index
    %277 = vector.load %arg6[%c2_210, %c0_211, %c0_212] : memref<4x64x64xf32, #tpu.memory_space<vmem>>, vector<1x64x64xf32>
    %278 = vector.shape_cast %277 : vector<1x64x64xf32> to vector<64x64xf32>
    %279 = arith.addf %276, %278 : vector<64x64xf32>
    %cst_213 = arith.constant dense<0xFF800000> : vector<64xf32>
    %280 = vector.multi_reduction <maximumf>, %279, %cst_213 [1] : vector<64x64xf32> to vector<64xf32>
    %281 = vector.shape_cast %280 : vector<64xf32> to vector<64x1xf32>
    %282 = vector.broadcast %281 : vector<64x1xf32> to vector<64x64xf32>
    %283 = arith.subf %279, %282 : vector<64x64xf32>
    %284 = math.exp %283 : vector<64x64xf32>
    %cst_214 = arith.constant dense<0.000000e+00> : vector<64xf32>
    %285 = vector.multi_reduction <add>, %284, %cst_214 [1] : vector<64x64xf32> to vector<64xf32>
    %286 = vector.shape_cast %285 : vector<64xf32> to vector<64x1xf32>
    %287 = tpu.reciprocal %286 {approx = true} : vector<64x1xf32> -> vector<64x1xf32>
    %288 = vector.broadcast %287 : vector<64x1xf32> to vector<64x64xf32>
    %289 = arith.mulf %284, %288 : vector<64x64xf32>
    %cst_215 = arith.constant dense<0.000000e+00> : vector<64x32xf32>
    %290 = tpu.matmul %289, %275, %cst_215 {dimension_numbers = #tpu.dot_dimension_numbers<[1], [0], [0], [1], [0, 0, 1, 1], [], []>} : vector<64x64xf32>, vector<64x32xf32>, vector<64x32xf32> -> vector<64x32xf32>
    %c192_216 = arith.constant 192 : index
    %c64_217 = arith.constant 64 : index
    %291 = vector.load %arg9[%c192_216, %c64_217] : memref<256x128xf32, #tpu.memory_space<vmem>>, vector<64x32xf32>
    tpu.vector_store %arg9[%c192_216, %c64_217], %290 {strides = array<i32>} : memref<256x128xf32, #tpu.memory_space<vmem>>, vector<64x32xf32>,
    %c192_218 = arith.constant 192 : index
    %c96_219 = arith.constant 96 : index
    %292 = vector.load %arg8[%c192_218, %c96_219] : memref<256x384xf32, #tpu.memory_space<vmem>>, vector<64x32xf32>
    %c192_220 = arith.constant 192 : index
    %c224_221 = arith.constant 224 : index
    %293 = vector.load %arg8[%c192_220, %c224_221] : memref<256x384xf32, #tpu.memory_space<vmem>>, vector<64x32xf32>
    %c192_222 = arith.constant 192 : index
    %c352_223 = arith.constant 352 : index
    %294 = vector.load %arg8[%c192_222, %c352_223] : memref<256x384xf32, #tpu.memory_space<vmem>>, vector<64x32xf32>
    %cst_224 = arith.constant dense<0.000000e+00> : vector<64x64xf32>
    %295 = tpu.matmul %292, %293, %cst_224 {dimension_numbers = #tpu.dot_dimension_numbers<[1], [1], [0], [0], [0, 0, 1, 0], [], []>} : vector<64x32xf32>, vector<64x32xf32>, vector<64x64xf32> -> vector<64x64xf32>
    %c3_225 = arith.constant 3 : index
    %c0_226 = arith.constant 0 : index
    %c0_227 = arith.constant 0 : index
    %296 = vector.load %arg6[%c3_225, %c0_226, %c0_227] : memref<4x64x64xf32, #tpu.memory_space<vmem>>, vector<1x64x64xf32>
    %297 = vector.shape_cast %296 : vector<1x64x64xf32> to vector<64x64xf32>
    %298 = arith.addf %295, %297 : vector<64x64xf32>
    %cst_228 = arith.constant dense<0xFF800000> : vector<64xf32>
    %299 = vector.multi_reduction <maximumf>, %298, %cst_228 [1] : vector<64x64xf32> to vector<64xf32>
    %300 = vector.shape_cast %299 : vector<64xf32> to vector<64x1xf32>
    %301 = vector.broadcast %300 : vector<64x1xf32> to vector<64x64xf32>
    %302 = arith.subf %298, %301 : vector<64x64xf32>
    %303 = math.exp %302 : vector<64x64xf32>
    %cst_229 = arith.constant dense<0.000000e+00> : vector<64xf32>
    %304 = vector.multi_reduction <add>, %303, %cst_229 [1] : vector<64x64xf32> to vector<64xf32>
    %305 = vector.shape_cast %304 : vector<64xf32> to vector<64x1xf32>
    %306 = tpu.reciprocal %305 {approx = true} : vector<64x1xf32> -> vector<64x1xf32>
    %307 = vector.broadcast %306 : vector<64x1xf32> to vector<64x64xf32>
    %308 = arith.mulf %303, %307 : vector<64x64xf32>
    %cst_230 = arith.constant dense<0.000000e+00> : vector<64x32xf32>
    %309 = tpu.matmul %308, %294, %cst_230 {dimension_numbers = #tpu.dot_dimension_numbers<[1], [0], [0], [1], [0, 0, 1, 1], [], []>} : vector<64x64xf32>, vector<64x32xf32>, vector<64x32xf32> -> vector<64x32xf32>
    %c192_231 = arith.constant 192 : index
    %c96_232 = arith.constant 96 : index
    %310 = vector.load %arg9[%c192_231, %c96_232] : memref<256x128xf32, #tpu.memory_space<vmem>>, vector<64x32xf32>
    tpu.vector_store %arg9[%c192_231, %c96_232], %309 {strides = array<i32>} : memref<256x128xf32, #tpu.memory_space<vmem>>, vector<64x32xf32>,
    %c0_233 = arith.constant 0 : index
    %c0_234 = arith.constant 0 : index
    %311 = vector.load %arg9[%c0_233, %c0_234] : memref<256x128xf32, #tpu.memory_space<vmem>>, vector<256x128xf32>
    %c0_235 = arith.constant 0 : index
    %c0_236 = arith.constant 0 : index
    %312 = vector.load %arg4[%c0_235, %c0_236] : memref<128x128xf32, #tpu.memory_space<vmem>>, vector<128x128xf32>
    %cst_237 = arith.constant dense<0.000000e+00> : vector<256x128xf32>
    %313 = tpu.matmul %311, %312, %cst_237 {dimension_numbers = #tpu.dot_dimension_numbers<[1], [0], [0], [1], [0, 0, 1, 1], [], []>} : vector<256x128xf32>, vector<128x128xf32>, vector<256x128xf32> -> vector<256x128xf32>
    %c0_238 = arith.constant 0 : index
    %c0_239 = arith.constant 0 : index
    %314 = vector.load %arg5[%c0_238, %c0_239] : memref<1x128xf32, #tpu.memory_space<vmem>>, vector<1x128xf32>
    %315 = vector.broadcast %314 : vector<1x128xf32> to vector<256x128xf32>
    %316 = arith.addf %313, %315 : vector<256x128xf32>
    %c0_240 = arith.constant 0 : index
    %c0_241 = arith.constant 0 : index
    %317 = vector.load %arg7[%c0_240, %c0_241] : memref<256x128xf32, #tpu.memory_space<vmem>>, vector<256x128xf32>
    tpu.vector_store %arg7[%c0_240, %c0_241], %316 {strides = array<i32>} : memref<256x128xf32, #tpu.memory_space<vmem>>, vector<256x128xf32>,
    return
  }
  func.func @transform_0(%arg0: i32) -> (i32, i32) {
    %c0_i32 = arith.constant 0 : i32
    %c0_i32_0 = arith.constant 0 : i32
    return %arg0, %c0_i32 : i32, i32
  }
  func.func @transform_1(%arg0: i32) -> (i32, i32) {
    %c0_i32 = arith.constant 0 : i32
    %c0_i32_0 = arith.constant 0 : i32
    %c0_i32_1 = arith.constant 0 : i32
    return %c0_i32, %c0_i32_0 : i32, i32
  }
  func.func @transform_2(%arg0: i32) -> (i32, i32) {
    %c0_i32 = arith.constant 0 : i32
    %c0_i32_0 = arith.constant 0 : i32
    %c0_i32_1 = arith.constant 0 : i32
    return %c0_i32, %c0_i32_0 : i32, i32
  }
  func.func @transform_3(%arg0: i32) -> (i32, i32) {
    %c0_i32 = arith.constant 0 : i32
    %c0_i32_0 = arith.constant 0 : i32
    %c0_i32_1 = arith.constant 0 : i32
    return %c0_i32, %c0_i32_0 : i32, i32
  }
  func.func @transform_4(%arg0: i32) -> (i32, i32) {
    %c0_i32 = arith.constant 0 : i32
    %c0_i32_0 = arith.constant 0 : i32
    %c0_i32_1 = arith.constant 0 : i32
    return %c0_i32, %c0_i32_0 : i32, i32
  }
  func.func @transform_5(%arg0: i32) -> (i32, i32, i32) {
    %c0_i32 = arith.constant 0 : i32
    %c0_i32_0 = arith.constant 0 : i32
    %c0_i32_1 = arith.constant 0 : i32
    %c0_i32_2 = arith.constant 0 : i32
    return %c0_i32, %c0_i32_0, %c0_i32_1 : i32, i32, i32
  }
  func.func @transform_6(%arg0: i32) -> (i32, i32) {
    %c0_i32 = arith.constant 0 : i32
    %c0_i32_0 = arith.constant 0 : i32
    return %arg0, %c0_i32 : i32, i32
  }
}

</mosaic_0001>

<llo_original>
// kernel: tpu_custom_call.1
$region0: #{tpu_custom_call.1}
  #allocation0 [shape = 'u32[]', space=smem, size = 0x4, offset = 0x4, fixed_abs, tag = 'smem constant byte address 0x4 - core index']
  #allocation1 [shape = 'u32[144,128]{1,0:T(1,128)}', space=vmem, size = 0x12000, scoped, tag = 'internal scratch']
  #allocation2 [shape = 'f32[256,384]{1,0:T(8,128)}', space=vmem, size = 0x60000, scoped, tag = 'scratch operand']
  #allocation3 [shape = 'f32[256,128]{1,0:T(8,128)}', space=vmem, size = 0x20000, scoped, tag = 'scratch operand']
  %s0 = inlined_call_operand.hbm [shape: f32[512,128], index: 0, kind: input, shape index: {}]
  %s1 = inlined_call_operand.hbm [shape: f32[128,384], index: 1, kind: input, shape index: {}]
  %s2 = inlined_call_operand.vmem [shape: f32[1,384], index: 2, kind: input, shape index: {}]
  %s3 = inlined_call_operand.hbm [shape: f32[128,128], index: 3, kind: input, shape index: {}]
  %s4 = inlined_call_operand.vmem [shape: f32[1,128], index: 4, kind: input, shape index: {}]
  %s5 = inlined_call_operand.hbm [shape: f32[4,64,64], index: 5, kind: input, shape index: {}]
  %s6 = inlined_call_operand.hbm [shape: f32[512,128], index: 6, kind: output, shape index: {}]
  %s7 = sld [smem:[#allocation0]]
  $region73: #{tpu_custom_call.1} parent=0
    _
  %s9 = ssub.s32 1, %s7
  %s10 = scalar_select 0, %s9, %s7
  $region1: #{tpu_custom_call.1} parent=0
    #allocation4 [shape = 'u8[262144]{0}', space=vmem, size = 0x40000, scoped, tag = 'input window, operand 0']
    #allocation5 [shape = 's32[2]{0}', space=sflag, size = 0x8, scoped, tag = 'scoped memory for tpu_custom_call.1']
    #allocation6 [shape = 's32[2]{0}', space=sflag, size = 0x8, scoped, tag = 'scoped memory for tpu_custom_call.1']
    #allocation7 [shape = 'u8[196608]{0}', space=vmem, size = 0x30000, scoped, tag = 'input window, operand 1, single buffered']
    #allocation8 [shape = 's32[1]{0}', space=sflag, size = 0x4, scoped, tag = 'scoped memory for tpu_custom_call.1']
    #allocation9 [shape = 'u8[65536]{0}', space=vmem, size = 0x10000, scoped, tag = 'input window, operand 3, single buffered']
    #allocation10 [shape = 'u8[131072]{0}', space=vmem, size = 0x20000, scoped, tag = 'input window, operand 5, single buffered']
    #allocation11 [shape = 's32[1]{0}', space=sflag, size = 0x4, scoped, tag = 'scoped memory for tpu_custom_call.1']
    #allocation12 [shape = 'u8[262144]{0}', space=vmem, size = 0x40000, scoped, tag = 'output window, operand 0']
    %11 = vsyncpa [#allocation5], 0
    %s12 = scalar_lea.sflag [#allocation5], 1
    %13 = vsyncpa %s12, 0
    %14 = vsyncpa [#allocation8], 0
    %15 = vsyncpa [#allocation11], 0
    %16 = vsyncpa [#allocation6], 0
    %s17 = scalar_lea.sflag [#allocation6], 1
    %18 = vsyncpa %s17, 0
    loop: start=0, step=1, limit=4
    $region2: #{tpu_custom_call.1} parent=1 // loop_pre_header
      _
    $region3: #{tpu_custom_call.1} parent=1 // loop_header
      %s20 = sphi 0, %s24
      %p21 = scmp.ge.s32.totalorder %s20, 4
      %s30 = sphi 0, %s32
      %s33 = sphi 0, %s30
      %s34 = sphi 0, %s33
      %s50 = sphi 0, %s34
      %s54 = sphi 0, %s54
      %s56 = sphi 0, %s54
      %s57 = sphi 0, %s56
      %s71 = sphi 0, %s57
      %s75 = sphi 0, %s75
      %s77 = sphi 0, %s75
      %s78 = sphi 0, %s77
      %s92 = sphi 0, %s78
      %s96 = sphi 0, %s96
      %s98 = sphi 0, %s96
      %s99 = sphi 0, %s98
      %s113 = sphi 0, %s99
      %s117 = sphi 0, %s117
      %s119 = sphi 0, %s117
      %s120 = sphi 0, %s119
      %s134 = sphi 0, %s120
      %s138 = sphi 0, %s138
      %s140 = sphi 0, %s138
      %s141 = sphi 0, %s140
      %s155 = sphi 0, %s141
      %s161 = sphi 0, %s163
      %s164 = sphi 0, %s161
      %s165 = sphi 0, %s164
      %s181 = sphi 0, %s165
    $region4: #{tpu_custom_call.1} parent=1 // loop_header_branch
      %23 = sbr.rel (%p21) target = $region8
    $region5: #{tpu_custom_call.1} parent=1 // loop_body
      %s25 = ssub.s32 %s20, 1
      %s26 = ssub.s32 %s20, 2
      %s27 = sadd.s32 %s20, 1
      %s28 = ssub.s32 %s20, %s27
      %p29 = scmp.eq.s32.totalorder %s28, 0
      %s31 = sadd.s32 %s30, 1
      %s32 = scalar_select %p29, %s30, %s31
      %p35 = pneg %p29
      %p36 = scmp.eq.s32.totalorder %s20, 1
      %p37 = por %p35, %p36
      %p38 = scmp.ne.s32.totalorder %s30, %s33
      %p39 = scmp.eq.s32.totalorder %s20, 0
      %p40 = por %p38, %p39
      %p41 = scmp.ne.s32.totalorder %s30, %s33
      %p42 = scmp.eq.s32.totalorder %s25, 1
      %p43 = por %p41, %p42
      %p44 = scmp.ne.s32.totalorder %s33, %s34
      %p45 = scmp.eq.s32.totalorder %s25, 0
      %p46 = por %p44, %p45
      %p47 = scmp.ne.s32.totalorder %s33, %s34
      %p48 = scmp.eq.s32.totalorder %s26, 1
      %p49 = por %p47, %p48
      %p51 = scmp.ne.s32.totalorder %s34, %s50
      %p52 = scmp.eq.s32.totalorder %s26, 0
      %p53 = por %p51, %p52
      %s55 = sadd.s32 %s54, 1
      %p58 = scmp.eq.s32.totalorder %s20, 1
      %p59 = scmp.ne.s32.totalorder %s54, %s56
      %p60 = scmp.eq.s32.totalorder %s20, 0
      %p61 = por %p59, %p60
      %p62 = scmp.ne.s32.totalorder %s54, %s56
      %p63 = scmp.eq.s32.totalorder %s25, 1
      %p64 = por %p62, %p63
      %p65 = scmp.ne.s32.totalorder %s56, %s57
      %p66 = scmp.eq.s32.totalorder %s25, 0
      %p67 = por %p65, %p66
      %p68 = scmp.ne.s32.totalorder %s56, %s57
      %p69 = scmp.eq.s32.totalorder %s26, 1
      %p70 = por %p68, %p69
      %p72 = scmp.ne.s32.totalorder %s57, %s71
      %p73 = scmp.eq.s32.totalorder %s26, 0
      %p74 = por %p72, %p73
      %s76 = sadd.s32 %s75, 1
      %p79 = scmp.eq.s32.totalorder %s20, 1
      %p80 = scmp.ne.s32.totalorder %s75, %s77
      %p81 = scmp.eq.s32.totalorder %s20, 0
      %p82 = por %p80, %p81
      %p83 = scmp.ne.s32.totalorder %s75, %s77
      %p84 = scmp.eq.s32.totalorder %s25, 1
      %p85 = por %p83, %p84
      %p86 = scmp.ne.s32.totalorder %s77, %s78
      %p87 = scmp.eq.s32.totalorder %s25, 0
      %p88 = por %p86, %p87
      %p89 = scmp.ne.s32.totalorder %s77, %s78
      %p90 = scmp.eq.s32.totalorder %s26, 1
      %p91 = por %p89, %p90
      %p93 = scmp.ne.s32.totalorder %s78, %s92
      %p94 = scmp.eq.s32.totalorder %s26, 0
      %p95 = por %p93, %p94
      %s97 = sadd.s32 %s96, 1
      %p100 = scmp.eq.s32.totalorder %s20, 1
      %p101 = scmp.ne.s32.totalorder %s96, %s98
      %p102 = scmp.eq.s32.totalorder %s20, 0
      %p103 = por %p101, %p102
      %p104 = scmp.ne.s32.totalorder %s96, %s98
      %p105 = scmp.eq.s32.totalorder %s25, 1
      %p106 = por %p104, %p105
      %p107 = scmp.ne.s32.totalorder %s98, %s99
      %p108 = scmp.eq.s32.totalorder %s25, 0
      %p109 = por %p107, %p108
      %p110 = scmp.ne.s32.totalorder %s98, %s99
      %p111 = scmp.eq.s32.totalorder %s26, 1
      %p112 = por %p110, %p111
      %p114 = scmp.ne.s32.totalorder %s99, %s113
      %p115 = scmp.eq.s32.totalorder %s26, 0
      %p116 = por %p114, %p115
      %s118 = sadd.s32 %s117, 1
      %p121 = scmp.eq.s32.totalorder %s20, 1
      %p122 = scmp.ne.s32.totalorder %s117, %s119
      %p123 = scmp.eq.s32.totalorder %s20, 0
      %p124 = por %p122, %p123
      %p125 = scmp.ne.s32.totalorder %s117, %s119
      %p126 = scmp.eq.s32.totalorder %s25, 1
      %p127 = por %p125, %p126
      %p128 = scmp.ne.s32.totalorder %s119, %s120
      %p129 = scmp.eq.s32.totalorder %s25, 0
      %p130 = por %p128, %p129
      %p131 = scmp.ne.s32.totalorder %s119, %s120
      %p132 = scmp.eq.s32.totalorder %s26, 1
      %p133 = por %p131, %p132
      %p135 = scmp.ne.s32.totalorder %s120, %s134
      %p136 = scmp.eq.s32.totalorder %s26, 0
      %p137 = por %p135, %p136
      %s139 = sadd.s32 %s138, 1
      %p142 = scmp.eq.s32.totalorder %s20, 1
      %p143 = scmp.ne.s32.totalorder %s138, %s140
      %p144 = scmp.eq.s32.totalorder %s20, 0
      %p145 = por %p143, %p144
      %p146 = scmp.ne.s32.totalorder %s138, %s140
      %p147 = scmp.eq.s32.totalorder %s25, 1
      %p148 = por %p146, %p147
      %p149 = scmp.ne.s32.totalorder %s140, %s141
      %p150 = scmp.eq.s32.totalorder %s25, 0
      %p151 = por %p149, %p150
      %p152 = scmp.ne.s32.totalorder %s140, %s141
      %p153 = scmp.eq.s32.totalorder %s26, 1
      %p154 = por %p152, %p153
      %p156 = scmp.ne.s32.totalorder %s141, %s155
      %p157 = scmp.eq.s32.totalorder %s26, 0
      %p158 = por %p156, %p157
      %s159 = ssub.s32 %s20, %s27
      %p160 = scmp.eq.s32.totalorder %s159, 0
      %s162 = sadd.s32 %s161, 1
      %s163 = scalar_select %p160, %s161, %s162
      %p166 = pneg %p160
      %p167 = scmp.eq.s32.totalorder %s20, 1
      %p168 = por %p166, %p167
      %p169 = scmp.ne.s32.totalorder %s161, %s164
      %p170 = scmp.eq.s32.totalorder %s20, 0
      %p171 = por %p169, %p170
      %p172 = scmp.ne.s32.totalorder %s161, %s164
      %p173 = scmp.eq.s32.totalorder %s25, 1
      %p174 = por %p172, %p173
      %p175 = scmp.ne.s32.totalorder %s164, %s165
      %p176 = scmp.eq.s32.totalorder %s25, 0
      %p177 = por %p175, %p176
      %p178 = scmp.ne.s32.totalorder %s164, %s165
      %p179 = scmp.eq.s32.totalorder %s26, 1
      %p180 = por %p178, %p179
      %p182 = scmp.ne.s32.totalorder %s165, %s181
      %p183 = scmp.eq.s32.totalorder %s26, 0
      %p184 = por %p182, %p183
      %p185 = scmp.le.s32.totalorder 1, %s20
      %p186 = scmp.lt.s32.totalorder %s20, 3
      %p187 = pnand %p185, %p186
      %p188 = pneg %p187
      // Predicated region
      $region9: #{tpu_custom_call.1} parent=5 // pred_check
        _
      $region10: #{tpu_custom_call.1} parent=5 // pred_check_branch
        %190 = sbr.rel (%p187) target = $region12
      $region11: #{tpu_custom_call.1} parent=5 // pred_region
        %s191 = ssub.s32 %s20, 1
        // Predicated region
        $region13: #{tpu_custom_call.1} parent=11 // pred_check
          %p192 = pneg %p67
        $region14: #{tpu_custom_call.1} parent=11 // pred_check_branch
          %194 = sbr.rel (%p192) target = $region16
        $region15: #{tpu_custom_call.1} parent=11 // pred_region
          %s196 = ssub.s32 6144, 6144
          %197 = vsyncadd [#allocation8], %s196
          %s198 = sshll.u32 [#allocation7], 4
          %s199 = int_to_ptr.vmem [resolvable:$true] %s198
          %204 = dma.hbm_to_vmem [thread:$0]  %s1, 6144, %s199, [#allocation8], 384, 384, 24
        $region16: #{tpu_custom_call.1} parent=11 // pred_fallthru
          _
        // Predicated region
        $region17: #{tpu_custom_call.1} parent=11 // pred_check
          %p205 = pneg %p88
        $region18: #{tpu_custom_call.1} parent=11 // pred_check_branch
          %207 = sbr.rel (%p205) target = $region20
        $region19: #{tpu_custom_call.1} parent=11 // pred_region
          _
        $region20: #{tpu_custom_call.1} parent=11 // pred_fallthru
          _
        // Predicated region
        $region21: #{tpu_custom_call.1} parent=11 // pred_check
          %p208 = pneg %p109
        $region22: #{tpu_custom_call.1} parent=11 // pred_check_branch
          %210 = sbr.rel (%p208) target = $region24
        $region23: #{tpu_custom_call.1} parent=11 // pred_region
          %s212 = ssub.s32 2048, 2048
          %213 = vsyncadd [#allocation8], %s212
          %s214 = sshll.u32 [#allocation9], 4
          %s215 = int_to_ptr.vmem [resolvable:$true] %s214
          %220 = dma.hbm_to_vmem [thread:$0]  %s3, 2048, %s215, [#allocation8], 128, 128, 8
        $region24: #{tpu_custom_call.1} parent=11 // pred_fallthru
          _
        // Predicated region
        $region25: #{tpu_custom_call.1} parent=11 // pred_check
          %p221 = pneg %p130
        $region26: #{tpu_custom_call.1} parent=11 // pred_check_branch
          %223 = sbr.rel (%p221) target = $region28
        $region27: #{tpu_custom_call.1} parent=11 // pred_region
          _
        $region28: #{tpu_custom_call.1} parent=11 // pred_fallthru
          _
        // Predicated region
        $region29: #{tpu_custom_call.1} parent=11 // pred_check
          %p224 = pneg %p151
        $region30: #{tpu_custom_call.1} parent=11 // pred_check_branch
          %226 = sbr.rel (%p224) target = $region32
        $region31: #{tpu_custom_call.1} parent=11 // pred_region
          %s228 = ssub.s32 4096, 4096
          %229 = vsyncadd [#allocation11], %s228
          %s230 = sshll.u32 [#allocation10], 4
          %s231 = int_to_ptr.vmem [resolvable:$true] %s230
          %236 = dma.hbm_to_vmem [thread:$0]  %s5, 4096, %s231, [#allocation11], 128, 128, 8
        $region32: #{tpu_custom_call.1} parent=11 // pred_fallthru
          _
      $region12: #{tpu_custom_call.1} parent=5 // pred_fallthru
        _
      %p237 = scmp.lt.s32.totalorder %s20, 2
      // Predicated region
      $region33: #{tpu_custom_call.1} parent=5 // pred_check
        %p238 = pneg %p237
      $region34: #{tpu_custom_call.1} parent=5 // pred_check_branch
        %240 = sbr.rel (%p238) target = $region36
      $region35: #{tpu_custom_call.1} parent=5 // pred_region
        // Predicated region
        $region37: #{tpu_custom_call.1} parent=35 // pred_check
          %p241 = pneg %p40
        $region38: #{tpu_custom_call.1} parent=35 // pred_check_branch
          %243 = sbr.rel (%p241) target = $region40
        $region39: #{tpu_custom_call.1} parent=35 // pred_region
          %s244 = sand.u32 %s30, 1
          %s245 = scalar_lea.sflag [#allocation5], %s244
          %s246 = sand.u32 %s30, 1
          %s247 = smul.addr %s246, 256
          %s248 = scalar_lea.vmem [#allocation4], %s247
          %s249 = smul.u32 32, %s20
          %s251 = ssub.s32 4096, 4096
          %252 = vsyncadd %s245, %s251
          %s253 = smul.addr %s249, 128
          %s254 = scalar_lea.hbm %s0, %s253
          %s255 = sshll.u32 %s248, 4
          %s256 = int_to_ptr.vmem [resolvable:$true] %s255
          %261 = dma.hbm_to_vmem [thread:$0]  %s254, 4096, %s256, %s245, 128, 128, 8
        $region40: #{tpu_custom_call.1} parent=35 // pred_fallthru
          _
      $region36: #{tpu_custom_call.1} parent=5 // pred_fallthru
        _
      %p262 = scmp.le.s32.totalorder 1, %s20
      %p263 = scmp.lt.s32.totalorder %s20, 3
      %p264 = pnand %p262, %p263
      %p265 = pneg %p264
      // Predicated region
      $region41: #{tpu_custom_call.1} parent=5 // pred_check
        _
      $region42: #{tpu_custom_call.1} parent=5 // pred_check_branch
        %267 = sbr.rel (%p264) target = $region44
      $region43: #{tpu_custom_call.1} parent=5 // pred_region
        %s268 = ssub.s32 %s20, 1
        %s269 = sand.u32 %s33, 1
        %s270 = scalar_lea.sflag [#allocation5], %s269
        %s271 = sand.u32 %s33, 1
        %s272 = smul.addr %s271, 256
        %s273 = scalar_lea.vmem [#allocation4], %s272
        // Predicated region
        $region45: #{tpu_custom_call.1} parent=43 // pred_check
          %p274 = pneg %p46
        $region46: #{tpu_custom_call.1} parent=43 // pred_check_branch
          %276 = sbr.rel (%p274) target = $region48
        $region47: #{tpu_custom_call.1} parent=43 // pred_region
          %277 = dma.done %s270, 4096
        $region48: #{tpu_custom_call.1} parent=43 // pred_fallthru
          _
        // Predicated region
        $region49: #{tpu_custom_call.1} parent=43 // pred_check
          %p278 = pneg %p67
        $region50: #{tpu_custom_call.1} parent=43 // pred_check_branch
          %280 = sbr.rel (%p278) target = $region52
        $region51: #{tpu_custom_call.1} parent=43 // pred_region
          %281 = dma.done [#allocation8], 6144
        $region52: #{tpu_custom_call.1} parent=43 // pred_fallthru
          _
        // Predicated region
        $region53: #{tpu_custom_call.1} parent=43 // pred_check
          %p282 = pneg %p109
        $region54: #{tpu_custom_call.1} parent=43 // pred_check_branch
          %284 = sbr.rel (%p282) target = $region56
        $region55: #{tpu_custom_call.1} parent=43 // pred_region
          %285 = dma.done [#allocation8], 2048
        $region56: #{tpu_custom_call.1} parent=43 // pred_fallthru
          _
        // Predicated region
        $region57: #{tpu_custom_call.1} parent=43 // pred_check
          %p286 = pneg %p151
        $region58: #{tpu_custom_call.1} parent=43 // pred_check_branch
          %288 = sbr.rel (%p286) target = $region60
        $region59: #{tpu_custom_call.1} parent=43 // pred_region
          %289 = dma.done [#allocation11], 4096
        $region60: #{tpu_custom_call.1} parent=43 // pred_fallthru
          _
        %s290 = sand.u32 %s33, 1
        %s291 = scalar_lea.sflag [#allocation5], %s290
        %s292 = sand.u32 %s33, 1
        %s293 = smul.addr %s292, 256
        %s294 = scalar_lea.vmem [#allocation4], %s293
        %p295 = pneg %p46
        %p296 = pneg %p43
        %p297 = pneg %p67
        %p298 = pneg %p64
        %p299 = pneg %p88
        %p300 = pneg %p85
        %p301 = pneg %p109
        %p302 = pneg %p106
        %p303 = pneg %p130
        %p304 = pneg %p127
        %p305 = pneg %p151
        %p306 = pneg %p148
        %p307 = pneg %p177
        %p308 = pneg %p174
        %s309 = sand.u32 %s164, 1
        %s310 = scalar_lea.sflag [#allocation6], %s309
        %s311 = sand.u32 %s164, 1
        %s312 = smul.addr %s311, 256
        %s313 = scalar_lea.vmem [#allocation12], %s312
        %s314 = smul.u32 32, %s25
        %s315 = smul.u32 32, %s25
        %v316 = vld [vmem:[%s273] sm:$0xff]
        %v317 = vld [vmem:[%s273 + $0x8] sm:$0xff]
        %v318 = vld [vmem:[%s273 + $0x10] sm:$0xff]
        %v319 = vld [vmem:[%s273 + $0x18] sm:$0xff]
        %v320 = vld [vmem:[%s273 + $0x20] sm:$0xff]
        %v321 = vld [vmem:[%s273 + $0x28] sm:$0xff]
        %v322 = vld [vmem:[%s273 + $0x30] sm:$0xff]
        %v323 = vld [vmem:[%s273 + $0x38] sm:$0xff]
        %v324 = vld [vmem:[%s273 + $0x40] sm:$0xff]
        %v325 = vld [vmem:[%s273 + $0x48] sm:$0xff]
        %v326 = vld [vmem:[%s273 + $0x50] sm:$0xff]
        %v327 = vld [vmem:[%s273 + $0x58] sm:$0xff]
        %v328 = vld [vmem:[%s273 + $0x60] sm:$0xff]
        %v329 = vld [vmem:[%s273 + $0x68] sm:$0xff]
        %v330 = vld [vmem:[%s273 + $0x70] sm:$0xff]
        %v331 = vld [vmem:[%s273 + $0x78] sm:$0xff]
        %v332 = vld [vmem:[%s273 + $0x80] sm:$0xff]
        %v333 = vld [vmem:[%s273 + $0x88] sm:$0xff]
        %v334 = vld [vmem:[%s273 + $0x90] sm:$0xff]
        %v335 = vld [vmem:[%s273 + $0x98] sm:$0xff]
        %v336 = vld [vmem:[%s273 + $0xa0] sm:$0xff]
        %v337 = vld [vmem:[%s273 + $0xa8] sm:$0xff]
        %v338 = vld [vmem:[%s273 + $0xb0] sm:$0xff]
        %v339 = vld [vmem:[%s273 + $0xb8] sm:$0xff]
        %v340 = vld [vmem:[%s273 + $0xc0] sm:$0xff]
        %v341 = vld [vmem:[%s273 + $0xc8] sm:$0xff]
        %v342 = vld [vmem:[%s273 + $0xd0] sm:$0xff]
        %v343 = vld [vmem:[%s273 + $0xd8] sm:$0xff]
        %v344 = vld [vmem:[%s273 + $0xe0] sm:$0xff]
        %v345 = vld [vmem:[%s273 + $0xe8] sm:$0xff]
        %v346 = vld [vmem:[%s273 + $0xf0] sm:$0xff]
        %v347 = vld [vmem:[%s273 + $0xf8] sm:$0xff]
        %v348 = vld [vmem:[#allocation7] sm:$0xff]
        %v349 = vld [vmem:[#allocation7 + $0x8] sm:$0xff]
        %v350 = vld [vmem:[#allocation7 + $0x10] sm:$0xff]
        %v351 = vld [vmem:[#allocation7 + $0x18] sm:$0xff]
        %v352 = vld [vmem:[#allocation7 + $0x20] sm:$0xff]
        %v353 = vld [vmem:[#allocation7 + $0x28] sm:$0xff]
        %v354 = vld [vmem:[#allocation7 + $0x30] sm:$0xff]
        %v355 = vld [vmem:[#allocation7 + $0x38] sm:$0xff]
        %v356 = vld [vmem:[#allocation7 + $0x40] sm:$0xff]
        %v357 = vld [vmem:[#allocation7 + $0x48] sm:$0xff]
        %v358 = vld [vmem:[#allocation7 + $0x50] sm:$0xff]
        %v359 = vld [vmem:[#allocation7 + $0x58] sm:$0xff]
        %v360 = vld [vmem:[#allocation7 + $0x60] sm:$0xff]
        %v361 = vld [vmem:[#allocation7 + $0x68] sm:$0xff]
        %v362 = vld [vmem:[#allocation7 + $0x70] sm:$0xff]
        %v363 = vld [vmem:[#allocation7 + $0x78] sm:$0xff]
        %v364 = vld [vmem:[#allocation7 + $0x80] sm:$0xff]
        %v365 = vld [vmem:[#allocation7 + $0x88] sm:$0xff]
        %v366 = vld [vmem:[#allocation7 + $0x90] sm:$0xff]
        %v367 = vld [vmem:[#allocation7 + $0x98] sm:$0xff]
        %v368 = vld [vmem:[#allocation7 + $0xa0] sm:$0xff]
        %v369 = vld [vmem:[#allocation7 + $0xa8] sm:$0xff]
        %v370 = vld [vmem:[#allocation7 + $0xb0] sm:$0xff]
        %v371 = vld [vmem:[#allocation7 + $0xb8] sm:$0xff]
        %v372 = vld [vmem:[#allocation7 + $0xc0] sm:$0xff]
        %v373 = vld [vmem:[#allocation7 + $0xc8] sm:$0xff]
        %v374 = vld [vmem:[#allocation7 + $0xd0] sm:$0xff]
        %v375 = vld [vmem:[#allocation7 + $0xd8] sm:$0xff]
        %v376 = vld [vmem:[#allocation7 + $0xe0] sm:$0xff]
        %v377 = vld [vmem:[#allocation7 + $0xe8] sm:$0xff]
        %v378 = vld [vmem:[#allocation7 + $0xf0] sm:$0xff]
        %v379 = vld [vmem:[#allocation7 + $0xf8] sm:$0xff]
        %v380 = vld [vmem:[#allocation7 + $0x100] sm:$0xff]
        %v381 = vld [vmem:[#allocation7 + $0x108] sm:$0xff]
        %v382 = vld [vmem:[#allocation7 + $0x110] sm:$0xff]
        %v383 = vld [vmem:[#allocation7 + $0x118] sm:$0xff]
        %v384 = vld [vmem:[#allocation7 + $0x120] sm:$0xff]
        %v385 = vld [vmem:[#allocation7 + $0x128] sm:$0xff]
        %v386 = vld [vmem:[#allocation7 + $0x130] sm:$0xff]
        %v387 = vld [vmem:[#allocation7 + $0x138] sm:$0xff]
        %v388 = vld [vmem:[#allocation7 + $0x140] sm:$0xff]
        %v389 = vld [vmem:[#allocation7 + $0x148] sm:$0xff]
        %v390 = vld [vmem:[#allocation7 + $0x150] sm:$0xff]
        %v391 = vld [vmem:[#allocation7 + $0x158] sm:$0xff]
        %v392 = vld [vmem:[#allocation7 + $0x160] sm:$0xff]
        %v393 = vld [vmem:[#allocation7 + $0x168] sm:$0xff]
        %v394 = vld [vmem:[#allocation7 + $0x170] sm:$0xff]
        %v395 = vld [vmem:[#allocation7 + $0x178] sm:$0xff]
        %v396 = vld [vmem:[%s2] sm:$0x7]
        %v398 = vlaneseq
        %v399 = vshrl.u32 %v398, 7
        %v400 = vsub.s32 0, %v399
        %v401 = vrot.slane %v396, %v400
        %v402 = vlaneseq
        %v403 = vshrl.u32 %v402, 7
        %v404 = vsub.s32 1, %v403
        %v405 = vrot.slane %v396, %v404
        %v406 = vlaneseq
        %v407 = vshrl.u32 %v406, 7
        %v408 = vsub.s32 2, %v407
        %v409 = vrot.slane %v396, %v408
        %413 = vmatprep.subr.mxu0 %v349
        %414 = vmatpush1.msra.mxu0 %v348
        %415 = vmatprep.subr.mxu0 %v352
        %416 = vmatpush1.msra.mxu0 %v351
        %417 = vmatprep.subr.mxu0 %v355
        %418 = vmatpush1.msra.mxu0 %v354
        %419 = vmatprep.subr.mxu0 %v358
        %420 = vmatpush1.msra.mxu0 %v357
        %421 = vmatprep.subr.mxu0 %v361
        %422 = vmatpush1.msra.mxu0 %v360
        %423 = vmatprep.subr.mxu0 %v364
        %424 = vmatpush1.msra.mxu0 %v363
        %425 = vmatprep.subr.mxu0 %v367
        %426 = vmatpush1.msra.mxu0 %v366
        %427 = vmatprep.subr.mxu0 %v370
        %428 = vmatpush1.msra.mxu0 %v369
        %429 = vmatprep.subr.mxu0 %v373
        %430 = vmatpush1.msra.mxu0 %v372
        %431 = vmatprep.subr.mxu0 %v376
        %432 = vmatpush1.msra.mxu0 %v375
        %433 = vmatprep.subr.mxu0 %v379
        %434 = vmatpush1.msra.mxu0 %v378
        %435 = vmatprep.subr.mxu0 %v382
        %436 = vmatpush1.msra.mxu0 %v381
        %437 = vmatprep.subr.mxu0 %v385
        %438 = vmatpush1.msra.mxu0 %v384
        %439 = vmatprep.subr.mxu0 %v388
        %440 = vmatpush1.msra.mxu0 %v387
        %441 = vmatprep.subr.mxu0 %v391
        %442 = vmatpush1.msra.mxu0 %v390
        %443 = vmatprep.subr.mxu0 %v394
        %444 = vmatpush1.msra.mxu0 %v393
        %445 = vmatprep.subr.mxu0 0.0
        %446 = vmatpush1.msra.mxu0 0.0
        %447 = vmatprep.subr.mxu0 0.0
        %448 = vmatpush1.msra.mxu0 0.0
        %449 = vmatprep.subr.mxu0 0.0
        %450 = vmatpush1.msra.mxu0 0.0
        %451 = vmatprep.subr.mxu0 0.0
        %452 = vmatpush1.msra.mxu0 0.0
        %453 = vmatprep.subr.mxu0 0.0
        %454 = vmatpush1.msra.mxu0 0.0
        %455 = vmatprep.subr.mxu0 0.0
        %456 = vmatpush1.msra.mxu0 0.0
        %457 = vmatprep.subr.mxu0 0.0
        %458 = vmatpush1.msra.mxu0 0.0
        %459 = vmatprep.subr.mxu0 0.0
        %460 = vmatpush1.msra.mxu0 0.0
        %461 = vmatprep.subr.mxu0 0.0
        %462 = vmatpush1.msra.mxu0 0.0
        %463 = vmatprep.subr.mxu0 0.0
        %464 = vmatpush1.msra.mxu0 0.0
        %465 = vmatprep.subr.mxu0 0.0
        %466 = vmatpush1.msra.mxu0 0.0
        %467 = vmatprep.subr.mxu0 0.0
        %468 = vmatpush1.msra.mxu0 0.0
        %469 = vmatprep.subr.mxu0 0.0
        %470 = vmatpush1.msra.mxu0 0.0
        %471 = vmatprep.subr.mxu0 0.0
        %472 = vmatpush1.msra.mxu0 0.0
        %473 = vmatprep.subr.mxu0 0.0
        %474 = vmatpush1.msra.mxu0 0.0
        %475 = vmatprep.subr.mxu0 0.0
        %476 = vmatpush1.msra.mxu0 0.0
        %477 = vmatprep.mubr.f32.mxu0 0.0
        %478 = vmatmul.mubr.f32.gmra.mrb[0].mxu0 %v316
        %v479 = vpop.f32.mrb[0].mxu0
        %v480 = vadd.f32 %v401, %v479
        %v481 = vpop.f32.mrb[0].mxu0
        %v482 = vadd.f32 %v405, %v481
        %483 = vmatprep.mubr.f32.mxu0 0.0
        %484 = vmatmul.mubr.f32.gmra.mrb[0].mxu0 %v317
        %v485 = vpop.f32.mrb[0].mxu0
        %v486 = vadd.f32 %v401, %v485
        %v487 = vpop.f32.mrb[0].mxu0
        %v488 = vadd.f32 %v405, %v487
        %489 = vmatprep.mubr.f32.mxu0 0.0
        %490 = vmatmul.mubr.f32.gmra.mrb[0].mxu0 %v318
        %v491 = vpop.f32.mrb[0].mxu0
        %v492 = vadd.f32 %v401, %v491
        %v493 = vpop.f32.mrb[0].mxu0
        %v494 = vadd.f32 %v405, %v493
        %495 = vmatprep.mubr.f32.mxu0 0.0
        %496 = vmatmul.mubr.f32.gmra.mrb[0].mxu0 %v319
        %v497 = vpop.f32.mrb[0].mxu0
        %v498 = vadd.f32 %v401, %v497
        %v499 = vpop.f32.mrb[0].mxu0
        %v500 = vadd.f32 %v405, %v499
        %501 = vmatprep.mubr.f32.mxu0 0.0
        %502 = vmatmul.mubr.f32.gmra.mrb[0].mxu0 %v320
        %v503 = vpop.f32.mrb[0].mxu0
        %v504 = vadd.f32 %v401, %v503
        %v505 = vpop.f32.mrb[0].mxu0
        %v506 = vadd.f32 %v405, %v505
        %507 = vmatprep.mubr.f32.mxu0 0.0
        %508 = vmatmul.mubr.f32.gmra.mrb[0].mxu0 %v321
        %v509 = vpop.f32.mrb[0].mxu0
        %v510 = vadd.f32 %v401, %v509
        %v511 = vpop.f32.mrb[0].mxu0
        %v512 = vadd.f32 %v405, %v511
        %513 = vmatprep.mubr.f32.mxu0 0.0
        %514 = vmatmul.mubr.f32.gmra.mrb[0].mxu0 %v322
        %v515 = vpop.f32.mrb[0].mxu0
        %v516 = vadd.f32 %v401, %v515
        %v517 = vpop.f32.mrb[0].mxu0
        %v518 = vadd.f32 %v405, %v517
        %519 = vmatprep.mubr.f32.mxu0 0.0
        %520 = vmatmul.mubr.f32.gmra.mrb[0].mxu0 %v323
        %v521 = vpop.f32.mrb[0].mxu0
        %v522 = vadd.f32 %v401, %v521
        %v523 = vpop.f32.mrb[0].mxu0
        %v524 = vadd.f32 %v405, %v523
        %525 = vmatprep.mubr.f32.mxu0 0.0
        %526 = vmatmul.mubr.f32.gmra.mrb[0].mxu0 %v324
        %v527 = vpop.f32.mrb[0].mxu0
        %v528 = vadd.f32 %v401, %v527
        %v529 = vpop.f32.mrb[0].mxu0
        %v530 = vadd.f32 %v405, %v529
        %531 = vmatprep.mubr.f32.mxu0 0.0
        %532 = vmatmul.mubr.f32.gmra.mrb[0].mxu0 %v325
        %v533 = vpop.f32.mrb[0].mxu0
        %v534 = vadd.f32 %v401, %v533
        %v535 = vpop.f32.mrb[0].mxu0
        %v536 = vadd.f32 %v405, %v535
        %537 = vmatprep.mubr.f32.mxu0 0.0
        %538 = vmatmul.mubr.f32.gmra.mrb[0].mxu0 %v326
        %v539 = vpop.f32.mrb[0].mxu0
        %v540 = vadd.f32 %v401, %v539
        %v541 = vpop.f32.mrb[0].mxu0
        %v542 = vadd.f32 %v405, %v541
        %543 = vmatprep.mubr.f32.mxu0 0.0
        %544 = vmatmul.mubr.f32.gmra.mrb[0].mxu0 %v327
        %v545 = vpop.f32.mrb[0].mxu0
        %v546 = vadd.f32 %v401, %v545
        %v547 = vpop.f32.mrb[0].mxu0
        %v548 = vadd.f32 %v405, %v547
        %549 = vmatprep.mubr.f32.mxu0 0.0
        %550 = vmatmul.mubr.f32.gmra.mrb[0].mxu0 %v328
        %v551 = vpop.f32.mrb[0].mxu0
        %v552 = vadd.f32 %v401, %v551
        %v553 = vpop.f32.mrb[0].mxu0
        %v554 = vadd.f32 %v405, %v553
        %555 = vmatprep.mubr.f32.mxu0 0.0
        %556 = vmatmul.mubr.f32.gmra.mrb[0].mxu0 %v329
        %v557 = vpop.f32.mrb[0].mxu0
        %v558 = vadd.f32 %v401, %v557
        %v559 = vpop.f32.mrb[0].mxu0
        %v560 = vadd.f32 %v405, %v559
        %561 = vmatprep.mubr.f32.mxu0 0.0
        %562 = vmatmul.mubr.f32.gmra.mrb[0].mxu0 %v330
        %v563 = vpop.f32.mrb[0].mxu0
        %v564 = vadd.f32 %v401, %v563
        %v565 = vpop.f32.mrb[0].mxu0
        %v566 = vadd.f32 %v405, %v565
        %567 = vmatprep.mubr.f32.mxu0 0.0
        %568 = vmatmul.mubr.f32.gmra.mrb[0].mxu0 %v331
        %v569 = vpop.f32.mrb[0].mxu0
        %v570 = vadd.f32 %v401, %v569
        %v571 = vpop.f32.mrb[0].mxu0
        %v572 = vadd.f32 %v405, %v571
        %573 = vmatprep.mubr.f32.mxu0 0.0
        %574 = vmatmul.mubr.f32.gmra.mrb[0].mxu0 %v332
        %v575 = vpop.f32.mrb[0].mxu0
        %v576 = vadd.f32 %v401, %v575
        %v577 = vpop.f32.mrb[0].mxu0
        %v578 = vadd.f32 %v405, %v577
        %579 = vmatprep.mubr.f32.mxu0 0.0
        %580 = vmatmul.mubr.f32.gmra.mrb[0].mxu0 %v333
        %v581 = vpop.f32.mrb[0].mxu0
        %v582 = vadd.f32 %v401, %v581
        %v583 = vpop.f32.mrb[0].mxu0
        %v584 = vadd.f32 %v405, %v583
        %585 = vmatprep.mubr.f32.mxu0 0.0
        %586 = vmatmul.mubr.f32.gmra.mrb[0].mxu0 %v334
        %v587 = vpop.f32.mrb[0].mxu0
        %v588 = vadd.f32 %v401, %v587
        %v589 = vpop.f32.mrb[0].mxu0
        %v590 = vadd.f32 %v405, %v589
        %591 = vmatprep.mubr.f32.mxu0 0.0
        %592 = vmatmul.mubr.f32.gmra.mrb[0].mxu0 %v335
        %v593 = vpop.f32.mrb[0].mxu0
        %v594 = vadd.f32 %v401, %v593
        %v595 = vpop.f32.mrb[0].mxu0
        %v596 = vadd.f32 %v405, %v595
        %597 = vmatprep.mubr.f32.mxu0 0.0
        %598 = vmatmul.mubr.f32.gmra.mrb[0].mxu0 %v336
        %v599 = vpop.f32.mrb[0].mxu0
        %v600 = vadd.f32 %v401, %v599
        %v601 = vpop.f32.mrb[0].mxu0
        %v602 = vadd.f32 %v405, %v601
        %603 = vmatprep.mubr.f32.mxu0 0.0
        %604 = vmatmul.mubr.f32.gmra.mrb[0].mxu0 %v337
        %v605 = vpop.f32.mrb[0].mxu0
        %v606 = vadd.f32 %v401, %v605
        %v607 = vpop.f32.mrb[0].mxu0
        %v608 = vadd.f32 %v405, %v607
        %609 = vmatprep.mubr.f32.mxu0 0.0
        %610 = vmatmul.mubr.f32.gmra.mrb[0].mxu0 %v338
        %v611 = vpop.f32.mrb[0].mxu0
        %v612 = vadd.f32 %v401, %v611
        %v613 = vpop.f32.mrb[0].mxu0
        %v614 = vadd.f32 %v405, %v613
        %615 = vmatprep.mubr.f32.mxu0 0.0
        %616 = vmatmul.mubr.f32.gmra.mrb[0].mxu0 %v339
        %v617 = vpop.f32.mrb[0].mxu0
        %v618 = vadd.f32 %v401, %v617
        %v619 = vpop.f32.mrb[0].mxu0
        %v620 = vadd.f32 %v405, %v619
        %621 = vmatprep.mubr.f32.mxu0 0.0
        %622 = vmatmul.mubr.f32.gmra.mrb[0].mxu0 %v340
        %v623 = vpop.f32.mrb[0].mxu0
        %v624 = vadd.f32 %v401, %v623
        %v625 = vpop.f32.mrb[0].mxu0
        %v626 = vadd.f32 %v405, %v625
        %627 = vmatprep.mubr.f32.mxu0 0.0
        %628 = vmatmul.mubr.f32.gmra.mrb[0].mxu0 %v341
        %v629 = vpop.f32.mrb[0].mxu0
        %v630 = vadd.f32 %v401, %v629
        %v631 = vpop.f32.mrb[0].mxu0
        %v632 = vadd.f32 %v405, %v631
        %633 = vmatprep.mubr.f32.mxu0 0.0
        %634 = vmatmul.mubr.f32.gmra.mrb[0].mxu0 %v342
        %v635 = vpop.f32.mrb[0].mxu0
        %v636 = vadd.f32 %v401, %v635
        %v637 = vpop.f32.mrb[0].mxu0
        %v638 = vadd.f32 %v405, %v637
        %639 = vmatprep.mubr.f32.mxu0 0.0
        %640 = vmatmul.mubr.f32.gmra.mrb[0].mxu0 %v343
        %v641 = vpop.f32.mrb[0].mxu0
        %v642 = vadd.f32 %v401, %v641
        %v643 = vpop.f32.mrb[0].mxu0
        %v644 = vadd.f32 %v405, %v643
        %645 = vmatprep.mubr.f32.mxu0 0.0
        %646 = vmatmul.mubr.f32.gmra.mrb[0].mxu0 %v344
        %v647 = vpop.f32.mrb[0].mxu0
        %v648 = vadd.f32 %v401, %v647
        %v649 = vpop.f32.mrb[0].mxu0
        %v650 = vadd.f32 %v405, %v649
        %651 = vmatprep.mubr.f32.mxu0 0.0
        %652 = vmatmul.mubr.f32.gmra.mrb[0].mxu0 %v345
        %v653 = vpop.f32.mrb[0].mxu0
        %v654 = vadd.f32 %v401, %v653
        %v655 = vpop.f32.mrb[0].mxu0
        %v656 = vadd.f32 %v405, %v655
        %657 = vmatprep.mubr.f32.mxu0 0.0
        %658 = vmatmul.mubr.f32.gmra.mrb[0].mxu0 %v346
        %v659 = vpop.f32.mrb[0].mxu0
        %v660 = vadd.f32 %v401, %v659
        %v661 = vpop.f32.mrb[0].mxu0
        %v662 = vadd.f32 %v405, %v661
        %663 = vmatprep.mubr.f32.mxu0 0.0
        %664 = vmatmul.mubr.f32.gmra.mrb[0].mxu0 %v347
        %v665 = vpop.f32.mrb[0].mxu0
        %v666 = vadd.f32 %v401, %v665
        %v667 = vpop.f32.mrb[0].mxu0
        %v668 = vadd.f32 %v405, %v667
        %669 = vdwg.mxu0
        %670 = vmatprep.subr.mxu0 0.0
        %671 = vmatpush1.msra.mxu0 %v350
        %672 = vmatprep.subr.mxu0 0.0
        %673 = vmatpush1.msra.mxu0 %v353
        %674 = vmatprep.subr.mxu0 0.0
        %675 = vmatpush1.msra.mxu0 %v356
        %676 = vmatprep.subr.mxu0 0.0
        %677 = vmatpush1.msra.mxu0 %v359
        %678 = vmatprep.subr.mxu0 0.0
        %679 = vmatpush1.msra.mxu0 %v362
        %680 = vmatprep.subr.mxu0 0.0
        %681 = vmatpush1.msra.mxu0 %v365
        %682 = vmatprep.subr.mxu0 0.0
        %683 = vmatpush1.msra.mxu0 %v368
        %684 = vmatprep.subr.mxu0 0.0
        %685 = vmatpush1.msra.mxu0 %v371
        %686 = vmatprep.subr.mxu0 0.0
        %687 = vmatpush1.msra.mxu0 %v374
        %688 = vmatprep.subr.mxu0 0.0
        %689 = vmatpush1.msra.mxu0 %v377
        %690 = vmatprep.subr.mxu0 0.0
        %691 = vmatpush1.msra.mxu0 %v380
        %692 = vmatprep.subr.mxu0 0.0
        %693 = vmatpush1.msra.mxu0 %v383
        %694 = vmatprep.subr.mxu0 0.0
        %695 = vmatpush1.msra.mxu0 %v386
        %696 = vmatprep.subr.mxu0 0.0
        %697 = vmatpush1.msra.mxu0 %v389
        %698 = vmatprep.subr.mxu0 0.0
        %699 = vmatpush1.msra.mxu0 %v392
        %700 = vmatprep.subr.mxu0 0.0
        %701 = vmatpush1.msra.mxu0 %v395
        %702 = vmatprep.subr.mxu0 0.0
        %703 = vmatpush1.msra.mxu0 0.0
        %704 = vmatprep.subr.mxu0 0.0
        %705 = vmatpush1.msra.mxu0 0.0
        %706 = vmatprep.subr.mxu0 0.0
        %707 = vmatpush1.msra.mxu0 0.0
        %708 = vmatprep.subr.mxu0 0.0
        %709 = vmatpush1.msra.mxu0 0.0
        %710 = vmatprep.subr.mxu0 0.0
        %711 = vmatpush1.msra.mxu0 0.0
        %712 = vmatprep.subr.mxu0 0.0
        %713 = vmatpush1.msra.mxu0 0.0
        %714 = vmatprep.subr.mxu0 0.0
        %715 = vmatpush1.msra.mxu0 0.0
        %716 = vmatprep.subr.mxu0 0.0
        %717 = vmatpush1.msra.mxu0 0.0
        %718 = vmatprep.subr.mxu0 0.0
        %719 = vmatpush1.msra.mxu0 0.0
        %720 = vmatprep.subr.mxu0 0.0
        %721 = vmatpush1.msra.mxu0 0.0
        %722 = vmatprep.subr.mxu0 0.0
        %723 = vmatpush1.msra.mxu0 0.0
        %724 = vmatprep.subr.mxu0 0.0
        %725 = vmatpush1.msra.mxu0 0.0
        %726 = vmatprep.subr.mxu0 0.0
        %727 = vmatpush1.msra.mxu0 0.0
        %728 = vmatprep.subr.mxu0 0.0
        %729 = vmatpush1.msra.mxu0 0.0
        %730 = vmatprep.subr.mxu0 0.0
        %731 = vmatpush1.msra.mxu0 0.0
        %732 = vmatprep.subr.mxu0 0.0
        %733 = vmatpush1.msra.mxu0 0.0
        %734 = vmatprep.mubr.f32.mxu0 0.0
        %735 = vmatmul.mubr.f32.gmra.mrb[0].mxu0 %v316
        %v736 = vpop.f32.mrb[0].mxu0
        %v737 = vadd.f32 %v409, %v736
        %v738 = vpop.f32.mrb[0].mxu0
        %739 = vmatprep.mubr.f32.mxu0 0.0
        %740 = vmatmul.mubr.f32.gmra.mrb[0].mxu0 %v317
        %v741 = vpop.f32.mrb[0].mxu0
        %v742 = vadd.f32 %v409, %v741
        %v743 = vpop.f32.mrb[0].mxu0
        %744 = vmatprep.mubr.f32.mxu0 0.0
        %745 = vmatmul.mubr.f32.gmra.mrb[0].mxu0 %v318
        %v746 = vpop.f32.mrb[0].mxu0
        %v747 = vadd.f32 %v409, %v746
        %v748 = vpop.f32.mrb[0].mxu0
        %749 = vmatprep.mubr.f32.mxu0 0.0
        %750 = vmatmul.mubr.f32.gmra.mrb[0].mxu0 %v319
        %v751 = vpop.f32.mrb[0].mxu0
        %v752 = vadd.f32 %v409, %v751
        %v753 = vpop.f32.mrb[0].mxu0
        %754 = vmatprep.mubr.f32.mxu0 0.0
        %755 = vmatmul.mubr.f32.gmra.mrb[0].mxu0 %v320
        %v756 = vpop.f32.mrb[0].mxu0
        %v757 = vadd.f32 %v409, %v756
        %v758 = vpop.f32.mrb[0].mxu0
        %759 = vmatprep.mubr.f32.mxu0 0.0
        %760 = vmatmul.mubr.f32.gmra.mrb[0].mxu0 %v321
        %v761 = vpop.f32.mrb[0].mxu0
        %v762 = vadd.f32 %v409, %v761
        %v763 = vpop.f32.mrb[0].mxu0
        %764 = vmatprep.mubr.f32.mxu0 0.0
        %765 = vmatmul.mubr.f32.gmra.mrb[0].mxu0 %v322
        %v766 = vpop.f32.mrb[0].mxu0
        %v767 = vadd.f32 %v409, %v766
        %v768 = vpop.f32.mrb[0].mxu0
        %769 = vmatprep.mubr.f32.mxu0 0.0
        %770 = vmatmul.mubr.f32.gmra.mrb[0].mxu0 %v323
        %v771 = vpop.f32.mrb[0].mxu0
        %v772 = vadd.f32 %v409, %v771
        %v773 = vpop.f32.mrb[0].mxu0
        %774 = vmatprep.mubr.f32.mxu0 0.0
        %775 = vmatmul.mubr.f32.gmra.mrb[0].mxu0 %v324
        %v776 = vpop.f32.mrb[0].mxu0
        %v777 = vadd.f32 %v409, %v776
        %v778 = vpop.f32.mrb[0].mxu0
        %779 = vmatprep.mubr.f32.mxu0 0.0
        %780 = vmatmul.mubr.f32.gmra.mrb[0].mxu0 %v325
        %v781 = vpop.f32.mrb[0].mxu0
        %v782 = vadd.f32 %v409, %v781
        %v783 = vpop.f32.mrb[0].mxu0
        %784 = vmatprep.mubr.f32.mxu0 0.0
        %785 = vmatmul.mubr.f32.gmra.mrb[0].mxu0 %v326
        %v786 = vpop.f32.mrb[0].mxu0
        %v787 = vadd.f32 %v409, %v786
        %v788 = vpop.f32.mrb[0].mxu0
        %789 = vmatprep.mubr.f32.mxu0 0.0
        %790 = vmatmul.mubr.f32.gmra.mrb[0].mxu0 %v327
        %v791 = vpop.f32.mrb[0].mxu0
        %v792 = vadd.f32 %v409, %v791
        %v793 = vpop.f32.mrb[0].mxu0
        %794 = vmatprep.mubr.f32.mxu0 0.0
        %795 = vmatmul.mubr.f32.gmra.mrb[0].mxu0 %v328
        %v796 = vpop.f32.mrb[0].mxu0
        %v797 = vadd.f32 %v409, %v796
        %v798 = vpop.f32.mrb[0].mxu0
        %799 = vmatprep.mubr.f32.mxu0 0.0
        %800 = vmatmul.mubr.f32.gmra.mrb[0].mxu0 %v329
        %v801 = vpop.f32.mrb[0].mxu0
        %v802 = vadd.f32 %v409, %v801
        %v803 = vpop.f32.mrb[0].mxu0
        %804 = vmatprep.mubr.f32.mxu0 0.0
        %805 = vmatmul.mubr.f32.gmra.mrb[0].mxu0 %v330
        %v806 = vpop.f32.mrb[0].mxu0
        %v807 = vadd.f32 %v409, %v806
        %v808 = vpop.f32.mrb[0].mxu0
        %809 = vmatprep.mubr.f32.mxu0 0.0
        %810 = vmatmul.mubr.f32.gmra.mrb[0].mxu0 %v331
        %v811 = vpop.f32.mrb[0].mxu0
        %v812 = vadd.f32 %v409, %v811
        %v813 = vpop.f32.mrb[0].mxu0
        %814 = vmatprep.mubr.f32.mxu0 0.0
        %815 = vmatmul.mubr.f32.gmra.mrb[0].mxu0 %v332
        %v816 = vpop.f32.mrb[0].mxu0
        %v817 = vadd.f32 %v409, %v816
        %v818 = vpop.f32.mrb[0].mxu0
        %819 = vmatprep.mubr.f32.mxu0 0.0
        %820 = vmatmul.mubr.f32.gmra.mrb[0].mxu0 %v333
        %v821 = vpop.f32.mrb[0].mxu0
        %v822 = vadd.f32 %v409, %v821
        %v823 = vpop.f32.mrb[0].mxu0
        %824 = vmatprep.mubr.f32.mxu0 0.0
        %825 = vmatmul.mubr.f32.gmra.mrb[0].mxu0 %v334
        %v826 = vpop.f32.mrb[0].mxu0
        %v827 = vadd.f32 %v409, %v826
        %v828 = vpop.f32.mrb[0].mxu0
        %829 = vmatprep.mubr.f32.mxu0 0.0
        %830 = vmatmul.mubr.f32.gmra.mrb[0].mxu0 %v335
        %v831 = vpop.f32.mrb[0].mxu0
        %v832 = vadd.f32 %v409, %v831
        %v833 = vpop.f32.mrb[0].mxu0
        %834 = vmatprep.mubr.f32.mxu0 0.0
        %835 = vmatmul.mubr.f32.gmra.mrb[0].mxu0 %v336
        %v836 = vpop.f32.mrb[0].mxu0
        %v837 = vadd.f32 %v409, %v836
        %v838 = vpop.f32.mrb[0].mxu0
        %839 = vmatprep.mubr.f32.mxu0 0.0
        %840 = vmatmul.mubr.f32.gmra.mrb[0].mxu0 %v337
        %v841 = vpop.f32.mrb[0].mxu0
        %v842 = vadd.f32 %v409, %v841
        %v843 = vpop.f32.mrb[0].mxu0
        %844 = vmatprep.mubr.f32.mxu0 0.0
        %845 = vmatmul.mubr.f32.gmra.mrb[0].mxu0 %v338
        %v846 = vpop.f32.mrb[0].mxu0
        %v847 = vadd.f32 %v409, %v846
        %v848 = vpop.f32.mrb[0].mxu0
        %849 = vmatprep.mubr.f32.mxu0 0.0
        %850 = vmatmul.mubr.f32.gmra.mrb[0].mxu0 %v339
        %v851 = vpop.f32.mrb[0].mxu0
        %v852 = vadd.f32 %v409, %v851
        %v853 = vpop.f32.mrb[0].mxu0
        %854 = vmatprep.mubr.f32.mxu0 0.0
        %855 = vmatmul.mubr.f32.gmra.mrb[0].mxu0 %v340
        %v856 = vpop.f32.mrb[0].mxu0
        %v857 = vadd.f32 %v409, %v856
        %v858 = vpop.f32.mrb[0].mxu0
        %859 = vmatprep.mubr.f32.mxu0 0.0
        %860 = vmatmul.mubr.f32.gmra.mrb[0].mxu0 %v341
        %v861 = vpop.f32.mrb[0].mxu0
        %v862 = vadd.f32 %v409, %v861
        %v863 = vpop.f32.mrb[0].mxu0
        %864 = vmatprep.mubr.f32.mxu0 0.0
        %865 = vmatmul.mubr.f32.gmra.mrb[0].mxu0 %v342
        %v866 = vpop.f32.mrb[0].mxu0
        %v867 = vadd.f32 %v409, %v866
        %v868 = vpop.f32.mrb[0].mxu0
        %869 = vmatprep.mubr.f32.mxu0 0.0
        %870 = vmatmul.mubr.f32.gmra.mrb[0].mxu0 %v343
        %v871 = vpop.f32.mrb[0].mxu0
        %v872 = vadd.f32 %v409, %v871
        %v873 = vpop.f32.mrb[0].mxu0
        %874 = vmatprep.mubr.f32.mxu0 0.0
        %875 = vmatmul.mubr.f32.gmra.mrb[0].mxu0 %v344
        %v876 = vpop.f32.mrb[0].mxu0
        %v877 = vadd.f32 %v409, %v876
        %v878 = vpop.f32.mrb[0].mxu0
        %879 = vmatprep.mubr.f32.mxu0 0.0
        %880 = vmatmul.mubr.f32.gmra.mrb[0].mxu0 %v345
        %v881 = vpop.f32.mrb[0].mxu0
        %v882 = vadd.f32 %v409, %v881
        %v883 = vpop.f32.mrb[0].mxu0
        %884 = vmatprep.mubr.f32.mxu0 0.0
        %885 = vmatmul.mubr.f32.gmra.mrb[0].mxu0 %v346
        %v886 = vpop.f32.mrb[0].mxu0
        %v887 = vadd.f32 %v409, %v886
        %v888 = vpop.f32.mrb[0].mxu0
        %889 = vmatprep.mubr.f32.mxu0 0.0
        %890 = vmatmul.mubr.f32.gmra.mrb[0].mxu0 %v347
        %v891 = vpop.f32.mrb[0].mxu0
        %v892 = vadd.f32 %v409, %v891
        %v893 = vpop.f32.mrb[0].mxu0
        %894 = vdwg.mxu0
        %895 = vst [vmem:[#allocation2] sm:$0xff] %v480
        %896 = vst [vmem:[#allocation2 + $0x8] sm:$0xff] %v482
        %897 = vst [vmem:[#allocation2 + $0x10] sm:$0xff] %v737
        %898 = vst [vmem:[#allocation2 + $0x18] sm:$0xff] %v486
        %899 = vst [vmem:[#allocation2 + $0x20] sm:$0xff] %v488
        %900 = vst [vmem:[#allocation2 + $0x28] sm:$0xff] %v742
        %901 = vst [vmem:[#allocation2 + $0x30] sm:$0xff] %v492
        %902 = vst [vmem:[#allocation2 + $0x38] sm:$0xff] %v494
        %903 = vst [vmem:[#allocation2 + $0x40] sm:$0xff] %v747
        %904 = vst [vmem:[#allocation2 + $0x48] sm:$0xff] %v498
        %905 = vst [vmem:[#allocation2 + $0x50] sm:$0xff] %v500
        %906 = vst [vmem:[#allocation2 + $0x58] sm:$0xff] %v752
        %907 = vst [vmem:[#allocation2 + $0x60] sm:$0xff] %v504
        %908 = vst [vmem:[#allocation2 + $0x68] sm:$0xff] %v506
        %909 = vst [vmem:[#allocation2 + $0x70] sm:$0xff] %v757
        %910 = vst [vmem:[#allocation2 + $0x78] sm:$0xff] %v510
        %911 = vst [vmem:[#allocation2 + $0x80] sm:$0xff] %v512
        %912 = vst [vmem:[#allocation2 + $0x88] sm:$0xff] %v762
        %913 = vst [vmem:[#allocation2 + $0x90] sm:$0xff] %v516
        %914 = vst [vmem:[#allocation2 + $0x98] sm:$0xff] %v518
        %915 = vst [vmem:[#allocation2 + $0xa0] sm:$0xff] %v767
        %916 = vst [vmem:[#allocation2 + $0xa8] sm:$0xff] %v522
        %917 = vst [vmem:[#allocation2 + $0xb0] sm:$0xff] %v524
        %918 = vst [vmem:[#allocation2 + $0xb8] sm:$0xff] %v772
        %919 = vst [vmem:[#allocation2 + $0xc0] sm:$0xff] %v528
        %920 = vst [vmem:[#allocation2 + $0xc8] sm:$0xff] %v530
        %921 = vst [vmem:[#allocation2 + $0xd0] sm:$0xff] %v777
        %922 = vst [vmem:[#allocation2 + $0xd8] sm:$0xff] %v534
        %923 = vst [vmem:[#allocation2 + $0xe0] sm:$0xff] %v536
        %924 = vst [vmem:[#allocation2 + $0xe8] sm:$0xff] %v782
        %925 = vst [vmem:[#allocation2 + $0xf0] sm:$0xff] %v540
        %926 = vst [vmem:[#allocation2 + $0xf8] sm:$0xff] %v542
        %927 = vst [vmem:[#allocation2 + $0x100] sm:$0xff] %v787
        %928 = vst [vmem:[#allocation2 + $0x108] sm:$0xff] %v546
        %929 = vst [vmem:[#allocation2 + $0x110] sm:$0xff] %v548
        %930 = vst [vmem:[#allocation2 + $0x118] sm:$0xff] %v792
        %931 = vst [vmem:[#allocation2 + $0x120] sm:$0xff] %v552
        %932 = vst [vmem:[#allocation2 + $0x128] sm:$0xff] %v554
        %933 = vst [vmem:[#allocation2 + $0x130] sm:$0xff] %v797
        %934 = vst [vmem:[#allocation2 + $0x138] sm:$0xff] %v558
        %935 = vst [vmem:[#allocation2 + $0x140] sm:$0xff] %v560
        %936 = vst [vmem:[#allocation2 + $0x148] sm:$0xff] %v802
        %937 = vst [vmem:[#allocation2 + $0x150] sm:$0xff] %v564
        %938 = vst [vmem:[#allocation2 + $0x158] sm:$0xff] %v566
        %939 = vst [vmem:[#allocation2 + $0x160] sm:$0xff] %v807
        %940 = vst [vmem:[#allocation2 + $0x168] sm:$0xff] %v570
        %941 = vst [vmem:[#allocation2 + $0x170] sm:$0xff] %v572
        %942 = vst [vmem:[#allocation2 + $0x178] sm:$0xff] %v812
        %943 = vst [vmem:[#allocation2 + $0x180] sm:$0xff] %v576
        %944 = vst [vmem:[#allocation2 + $0x188] sm:$0xff] %v578
        %945 = vst [vmem:[#allocation2 + $0x190] sm:$0xff] %v817
        %946 = vst [vmem:[#allocation2 + $0x198] sm:$0xff] %v582
        %947 = vst [vmem:[#allocation2 + $0x1a0] sm:$0xff] %v584
        %948 = vst [vmem:[#allocation2 + $0x1a8] sm:$0xff] %v822
        %949 = vst [vmem:[#allocation2 + $0x1b0] sm:$0xff] %v588
        %950 = vst [vmem:[#allocation2 + $0x1b8] sm:$0xff] %v590
        %951 = vst [vmem:[#allocation2 + $0x1c0] sm:$0xff] %v827
        %952 = vst [vmem:[#allocation2 + $0x1c8] sm:$0xff] %v594
        %953 = vst [vmem:[#allocation2 + $0x1d0] sm:$0xff] %v596
        %954 = vst [vmem:[#allocation2 + $0x1d8] sm:$0xff] %v832
        %955 = vst [vmem:[#allocation2 + $0x1e0] sm:$0xff] %v600
        %956 = vst [vmem:[#allocation2 + $0x1e8] sm:$0xff] %v602
        %957 = vst [vmem:[#allocation2 + $0x1f0] sm:$0xff] %v837
        %958 = vst [vmem:[#allocation2 + $0x1f8] sm:$0xff] %v606
        %959 = vst [vmem:[#allocation2 + $0x200] sm:$0xff] %v608
        %960 = vst [vmem:[#allocation2 + $0x208] sm:$0xff] %v842
        %961 = vst [vmem:[#allocation2 + $0x210] sm:$0xff] %v612
        %962 = vst [vmem:[#allocation2 + $0x218] sm:$0xff] %v614
        %963 = vst [vmem:[#allocation2 + $0x220] sm:$0xff] %v847
        %964 = vst [vmem:[#allocation2 + $0x228] sm:$0xff] %v618
        %965 = vst [vmem:[#allocation2 + $0x230] sm:$0xff] %v620
        %966 = vst [vmem:[#allocation2 + $0x238] sm:$0xff] %v852
        %967 = vst [vmem:[#allocation2 + $0x240] sm:$0xff] %v624
        %968 = vst [vmem:[#allocation2 + $0x248] sm:$0xff] %v626
        %969 = vst [vmem:[#allocation2 + $0x250] sm:$0xff] %v857
        %970 = vst [vmem:[#allocation2 + $0x258] sm:$0xff] %v630
        %971 = vst [vmem:[#allocation2 + $0x260] sm:$0xff] %v632
        %972 = vst [vmem:[#allocation2 + $0x268] sm:$0xff] %v862
        %973 = vst [vmem:[#allocation2 + $0x270] sm:$0xff] %v636
        %974 = vst [vmem:[#allocation2 + $0x278] sm:$0xff] %v638
        %975 = vst [vmem:[#allocation2 + $0x280] sm:$0xff] %v867
        %976 = vst [vmem:[#allocation2 + $0x288] sm:$0xff] %v642
        %977 = vst [vmem:[#allocation2 + $0x290] sm:$0xff] %v644
        %978 = vst [vmem:[#allocation2 + $0x298] sm:$0xff] %v872
        %979 = vst [vmem:[#allocation2 + $0x2a0] sm:$0xff] %v648
        %980 = vst [vmem:[#allocation2 + $0x2a8] sm:$0xff] %v650
        %981 = vst [vmem:[#allocation2 + $0x2b0] sm:$0xff] %v877
        %982 = vst [vmem:[#allocation2 + $0x2b8] sm:$0xff] %v654
        %983 = vst [vmem:[#allocation2 + $0x2c0] sm:$0xff] %v656
        %984 = vst [vmem:[#allocation2 + $0x2c8] sm:$0xff] %v882
        %985 = vst [vmem:[#allocation2 + $0x2d0] sm:$0xff] %v660
        %986 = vst [vmem:[#allocation2 + $0x2d8] sm:$0xff] %v662
        %987 = vst [vmem:[#allocation2 + $0x2e0] sm:$0xff] %v887
        %988 = vst [vmem:[#allocation2 + $0x2e8] sm:$0xff] %v666
        %989 = vst [vmem:[#allocation2 + $0x2f0] sm:$0xff] %v668
        %990 = vst [vmem:[#allocation2 + $0x2f8] sm:$0xff] %v892
        %v991 = vld [vmem:[#allocation2] sm:$0xff]
        %v992 = vld [vmem:[#allocation2 + $0x18] sm:$0xff]
        %v993 = vld [vmem:[#allocation2 + $0x30] sm:$0xff]
        %v994 = vld [vmem:[#allocation2 + $0x48] sm:$0xff]
        %v995 = vld [vmem:[#allocation2 + $0x60] sm:$0xff]
        %v996 = vld [vmem:[#allocation2 + $0x78] sm:$0xff]
        %v997 = vld [vmem:[#allocation2 + $0x90] sm:$0xff]
        %v998 = vld [vmem:[#allocation2 + $0xa8] sm:$0xff]
        %v999 = vld [vmem:[#allocation2 + $0x8] sm:$0xff]
        %v1000 = vld [vmem:[#allocation2 + $0x20] sm:$0xff]
        %v1001 = vld [vmem:[#allocation2 + $0x38] sm:$0xff]
        %v1002 = vld [vmem:[#allocation2 + $0x50] sm:$0xff]
        %v1003 = vld [vmem:[#allocation2 + $0x68] sm:$0xff]
        %v1004 = vld [vmem:[#allocation2 + $0x80] sm:$0xff]
        %v1005 = vld [vmem:[#allocation2 + $0x98] sm:$0xff]
        %v1006 = vld [vmem:[#allocation2 + $0xb0] sm:$0xff]
        %v1007 = vld [vmem:[#allocation2 + $0x10] sm:$0xff]
        %v1008 = vld [vmem:[#allocation2 + $0x28] sm:$0xff]
        %v1009 = vld [vmem:[#allocation2 + $0x40] sm:$0xff]
        %v1010 = vld [vmem:[#allocation2 + $0x58] sm:$0xff]
        %v1011 = vld [vmem:[#allocation2 + $0x70] sm:$0xff]
        %v1012 = vld [vmem:[#allocation2 + $0x88] sm:$0xff]
        %v1013 = vld [vmem:[#allocation2 + $0xa0] sm:$0xff]
        %v1014 = vld [vmem:[#allocation2 + $0xb8] sm:$0xff]
        %v1015 = vld [vmem:[#allocation10] sm:$0xff]
        %v1016 = vld [vmem:[#allocation10 + $0x8] sm:$0xff]
        %v1017 = vld [vmem:[#allocation10 + $0x10] sm:$0xff]
        %v1018 = vld [vmem:[#allocation10 + $0x18] sm:$0xff]
        %v1019 = vld [vmem:[#allocation10 + $0x20] sm:$0xff]
        %v1020 = vld [vmem:[#allocation10 + $0x28] sm:$0xff]
        %v1021 = vld [vmem:[#allocation10 + $0x30] sm:$0xff]
        %v1022 = vld [vmem:[#allocation10 + $0x38] sm:$0xff]
        %vm1023 = vcmask 261120
        %v1025 = vsel %vm1023, %v991, 0
        %v1028 = vsel %vm1023, %v992, 0
        %v1031 = vsel %vm1023, %v993, 0
        %v1034 = vsel %vm1023, %v994, 0
        %v1037 = vsel %vm1023, %v995, 0
        %v1040 = vsel %vm1023, %v996, 0
        %v1043 = vsel %vm1023, %v997, 0
        %v1046 = vsel %vm1023, %v998, 0
        %v1049 = vsel %vm1023, %v999, 0
        %v1052 = vsel %vm1023, %v1000, 0
        %v1055 = vsel %vm1023, %v1001, 0
        %v1058 = vsel %vm1023, %v1002, 0
        %v1061 = vsel %vm1023, %v1003, 0
        %v1064 = vsel %vm1023, %v1004, 0
        %v1067 = vsel %vm1023, %v1005, 0
        %v1070 = vsel %vm1023, %v1006, 0
        %1072 = vmatprep.subr.mxu0 0.0
        %1073 = vmatpush1.xpose.msra.mxu0 %v1049
        %1074 = vmatprep.subr.mxu0 0.0
        %1075 = vmatpush1.xpose.msra.mxu0 %v1052
        %1076 = vmatprep.subr.mxu0 0.0
        %1077 = vmatpush1.xpose.msra.mxu0 %v1055
        %1078 = vmatprep.subr.mxu0 0.0
        %1079 = vmatpush1.xpose.msra.mxu0 %v1058
        %1080 = vmatprep.subr.mxu0 0.0
        %1081 = vmatpush1.xpose.msra.mxu0 %v1061
        %1082 = vmatprep.subr.mxu0 0.0
        %1083 = vmatpush1.xpose.msra.mxu0 %v1064
        %1084 = vmatprep.subr.mxu0 0.0
        %1085 = vmatpush1.xpose.msra.mxu0 %v1067
        %1086 = vmatprep.subr.mxu0 0.0
        %1087 = vmatpush1.xpose.msra.mxu0 %v1070
        %1088 = vmatprep.subr.mxu0 0.0
        %1089 = vmatpush1.xpose.msra.mxu0 0.0
        %1090 = vmatprep.subr.mxu0 0.0
        %1091 = vmatpush1.xpose.msra.mxu0 0.0
        %1092 = vmatprep.subr.mxu0 0.0
        %1093 = vmatpush1.xpose.msra.mxu0 0.0
        %1094 = vmatprep.subr.mxu0 0.0
        %1095 = vmatpush1.xpose.msra.mxu0 0.0
        %1096 = vmatprep.subr.mxu0 0.0
        %1097 = vmatpush1.xpose.msra.mxu0 0.0
        %1098 = vmatprep.subr.mxu0 0.0
        %1099 = vmatpush1.xpose.msra.mxu0 0.0
        %1100 = vmatprep.subr.mxu0 0.0
        %1101 = vmatpush1.xpose.msra.mxu0 0.0
        %1102 = vmatprep.subr.mxu0 0.0
        %1103 = vmatpush1.xpose.msra.mxu0 0.0
        %1104 = vmatprep.subr.mxu0 0.0
        %1105 = vmatpush1.xpose.msra.mxu0 0.0
        %1106 = vmatprep.subr.mxu0 0.0
        %1107 = vmatpush1.xpose.msra.mxu0 0.0
        %1108 = vmatprep.subr.mxu0 0.0
        %1109 = vmatpush1.xpose.msra.mxu0 0.0
        %1110 = vmatprep.subr.mxu0 0.0
        %1111 = vmatpush1.xpose.msra.mxu0 0.0
        %1112 = vmatprep.subr.mxu0 0.0
        %1113 = vmatpush1.xpose.msra.mxu0 0.0
        %1114 = vmatprep.subr.mxu0 0.0
        %1115 = vmatpush1.xpose.msra.mxu0 0.0
        %1116 = vmatprep.subr.mxu0 0.0
        %1117 = vmatpush1.xpose.msra.mxu0 0.0
        %1118 = vmatprep.subr.mxu0 0.0
        %1119 = vmatpush1.xpose.msra.mxu0 0.0
        %1120 = vmatprep.subr.mxu0 0.0
        %1121 = vmatpush1.xpose.msra.mxu0 0.0
        %1122 = vmatprep.subr.mxu0 0.0
        %1123 = vmatpush1.xpose.msra.mxu0 0.0
        %1124 = vmatprep.subr.mxu0 0.0
        %1125 = vmatpush1.xpose.msra.mxu0 0.0
        %1126 = vmatprep.subr.mxu0 0.0
        %1127 = vmatpush1.xpose.msra.mxu0 0.0
        %1128 = vmatprep.subr.mxu0 0.0
        %1129 = vmatpush1.xpose.msra.mxu0 0.0
        %1130 = vmatprep.subr.mxu0 0.0
        %1131 = vmatpush1.xpose.msra.mxu0 0.0
        %1132 = vmatprep.subr.mxu0 0.0
        %1133 = vmatpush1.xpose.msra.mxu0 0.0
        %1134 = vmatprep.subr.mxu0 0.0
        %1135 = vmatpush1.xpose.msra.mxu0 0.0
        %1136 = vmatprep.mubr.f32.mxu0 0.0
        %1137 = vmatmul.mubr.f32.gmra.mrb[0].mxu0 %v1025
        %v1138 = vpop.f32.mrb[0].mxu0
        %v1139 = vadd.f32 %v1015, %v1138
        %v1140 = vpop.f32.mrb[0].mxu0
        %1141 = vmatprep.mubr.f32.mxu0 0.0
        %1142 = vmatmul.mubr.f32.gmra.mrb[0].mxu0 %v1028
        %v1143 = vpop.f32.mrb[0].mxu0
        %v1144 = vadd.f32 %v1016, %v1143
        %v1145 = vpop.f32.mrb[0].mxu0
        %1146 = vmatprep.mubr.f32.mxu0 0.0
        %1147 = vmatmul.mubr.f32.gmra.mrb[0].mxu0 %v1031
        %v1148 = vpop.f32.mrb[0].mxu0
        %v1149 = vadd.f32 %v1017, %v1148
        %v1150 = vpop.f32.mrb[0].mxu0
        %1151 = vmatprep.mubr.f32.mxu0 0.0
        %1152 = vmatmul.mubr.f32.gmra.mrb[0].mxu0 %v1034
        %v1153 = vpop.f32.mrb[0].mxu0
        %v1154 = vadd.f32 %v1018, %v1153
        %v1155 = vpop.f32.mrb[0].mxu0
        %1156 = vmatprep.mubr.f32.mxu0 0.0
        %1157 = vmatmul.mubr.f32.gmra.mrb[0].mxu0 %v1037
        %v1158 = vpop.f32.mrb[0].mxu0
        %v1159 = vadd.f32 %v1019, %v1158
        %v1160 = vpop.f32.mrb[0].mxu0
        %1161 = vmatprep.mubr.f32.mxu0 0.0
        %1162 = vmatmul.mubr.f32.gmra.mrb[0].mxu0 %v1040
        %v1163 = vpop.f32.mrb[0].mxu0
        %v1164 = vadd.f32 %v1020, %v1163
        %v1165 = vpop.f32.mrb[0].mxu0
        %1166 = vmatprep.mubr.f32.mxu0 0.0
        %1167 = vmatmul.mubr.f32.gmra.mrb[0].mxu0 %v1043
        %v1168 = vpop.f32.mrb[0].mxu0
        %v1169 = vadd.f32 %v1021, %v1168
        %v1170 = vpop.f32.mrb[0].mxu0
        %1171 = vmatprep.mubr.f32.mxu0 0.0
        %1172 = vmatmul.mubr.f32.gmra.mrb[0].mxu0 %v1046
        %v1173 = vpop.f32.mrb[0].mxu0
        %v1174 = vadd.f32 %v1022, %v1173
        %v1175 = vpop.f32.mrb[0].mxu0
        %1176 = vdwg.mxu0
        %vm1177 = vcmask 523264
        %v1178 = vsel %vm1177, %v1139, -inf
        %1179 = vmax.xlane.f32.xlu0 %v1178
        %v1180 = vpop.xlane.xlu0 %1179
        %v1181 = vsel %vm1177, %v1144, -inf
        %1182 = vmax.xlane.f32.xlu0 %v1181
        %v1183 = vpop.xlane.xlu0 %1182
        %v1184 = vsel %vm1177, %v1149, -inf
        %1185 = vmax.xlane.f32.xlu0 %v1184
        %v1186 = vpop.xlane.xlu0 %1185
        %v1187 = vsel %vm1177, %v1154, -inf
        %1188 = vmax.xlane.f32.xlu0 %v1187
        %v1189 = vpop.xlane.xlu0 %1188
        %v1190 = vsel %vm1177, %v1159, -inf
        %1191 = vmax.xlane.f32.xlu0 %v1190
        %v1192 = vpop.xlane.xlu0 %1191
        %v1193 = vsel %vm1177, %v1164, -inf
        %1194 = vmax.xlane.f32.xlu0 %v1193
        %v1195 = vpop.xlane.xlu0 %1194
        %v1196 = vsel %vm1177, %v1169, -inf
        %1197 = vmax.xlane.f32.xlu0 %v1196
        %v1198 = vpop.xlane.xlu0 %1197
        %v1199 = vsel %vm1177, %v1174, -inf
        %1200 = vmax.xlane.f32.xlu0 %v1199
        %v1201 = vpop.xlane.xlu0 %1200
        %v1202 = vsub.f32 %v1139, %v1180
        %v1203 = vsub.f32 %v1144, %v1183
        %v1204 = vsub.f32 %v1149, %v1186
        %v1205 = vsub.f32 %v1154, %v1189
        %v1206 = vsub.f32 %v1159, %v1192
        %v1207 = vsub.f32 %v1164, %v1195
        %v1208 = vsub.f32 %v1169, %v1198
        %v1209 = vsub.f32 %v1174, %v1201
        %v1210 = vmul.f32 %v1202, 1.442695
        %v1211 = vpow.pop %v1210
        %v1212 = vmul.f32 %v1203, 1.442695
        %v1213 = vpow.pop %v1212
        %v1214 = vmul.f32 %v1204, 1.442695
        %v1215 = vpow.pop %v1214
        %v1216 = vmul.f32 %v1205, 1.442695
        %v1217 = vpow.pop %v1216
        %v1218 = vmul.f32 %v1206, 1.442695
        %v1219 = vpow.pop %v1218
        %v1220 = vmul.f32 %v1207, 1.442695
        %v1221 = vpow.pop %v1220
        %v1222 = vmul.f32 %v1208, 1.442695
        %v1223 = vpow.pop %v1222
        %v1224 = vmul.f32 %v1209, 1.442695
        %v1225 = vpow.pop %v1224
        %v1226 = vsel %vm1177, %v1211, 0.0
        %1227 = vadd.xlane.f32.xlu0 %v1226
        %v1228 = vpop.xlane.xlu0 %1227
        %v1229 = vsel %vm1177, %v1213, 0.0
        %1230 = vadd.xlane.f32.xlu0 %v1229
        %v1231 = vpop.xlane.xlu0 %1230
        %v1232 = vsel %vm1177, %v1215, 0.0
        %1233 = vadd.xlane.f32.xlu0 %v1232
        %v1234 = vpop.xlane.xlu0 %1233
        %v1235 = vsel %vm1177, %v1217, 0.0
        %1236 = vadd.xlane.f32.xlu0 %v1235
        %v1237 = vpop.xlane.xlu0 %1236
        %v1238 = vsel %vm1177, %v1219, 0.0
        %1239 = vadd.xlane.f32.xlu0 %v1238
        %v1240 = vpop.xlane.xlu0 %1239
        %v1241 = vsel %vm1177, %v1221, 0.0
        %1242 = vadd.xlane.f32.xlu0 %v1241
        %v1243 = vpop.xlane.xlu0 %1242
        %v1244 = vsel %vm1177, %v1223, 0.0
        %1245 = vadd.xlane.f32.xlu0 %v1244
        %v1246 = vpop.xlane.xlu0 %1245
        %v1247 = vsel %vm1177, %v1225, 0.0
        %1248 = vadd.xlane.f32.xlu0 %v1247
        %v1249 = vpop.xlane.xlu0 %1248
        %v1250 = vrcp.pop %v1228
        %v1251 = vrcp.pop %v1231
        %v1252 = vrcp.pop %v1234
        %v1253 = vrcp.pop %v1237
        %v1254 = vrcp.pop %v1240
        %v1255 = vrcp.pop %v1243
        %v1256 = vrcp.pop %v1246
        %v1257 = vrcp.pop %v1249
        %v1258 = vmul.f32 %v1211, %v1250
        %v1259 = vmul.f32 %v1213, %v1251
        %v1260 = vmul.f32 %v1215, %v1252
        %v1261 = vmul.f32 %v1217, %v1253
        %v1262 = vmul.f32 %v1219, %v1254
        %v1263 = vmul.f32 %v1221, %v1255
        %v1264 = vmul.f32 %v1223, %v1256
        %v1265 = vmul.f32 %v1225, %v1257
        %v1267 = vsel %vm1177, %v1258, 0
        %v1270 = vsel %vm1177, %v1259, 0
        %v1273 = vsel %vm1177, %v1260, 0
        %v1276 = vsel %vm1177, %v1261, 0
        %v1279 = vsel %vm1177, %v1262, 0
        %v1282 = vsel %vm1177, %v1263, 0
        %v1285 = vsel %vm1177, %v1264, 0
        %v1288 = vsel %vm1177, %v1265, 0
        %1290 = vmatprep.subr.mxu0 0.0
        %1291 = vmatpush1.msra.mxu0 %v1007
        %1292 = vmatprep.subr.mxu0 0.0
        %1293 = vmatpush1.msra.mxu0 %v1008
        %1294 = vmatprep.subr.mxu0 0.0
        %1295 = vmatpush1.msra.mxu0 %v1009
        %1296 = vmatprep.subr.mxu0 0.0
        %1297 = vmatpush1.msra.mxu0 %v1010
        %1298 = vmatprep.subr.mxu0 0.0
        %1299 = vmatpush1.msra.mxu0 %v1011
        %1300 = vmatprep.subr.mxu0 0.0
        %1301 = vmatpush1.msra.mxu0 %v1012
        %1302 = vmatprep.subr.mxu0 0.0
        %1303 = vmatpush1.msra.mxu0 %v1013
        %1304 = vmatprep.subr.mxu0 0.0
        %1305 = vmatpush1.msra.mxu0 %v1014
        %1306 = vmatprep.subr.mxu0 0.0
        %1307 = vmatpush1.msra.mxu0 0.0
        %1308 = vmatprep.subr.mxu0 0.0
        %1309 = vmatpush1.msra.mxu0 0.0
        %1310 = vmatprep.subr.mxu0 0.0
        %1311 = vmatpush1.msra.mxu0 0.0
        %1312 = vmatprep.subr.mxu0 0.0
        %1313 = vmatpush1.msra.mxu0 0.0
        %1314 = vmatprep.subr.mxu0 0.0
        %1315 = vmatpush1.msra.mxu0 0.0
        %1316 = vmatprep.subr.mxu0 0.0
        %1317 = vmatpush1.msra.mxu0 0.0
        %1318 = vmatprep.subr.mxu0 0.0
        %1319 = vmatpush1.msra.mxu0 0.0
        %1320 = vmatprep.subr.mxu0 0.0
        %1321 = vmatpush1.msra.mxu0 0.0
        %1322 = vmatprep.subr.mxu0 0.0
        %1323 = vmatpush1.msra.mxu0 0.0
        %1324 = vmatprep.subr.mxu0 0.0
        %1325 = vmatpush1.msra.mxu0 0.0
        %1326 = vmatprep.subr.mxu0 0.0
        %1327 = vmatpush1.msra.mxu0 0.0
        %1328 = vmatprep.subr.mxu0 0.0
        %1329 = vmatpush1.msra.mxu0 0.0
        %1330 = vmatprep.subr.mxu0 0.0
        %1331 = vmatpush1.msra.mxu0 0.0
        %1332 = vmatprep.subr.mxu0 0.0
        %1333 = vmatpush1.msra.mxu0 0.0
        %1334 = vmatprep.subr.mxu0 0.0
        %1335 = vmatpush1.msra.mxu0 0.0
        %1336 = vmatprep.subr.mxu0 0.0
        %1337 = vmatpush1.msra.mxu0 0.0
        %1338 = vmatprep.subr.mxu0 0.0
        %1339 = vmatpush1.msra.mxu0 0.0
        %1340 = vmatprep.subr.mxu0 0.0
        %1341 = vmatpush1.msra.mxu0 0.0
        %1342 = vmatprep.subr.mxu0 0.0
        %1343 = vmatpush1.msra.mxu0 0.0
        %1344 = vmatprep.subr.mxu0 0.0
        %1345 = vmatpush1.msra.mxu0 0.0
        %1346 = vmatprep.subr.mxu0 0.0
        %1347 = vmatpush1.msra.mxu0 0.0
        %1348 = vmatprep.subr.mxu0 0.0
        %1349 = vmatpush1.msra.mxu0 0.0
        %1350 = vmatprep.subr.mxu0 0.0
        %1351 = vmatpush1.msra.mxu0 0.0
        %1352 = vmatprep.subr.mxu0 0.0
        %1353 = vmatpush1.msra.mxu0 0.0
        %1354 = vmatprep.mubr.f32.mxu0 0.0
        %1355 = vmatmul.mubr.f32.gmra.mrb[0].mxu0 %v1267
        %v1356 = vpop.f32.mrb[0].mxu0
        %v1357 = vadd.f32 0.0, %v1356
        %v1358 = vpop.f32.mrb[0].mxu0
        %1359 = vmatprep.mubr.f32.mxu0 0.0
        %1360 = vmatmul.mubr.f32.gmra.mrb[0].mxu0 %v1270
        %v1361 = vpop.f32.mrb[0].mxu0
        %v1362 = vadd.f32 0.0, %v1361
        %v1363 = vpop.f32.mrb[0].mxu0
        %1364 = vmatprep.mubr.f32.mxu0 0.0
        %1365 = vmatmul.mubr.f32.gmra.mrb[0].mxu0 %v1273
        %v1366 = vpop.f32.mrb[0].mxu0
        %v1367 = vadd.f32 0.0, %v1366
        %v1368 = vpop.f32.mrb[0].mxu0
        %1369 = vmatprep.mubr.f32.mxu0 0.0
        %1370 = vmatmul.mubr.f32.gmra.mrb[0].mxu0 %v1276
        %v1371 = vpop.f32.mrb[0].mxu0
        %v1372 = vadd.f32 0.0, %v1371
        %v1373 = vpop.f32.mrb[0].mxu0
        %1374 = vmatprep.mubr.f32.mxu0 0.0
        %1375 = vmatmul.mubr.f32.gmra.mrb[0].mxu0 %v1279
        %v1376 = vpop.f32.mrb[0].mxu0
        %v1377 = vadd.f32 0.0, %v1376
        %v1378 = vpop.f32.mrb[0].mxu0
        %1379 = vmatprep.mubr.f32.mxu0 0.0
        %1380 = vmatmul.mubr.f32.gmra.mrb[0].mxu0 %v1282
        %v1381 = vpop.f32.mrb[0].mxu0
        %v1382 = vadd.f32 0.0, %v1381
        %v1383 = vpop.f32.mrb[0].mxu0
        %1384 = vmatprep.mubr.f32.mxu0 0.0
        %1385 = vmatmul.mubr.f32.gmra.mrb[0].mxu0 %v1285
        %v1386 = vpop.f32.mrb[0].mxu0
        %v1387 = vadd.f32 0.0, %v1386
        %v1388 = vpop.f32.mrb[0].mxu0
        %1389 = vmatprep.mubr.f32.mxu0 0.0
        %1390 = vmatmul.mubr.f32.gmra.mrb[0].mxu0 %v1288
        %v1391 = vpop.f32.mrb[0].mxu0
        %v1392 = vadd.f32 0.0, %v1391
        %v1393 = vpop.f32.mrb[0].mxu0
        %1394 = vdwg.mxu0
        %1395 = vst.msk [vmem:[#allocation3] sm:$0xff] %vm1023, %v1357
        %1396 = vst.msk [vmem:[#allocation3 + $0x8] sm:$0xff] %vm1023, %v1362
        %1397 = vst.msk [vmem:[#allocation3 + $0x10] sm:$0xff] %vm1023, %v1367
        %1398 = vst.msk [vmem:[#allocation3 + $0x18] sm:$0xff] %vm1023, %v1372
        %1399 = vst.msk [vmem:[#allocation3 + $0x20] sm:$0xff] %vm1023, %v1377
        %1400 = vst.msk [vmem:[#allocation3 + $0x28] sm:$0xff] %vm1023, %v1382
        %1401 = vst.msk [vmem:[#allocation3 + $0x30] sm:$0xff] %vm1023, %v1387
        %1402 = vst.msk [vmem:[#allocation3 + $0x38] sm:$0xff] %vm1023, %v1392
        %v1403 = vld [vmem:[#allocation2] sm:$0xff]
        %v1404 = vld [vmem:[#allocation2 + $0x18] sm:$0xff]
        %v1405 = vld [vmem:[#allocation2 + $0x30] sm:$0xff]
        %v1406 = vld [vmem:[#allocation2 + $0x48] sm:$0xff]
        %v1407 = vld [vmem:[#allocation2 + $0x60] sm:$0xff]
        %v1408 = vld [vmem:[#allocation2 + $0x78] sm:$0xff]
        %v1409 = vld [vmem:[#allocation2 + $0x90] sm:$0xff]
        %v1410 = vld [vmem:[#allocation2 + $0xa8] sm:$0xff]
        %v1411 = vld [vmem:[#allocation2 + $0x8] sm:$0xff]
        %v1412 = vld [vmem:[#allocation2 + $0x20] sm:$0xff]
        %v1413 = vld [vmem:[#allocation2 + $0x38] sm:$0xff]
        %v1414 = vld [vmem:[#allocation2 + $0x50] sm:$0xff]
        %v1415 = vld [vmem:[#allocation2 + $0x68] sm:$0xff]
        %v1416 = vld [vmem:[#allocation2 + $0x80] sm:$0xff]
        %v1417 = vld [vmem:[#allocation2 + $0x98] sm:$0xff]
        %v1418 = vld [vmem:[#allocation2 + $0xb0] sm:$0xff]
        %v1419 = vld [vmem:[#allocation2 + $0x10] sm:$0xff]
        %v1420 = vld [vmem:[#allocation2 + $0x28] sm:$0xff]
        %v1421 = vld [vmem:[#allocation2 + $0x40] sm:$0xff]
        %v1422 = vld [vmem:[#allocation2 + $0x58] sm:$0xff]
        %v1423 = vld [vmem:[#allocation2 + $0x70] sm:$0xff]
        %v1424 = vld [vmem:[#allocation2 + $0x88] sm:$0xff]
        %v1425 = vld [vmem:[#allocation2 + $0xa0] sm:$0xff]
        %v1426 = vld [vmem:[#allocation2 + $0xb8] sm:$0xff]
        %s1427 = scalar_lea.vmem [#allocation10], 64
        %v1428 = vld [vmem:[%s1427] sm:$0xff]
        %v1429 = vld [vmem:[%s1427 + $0x8] sm:$0xff]
        %v1430 = vld [vmem:[%s1427 + $0x10] sm:$0xff]
        %v1431 = vld [vmem:[%s1427 + $0x18] sm:$0xff]
        %v1432 = vld [vmem:[%s1427 + $0x20] sm:$0xff]
        %v1433 = vld [vmem:[%s1427 + $0x28] sm:$0xff]
        %v1434 = vld [vmem:[%s1427 + $0x30] sm:$0xff]
        %v1435 = vld [vmem:[%s1427 + $0x38] sm:$0xff]
        %1444 = vrot.lane.b32.xlu0 %v1403, 96
        %v1445 = vpop.permute.xlu0 %1444
        %1446 = vrot.lane.b32.xlu0 %v1404, 96
        %v1447 = vpop.permute.xlu0 %1446
        %1448 = vrot.lane.b32.xlu0 %v1405, 96
        %v1449 = vpop.permute.xlu0 %1448
        %1450 = vrot.lane.b32.xlu0 %v1406, 96
        %v1451 = vpop.permute.xlu0 %1450
        %1452 = vrot.lane.b32.xlu0 %v1407, 96
        %v1453 = vpop.permute.xlu0 %1452
        %1454 = vrot.lane.b32.xlu0 %v1408, 96
        %v1455 = vpop.permute.xlu0 %1454
        %1456 = vrot.lane.b32.xlu0 %v1409, 96
        %v1457 = vpop.permute.xlu0 %1456
        %1458 = vrot.lane.b32.xlu0 %v1410, 96
        %v1459 = vpop.permute.xlu0 %1458
        %1468 = vrot.lane.b32.xlu0 %v1411, 96
        %v1469 = vpop.permute.xlu0 %1468
        %1470 = vrot.lane.b32.xlu0 %v1412, 96
        %v1471 = vpop.permute.xlu0 %1470
        %1472 = vrot.lane.b32.xlu0 %v1413, 96
        %v1473 = vpop.permute.xlu0 %1472
        %1474 = vrot.lane.b32.xlu0 %v1414, 96
        %v1475 = vpop.permute.xlu0 %1474
        %1476 = vrot.lane.b32.xlu0 %v1415, 96
        %v1477 = vpop.permute.xlu0 %1476
        %1478 = vrot.lane.b32.xlu0 %v1416, 96
        %v1479 = vpop.permute.xlu0 %1478
        %1480 = vrot.lane.b32.xlu0 %v1417, 96
        %v1481 = vpop.permute.xlu0 %1480
        %1482 = vrot.lane.b32.xlu0 %v1418, 96
        %v1483 = vpop.permute.xlu0 %1482
        %v1484 = vsel %vm1023, %v1445, 0
        %v1486 = vsel %vm1023, %v1447, 0
        %v1488 = vsel %vm1023, %v1449, 0
        %v1490 = vsel %vm1023, %v1451, 0
        %v1492 = vsel %vm1023, %v1453, 0
        %v1494 = vsel %vm1023, %v1455, 0
        %v1496 = vsel %vm1023, %v1457, 0
        %v1498 = vsel %vm1023, %v1459, 0
        %v1500 = vsel %vm1023, %v1469, 0
        %v1502 = vsel %vm1023, %v1471, 0
        %v1504 = vsel %vm1023, %v1473, 0
        %v1506 = vsel %vm1023, %v1475, 0
        %v1508 = vsel %vm1023, %v1477, 0
        %v1510 = vsel %vm1023, %v1479, 0
        %v1512 = vsel %vm1023, %v1481, 0
        %v1514 = vsel %vm1023, %v1483, 0
        %1516 = vmatprep.subr.mxu0 0.0
        %1517 = vmatpush1.xpose.msra.mxu0 %v1500
        %1518 = vmatprep.subr.mxu0 0.0
        %1519 = vmatpush1.xpose.msra.mxu0 %v1502
        %1520 = vmatprep.subr.mxu0 0.0
        %1521 = vmatpush1.xpose.msra.mxu0 %v1504
        %1522 = vmatprep.subr.mxu0 0.0
        %1523 = vmatpush1.xpose.msra.mxu0 %v1506
        %1524 = vmatprep.subr.mxu0 0.0
        %1525 = vmatpush1.xpose.msra.mxu0 %v1508
        %1526 = vmatprep.subr.mxu0 0.0
        %1527 = vmatpush1.xpose.msra.mxu0 %v1510
        %1528 = vmatprep.subr.mxu0 0.0
        %1529 = vmatpush1.xpose.msra.mxu0 %v1512
        %1530 = vmatprep.subr.mxu0 0.0
        %1531 = vmatpush1.xpose.msra.mxu0 %v1514
        %1532 = vmatprep.subr.mxu0 0.0
        %1533 = vmatpush1.xpose.msra.mxu0 0.0
        %1534 = vmatprep.subr.mxu0 0.0
        %1535 = vmatpush1.xpose.msra.mxu0 0.0
        %1536 = vmatprep.subr.mxu0 0.0
        %1537 = vmatpush1.xpose.msra.mxu0 0.0
        %1538 = vmatprep.subr.mxu0 0.0
        %1539 = vmatpush1.xpose.msra.mxu0 0.0
        %1540 = vmatprep.subr.mxu0 0.0
        %1541 = vmatpush1.xpose.msra.mxu0 0.0
        %1542 = vmatprep.subr.mxu0 0.0
        %1543 = vmatpush1.xpose.msra.mxu0 0.0
        %1544 = vmatprep.subr.mxu0 0.0
        %1545 = vmatpush1.xpose.msra.mxu0 0.0
        %1546 = vmatprep.subr.mxu0 0.0
        %1547 = vmatpush1.xpose.msra.mxu0 0.0
        %1548 = vmatprep.subr.mxu0 0.0
        %1549 = vmatpush1.xpose.msra.mxu0 0.0
        %1550 = vmatprep.subr.mxu0 0.0
        %1551 = vmatpush1.xpose.msra.mxu0 0.0
        %1552 = vmatprep.subr.mxu0 0.0
        %1553 = vmatpush1.xpose.msra.mxu0 0.0
        %1554 = vmatprep.subr.mxu0 0.0
        %1555 = vmatpush1.xpose.msra.mxu0 0.0
        %1556 = vmatprep.subr.mxu0 0.0
        %1557 = vmatpush1.xpose.msra.mxu0 0.0
        %1558 = vmatprep.subr.mxu0 0.0
        %1559 = vmatpush1.xpose.msra.mxu0 0.0
        %1560 = vmatprep.subr.mxu0 0.0
        %1561 = vmatpush1.xpose.msra.mxu0 0.0
        %1562 = vmatprep.subr.mxu0 0.0
        %1563 = vmatpush1.xpose.msra.mxu0 0.0
        %1564 = vmatprep.subr.mxu0 0.0
        %1565 = vmatpush1.xpose.msra.mxu0 0.0
        %1566 = vmatprep.subr.mxu0 0.0
        %1567 = vmatpush1.xpose.msra.mxu0 0.0
        %1568 = vmatprep.subr.mxu0 0.0
        %1569 = vmatpush1.xpose.msra.mxu0 0.0
        %1570 = vmatprep.subr.mxu0 0.0
        %1571 = vmatpush1.xpose.msra.mxu0 0.0
        %1572 = vmatprep.subr.mxu0 0.0
        %1573 = vmatpush1.xpose.msra.mxu0 0.0
        %1574 = vmatprep.subr.mxu0 0.0
        %1575 = vmatpush1.xpose.msra.mxu0 0.0
        %1576 = vmatprep.subr.mxu0 0.0
        %1577 = vmatpush1.xpose.msra.mxu0 0.0
        %1578 = vmatprep.subr.mxu0 0.0
        %1579 = vmatpush1.xpose.msra.mxu0 0.0
        %1580 = vmatprep.mubr.f32.mxu0 0.0
        %1581 = vmatmul.mubr.f32.gmra.mrb[0].mxu0 %v1484
        %v1582 = vpop.f32.mrb[0].mxu0
        %v1583 = vadd.f32 %v1428, %v1582
        %v1584 = vpop.f32.mrb[0].mxu0
        %1585 = vmatprep.mubr.f32.mxu0 0.0
        %1586 = vmatmul.mubr.f32.gmra.mrb[0].mxu0 %v1486
        %v1587 = vpop.f32.mrb[0].mxu0
        %v1588 = vadd.f32 %v1429, %v1587
        %v1589 = vpop.f32.mrb[0].mxu0
        %1590 = vmatprep.mubr.f32.mxu0 0.0
        %1591 = vmatmul.mubr.f32.gmra.mrb[0].mxu0 %v1488
        %v1592 = vpop.f32.mrb[0].mxu0
        %v1593 = vadd.f32 %v1430, %v1592
        %v1594 = vpop.f32.mrb[0].mxu0
        %1595 = vmatprep.mubr.f32.mxu0 0.0
        %1596 = vmatmul.mubr.f32.gmra.mrb[0].mxu0 %v1490
        %v1597 = vpop.f32.mrb[0].mxu0
        %v1598 = vadd.f32 %v1431, %v1597
        %v1599 = vpop.f32.mrb[0].mxu0
        %1600 = vmatprep.mubr.f32.mxu0 0.0
        %1601 = vmatmul.mubr.f32.gmra.mrb[0].mxu0 %v1492
        %v1602 = vpop.f32.mrb[0].mxu0
        %v1603 = vadd.f32 %v1432, %v1602
        %v1604 = vpop.f32.mrb[0].mxu0
        %1605 = vmatprep.mubr.f32.mxu0 0.0
        %1606 = vmatmul.mubr.f32.gmra.mrb[0].mxu0 %v1494
        %v1607 = vpop.f32.mrb[0].mxu0
        %v1608 = vadd.f32 %v1433, %v1607
        %v1609 = vpop.f32.mrb[0].mxu0
        %1610 = vmatprep.mubr.f32.mxu0 0.0
        %1611 = vmatmul.mubr.f32.gmra.mrb[0].mxu0 %v1496
        %v1612 = vpop.f32.mrb[0].mxu0
        %v1613 = vadd.f32 %v1434, %v1612
        %v1614 = vpop.f32.mrb[0].mxu0
        %1615 = vmatprep.mubr.f32.mxu0 0.0
        %1616 = vmatmul.mubr.f32.gmra.mrb[0].mxu0 %v1498
        %v1617 = vpop.f32.mrb[0].mxu0
        %v1618 = vadd.f32 %v1435, %v1617
        %v1619 = vpop.f32.mrb[0].mxu0
        %1620 = vdwg.mxu0
        %v1621 = vsel %vm1177, %v1583, -inf
        %1622 = vmax.xlane.f32.xlu0 %v1621
        %v1623 = vpop.xlane.xlu0 %1622
        %v1624 = vsel %vm1177, %v1588, -inf
        %1625 = vmax.xlane.f32.xlu0 %v1624
        %v1626 = vpop.xlane.xlu0 %1625
        %v1627 = vsel %vm1177, %v1593, -inf
        %1628 = vmax.xlane.f32.xlu0 %v1627
        %v1629 = vpop.xlane.xlu0 %1628
        %v1630 = vsel %vm1177, %v1598, -inf
        %1631 = vmax.xlane.f32.xlu0 %v1630
        %v1632 = vpop.xlane.xlu0 %1631
        %v1633 = vsel %vm1177, %v1603, -inf
        %1634 = vmax.xlane.f32.xlu0 %v1633
        %v1635 = vpop.xlane.xlu0 %1634
        %v1636 = vsel %vm1177, %v1608, -inf
        %1637 = vmax.xlane.f32.xlu0 %v1636
        %v1638 = vpop.xlane.xlu0 %1637
        %v1639 = vsel %vm1177, %v1613, -inf
        %1640 = vmax.xlane.f32.xlu0 %v1639
        %v1641 = vpop.xlane.xlu0 %1640
        %v1642 = vsel %vm1177, %v1618, -inf
        %1643 = vmax.xlane.f32.xlu0 %v1642
        %v1644 = vpop.xlane.xlu0 %1643
        %v1645 = vsub.f32 %v1583, %v1623
        %v1646 = vsub.f32 %v1588, %v1626
        %v1647 = vsub.f32 %v1593, %v1629
        %v1648 = vsub.f32 %v1598, %v1632
        %v1649 = vsub.f32 %v1603, %v1635
        %v1650 = vsub.f32 %v1608, %v1638
        %v1651 = vsub.f32 %v1613, %v1641
        %v1652 = vsub.f32 %v1618, %v1644
        %v1653 = vmul.f32 %v1645, 1.442695
        %v1654 = vpow.pop %v1653
        %v1655 = vmul.f32 %v1646, 1.442695
        %v1656 = vpow.pop %v1655
        %v1657 = vmul.f32 %v1647, 1.442695
        %v1658 = vpow.pop %v1657
        %v1659 = vmul.f32 %v1648, 1.442695
        %v1660 = vpow.pop %v1659
        %v1661 = vmul.f32 %v1649, 1.442695
        %v1662 = vpow.pop %v1661
        %v1663 = vmul.f32 %v1650, 1.442695
        %v1664 = vpow.pop %v1663
        %v1665 = vmul.f32 %v1651, 1.442695
        %v1666 = vpow.pop %v1665
        %v1667 = vmul.f32 %v1652, 1.442695
        %v1668 = vpow.pop %v1667
        %v1669 = vsel %vm1177, %v1654, 0.0
        %1670 = vadd.xlane.f32.xlu0 %v1669
        %v1671 = vpop.xlane.xlu0 %1670
        %v1672 = vsel %vm1177, %v1656, 0.0
        %1673 = vadd.xlane.f32.xlu0 %v1672
        %v1674 = vpop.xlane.xlu0 %1673
        %v1675 = vsel %vm1177, %v1658, 0.0
        %1676 = vadd.xlane.f32.xlu0 %v1675
        %v1677 = vpop.xlane.xlu0 %1676
        %v1678 = vsel %vm1177, %v1660, 0.0
        %1679 = vadd.xlane.f32.xlu0 %v1678
        %v1680 = vpop.xlane.xlu0 %1679
        %v1681 = vsel %vm1177, %v1662, 0.0
        %1682 = vadd.xlane.f32.xlu0 %v1681
        %v1683 = vpop.xlane.xlu0 %1682
        %v1684 = vsel %vm1177, %v1664, 0.0
        %1685 = vadd.xlane.f32.xlu0 %v1684
        %v1686 = vpop.xlane.xlu0 %1685
        %v1687 = vsel %vm1177, %v1666, 0.0
        %1688 = vadd.xlane.f32.xlu0 %v1687
        %v1689 = vpop.xlane.xlu0 %1688
        %v1690 = vsel %vm1177, %v1668, 0.0
        %1691 = vadd.xlane.f32.xlu0 %v1690
        %v1692 = vpop.xlane.xlu0 %1691
        %v1693 = vrcp.pop %v1671
        %v1694 = vrcp.pop %v1674
        %v1695 = vrcp.pop %v1677
        %v1696 = vrcp.pop %v1680
        %v1697 = vrcp.pop %v1683
        %v1698 = vrcp.pop %v1686
        %v1699 = vrcp.pop %v1689
        %v1700 = vrcp.pop %v1692
        %v1701 = vmul.f32 %v1654, %v1693
        %v1702 = vmul.f32 %v1656, %v1694
        %v1703 = vmul.f32 %v1658, %v1695
        %v1704 = vmul.f32 %v1660, %v1696
        %v1705 = vmul.f32 %v1662, %v1697
        %v1706 = vmul.f32 %v1664, %v1698
        %v1707 = vmul.f32 %v1666, %v1699
        %v1708 = vmul.f32 %v1668, %v1700
        %1717 = vrot.lane.b32.xlu0 %v1419, 96
        %v1718 = vpop.permute.xlu0 %1717
        %1719 = vrot.lane.b32.xlu0 %v1420, 96
        %v1720 = vpop.permute.xlu0 %1719
        %1721 = vrot.lane.b32.xlu0 %v1421, 96
        %v1722 = vpop.permute.xlu0 %1721
        %1723 = vrot.lane.b32.xlu0 %v1422, 96
        %v1724 = vpop.permute.xlu0 %1723
        %1725 = vrot.lane.b32.xlu0 %v1423, 96
        %v1726 = vpop.permute.xlu0 %1725
        %1727 = vrot.lane.b32.xlu0 %v1424, 96
        %v1728 = vpop.permute.xlu0 %1727
        %1729 = vrot.lane.b32.xlu0 %v1425, 96
        %v1730 = vpop.permute.xlu0 %1729
        %1731 = vrot.lane.b32.xlu0 %v1426, 96
        %v1732 = vpop.permute.xlu0 %1731
        %v1742 = vsel %vm1177, %v1701, 0
        %v1745 = vsel %vm1177, %v1702, 0
        %v1748 = vsel %vm1177, %v1703, 0
        %v1751 = vsel %vm1177, %v1704, 0
        %v1754 = vsel %vm1177, %v1705, 0
        %v1757 = vsel %vm1177, %v1706, 0
        %v1760 = vsel %vm1177, %v1707, 0
        %v1763 = vsel %vm1177, %v1708, 0
        %1765 = vmatprep.subr.mxu0 0.0
        %1766 = vmatpush1.msra.mxu0 %v1718
        %1767 = vmatprep.subr.mxu0 0.0
        %1768 = vmatpush1.msra.mxu0 %v1720
        %1769 = vmatprep.subr.mxu0 0.0
        %1770 = vmatpush1.msra.mxu0 %v1722
        %1771 = vmatprep.subr.mxu0 0.0
        %1772 = vmatpush1.msra.mxu0 %v1724
        %1773 = vmatprep.subr.mxu0 0.0
        %1774 = vmatpush1.msra.mxu0 %v1726
        %1775 = vmatprep.subr.mxu0 0.0
        %1776 = vmatpush1.msra.mxu0 %v1728
        %1777 = vmatprep.subr.mxu0 0.0
        %1778 = vmatpush1.msra.mxu0 %v1730
        %1779 = vmatprep.subr.mxu0 0.0
        %1780 = vmatpush1.msra.mxu0 %v1732
        %1781 = vmatprep.subr.mxu0 0.0
        %1782 = vmatpush1.msra.mxu0 0.0
        %1783 = vmatprep.subr.mxu0 0.0
        %1784 = vmatpush1.msra.mxu0 0.0
        %1785 = vmatprep.subr.mxu0 0.0
        %1786 = vmatpush1.msra.mxu0 0.0
        %1787 = vmatprep.subr.mxu0 0.0
        %1788 = vmatpush1.msra.mxu0 0.0
        %1789 = vmatprep.subr.mxu0 0.0
        %1790 = vmatpush1.msra.mxu0 0.0
        %1791 = vmatprep.subr.mxu0 0.0
        %1792 = vmatpush1.msra.mxu0 0.0
        %1793 = vmatprep.subr.mxu0 0.0
        %1794 = vmatpush1.msra.mxu0 0.0
        %1795 = vmatprep.subr.mxu0 0.0
        %1796 = vmatpush1.msra.mxu0 0.0
        %1797 = vmatprep.subr.mxu0 0.0
        %1798 = vmatpush1.msra.mxu0 0.0
        %1799 = vmatprep.subr.mxu0 0.0
        %1800 = vmatpush1.msra.mxu0 0.0
        %1801 = vmatprep.subr.mxu0 0.0
        %1802 = vmatpush1.msra.mxu0 0.0
        %1803 = vmatprep.subr.mxu0 0.0
        %1804 = vmatpush1.msra.mxu0 0.0
        %1805 = vmatprep.subr.mxu0 0.0
        %1806 = vmatpush1.msra.mxu0 0.0
        %1807 = vmatprep.subr.mxu0 0.0
        %1808 = vmatpush1.msra.mxu0 0.0
        %1809 = vmatprep.subr.mxu0 0.0
        %1810 = vmatpush1.msra.mxu0 0.0
        %1811 = vmatprep.subr.mxu0 0.0
        %1812 = vmatpush1.msra.mxu0 0.0
        %1813 = vmatprep.subr.mxu0 0.0
        %1814 = vmatpush1.msra.mxu0 0.0
        %1815 = vmatprep.subr.mxu0 0.0
        %1816 = vmatpush1.msra.mxu0 0.0
        %1817 = vmatprep.subr.mxu0 0.0
        %1818 = vmatpush1.msra.mxu0 0.0
        %1819 = vmatprep.subr.mxu0 0.0
        %1820 = vmatpush1.msra.mxu0 0.0
        %1821 = vmatprep.subr.mxu0 0.0
        %1822 = vmatpush1.msra.mxu0 0.0
        %1823 = vmatprep.subr.mxu0 0.0
        %1824 = vmatpush1.msra.mxu0 0.0
        %1825 = vmatprep.subr.mxu0 0.0
        %1826 = vmatpush1.msra.mxu0 0.0
        %1827 = vmatprep.subr.mxu0 0.0
        %1828 = vmatpush1.msra.mxu0 0.0
        %1829 = vmatprep.mubr.f32.mxu0 0.0
        %1830 = vmatmul.mubr.f32.gmra.mrb[0].mxu0 %v1742
        %v1831 = vpop.f32.mrb[0].mxu0
        %v1832 = vadd.f32 0.0, %v1831
        %v1833 = vpop.f32.mrb[0].mxu0
        %1834 = vmatprep.mubr.f32.mxu0 0.0
        %1835 = vmatmul.mubr.f32.gmra.mrb[0].mxu0 %v1745
        %v1836 = vpop.f32.mrb[0].mxu0
        %v1837 = vadd.f32 0.0, %v1836
        %v1838 = vpop.f32.mrb[0].mxu0
        %1839 = vmatprep.mubr.f32.mxu0 0.0
        %1840 = vmatmul.mubr.f32.gmra.mrb[0].mxu0 %v1748
        %v1841 = vpop.f32.mrb[0].mxu0
        %v1842 = vadd.f32 0.0, %v1841
        %v1843 = vpop.f32.mrb[0].mxu0
        %1844 = vmatprep.mubr.f32.mxu0 0.0
        %1845 = vmatmul.mubr.f32.gmra.mrb[0].mxu0 %v1751
        %v1846 = vpop.f32.mrb[0].mxu0
        %v1847 = vadd.f32 0.0, %v1846
        %v1848 = vpop.f32.mrb[0].mxu0
        %1849 = vmatprep.mubr.f32.mxu0 0.0
        %1850 = vmatmul.mubr.f32.gmra.mrb[0].mxu0 %v1754
        %v1851 = vpop.f32.mrb[0].mxu0
        %v1852 = vadd.f32 0.0, %v1851
        %v1853 = vpop.f32.mrb[0].mxu0
        %1854 = vmatprep.mubr.f32.mxu0 0.0
        %1855 = vmatmul.mubr.f32.gmra.mrb[0].mxu0 %v1757
        %v1856 = vpop.f32.mrb[0].mxu0
        %v1857 = vadd.f32 0.0, %v1856
        %v1858 = vpop.f32.mrb[0].mxu0
        %1859 = vmatprep.mubr.f32.mxu0 0.0
        %1860 = vmatmul.mubr.f32.gmra.mrb[0].mxu0 %v1760
        %v1861 = vpop.f32.mrb[0].mxu0
        %v1862 = vadd.f32 0.0, %v1861
        %v1863 = vpop.f32.mrb[0].mxu0
        %1864 = vmatprep.mubr.f32.mxu0 0.0
        %1865 = vmatmul.mubr.f32.gmra.mrb[0].mxu0 %v1763
        %v1866 = vpop.f32.mrb[0].mxu0
        %v1867 = vadd.f32 0.0, %v1866
        %v1868 = vpop.f32.mrb[0].mxu0
        %1869 = vdwg.mxu0
        %1878 = vrot.lane.b32.xlu0 %v1832, 32
        %v1879 = vpop.permute.xlu0 %1878
        %1880 = vrot.lane.b32.xlu0 %v1837, 32
        %v1881 = vpop.permute.xlu0 %1880
        %1882 = vrot.lane.b32.xlu0 %v1842, 32
        %v1883 = vpop.permute.xlu0 %1882
        %1884 = vrot.lane.b32.xlu0 %v1847, 32
        %v1885 = vpop.permute.xlu0 %1884
        %1886 = vrot.lane.b32.xlu0 %v1852, 32
        %v1887 = vpop.permute.xlu0 %1886
        %1888 = vrot.lane.b32.xlu0 %v1857, 32
        %v1889 = vpop.permute.xlu0 %1888
        %1890 = vrot.lane.b32.xlu0 %v1862, 32
        %v1891 = vpop.permute.xlu0 %1890
        %1892 = vrot.lane.b32.xlu0 %v1867, 32
        %v1893 = vpop.permute.xlu0 %1892
        %vm1902 = vcmask 523520
        %1903 = vst.msk [vmem:[#allocation3] sm:$0xff] %vm1902, %v1879
        %1904 = vst.msk [vmem:[#allocation3 + $0x8] sm:$0xff] %vm1902, %v1881
        %1905 = vst.msk [vmem:[#allocation3 + $0x10] sm:$0xff] %vm1902, %v1883
        %1906 = vst.msk [vmem:[#allocation3 + $0x18] sm:$0xff] %vm1902, %v1885
        %1907 = vst.msk [vmem:[#allocation3 + $0x20] sm:$0xff] %vm1902, %v1887
        %1908 = vst.msk [vmem:[#allocation3 + $0x28] sm:$0xff] %vm1902, %v1889
        %1909 = vst.msk [vmem:[#allocation3 + $0x30] sm:$0xff] %vm1902, %v1891
        %1910 = vst.msk [vmem:[#allocation3 + $0x38] sm:$0xff] %vm1902, %v1893
        %v1911 = vld [vmem:[#allocation2] sm:$0xff]
        %v1912 = vld [vmem:[#allocation2 + $0x18] sm:$0xff]
        %v1913 = vld [vmem:[#allocation2 + $0x30] sm:$0xff]
        %v1914 = vld [vmem:[#allocation2 + $0x48] sm:$0xff]
        %v1915 = vld [vmem:[#allocation2 + $0x60] sm:$0xff]
        %v1916 = vld [vmem:[#allocation2 + $0x78] sm:$0xff]
        %v1917 = vld [vmem:[#allocation2 + $0x90] sm:$0xff]
        %v1918 = vld [vmem:[#allocation2 + $0xa8] sm:$0xff]
        %v1919 = vld [vmem:[#allocation2 + $0x8] sm:$0xff]
        %v1920 = vld [vmem:[#allocation2 + $0x20] sm:$0xff]
        %v1921 = vld [vmem:[#allocation2 + $0x38] sm:$0xff]
        %v1922 = vld [vmem:[#allocation2 + $0x50] sm:$0xff]
        %v1923 = vld [vmem:[#allocation2 + $0x68] sm:$0xff]
        %v1924 = vld [vmem:[#allocation2 + $0x80] sm:$0xff]
        %v1925 = vld [vmem:[#allocation2 + $0x98] sm:$0xff]
        %v1926 = vld [vmem:[#allocation2 + $0xb0] sm:$0xff]
        %v1927 = vld [vmem:[#allocation2 + $0x10] sm:$0xff]
        %v1928 = vld [vmem:[#allocation2 + $0x28] sm:$0xff]
        %v1929 = vld [vmem:[#allocation2 + $0x40] sm:$0xff]
        %v1930 = vld [vmem:[#allocation2 + $0x58] sm:$0xff]
        %v1931 = vld [vmem:[#allocation2 + $0x70] sm:$0xff]
        %v1932 = vld [vmem:[#allocation2 + $0x88] sm:$0xff]
        %v1933 = vld [vmem:[#allocation2 + $0xa0] sm:$0xff]
        %v1934 = vld [vmem:[#allocation2 + $0xb8] sm:$0xff]
        %s1935 = scalar_lea.vmem [#allocation10], 128
        %v1936 = vld [vmem:[%s1935] sm:$0xff]
        %v1937 = vld [vmem:[%s1935 + $0x8] sm:$0xff]
        %v1938 = vld [vmem:[%s1935 + $0x10] sm:$0xff]
        %v1939 = vld [vmem:[%s1935 + $0x18] sm:$0xff]
        %v1940 = vld [vmem:[%s1935 + $0x20] sm:$0xff]
        %v1941 = vld [vmem:[%s1935 + $0x28] sm:$0xff]
        %v1942 = vld [vmem:[%s1935 + $0x30] sm:$0xff]
        %v1943 = vld [vmem:[%s1935 + $0x38] sm:$0xff]
        %1952 = vrot.lane.b32.xlu0 %v1911, 64
        %v1953 = vpop.permute.xlu0 %1952
        %1954 = vrot.lane.b32.xlu0 %v1912, 64
        %v1955 = vpop.permute.xlu0 %1954
        %1956 = vrot.lane.b32.xlu0 %v1913, 64
        %v1957 = vpop.permute.xlu0 %1956
        %1958 = vrot.lane.b32.xlu0 %v1914, 64
        %v1959 = vpop.permute.xlu0 %1958
        %1960 = vrot.lane.b32.xlu0 %v1915, 64
        %v1961 = vpop.permute.xlu0 %1960
        %1962 = vrot.lane.b32.xlu0 %v1916, 64
        %v1963 = vpop.permute.xlu0 %1962
        %1964 = vrot.lane.b32.xlu0 %v1917, 64
        %v1965 = vpop.permute.xlu0 %1964
        %1966 = vrot.lane.b32.xlu0 %v1918, 64
        %v1967 = vpop.permute.xlu0 %1966
        %1976 = vrot.lane.b32.xlu0 %v1919, 64
        %v1977 = vpop.permute.xlu0 %1976
        %1978 = vrot.lane.b32.xlu0 %v1920, 64
        %v1979 = vpop.permute.xlu0 %1978
        %1980 = vrot.lane.b32.xlu0 %v1921, 64
        %v1981 = vpop.permute.xlu0 %1980
        %1982 = vrot.lane.b32.xlu0 %v1922, 64
        %v1983 = vpop.permute.xlu0 %1982
        %1984 = vrot.lane.b32.xlu0 %v1923, 64
        %v1985 = vpop.permute.xlu0 %1984
        %1986 = vrot.lane.b32.xlu0 %v1924, 64
        %v1987 = vpop.permute.xlu0 %1986
        %1988 = vrot.lane.b32.xlu0 %v1925, 64
        %v1989 = vpop.permute.xlu0 %1988
        %1990 = vrot.lane.b32.xlu0 %v1926, 64
        %v1991 = vpop.permute.xlu0 %1990
        %v1992 = vsel %vm1023, %v1953, 0
        %v1994 = vsel %vm1023, %v1955, 0
        %v1996 = vsel %vm1023, %v1957, 0
        %v1998 = vsel %vm1023, %v1959, 0
        %v2000 = vsel %vm1023, %v1961, 0
        %v2002 = vsel %vm1023, %v1963, 0
        %v2004 = vsel %vm1023, %v1965, 0
        %v2006 = vsel %vm1023, %v1967, 0
        %v2008 = vsel %vm1023, %v1977, 0
        %v2010 = vsel %vm1023, %v1979, 0
        %v2012 = vsel %vm1023, %v1981, 0
        %v2014 = vsel %vm1023, %v1983, 0
        %v2016 = vsel %vm1023, %v1985, 0
        %v2018 = vsel %vm1023, %v1987, 0
        %v2020 = vsel %vm1023, %v1989, 0
        %v2022 = vsel %vm1023, %v1991, 0
        %2024 = vmatprep.subr.mxu0 0.0
        %2025 = vmatpush1.xpose.msra.mxu0 %v2008
        %2026 = vmatprep.subr.mxu0 0.0
        %2027 = vmatpush1.xpose.msra.mxu0 %v2010
        %2028 = vmatprep.subr.mxu0 0.0
        %2029 = vmatpush1.xpose.msra.mxu0 %v2012
        %2030 = vmatprep.subr.mxu0 0.0
        %2031 = vmatpush1.xpose.msra.mxu0 %v2014
        %2032 = vmatprep.subr.mxu0 0.0
        %2033 = vmatpush1.xpose.msra.mxu0 %v2016
        %2034 = vmatprep.subr.mxu0 0.0
        %2035 = vmatpush1.xpose.msra.mxu0 %v2018
        %2036 = vmatprep.subr.mxu0 0.0
        %2037 = vmatpush1.xpose.msra.mxu0 %v2020
        %2038 = vmatprep.subr.mxu0 0.0
        %2039 = vmatpush1.xpose.msra.mxu0 %v2022
        %2040 = vmatprep.subr.mxu0 0.0
        %2041 = vmatpush1.xpose.msra.mxu0 0.0
        %2042 = vmatprep.subr.mxu0 0.0
        %2043 = vmatpush1.xpose.msra.mxu0 0.0
        %2044 = vmatprep.subr.mxu0 0.0
        %2045 = vmatpush1.xpose.msra.mxu0 0.0
        %2046 = vmatprep.subr.mxu0 0.0
        %2047 = vmatpush1.xpose.msra.mxu0 0.0
        %2048 = vmatprep.subr.mxu0 0.0
        %2049 = vmatpush1.xpose.msra.mxu0 0.0
        %2050 = vmatprep.subr.mxu0 0.0
        %2051 = vmatpush1.xpose.msra.mxu0 0.0
        %2052 = vmatprep.subr.mxu0 0.0
        %2053 = vmatpush1.xpose.msra.mxu0 0.0
        %2054 = vmatprep.subr.mxu0 0.0
        %2055 = vmatpush1.xpose.msra.mxu0 0.0
        %2056 = vmatprep.subr.mxu0 0.0
        %2057 = vmatpush1.xpose.msra.mxu0 0.0
        %2058 = vmatprep.subr.mxu0 0.0
        %2059 = vmatpush1.xpose.msra.mxu0 0.0
        %2060 = vmatprep.subr.mxu0 0.0
        %2061 = vmatpush1.xpose.msra.mxu0 0.0
        %2062 = vmatprep.subr.mxu0 0.0
        %2063 = vmatpush1.xpose.msra.mxu0 0.0
        %2064 = vmatprep.subr.mxu0 0.0
        %2065 = vmatpush1.xpose.msra.mxu0 0.0
        %2066 = vmatprep.subr.mxu0 0.0
        %2067 = vmatpush1.xpose.msra.mxu0 0.0
        %2068 = vmatprep.subr.mxu0 0.0
        %2069 = vmatpush1.xpose.msra.mxu0 0.0
        %2070 = vmatprep.subr.mxu0 0.0
        %2071 = vmatpush1.xpose.msra.mxu0 0.0
        %2072 = vmatprep.subr.mxu0 0.0
        %2073 = vmatpush1.xpose.msra.mxu0 0.0
        %2074 = vmatprep.subr.mxu0 0.0
        %2075 = vmatpush1.xpose.msra.mxu0 0.0
        %2076 = vmatprep.subr.mxu0 0.0
        %2077 = vmatpush1.xpose.msra.mxu0 0.0
        %2078 = vmatprep.subr.mxu0 0.0
        %2079 = vmatpush1.xpose.msra.mxu0 0.0
        %2080 = vmatprep.subr.mxu0 0.0
        %2081 = vmatpush1.xpose.msra.mxu0 0.0
        %2082 = vmatprep.subr.mxu0 0.0
        %2083 = vmatpush1.xpose.msra.mxu0 0.0
        %2084 = vmatprep.subr.mxu0 0.0
        %2085 = vmatpush1.xpose.msra.mxu0 0.0
        %2086 = vmatprep.subr.mxu0 0.0
        %2087 = vmatpush1.xpose.msra.mxu0 0.0
        %2088 = vmatprep.mubr.f32.mxu0 0.0
        %2089 = vmatmul.mubr.f32.gmra.mrb[0].mxu0 %v1992
        %v2090 = vpop.f32.mrb[0].mxu0
        %v2091 = vadd.f32 %v1936, %v2090
        %v2092 = vpop.f32.mrb[0].mxu0
        %2093 = vmatprep.mubr.f32.mxu0 0.0
        %2094 = vmatmul.mubr.f32.gmra.mrb[0].mxu0 %v1994
        %v2095 = vpop.f32.mrb[0].mxu0
        %v2096 = vadd.f32 %v1937, %v2095
        %v2097 = vpop.f32.mrb[0].mxu0
        %2098 = vmatprep.mubr.f32.mxu0 0.0
        %2099 = vmatmul.mubr.f32.gmra.mrb[0].mxu0 %v1996
        %v2100 = vpop.f32.mrb[0].mxu0
        %v2101 = vadd.f32 %v1938, %v2100
        %v2102 = vpop.f32.mrb[0].mxu0
        %2103 = vmatprep.mubr.f32.mxu0 0.0
        %2104 = vmatmul.mubr.f32.gmra.mrb[0].mxu0 %v1998
        %v2105 = vpop.f32.mrb[0].mxu0
        %v2106 = vadd.f32 %v1939, %v2105
        %v2107 = vpop.f32.mrb[0].mxu0
        %2108 = vmatprep.mubr.f32.mxu0 0.0
        %2109 = vmatmul.mubr.f32.gmra.mrb[0].mxu0 %v2000
        %v2110 = vpop.f32.mrb[0].mxu0
        %v2111 = vadd.f32 %v1940, %v2110
        %v2112 = vpop.f32.mrb[0].mxu0
        %2113 = vmatprep.mubr.f32.mxu0 0.0
        %2114 = vmatmul.mubr.f32.gmra.mrb[0].mxu0 %v2002
        %v2115 = vpop.f32.mrb[0].mxu0
        %v2116 = vadd.f32 %v1941, %v2115
        %v2117 = vpop.f32.mrb[0].mxu0
        %2118 = vmatprep.mubr.f32.mxu0 0.0
        %2119 = vmatmul.mubr.f32.gmra.mrb[0].mxu0 %v2004
        %v2120 = vpop.f32.mrb[0].mxu0
        %v2121 = vadd.f32 %v1942, %v2120
        %v2122 = vpop.f32.mrb[0].mxu0
        %2123 = vmatprep.mubr.f32.mxu0 0.0
        %2124 = vmatmul.mubr.f32.gmra.mrb[0].mxu0 %v2006
        %v2125 = vpop.f32.mrb[0].mxu0
        %v2126 = vadd.f32 %v1943, %v2125
        %v2127 = vpop.f32.mrb[0].mxu0
        %2128 = vdwg.mxu0
        %v2129 = vsel %vm1177, %v2091, -inf
        %2130 = vmax.xlane.f32.xlu0 %v2129
        %v2131 = vpop.xlane.xlu0 %2130
        %v2132 = vsel %vm1177, %v2096, -inf
        %2133 = vmax.xlane.f32.xlu0 %v2132
        %v2134 = vpop.xlane.xlu0 %2133
        %v2135 = vsel %vm1177, %v2101, -inf
        %2136 = vmax.xlane.f32.xlu0 %v2135
        %v2137 = vpop.xlane.xlu0 %2136
        %v2138 = vsel %vm1177, %v2106, -inf
        %2139 = vmax.xlane.f32.xlu0 %v2138
        %v2140 = vpop.xlane.xlu0 %2139
        %v2141 = vsel %vm1177, %v2111, -inf
        %2142 = vmax.xlane.f32.xlu0 %v2141
        %v2143 = vpop.xlane.xlu0 %2142
        %v2144 = vsel %vm1177, %v2116, -inf
        %2145 = vmax.xlane.f32.xlu0 %v2144
        %v2146 = vpop.xlane.xlu0 %2145
        %v2147 = vsel %vm1177, %v2121, -inf
        %2148 = vmax.xlane.f32.xlu0 %v2147
        %v2149 = vpop.xlane.xlu0 %2148
        %v2150 = vsel %vm1177, %v2126, -inf
        %2151 = vmax.xlane.f32.xlu0 %v2150
        %v2152 = vpop.xlane.xlu0 %2151
        %v2153 = vsub.f32 %v2091, %v2131
        %v2154 = vsub.f32 %v2096, %v2134
        %v2155 = vsub.f32 %v2101, %v2137
        %v2156 = vsub.f32 %v2106, %v2140
        %v2157 = vsub.f32 %v2111, %v2143
        %v2158 = vsub.f32 %v2116, %v2146
        %v2159 = vsub.f32 %v2121, %v2149
        %v2160 = vsub.f32 %v2126, %v2152
        %v2161 = vmul.f32 %v2153, 1.442695
        %v2162 = vpow.pop %v2161
        %v2163 = vmul.f32 %v2154, 1.442695
        %v2164 = vpow.pop %v2163
        %v2165 = vmul.f32 %v2155, 1.442695
        %v2166 = vpow.pop %v2165
        %v2167 = vmul.f32 %v2156, 1.442695
        %v2168 = vpow.pop %v2167
        %v2169 = vmul.f32 %v2157, 1.442695
        %v2170 = vpow.pop %v2169
        %v2171 = vmul.f32 %v2158, 1.442695
        %v2172 = vpow.pop %v2171
        %v2173 = vmul.f32 %v2159, 1.442695
        %v2174 = vpow.pop %v2173
        %v2175 = vmul.f32 %v2160, 1.442695
        %v2176 = vpow.pop %v2175
        %v2177 = vsel %vm1177, %v2162, 0.0
        %2178 = vadd.xlane.f32.xlu0 %v2177
        %v2179 = vpop.xlane.xlu0 %2178
        %v2180 = vsel %vm1177, %v2164, 0.0
        %2181 = vadd.xlane.f32.xlu0 %v2180
        %v2182 = vpop.xlane.xlu0 %2181
        %v2183 = vsel %vm1177, %v2166, 0.0
        %2184 = vadd.xlane.f32.xlu0 %v2183
        %v2185 = vpop.xlane.xlu0 %2184
        %v2186 = vsel %vm1177, %v2168, 0.0
        %2187 = vadd.xlane.f32.xlu0 %v2186
        %v2188 = vpop.xlane.xlu0 %2187
        %v2189 = vsel %vm1177, %v2170, 0.0
        %2190 = vadd.xlane.f32.xlu0 %v2189
        %v2191 = vpop.xlane.xlu0 %2190
        %v2192 = vsel %vm1177, %v2172, 0.0
        %2193 = vadd.xlane.f32.xlu0 %v2192
        %v2194 = vpop.xlane.xlu0 %2193
        %v2195 = vsel %vm1177, %v2174, 0.0
        %2196 = vadd.xlane.f32.xlu0 %v2195
        %v2197 = vpop.xlane.xlu0 %2196
        %v2198 = vsel %vm1177, %v2176, 0.0
        %2199 = vadd.xlane.f32.xlu0 %v2198
        %v2200 = vpop.xlane.xlu0 %2199
        %v2201 = vrcp.pop %v2179
        %v2202 = vrcp.pop %v2182
        %v2203 = vrcp.pop %v2185
        %v2204 = vrcp.pop %v2188
        %v2205 = vrcp.pop %v2191
        %v2206 = vrcp.pop %v2194
        %v2207 = vrcp.pop %v2197
        %v2208 = vrcp.pop %v2200
        %v2209 = vmul.f32 %v2162, %v2201
        %v2210 = vmul.f32 %v2164, %v2202
        %v2211 = vmul.f32 %v2166, %v2203
        %v2212 = vmul.f32 %v2168, %v2204
        %v2213 = vmul.f32 %v2170, %v2205
        %v2214 = vmul.f32 %v2172, %v2206
        %v2215 = vmul.f32 %v2174, %v2207
        %v2216 = vmul.f32 %v2176, %v2208
        %2225 = vrot.lane.b32.xlu0 %v1927, 64
        %v2226 = vpop.permute.xlu0 %2225
        %2227 = vrot.lane.b32.xlu0 %v1928, 64
        %v2228 = vpop.permute.xlu0 %2227
        %2229 = vrot.lane.b32.xlu0 %v1929, 64
        %v2230 = vpop.permute.xlu0 %2229
        %2231 = vrot.lane.b32.xlu0 %v1930, 64
        %v2232 = vpop.permute.xlu0 %2231
        %2233 = vrot.lane.b32.xlu0 %v1931, 64
        %v2234 = vpop.permute.xlu0 %2233
        %2235 = vrot.lane.b32.xlu0 %v1932, 64
        %v2236 = vpop.permute.xlu0 %2235
        %2237 = vrot.lane.b32.xlu0 %v1933, 64
        %v2238 = vpop.permute.xlu0 %2237
        %2239 = vrot.lane.b32.xlu0 %v1934, 64
        %v2240 = vpop.permute.xlu0 %2239
        %v2250 = vsel %vm1177, %v2209, 0
        %v2253 = vsel %vm1177, %v2210, 0
        %v2256 = vsel %vm1177, %v2211, 0
        %v2259 = vsel %vm1177, %v2212, 0
        %v2262 = vsel %vm1177, %v2213, 0
        %v2265 = vsel %vm1177, %v2214, 0
        %v2268 = vsel %vm1177, %v2215, 0
        %v2271 = vsel %vm1177, %v2216, 0
        %2273 = vmatprep.subr.mxu0 0.0
        %2274 = vmatpush1.msra.mxu0 %v2226
        %2275 = vmatprep.subr.mxu0 0.0
        %2276 = vmatpush1.msra.mxu0 %v2228
        %2277 = vmatprep.subr.mxu0 0.0
        %2278 = vmatpush1.msra.mxu0 %v2230
        %2279 = vmatprep.subr.mxu0 0.0
        %2280 = vmatpush1.msra.mxu0 %v2232
        %2281 = vmatprep.subr.mxu0 0.0
        %2282 = vmatpush1.msra.mxu0 %v2234
        %2283 = vmatprep.subr.mxu0 0.0
        %2284 = vmatpush1.msra.mxu0 %v2236
        %2285 = vmatprep.subr.mxu0 0.0
        %2286 = vmatpush1.msra.mxu0 %v2238
        %2287 = vmatprep.subr.mxu0 0.0
        %2288 = vmatpush1.msra.mxu0 %v2240
        %2289 = vmatprep.subr.mxu0 0.0
        %2290 = vmatpush1.msra.mxu0 0.0
        %2291 = vmatprep.subr.mxu0 0.0
        %2292 = vmatpush1.msra.mxu0 0.0
        %2293 = vmatprep.subr.mxu0 0.0
        %2294 = vmatpush1.msra.mxu0 0.0
        %2295 = vmatprep.subr.mxu0 0.0
        %2296 = vmatpush1.msra.mxu0 0.0
        %2297 = vmatprep.subr.mxu0 0.0
        %2298 = vmatpush1.msra.mxu0 0.0
        %2299 = vmatprep.subr.mxu0 0.0
        %2300 = vmatpush1.msra.mxu0 0.0
        %2301 = vmatprep.subr.mxu0 0.0
        %2302 = vmatpush1.msra.mxu0 0.0
        %2303 = vmatprep.subr.mxu0 0.0
        %2304 = vmatpush1.msra.mxu0 0.0
        %2305 = vmatprep.subr.mxu0 0.0
        %2306 = vmatpush1.msra.mxu0 0.0
        %2307 = vmatprep.subr.mxu0 0.0
        %2308 = vmatpush1.msra.mxu0 0.0
        %2309 = vmatprep.subr.mxu0 0.0
        %2310 = vmatpush1.msra.mxu0 0.0
        %2311 = vmatprep.subr.mxu0 0.0
        %2312 = vmatpush1.msra.mxu0 0.0
        %2313 = vmatprep.subr.mxu0 0.0
        %2314 = vmatpush1.msra.mxu0 0.0
        %2315 = vmatprep.subr.mxu0 0.0
        %2316 = vmatpush1.msra.mxu0 0.0
        %2317 = vmatprep.subr.mxu0 0.0
        %2318 = vmatpush1.msra.mxu0 0.0
        %2319 = vmatprep.subr.mxu0 0.0
        %2320 = vmatpush1.msra.mxu0 0.0
        %2321 = vmatprep.subr.mxu0 0.0
        %2322 = vmatpush1.msra.mxu0 0.0
        %2323 = vmatprep.subr.mxu0 0.0
        %2324 = vmatpush1.msra.mxu0 0.0
        %2325 = vmatprep.subr.mxu0 0.0
        %2326 = vmatpush1.msra.mxu0 0.0
        %2327 = vmatprep.subr.mxu0 0.0
        %2328 = vmatpush1.msra.mxu0 0.0
        %2329 = vmatprep.subr.mxu0 0.0
        %2330 = vmatpush1.msra.mxu0 0.0
        %2331 = vmatprep.subr.mxu0 0.0
        %2332 = vmatpush1.msra.mxu0 0.0
        %2333 = vmatprep.subr.mxu0 0.0
        %2334 = vmatpush1.msra.mxu0 0.0
        %2335 = vmatprep.subr.mxu0 0.0
        %2336 = vmatpush1.msra.mxu0 0.0
        %2337 = vmatprep.mubr.f32.mxu0 0.0
        %2338 = vmatmul.mubr.f32.gmra.mrb[0].mxu0 %v2250
        %v2339 = vpop.f32.mrb[0].mxu0
        %v2340 = vadd.f32 0.0, %v2339
        %v2341 = vpop.f32.mrb[0].mxu0
        %2342 = vmatprep.mubr.f32.mxu0 0.0
        %2343 = vmatmul.mubr.f32.gmra.mrb[0].mxu0 %v2253
        %v2344 = vpop.f32.mrb[0].mxu0
        %v2345 = vadd.f32 0.0, %v2344
        %v2346 = vpop.f32.mrb[0].mxu0
        %2347 = vmatprep.mubr.f32.mxu0 0.0
        %2348 = vmatmul.mubr.f32.gmra.mrb[0].mxu0 %v2256
        %v2349 = vpop.f32.mrb[0].mxu0
        %v2350 = vadd.f32 0.0, %v2349
        %v2351 = vpop.f32.mrb[0].mxu0
        %2352 = vmatprep.mubr.f32.mxu0 0.0
        %2353 = vmatmul.mubr.f32.gmra.mrb[0].mxu0 %v2259
        %v2354 = vpop.f32.mrb[0].mxu0
        %v2355 = vadd.f32 0.0, %v2354
        %v2356 = vpop.f32.mrb[0].mxu0
        %2357 = vmatprep.mubr.f32.mxu0 0.0
        %2358 = vmatmul.mubr.f32.gmra.mrb[0].mxu0 %v2262
        %v2359 = vpop.f32.mrb[0].mxu0
        %v2360 = vadd.f32 0.0, %v2359
        %v2361 = vpop.f32.mrb[0].mxu0
        %2362 = vmatprep.mubr.f32.mxu0 0.0
        %2363 = vmatmul.mubr.f32.gmra.mrb[0].mxu0 %v2265
        %v2364 = vpop.f32.mrb[0].mxu0
        %v2365 = vadd.f32 0.0, %v2364
        %v2366 = vpop.f32.mrb[0].mxu0
        %2367 = vmatprep.mubr.f32.mxu0 0.0
        %2368 = vmatmul.mubr.f32.gmra.mrb[0].mxu0 %v2268
        %v2369 = vpop.f32.mrb[0].mxu0
        %v2370 = vadd.f32 0.0, %v2369
        %v2371 = vpop.f32.mrb[0].mxu0
        %2372 = vmatprep.mubr.f32.mxu0 0.0
        %2373 = vmatmul.mubr.f32.gmra.mrb[0].mxu0 %v2271
        %v2374 = vpop.f32.mrb[0].mxu0
        %v2375 = vadd.f32 0.0, %v2374
        %v2376 = vpop.f32.mrb[0].mxu0
        %2377 = vdwg.mxu0
        %2386 = vrot.lane.b32.xlu0 %v2340, 64
        %v2387 = vpop.permute.xlu0 %2386
        %2388 = vrot.lane.b32.xlu0 %v2345, 64
        %v2389 = vpop.permute.xlu0 %2388
        %2390 = vrot.lane.b32.xlu0 %v2350, 64
        %v2391 = vpop.permute.xlu0 %2390
        %2392 = vrot.lane.b32.xlu0 %v2355, 64
        %v2393 = vpop.permute.xlu0 %2392
        %2394 = vrot.lane.b32.xlu0 %v2360, 64
        %v2395 = vpop.permute.xlu0 %2394
        %2396 = vrot.lane.b32.xlu0 %v2365, 64
        %v2397 = vpop.permute.xlu0 %2396
        %2398 = vrot.lane.b32.xlu0 %v2370, 64
        %v2399 = vpop.permute.xlu0 %2398
        %2400 = vrot.lane.b32.xlu0 %v2375, 64
        %v2401 = vpop.permute.xlu0 %2400
        %vm2410 = vcmask 785920
        %2411 = vst.msk [vmem:[#allocation3] sm:$0xff] %vm2410, %v2387
        %2412 = vst.msk [vmem:[#allocation3 + $0x8] sm:$0xff] %vm2410, %v2389
        %2413 = vst.msk [vmem:[#allocation3 + $0x10] sm:$0xff] %vm2410, %v2391
        %2414 = vst.msk [vmem:[#allocation3 + $0x18] sm:$0xff] %vm2410, %v2393
        %2415 = vst.msk [vmem:[#allocation3 + $0x20] sm:$0xff] %vm2410, %v2395
        %2416 = vst.msk [vmem:[#allocation3 + $0x28] sm:$0xff] %vm2410, %v2397
        %2417 = vst.msk [vmem:[#allocation3 + $0x30] sm:$0xff] %vm2410, %v2399
        %2418 = vst.msk [vmem:[#allocation3 + $0x38] sm:$0xff] %vm2410, %v2401
        %v2419 = vld [vmem:[#allocation2] sm:$0xff]
        %v2420 = vld [vmem:[#allocation2 + $0x18] sm:$0xff]
        %v2421 = vld [vmem:[#allocation2 + $0x30] sm:$0xff]
        %v2422 = vld [vmem:[#allocation2 + $0x48] sm:$0xff]
        %v2423 = vld [vmem:[#allocation2 + $0x60] sm:$0xff]
        %v2424 = vld [vmem:[#allocation2 + $0x78] sm:$0xff]
        %v2425 = vld [vmem:[#allocation2 + $0x90] sm:$0xff]
        %v2426 = vld [vmem:[#allocation2 + $0xa8] sm:$0xff]
        %v2427 = vld [vmem:[#allocation2 + $0x8] sm:$0xff]
        %v2428 = vld [vmem:[#allocation2 + $0x20] sm:$0xff]
        %v2429 = vld [vmem:[#allocation2 + $0x38] sm:$0xff]
        %v2430 = vld [vmem:[#allocation2 + $0x50] sm:$0xff]
        %v2431 = vld [vmem:[#allocation2 + $0x68] sm:$0xff]
        %v2432 = vld [vmem:[#allocation2 + $0x80] sm:$0xff]
        %v2433 = vld [vmem:[#allocation2 + $0x98] sm:$0xff]
        %v2434 = vld [vmem:[#allocation2 + $0xb0] sm:$0xff]
        %v2435 = vld [vmem:[#allocation2 + $0x10] sm:$0xff]
        %v2436 = vld [vmem:[#allocation2 + $0x28] sm:$0xff]
        %v2437 = vld [vmem:[#allocation2 + $0x40] sm:$0xff]
        %v2438 = vld [vmem:[#allocation2 + $0x58] sm:$0xff]
        %v2439 = vld [vmem:[#allocation2 + $0x70] sm:$0xff]
        %v2440 = vld [vmem:[#allocation2 + $0x88] sm:$0xff]
        %v2441 = vld [vmem:[#allocation2 + $0xa0] sm:$0xff]
        %v2442 = vld [vmem:[#allocation2 + $0xb8] sm:$0xff]
        %s2443 = scalar_lea.vmem [#allocation10], 192
        %v2444 = vld [vmem:[%s2443] sm:$0xff]
        %v2445 = vld [vmem:[%s2443 + $0x8] sm:$0xff]
        %v2446 = vld [vmem:[%s2443 + $0x10] sm:$0xff]
        %v2447 = vld [vmem:[%s2443 + $0x18] sm:$0xff]
        %v2448 = vld [vmem:[%s2443 + $0x20] sm:$0xff]
        %v2449 = vld [vmem:[%s2443 + $0x28] sm:$0xff]
        %v2450 = vld [vmem:[%s2443 + $0x30] sm:$0xff]
        %v2451 = vld [vmem:[%s2443 + $0x38] sm:$0xff]
        %2460 = vrot.lane.b32.xlu0 %v2419, 32
        %v2461 = vpop.permute.xlu0 %2460
        %2462 = vrot.lane.b32.xlu0 %v2420, 32
        %v2463 = vpop.permute.xlu0 %2462
        %2464 = vrot.lane.b32.xlu0 %v2421, 32
        %v2465 = vpop.permute.xlu0 %2464
        %2466 = vrot.lane.b32.xlu0 %v2422, 32
        %v2467 = vpop.permute.xlu0 %2466
        %2468 = vrot.lane.b32.xlu0 %v2423, 32
        %v2469 = vpop.permute.xlu0 %2468
        %2470 = vrot.lane.b32.xlu0 %v2424, 32
        %v2471 = vpop.permute.xlu0 %2470
        %2472 = vrot.lane.b32.xlu0 %v2425, 32
        %v2473 = vpop.permute.xlu0 %2472
        %2474 = vrot.lane.b32.xlu0 %v2426, 32
        %v2475 = vpop.permute.xlu0 %2474
        %2484 = vrot.lane.b32.xlu0 %v2427, 32
        %v2485 = vpop.permute.xlu0 %2484
        %2486 = vrot.lane.b32.xlu0 %v2428, 32
        %v2487 = vpop.permute.xlu0 %2486
        %2488 = vrot.lane.b32.xlu0 %v2429, 32
        %v2489 = vpop.permute.xlu0 %2488
        %2490 = vrot.lane.b32.xlu0 %v2430, 32
        %v2491 = vpop.permute.xlu0 %2490
        %2492 = vrot.lane.b32.xlu0 %v2431, 32
        %v2493 = vpop.permute.xlu0 %2492
        %2494 = vrot.lane.b32.xlu0 %v2432, 32
        %v2495 = vpop.permute.xlu0 %2494
        %2496 = vrot.lane.b32.xlu0 %v2433, 32
        %v2497 = vpop.permute.xlu0 %2496
        %2498 = vrot.lane.b32.xlu0 %v2434, 32
        %v2499 = vpop.permute.xlu0 %2498
        %v2500 = vsel %vm1023, %v2461, 0
        %v2502 = vsel %vm1023, %v2463, 0
        %v2504 = vsel %vm1023, %v2465, 0
        %v2506 = vsel %vm1023, %v2467, 0
        %v2508 = vsel %vm1023, %v2469, 0
        %v2510 = vsel %vm1023, %v2471, 0
        %v2512 = vsel %vm1023, %v2473, 0
        %v2514 = vsel %vm1023, %v2475, 0
        %v2516 = vsel %vm1023, %v2485, 0
        %v2518 = vsel %vm1023, %v2487, 0
        %v2520 = vsel %vm1023, %v2489, 0
        %v2522 = vsel %vm1023, %v2491, 0
        %v2524 = vsel %vm1023, %v2493, 0
        %v2526 = vsel %vm1023, %v2495, 0
        %v2528 = vsel %vm1023, %v2497, 0
        %v2530 = vsel %vm1023, %v2499, 0
        %2532 = vmatprep.subr.mxu0 0.0
        %2533 = vmatpush1.xpose.msra.mxu0 %v2516
        %2534 = vmatprep.subr.mxu0 0.0
        %2535 = vmatpush1.xpose.msra.mxu0 %v2518
        %2536 = vmatprep.subr.mxu0 0.0
        %2537 = vmatpush1.xpose.msra.mxu0 %v2520
        %2538 = vmatprep.subr.mxu0 0.0
        %2539 = vmatpush1.xpose.msra.mxu0 %v2522
        %2540 = vmatprep.subr.mxu0 0.0
        %2541 = vmatpush1.xpose.msra.mxu0 %v2524
        %2542 = vmatprep.subr.mxu0 0.0
        %2543 = vmatpush1.xpose.msra.mxu0 %v2526
        %2544 = vmatprep.subr.mxu0 0.0
        %2545 = vmatpush1.xpose.msra.mxu0 %v2528
        %2546 = vmatprep.subr.mxu0 0.0
        %2547 = vmatpush1.xpose.msra.mxu0 %v2530
        %2548 = vmatprep.subr.mxu0 0.0
        %2549 = vmatpush1.xpose.msra.mxu0 0.0
        %2550 = vmatprep.subr.mxu0 0.0
        %2551 = vmatpush1.xpose.msra.mxu0 0.0
        %2552 = vmatprep.subr.mxu0 0.0
        %2553 = vmatpush1.xpose.msra.mxu0 0.0
        %2554 = vmatprep.subr.mxu0 0.0
        %2555 = vmatpush1.xpose.msra.mxu0 0.0
        %2556 = vmatprep.subr.mxu0 0.0
        %2557 = vmatpush1.xpose.msra.mxu0 0.0
        %2558 = vmatprep.subr.mxu0 0.0
        %2559 = vmatpush1.xpose.msra.mxu0 0.0
        %2560 = vmatprep.subr.mxu0 0.0
        %2561 = vmatpush1.xpose.msra.mxu0 0.0
        %2562 = vmatprep.subr.mxu0 0.0
        %2563 = vmatpush1.xpose.msra.mxu0 0.0
        %2564 = vmatprep.subr.mxu0 0.0
        %2565 = vmatpush1.xpose.msra.mxu0 0.0
        %2566 = vmatprep.subr.mxu0 0.0
        %2567 = vmatpush1.xpose.msra.mxu0 0.0
        %2568 = vmatprep.subr.mxu0 0.0
        %2569 = vmatpush1.xpose.msra.mxu0 0.0
        %2570 = vmatprep.subr.mxu0 0.0
        %2571 = vmatpush1.xpose.msra.mxu0 0.0
        %2572 = vmatprep.subr.mxu0 0.0
        %2573 = vmatpush1.xpose.msra.mxu0 0.0
        %2574 = vmatprep.subr.mxu0 0.0
        %2575 = vmatpush1.xpose.msra.mxu0 0.0
        %2576 = vmatprep.subr.mxu0 0.0
        %2577 = vmatpush1.xpose.msra.mxu0 0.0
        %2578 = vmatprep.subr.mxu0 0.0
        %2579 = vmatpush1.xpose.msra.mxu0 0.0
        %2580 = vmatprep.subr.mxu0 0.0
        %2581 = vmatpush1.xpose.msra.mxu0 0.0
        %2582 = vmatprep.subr.mxu0 0.0
        %2583 = vmatpush1.xpose.msra.mxu0 0.0
        %2584 = vmatprep.subr.mxu0 0.0
        %2585 = vmatpush1.xpose.msra.mxu0 0.0
        %2586 = vmatprep.subr.mxu0 0.0
        %2587 = vmatpush1.xpose.msra.mxu0 0.0
        %2588 = vmatprep.subr.mxu0 0.0
        %2589 = vmatpush1.xpose.msra.mxu0 0.0
        %2590 = vmatprep.subr.mxu0 0.0
        %2591 = vmatpush1.xpose.msra.mxu0 0.0
        %2592 = vmatprep.subr.mxu0 0.0
        %2593 = vmatpush1.xpose.msra.mxu0 0.0
        %2594 = vmatprep.subr.mxu0 0.0
        %2595 = vmatpush1.xpose.msra.mxu0 0.0
        %2596 = vmatprep.mubr.f32.mxu0 0.0
        %2597 = vmatmul.mubr.f32.gmra.mrb[0].mxu0 %v2500
        %v2598 = vpop.f32.mrb[0].mxu0
        %v2599 = vadd.f32 %v2444, %v2598
        %v2600 = vpop.f32.mrb[0].mxu0
        %2601 = vmatprep.mubr.f32.mxu0 0.0
        %2602 = vmatmul.mubr.f32.gmra.mrb[0].mxu0 %v2502
        %v2603 = vpop.f32.mrb[0].mxu0
        %v2604 = vadd.f32 %v2445, %v2603
        %v2605 = vpop.f32.mrb[0].mxu0
        %2606 = vmatprep.mubr.f32.mxu0 0.0
        %2607 = vmatmul.mubr.f32.gmra.mrb[0].mxu0 %v2504
        %v2608 = vpop.f32.mrb[0].mxu0
        %v2609 = vadd.f32 %v2446, %v2608
        %v2610 = vpop.f32.mrb[0].mxu0
        %2611 = vmatprep.mubr.f32.mxu0 0.0
        %2612 = vmatmul.mubr.f32.gmra.mrb[0].mxu0 %v2506
        %v2613 = vpop.f32.mrb[0].mxu0
        %v2614 = vadd.f32 %v2447, %v2613
        %v2615 = vpop.f32.mrb[0].mxu0
        %2616 = vmatprep.mubr.f32.mxu0 0.0
        %2617 = vmatmul.mubr.f32.gmra.mrb[0].mxu0 %v2508
        %v2618 = vpop.f32.mrb[0].mxu0
        %v2619 = vadd.f32 %v2448, %v2618
        %v2620 = vpop.f32.mrb[0].mxu0
        %2621 = vmatprep.mubr.f32.mxu0 0.0
        %2622 = vmatmul.mubr.f32.gmra.mrb[0].mxu0 %v2510
        %v2623 = vpop.f32.mrb[0].mxu0
        %v2624 = vadd.f32 %v2449, %v2623
        %v2625 = vpop.f32.mrb[0].mxu0
        %2626 = vmatprep.mubr.f32.mxu0 0.0
        %2627 = vmatmul.mubr.f32.gmra.mrb[0].mxu0 %v2512
        %v2628 = vpop.f32.mrb[0].mxu0
        %v2629 = vadd.f32 %v2450, %v2628
        %v2630 = vpop.f32.mrb[0].mxu0
        %2631 = vmatprep.mubr.f32.mxu0 0.0
        %2632 = vmatmul.mubr.f32.gmra.mrb[0].mxu0 %v2514
        %v2633 = vpop.f32.mrb[0].mxu0
        %v2634 = vadd.f32 %v2451, %v2633
        %v2635 = vpop.f32.mrb[0].mxu0
        %2636 = vdwg.mxu0
        %v2637 = vsel %vm1177, %v2599, -inf
        %2638 = vmax.xlane.f32.xlu0 %v2637
        %v2639 = vpop.xlane.xlu0 %2638
        %v2640 = vsel %vm1177, %v2604, -inf
        %2641 = vmax.xlane.f32.xlu0 %v2640
        %v2642 = vpop.xlane.xlu0 %2641
        %v2643 = vsel %vm1177, %v2609, -inf
        %2644 = vmax.xlane.f32.xlu0 %v2643
        %v2645 = vpop.xlane.xlu0 %2644
        %v2646 = vsel %vm1177, %v2614, -inf
        %2647 = vmax.xlane.f32.xlu0 %v2646
        %v2648 = vpop.xlane.xlu0 %2647
        %v2649 = vsel %vm1177, %v2619, -inf
        %2650 = vmax.xlane.f32.xlu0 %v2649
        %v2651 = vpop.xlane.xlu0 %2650
        %v2652 = vsel %vm1177, %v2624, -inf
        %2653 = vmax.xlane.f32.xlu0 %v2652
        %v2654 = vpop.xlane.xlu0 %2653
        %v2655 = vsel %vm1177, %v2629, -inf
        %2656 = vmax.xlane.f32.xlu0 %v2655
        %v2657 = vpop.xlane.xlu0 %2656
        %v2658 = vsel %vm1177, %v2634, -inf
        %2659 = vmax.xlane.f32.xlu0 %v2658
        %v2660 = vpop.xlane.xlu0 %2659
        %v2661 = vsub.f32 %v2599, %v2639
        %v2662 = vsub.f32 %v2604, %v2642
        %v2663 = vsub.f32 %v2609, %v2645
        %v2664 = vsub.f32 %v2614, %v2648
        %v2665 = vsub.f32 %v2619, %v2651
        %v2666 = vsub.f32 %v2624, %v2654
        %v2667 = vsub.f32 %v2629, %v2657
        %v2668 = vsub.f32 %v2634, %v2660
        %v2669 = vmul.f32 %v2661, 1.442695
        %v2670 = vpow.pop %v2669
        %v2671 = vmul.f32 %v2662, 1.442695
        %v2672 = vpow.pop %v2671
        %v2673 = vmul.f32 %v2663, 1.442695
        %v2674 = vpow.pop %v2673
        %v2675 = vmul.f32 %v2664, 1.442695
        %v2676 = vpow.pop %v2675
        %v2677 = vmul.f32 %v2665, 1.442695
        %v2678 = vpow.pop %v2677
        %v2679 = vmul.f32 %v2666, 1.442695
        %v2680 = vpow.pop %v2679
        %v2681 = vmul.f32 %v2667, 1.442695
        %v2682 = vpow.pop %v2681
        %v2683 = vmul.f32 %v2668, 1.442695
        %v2684 = vpow.pop %v2683
        %v2685 = vsel %vm1177, %v2670, 0.0
        %2686 = vadd.xlane.f32.xlu0 %v2685
        %v2687 = vpop.xlane.xlu0 %2686
        %v2688 = vsel %vm1177, %v2672, 0.0
        %2689 = vadd.xlane.f32.xlu0 %v2688
        %v2690 = vpop.xlane.xlu0 %2689
        %v2691 = vsel %vm1177, %v2674, 0.0
        %2692 = vadd.xlane.f32.xlu0 %v2691
        %v2693 = vpop.xlane.xlu0 %2692
        %v2694 = vsel %vm1177, %v2676, 0.0
        %2695 = vadd.xlane.f32.xlu0 %v2694
        %v2696 = vpop.xlane.xlu0 %2695
        %v2697 = vsel %vm1177, %v2678, 0.0
        %2698 = vadd.xlane.f32.xlu0 %v2697
        %v2699 = vpop.xlane.xlu0 %2698
        %v2700 = vsel %vm1177, %v2680, 0.0
        %2701 = vadd.xlane.f32.xlu0 %v2700
        %v2702 = vpop.xlane.xlu0 %2701
        %v2703 = vsel %vm1177, %v2682, 0.0
        %2704 = vadd.xlane.f32.xlu0 %v2703
        %v2705 = vpop.xlane.xlu0 %2704
        %v2706 = vsel %vm1177, %v2684, 0.0
        %2707 = vadd.xlane.f32.xlu0 %v2706
        %v2708 = vpop.xlane.xlu0 %2707
        %v2709 = vrcp.pop %v2687
        %v2710 = vrcp.pop %v2690
        %v2711 = vrcp.pop %v2693
        %v2712 = vrcp.pop %v2696
        %v2713 = vrcp.pop %v2699
        %v2714 = vrcp.pop %v2702
        %v2715 = vrcp.pop %v2705
        %v2716 = vrcp.pop %v2708
        %v2717 = vmul.f32 %v2670, %v2709
        %v2718 = vmul.f32 %v2672, %v2710
        %v2719 = vmul.f32 %v2674, %v2711
        %v2720 = vmul.f32 %v2676, %v2712
        %v2721 = vmul.f32 %v2678, %v2713
        %v2722 = vmul.f32 %v2680, %v2714
        %v2723 = vmul.f32 %v2682, %v2715
        %v2724 = vmul.f32 %v2684, %v2716
        %2733 = vrot.lane.b32.xlu0 %v2435, 32
        %v2734 = vpop.permute.xlu0 %2733
        %2735 = vrot.lane.b32.xlu0 %v2436, 32
        %v2736 = vpop.permute.xlu0 %2735
        %2737 = vrot.lane.b32.xlu0 %v2437, 32
        %v2738 = vpop.permute.xlu0 %2737
        %2739 = vrot.lane.b32.xlu0 %v2438, 32
        %v2740 = vpop.permute.xlu0 %2739
        %2741 = vrot.lane.b32.xlu0 %v2439, 32
        %v2742 = vpop.permute.xlu0 %2741
        %2743 = vrot.lane.b32.xlu0 %v2440, 32
        %v2744 = vpop.permute.xlu0 %2743
        %2745 = vrot.lane.b32.xlu0 %v2441, 32
        %v2746 = vpop.permute.xlu0 %2745
        %2747 = vrot.lane.b32.xlu0 %v2442, 32
        %v2748 = vpop.permute.xlu0 %2747
        %v2758 = vsel %vm1177, %v2717, 0
        %v2761 = vsel %vm1177, %v2718, 0
        %v2764 = vsel %vm1177, %v2719, 0
        %v2767 = vsel %vm1177, %v2720, 0
        %v2770 = vsel %vm1177, %v2721, 0
        %v2773 = vsel %vm1177, %v2722, 0
        %v2776 = vsel %vm1177, %v2723, 0
        %v2779 = vsel %vm1177, %v2724, 0
        %2781 = vmatprep.subr.mxu0 0.0
        %2782 = vmatpush1.msra.mxu0 %v2734
        %2783 = vmatprep.subr.mxu0 0.0
        %2784 = vmatpush1.msra.mxu0 %v2736
        %2785 = vmatprep.subr.mxu0 0.0
        %2786 = vmatpush1.msra.mxu0 %v2738
        %2787 = vmatprep.subr.mxu0 0.0
        %2788 = vmatpush1.msra.mxu0 %v2740
        %2789 = vmatprep.subr.mxu0 0.0
        %2790 = vmatpush1.msra.mxu0 %v2742
        %2791 = vmatprep.subr.mxu0 0.0
        %2792 = vmatpush1.msra.mxu0 %v2744
        %2793 = vmatprep.subr.mxu0 0.0
        %2794 = vmatpush1.msra.mxu0 %v2746
        %2795 = vmatprep.subr.mxu0 0.0
        %2796 = vmatpush1.msra.mxu0 %v2748
        %2797 = vmatprep.subr.mxu0 0.0
        %2798 = vmatpush1.msra.mxu0 0.0
        %2799 = vmatprep.subr.mxu0 0.0
        %2800 = vmatpush1.msra.mxu0 0.0
        %2801 = vmatprep.subr.mxu0 0.0
        %2802 = vmatpush1.msra.mxu0 0.0
        %2803 = vmatprep.subr.mxu0 0.0
        %2804 = vmatpush1.msra.mxu0 0.0
        %2805 = vmatprep.subr.mxu0 0.0
        %2806 = vmatpush1.msra.mxu0 0.0
        %2807 = vmatprep.subr.mxu0 0.0
        %2808 = vmatpush1.msra.mxu0 0.0
        %2809 = vmatprep.subr.mxu0 0.0
        %2810 = vmatpush1.msra.mxu0 0.0
        %2811 = vmatprep.subr.mxu0 0.0
        %2812 = vmatpush1.msra.mxu0 0.0
        %2813 = vmatprep.subr.mxu0 0.0
        %2814 = vmatpush1.msra.mxu0 0.0
        %2815 = vmatprep.subr.mxu0 0.0
        %2816 = vmatpush1.msra.mxu0 0.0
        %2817 = vmatprep.subr.mxu0 0.0
        %2818 = vmatpush1.msra.mxu0 0.0
        %2819 = vmatprep.subr.mxu0 0.0
        %2820 = vmatpush1.msra.mxu0 0.0
        %2821 = vmatprep.subr.mxu0 0.0
        %2822 = vmatpush1.msra.mxu0 0.0
        %2823 = vmatprep.subr.mxu0 0.0
        %2824 = vmatpush1.msra.mxu0 0.0
        %2825 = vmatprep.subr.mxu0 0.0
        %2826 = vmatpush1.msra.mxu0 0.0
        %2827 = vmatprep.subr.mxu0 0.0
        %2828 = vmatpush1.msra.mxu0 0.0
        %2829 = vmatprep.subr.mxu0 0.0
        %2830 = vmatpush1.msra.mxu0 0.0
        %2831 = vmatprep.subr.mxu0 0.0
        %2832 = vmatpush1.msra.mxu0 0.0
        %2833 = vmatprep.subr.mxu0 0.0
        %2834 = vmatpush1.msra.mxu0 0.0
        %2835 = vmatprep.subr.mxu0 0.0
        %2836 = vmatpush1.msra.mxu0 0.0
        %2837 = vmatprep.subr.mxu0 0.0
        %2838 = vmatpush1.msra.mxu0 0.0
        %2839 = vmatprep.subr.mxu0 0.0
        %2840 = vmatpush1.msra.mxu0 0.0
        %2841 = vmatprep.subr.mxu0 0.0
        %2842 = vmatpush1.msra.mxu0 0.0
        %2843 = vmatprep.subr.mxu0 0.0
        %2844 = vmatpush1.msra.mxu0 0.0
        %2845 = vmatprep.mubr.f32.mxu0 0.0
        %2846 = vmatmul.mubr.f32.gmra.mrb[0].mxu0 %v2758
        %v2847 = vpop.f32.mrb[0].mxu0
        %v2848 = vadd.f32 0.0, %v2847
        %v2849 = vpop.f32.mrb[0].mxu0
        %2850 = vmatprep.mubr.f32.mxu0 0.0
        %2851 = vmatmul.mubr.f32.gmra.mrb[0].mxu0 %v2761
        %v2852 = vpop.f32.mrb[0].mxu0
        %v2853 = vadd.f32 0.0, %v2852
        %v2854 = vpop.f32.mrb[0].mxu0
        %2855 = vmatprep.mubr.f32.mxu0 0.0
        %2856 = vmatmul.mubr.f32.gmra.mrb[0].mxu0 %v2764
        %v2857 = vpop.f32.mrb[0].mxu0
        %v2858 = vadd.f32 0.0, %v2857
        %v2859 = vpop.f32.mrb[0].mxu0
        %2860 = vmatprep.mubr.f32.mxu0 0.0
        %2861 = vmatmul.mubr.f32.gmra.mrb[0].mxu0 %v2767
        %v2862 = vpop.f32.mrb[0].mxu0
        %v2863 = vadd.f32 0.0, %v2862
        %v2864 = vpop.f32.mrb[0].mxu0
        %2865 = vmatprep.mubr.f32.mxu0 0.0
        %2866 = vmatmul.mubr.f32.gmra.mrb[0].mxu0 %v2770
        %v2867 = vpop.f32.mrb[0].mxu0
        %v2868 = vadd.f32 0.0, %v2867
        %v2869 = vpop.f32.mrb[0].mxu0
        %2870 = vmatprep.mubr.f32.mxu0 0.0
        %2871 = vmatmul.mubr.f32.gmra.mrb[0].mxu0 %v2773
        %v2872 = vpop.f32.mrb[0].mxu0
        %v2873 = vadd.f32 0.0, %v2872
        %v2874 = vpop.f32.mrb[0].mxu0
        %2875 = vmatprep.mubr.f32.mxu0 0.0
        %2876 = vmatmul.mubr.f32.gmra.mrb[0].mxu0 %v2776
        %v2877 = vpop.f32.mrb[0].mxu0
        %v2878 = vadd.f32 0.0, %v2877
        %v2879 = vpop.f32.mrb[0].mxu0
        %2880 = vmatprep.mubr.f32.mxu0 0.0
        %2881 = vmatmul.mubr.f32.gmra.mrb[0].mxu0 %v2779
        %v2882 = vpop.f32.mrb[0].mxu0
        %v2883 = vadd.f32 0.0, %v2882
        %v2884 = vpop.f32.mrb[0].mxu0
        %2885 = vdwg.mxu0
        %2894 = vrot.lane.b32.xlu0 %v2848, 96
        %v2895 = vpop.permute.xlu0 %2894
        %2896 = vrot.lane.b32.xlu0 %v2853, 96
        %v2897 = vpop.permute.xlu0 %2896
        %2898 = vrot.lane.b32.xlu0 %v2858, 96
        %v2899 = vpop.permute.xlu0 %2898
        %2900 = vrot.lane.b32.xlu0 %v2863, 96
        %v2901 = vpop.permute.xlu0 %2900
        %2902 = vrot.lane.b32.xlu0 %v2868, 96
        %v2903 = vpop.permute.xlu0 %2902
        %2904 = vrot.lane.b32.xlu0 %v2873, 96
        %v2905 = vpop.permute.xlu0 %2904
        %2906 = vrot.lane.b32.xlu0 %v2878, 96
        %v2907 = vpop.permute.xlu0 %2906
        %2908 = vrot.lane.b32.xlu0 %v2883, 96
        %v2909 = vpop.permute.xlu0 %2908
        %vm2918 = vcmask 1048320
        %2919 = vst.msk [vmem:[#allocation3] sm:$0xff] %vm2918, %v2895
        %2920 = vst.msk [vmem:[#allocation3 + $0x8] sm:$0xff] %vm2918, %v2897
        %2921 = vst.msk [vmem:[#allocation3 + $0x10] sm:$0xff] %vm2918, %v2899
        %2922 = vst.msk [vmem:[#allocation3 + $0x18] sm:$0xff] %vm2918, %v2901
        %2923 = vst.msk [vmem:[#allocation3 + $0x20] sm:$0xff] %vm2918, %v2903
        %2924 = vst.msk [vmem:[#allocation3 + $0x28] sm:$0xff] %vm2918, %v2905
        %2925 = vst.msk [vmem:[#allocation3 + $0x30] sm:$0xff] %vm2918, %v2907
        %2926 = vst.msk [vmem:[#allocation3 + $0x38] sm:$0xff] %vm2918, %v2909
        %v2927 = vld [vmem:[#allocation2 + $0xc0] sm:$0xff]
        %v2928 = vld [vmem:[#allocation2 + $0xd8] sm:$0xff]
        %v2929 = vld [vmem:[#allocation2 + $0xf0] sm:$0xff]
        %v2930 = vld [vmem:[#allocation2 + $0x108] sm:$0xff]
        %v2931 = vld [vmem:[#allocation2 + $0x120] sm:$0xff]
        %v2932 = vld [vmem:[#allocation2 + $0x138] sm:$0xff]
        %v2933 = vld [vmem:[#allocation2 + $0x150] sm:$0xff]
        %v2934 = vld [vmem:[#allocation2 + $0x168] sm:$0xff]
        %v2935 = vld [vmem:[#allocation2 + $0xc8] sm:$0xff]
        %v2936 = vld [vmem:[#allocation2 + $0xe0] sm:$0xff]
        %v2937 = vld [vmem:[#allocation2 + $0xf8] sm:$0xff]
        %v2938 = vld [vmem:[#allocation2 + $0x110] sm:$0xff]
        %v2939 = vld [vmem:[#allocation2 + $0x128] sm:$0xff]
        %v2940 = vld [vmem:[#allocation2 + $0x140] sm:$0xff]
        %v2941 = vld [vmem:[#allocation2 + $0x158] sm:$0xff]
        %v2942 = vld [vmem:[#allocation2 + $0x170] sm:$0xff]
        %v2943 = vld [vmem:[#allocation2 + $0xd0] sm:$0xff]
        %v2944 = vld [vmem:[#allocation2 + $0xe8] sm:$0xff]
        %v2945 = vld [vmem:[#allocation2 + $0x100] sm:$0xff]
        %v2946 = vld [vmem:[#allocation2 + $0x118] sm:$0xff]
        %v2947 = vld [vmem:[#allocation2 + $0x130] sm:$0xff]
        %v2948 = vld [vmem:[#allocation2 + $0x148] sm:$0xff]
        %v2949 = vld [vmem:[#allocation2 + $0x160] sm:$0xff]
        %v2950 = vld [vmem:[#allocation2 + $0x178] sm:$0xff]
        %v2951 = vld [vmem:[#allocation10] sm:$0xff]
        %v2952 = vld [vmem:[#allocation10 + $0x8] sm:$0xff]
        %v2953 = vld [vmem:[#allocation10 + $0x10] sm:$0xff]
        %v2954 = vld [vmem:[#allocation10 + $0x18] sm:$0xff]
        %v2955 = vld [vmem:[#allocation10 + $0x20] sm:$0xff]
        %v2956 = vld [vmem:[#allocation10 + $0x28] sm:$0xff]
        %v2957 = vld [vmem:[#allocation10 + $0x30] sm:$0xff]
        %v2958 = vld [vmem:[#allocation10 + $0x38] sm:$0xff]
        %v2960 = vsel %vm1023, %v2927, 0
        %v2963 = vsel %vm1023, %v2928, 0
        %v2966 = vsel %vm1023, %v2929, 0
        %v2969 = vsel %vm1023, %v2930, 0
        %v2972 = vsel %vm1023, %v2931, 0
        %v2975 = vsel %vm1023, %v2932, 0
        %v2978 = vsel %vm1023, %v2933, 0
        %v2981 = vsel %vm1023, %v2934, 0
        %v2984 = vsel %vm1023, %v2935, 0
        %v2987 = vsel %vm1023, %v2936, 0
        %v2990 = vsel %vm1023, %v2937, 0
        %v2993 = vsel %vm1023, %v2938, 0
        %v2996 = vsel %vm1023, %v2939, 0
        %v2999 = vsel %vm1023, %v2940, 0
        %v3002 = vsel %vm1023, %v2941, 0
        %v3005 = vsel %vm1023, %v2942, 0
        %3007 = vmatprep.subr.mxu0 0.0
        %3008 = vmatpush1.xpose.msra.mxu0 %v2984
        %3009 = vmatprep.subr.mxu0 0.0
        %3010 = vmatpush1.xpose.msra.mxu0 %v2987
        %3011 = vmatprep.subr.mxu0 0.0
        %3012 = vmatpush1.xpose.msra.mxu0 %v2990
        %3013 = vmatprep.subr.mxu0 0.0
        %3014 = vmatpush1.xpose.msra.mxu0 %v2993
        %3015 = vmatprep.subr.mxu0 0.0
        %3016 = vmatpush1.xpose.msra.mxu0 %v2996
        %3017 = vmatprep.subr.mxu0 0.0
        %3018 = vmatpush1.xpose.msra.mxu0 %v2999
        %3019 = vmatprep.subr.mxu0 0.0
        %3020 = vmatpush1.xpose.msra.mxu0 %v3002
        %3021 = vmatprep.subr.mxu0 0.0
        %3022 = vmatpush1.xpose.msra.mxu0 %v3005
        %3023 = vmatprep.subr.mxu0 0.0
        %3024 = vmatpush1.xpose.msra.mxu0 0.0
        %3025 = vmatprep.subr.mxu0 0.0
        %3026 = vmatpush1.xpose.msra.mxu0 0.0
        %3027 = vmatprep.subr.mxu0 0.0
        %3028 = vmatpush1.xpose.msra.mxu0 0.0
        %3029 = vmatprep.subr.mxu0 0.0
        %3030 = vmatpush1.xpose.msra.mxu0 0.0
        %3031 = vmatprep.subr.mxu0 0.0
        %3032 = vmatpush1.xpose.msra.mxu0 0.0
        %3033 = vmatprep.subr.mxu0 0.0
        %3034 = vmatpush1.xpose.msra.mxu0 0.0
        %3035 = vmatprep.subr.mxu0 0.0
        %3036 = vmatpush1.xpose.msra.mxu0 0.0
        %3037 = vmatprep.subr.mxu0 0.0
        %3038 = vmatpush1.xpose.msra.mxu0 0.0
        %3039 = vmatprep.subr.mxu0 0.0
        %3040 = vmatpush1.xpose.msra.mxu0 0.0
        %3041 = vmatprep.subr.mxu0 0.0
        %3042 = vmatpush1.xpose.msra.mxu0 0.0
        %3043 = vmatprep.subr.mxu0 0.0
        %3044 = vmatpush1.xpose.msra.mxu0 0.0
        %3045 = vmatprep.subr.mxu0 0.0
        %3046 = vmatpush1.xpose.msra.mxu0 0.0
        %3047 = vmatprep.subr.mxu0 0.0
        %3048 = vmatpush1.xpose.msra.mxu0 0.0
        %3049 = vmatprep.subr.mxu0 0.0
        %3050 = vmatpush1.xpose.msra.mxu0 0.0
        %3051 = vmatprep.subr.mxu0 0.0
        %3052 = vmatpush1.xpose.msra.mxu0 0.0
        %3053 = vmatprep.subr.mxu0 0.0
        %3054 = vmatpush1.xpose.msra.mxu0 0.0
        %3055 = vmatprep.subr.mxu0 0.0
        %3056 = vmatpush1.xpose.msra.mxu0 0.0
        %3057 = vmatprep.subr.mxu0 0.0
        %3058 = vmatpush1.xpose.msra.mxu0 0.0
        %3059 = vmatprep.subr.mxu0 0.0
        %3060 = vmatpush1.xpose.msra.mxu0 0.0
        %3061 = vmatprep.subr.mxu0 0.0
        %3062 = vmatpush1.xpose.msra.mxu0 0.0
        %3063 = vmatprep.subr.mxu0 0.0
        %3064 = vmatpush1.xpose.msra.mxu0 0.0
        %3065 = vmatprep.subr.mxu0 0.0
        %3066 = vmatpush1.xpose.msra.mxu0 0.0
        %3067 = vmatprep.subr.mxu0 0.0
        %3068 = vmatpush1.xpose.msra.mxu0 0.0
        %3069 = vmatprep.subr.mxu0 0.0
        %3070 = vmatpush1.xpose.msra.mxu0 0.0
        %3071 = vmatprep.mubr.f32.mxu0 0.0
        %3072 = vmatmul.mubr.f32.gmra.mrb[0].mxu0 %v2960
        %v3073 = vpop.f32.mrb[0].mxu0
        %v3074 = vadd.f32 %v2951, %v3073
        %v3075 = vpop.f32.mrb[0].mxu0
        %3076 = vmatprep.mubr.f32.mxu0 0.0
        %3077 = vmatmul.mubr.f32.gmra.mrb[0].mxu0 %v2963
        %v3078 = vpop.f32.mrb[0].mxu0
        %v3079 = vadd.f32 %v2952, %v3078
        %v3080 = vpop.f32.mrb[0].mxu0
        %3081 = vmatprep.mubr.f32.mxu0 0.0
        %3082 = vmatmul.mubr.f32.gmra.mrb[0].mxu0 %v2966
        %v3083 = vpop.f32.mrb[0].mxu0
        %v3084 = vadd.f32 %v2953, %v3083
        %v3085 = vpop.f32.mrb[0].mxu0
        %3086 = vmatprep.mubr.f32.mxu0 0.0
        %3087 = vmatmul.mubr.f32.gmra.mrb[0].mxu0 %v2969
        %v3088 = vpop.f32.mrb[0].mxu0
        %v3089 = vadd.f32 %v2954, %v3088
        %v3090 = vpop.f32.mrb[0].mxu0
        %3091 = vmatprep.mubr.f32.mxu0 0.0
        %3092 = vmatmul.mubr.f32.gmra.mrb[0].mxu0 %v2972
        %v3093 = vpop.f32.mrb[0].mxu0
        %v3094 = vadd.f32 %v2955, %v3093
        %v3095 = vpop.f32.mrb[0].mxu0
        %3096 = vmatprep.mubr.f32.mxu0 0.0
        %3097 = vmatmul.mubr.f32.gmra.mrb[0].mxu0 %v2975
        %v3098 = vpop.f32.mrb[0].mxu0
        %v3099 = vadd.f32 %v2956, %v3098
        %v3100 = vpop.f32.mrb[0].mxu0
        %3101 = vmatprep.mubr.f32.mxu0 0.0
        %3102 = vmatmul.mubr.f32.gmra.mrb[0].mxu0 %v2978
        %v3103 = vpop.f32.mrb[0].mxu0
        %v3104 = vadd.f32 %v2957, %v3103
        %v3105 = vpop.f32.mrb[0].mxu0
        %3106 = vmatprep.mubr.f32.mxu0 0.0
        %3107 = vmatmul.mubr.f32.gmra.mrb[0].mxu0 %v2981
        %v3108 = vpop.f32.mrb[0].mxu0
        %v3109 = vadd.f32 %v2958, %v3108
        %v3110 = vpop.f32.mrb[0].mxu0
        %3111 = vdwg.mxu0
        %v3112 = vsel %vm1177, %v3074, -inf
        %3113 = vmax.xlane.f32.xlu0 %v3112
        %v3114 = vpop.xlane.xlu0 %3113
        %v3115 = vsel %vm1177, %v3079, -inf
        %3116 = vmax.xlane.f32.xlu0 %v3115
        %v3117 = vpop.xlane.xlu0 %3116
        %v3118 = vsel %vm1177, %v3084, -inf
        %3119 = vmax.xlane.f32.xlu0 %v3118
        %v3120 = vpop.xlane.xlu0 %3119
        %v3121 = vsel %vm1177, %v3089, -inf
        %3122 = vmax.xlane.f32.xlu0 %v3121
        %v3123 = vpop.xlane.xlu0 %3122
        %v3124 = vsel %vm1177, %v3094, -inf
        %3125 = vmax.xlane.f32.xlu0 %v3124
        %v3126 = vpop.xlane.xlu0 %3125
        %v3127 = vsel %vm1177, %v3099, -inf
        %3128 = vmax.xlane.f32.xlu0 %v3127
        %v3129 = vpop.xlane.xlu0 %3128
        %v3130 = vsel %vm1177, %v3104, -inf
        %3131 = vmax.xlane.f32.xlu0 %v3130
        %v3132 = vpop.xlane.xlu0 %3131
        %v3133 = vsel %vm1177, %v3109, -inf
        %3134 = vmax.xlane.f32.xlu0 %v3133
        %v3135 = vpop.xlane.xlu0 %3134
        %v3136 = vsub.f32 %v3074, %v3114
        %v3137 = vsub.f32 %v3079, %v3117
        %v3138 = vsub.f32 %v3084, %v3120
        %v3139 = vsub.f32 %v3089, %v3123
        %v3140 = vsub.f32 %v3094, %v3126
        %v3141 = vsub.f32 %v3099, %v3129
        %v3142 = vsub.f32 %v3104, %v3132
        %v3143 = vsub.f32 %v3109, %v3135
        %v3144 = vmul.f32 %v3136, 1.442695
        %v3145 = vpow.pop %v3144
        %v3146 = vmul.f32 %v3137, 1.442695
        %v3147 = vpow.pop %v3146
        %v3148 = vmul.f32 %v3138, 1.442695
        %v3149 = vpow.pop %v3148
        %v3150 = vmul.f32 %v3139, 1.442695
        %v3151 = vpow.pop %v3150
        %v3152 = vmul.f32 %v3140, 1.442695
        %v3153 = vpow.pop %v3152
        %v3154 = vmul.f32 %v3141, 1.442695
        %v3155 = vpow.pop %v3154
        %v3156 = vmul.f32 %v3142, 1.442695
        %v3157 = vpow.pop %v3156
        %v3158 = vmul.f32 %v3143, 1.442695
        %v3159 = vpow.pop %v3158
        %v3160 = vsel %vm1177, %v3145, 0.0
        %3161 = vadd.xlane.f32.xlu0 %v3160
        %v3162 = vpop.xlane.xlu0 %3161
        %v3163 = vsel %vm1177, %v3147, 0.0
        %3164 = vadd.xlane.f32.xlu0 %v3163
        %v3165 = vpop.xlane.xlu0 %3164
        %v3166 = vsel %vm1177, %v3149, 0.0
        %3167 = vadd.xlane.f32.xlu0 %v3166
        %v3168 = vpop.xlane.xlu0 %3167
        %v3169 = vsel %vm1177, %v3151, 0.0
        %3170 = vadd.xlane.f32.xlu0 %v3169
        %v3171 = vpop.xlane.xlu0 %3170
        %v3172 = vsel %vm1177, %v3153, 0.0
        %3173 = vadd.xlane.f32.xlu0 %v3172
        %v3174 = vpop.xlane.xlu0 %3173
        %v3175 = vsel %vm1177, %v3155, 0.0
        %3176 = vadd.xlane.f32.xlu0 %v3175
        %v3177 = vpop.xlane.xlu0 %3176
        %v3178 = vsel %vm1177, %v3157, 0.0
        %3179 = vadd.xlane.f32.xlu0 %v3178
        %v3180 = vpop.xlane.xlu0 %3179
        %v3181 = vsel %vm1177, %v3159, 0.0
        %3182 = vadd.xlane.f32.xlu0 %v3181
        %v3183 = vpop.xlane.xlu0 %3182
        %v3184 = vrcp.pop %v3162
        %v3185 = vrcp.pop %v3165
        %v3186 = vrcp.pop %v3168
        %v3187 = vrcp.pop %v3171
        %v3188 = vrcp.pop %v3174
        %v3189 = vrcp.pop %v3177
        %v3190 = vrcp.pop %v3180
        %v3191 = vrcp.pop %v3183
        %v3192 = vmul.f32 %v3145, %v3184
        %v3193 = vmul.f32 %v3147, %v3185
        %v3194 = vmul.f32 %v3149, %v3186
        %v3195 = vmul.f32 %v3151, %v3187
        %v3196 = vmul.f32 %v3153, %v3188
        %v3197 = vmul.f32 %v3155, %v3189
        %v3198 = vmul.f32 %v3157, %v3190
        %v3199 = vmul.f32 %v3159, %v3191
        %v3201 = vsel %vm1177, %v3192, 0
        %v3204 = vsel %vm1177, %v3193, 0
        %v3207 = vsel %vm1177, %v3194, 0
        %v3210 = vsel %vm1177, %v3195, 0
        %v3213 = vsel %vm1177, %v3196, 0
        %v3216 = vsel %vm1177, %v3197, 0
        %v3219 = vsel %vm1177, %v3198, 0
        %v3222 = vsel %vm1177, %v3199, 0
        %3224 = vmatprep.subr.mxu0 0.0
        %3225 = vmatpush1.msra.mxu0 %v2943
        %3226 = vmatprep.subr.mxu0 0.0
        %3227 = vmatpush1.msra.mxu0 %v2944
        %3228 = vmatprep.subr.mxu0 0.0
        %3229 = vmatpush1.msra.mxu0 %v2945
        %3230 = vmatprep.subr.mxu0 0.0
        %3231 = vmatpush1.msra.mxu0 %v2946
        %3232 = vmatprep.subr.mxu0 0.0
        %3233 = vmatpush1.msra.mxu0 %v2947
        %3234 = vmatprep.subr.mxu0 0.0
        %3235 = vmatpush1.msra.mxu0 %v2948
        %3236 = vmatprep.subr.mxu0 0.0
        %3237 = vmatpush1.msra.mxu0 %v2949
        %3238 = vmatprep.subr.mxu0 0.0
        %3239 = vmatpush1.msra.mxu0 %v2950
        %3240 = vmatprep.subr.mxu0 0.0
        %3241 = vmatpush1.msra.mxu0 0.0
        %3242 = vmatprep.subr.mxu0 0.0
        %3243 = vmatpush1.msra.mxu0 0.0
        %3244 = vmatprep.subr.mxu0 0.0
        %3245 = vmatpush1.msra.mxu0 0.0
        %3246 = vmatprep.subr.mxu0 0.0
        %3247 = vmatpush1.msra.mxu0 0.0
        %3248 = vmatprep.subr.mxu0 0.0
        %3249 = vmatpush1.msra.mxu0 0.0
        %3250 = vmatprep.subr.mxu0 0.0
        %3251 = vmatpush1.msra.mxu0 0.0
        %3252 = vmatprep.subr.mxu0 0.0
        %3253 = vmatpush1.msra.mxu0 0.0
        %3254 = vmatprep.subr.mxu0 0.0
        %3255 = vmatpush1.msra.mxu0 0.0
        %3256 = vmatprep.subr.mxu0 0.0
        %3257 = vmatpush1.msra.mxu0 0.0
        %3258 = vmatprep.subr.mxu0 0.0
        %3259 = vmatpush1.msra.mxu0 0.0
        %3260 = vmatprep.subr.mxu0 0.0
        %3261 = vmatpush1.msra.mxu0 0.0
        %3262 = vmatprep.subr.mxu0 0.0
        %3263 = vmatpush1.msra.mxu0 0.0
        %3264 = vmatprep.subr.mxu0 0.0
        %3265 = vmatpush1.msra.mxu0 0.0
        %3266 = vmatprep.subr.mxu0 0.0
        %3267 = vmatpush1.msra.mxu0 0.0
        %3268 = vmatprep.subr.mxu0 0.0
        %3269 = vmatpush1.msra.mxu0 0.0
        %3270 = vmatprep.subr.mxu0 0.0
        %3271 = vmatpush1.msra.mxu0 0.0
        %3272 = vmatprep.subr.mxu0 0.0
        %3273 = vmatpush1.msra.mxu0 0.0
        %3274 = vmatprep.subr.mxu0 0.0
        %3275 = vmatpush1.msra.mxu0 0.0
        %3276 = vmatprep.subr.mxu0 0.0
        %3277 = vmatpush1.msra.mxu0 0.0
        %3278 = vmatprep.subr.mxu0 0.0
        %3279 = vmatpush1.msra.mxu0 0.0
        %3280 = vmatprep.subr.mxu0 0.0
        %3281 = vmatpush1.msra.mxu0 0.0
        %3282 = vmatprep.subr.mxu0 0.0
        %3283 = vmatpush1.msra.mxu0 0.0
        %3284 = vmatprep.subr.mxu0 0.0
        %3285 = vmatpush1.msra.mxu0 0.0
        %3286 = vmatprep.subr.mxu0 0.0
        %3287 = vmatpush1.msra.mxu0 0.0
        %3288 = vmatprep.mubr.f32.mxu0 0.0
        %3289 = vmatmul.mubr.f32.gmra.mrb[0].mxu0 %v3201
        %v3290 = vpop.f32.mrb[0].mxu0
        %v3291 = vadd.f32 0.0, %v3290
        %v3292 = vpop.f32.mrb[0].mxu0
        %3293 = vmatprep.mubr.f32.mxu0 0.0
        %3294 = vmatmul.mubr.f32.gmra.mrb[0].mxu0 %v3204
        %v3295 = vpop.f32.mrb[0].mxu0
        %v3296 = vadd.f32 0.0, %v3295
        %v3297 = vpop.f32.mrb[0].mxu0
        %3298 = vmatprep.mubr.f32.mxu0 0.0
        %3299 = vmatmul.mubr.f32.gmra.mrb[0].mxu0 %v3207
        %v3300 = vpop.f32.mrb[0].mxu0
        %v3301 = vadd.f32 0.0, %v3300
        %v3302 = vpop.f32.mrb[0].mxu0
        %3303 = vmatprep.mubr.f32.mxu0 0.0
        %3304 = vmatmul.mubr.f32.gmra.mrb[0].mxu0 %v3210
        %v3305 = vpop.f32.mrb[0].mxu0
        %v3306 = vadd.f32 0.0, %v3305
        %v3307 = vpop.f32.mrb[0].mxu0
        %3308 = vmatprep.mubr.f32.mxu0 0.0
        %3309 = vmatmul.mubr.f32.gmra.mrb[0].mxu0 %v3213
        %v3310 = vpop.f32.mrb[0].mxu0
        %v3311 = vadd.f32 0.0, %v3310
        %v3312 = vpop.f32.mrb[0].mxu0
        %3313 = vmatprep.mubr.f32.mxu0 0.0
        %3314 = vmatmul.mubr.f32.gmra.mrb[0].mxu0 %v3216
        %v3315 = vpop.f32.mrb[0].mxu0
        %v3316 = vadd.f32 0.0, %v3315
        %v3317 = vpop.f32.mrb[0].mxu0
        %3318 = vmatprep.mubr.f32.mxu0 0.0
        %3319 = vmatmul.mubr.f32.gmra.mrb[0].mxu0 %v3219
        %v3320 = vpop.f32.mrb[0].mxu0
        %v3321 = vadd.f32 0.0, %v3320
        %v3322 = vpop.f32.mrb[0].mxu0
        %3323 = vmatprep.mubr.f32.mxu0 0.0
        %3324 = vmatmul.mubr.f32.gmra.mrb[0].mxu0 %v3222
        %v3325 = vpop.f32.mrb[0].mxu0
        %v3326 = vadd.f32 0.0, %v3325
        %v3327 = vpop.f32.mrb[0].mxu0
        %3328 = vdwg.mxu0
        %3329 = vst.msk [vmem:[#allocation3 + $0x40] sm:$0xff] %vm1023, %v3291
        %3330 = vst.msk [vmem:[#allocation3 + $0x48] sm:$0xff] %vm1023, %v3296
        %3331 = vst.msk [vmem:[#allocation3 + $0x50] sm:$0xff] %vm1023, %v3301
        %3332 = vst.msk [vmem:[#allocation3 + $0x58] sm:$0xff] %vm1023, %v3306
        %3333 = vst.msk [vmem:[#allocation3 + $0x60] sm:$0xff] %vm1023, %v3311
        %3334 = vst.msk [vmem:[#allocation3 + $0x68] sm:$0xff] %vm1023, %v3316
        %3335 = vst.msk [vmem:[#allocation3 + $0x70] sm:$0xff] %vm1023, %v3321
        %3336 = vst.msk [vmem:[#allocation3 + $0x78] sm:$0xff] %vm1023, %v3326
        %v3337 = vld [vmem:[#allocation2 + $0xc0] sm:$0xff]
        %v3338 = vld [vmem:[#allocation2 + $0xd8] sm:$0xff]
        %v3339 = vld [vmem:[#allocation2 + $0xf0] sm:$0xff]
        %v3340 = vld [vmem:[#allocation2 + $0x108] sm:$0xff]
        %v3341 = vld [vmem:[#allocation2 + $0x120] sm:$0xff]
        %v3342 = vld [vmem:[#allocation2 + $0x138] sm:$0xff]
        %v3343 = vld [vmem:[#allocation2 + $0x150] sm:$0xff]
        %v3344 = vld [vmem:[#allocation2 + $0x168] sm:$0xff]
        %v3345 = vld [vmem:[#allocation2 + $0xc8] sm:$0xff]
        %v3346 = vld [vmem:[#allocation2 + $0xe0] sm:$0xff]
        %v3347 = vld [vmem:[#allocation2 + $0xf8] sm:$0xff]
        %v3348 = vld [vmem:[#allocation2 + $0x110] sm:$0xff]
        %v3349 = vld [vmem:[#allocation2 + $0x128] sm:$0xff]
        %v3350 = vld [vmem:[#allocation2 + $0x140] sm:$0xff]
        %v3351 = vld [vmem:[#allocation2 + $0x158] sm:$0xff]
        %v3352 = vld [vmem:[#allocation2 + $0x170] sm:$0xff]
        %v3353 = vld [vmem:[#allocation2 + $0xd0] sm:$0xff]
        %v3354 = vld [vmem:[#allocation2 + $0xe8] sm:$0xff]
        %v3355 = vld [vmem:[#allocation2 + $0x100] sm:$0xff]
        %v3356 = vld [vmem:[#allocation2 + $0x118] sm:$0xff]
        %v3357 = vld [vmem:[#allocation2 + $0x130] sm:$0xff]
        %v3358 = vld [vmem:[#allocation2 + $0x148] sm:$0xff]
        %v3359 = vld [vmem:[#allocation2 + $0x160] sm:$0xff]
        %v3360 = vld [vmem:[#allocation2 + $0x178] sm:$0xff]
        %v3361 = vld [vmem:[%s1427] sm:$0xff]
        %v3362 = vld [vmem:[%s1427 + $0x8] sm:$0xff]
        %v3363 = vld [vmem:[%s1427 + $0x10] sm:$0xff]
        %v3364 = vld [vmem:[%s1427 + $0x18] sm:$0xff]
        %v3365 = vld [vmem:[%s1427 + $0x20] sm:$0xff]
        %v3366 = vld [vmem:[%s1427 + $0x28] sm:$0xff]
        %v3367 = vld [vmem:[%s1427 + $0x30] sm:$0xff]
        %v3368 = vld [vmem:[%s1427 + $0x38] sm:$0xff]
        %3377 = vrot.lane.b32.xlu0 %v3337, 96
        %v3378 = vpop.permute.xlu0 %3377
        %3379 = vrot.lane.b32.xlu0 %v3338, 96
        %v3380 = vpop.permute.xlu0 %3379
        %3381 = vrot.lane.b32.xlu0 %v3339, 96
        %v3382 = vpop.permute.xlu0 %3381
        %3383 = vrot.lane.b32.xlu0 %v3340, 96
        %v3384 = vpop.permute.xlu0 %3383
        %3385 = vrot.lane.b32.xlu0 %v3341, 96
        %v3386 = vpop.permute.xlu0 %3385
        %3387 = vrot.lane.b32.xlu0 %v3342, 96
        %v3388 = vpop.permute.xlu0 %3387
        %3389 = vrot.lane.b32.xlu0 %v3343, 96
        %v3390 = vpop.permute.xlu0 %3389
        %3391 = vrot.lane.b32.xlu0 %v3344, 96
        %v3392 = vpop.permute.xlu0 %3391
        %3401 = vrot.lane.b32.xlu0 %v3345, 96
        %v3402 = vpop.permute.xlu0 %3401
        %3403 = vrot.lane.b32.xlu0 %v3346, 96
        %v3404 = vpop.permute.xlu0 %3403
        %3405 = vrot.lane.b32.xlu0 %v3347, 96
        %v3406 = vpop.permute.xlu0 %3405
        %3407 = vrot.lane.b32.xlu0 %v3348, 96
        %v3408 = vpop.permute.xlu0 %3407
        %3409 = vrot.lane.b32.xlu0 %v3349, 96
        %v3410 = vpop.permute.xlu0 %3409
        %3411 = vrot.lane.b32.xlu0 %v3350, 96
        %v3412 = vpop.permute.xlu0 %3411
        %3413 = vrot.lane.b32.xlu0 %v3351, 96
        %v3414 = vpop.permute.xlu0 %3413
        %3415 = vrot.lane.b32.xlu0 %v3352, 96
        %v3416 = vpop.permute.xlu0 %3415
        %v3417 = vsel %vm1023, %v3378, 0
        %v3419 = vsel %vm1023, %v3380, 0
        %v3421 = vsel %vm1023, %v3382, 0
        %v3423 = vsel %vm1023, %v3384, 0
        %v3425 = vsel %vm1023, %v3386, 0
        %v3427 = vsel %vm1023, %v3388, 0
        %v3429 = vsel %vm1023, %v3390, 0
        %v3431 = vsel %vm1023, %v3392, 0
        %v3433 = vsel %vm1023, %v3402, 0
        %v3435 = vsel %vm1023, %v3404, 0
        %v3437 = vsel %vm1023, %v3406, 0
        %v3439 = vsel %vm1023, %v3408, 0
        %v3441 = vsel %vm1023, %v3410, 0
        %v3443 = vsel %vm1023, %v3412, 0
        %v3445 = vsel %vm1023, %v3414, 0
        %v3447 = vsel %vm1023, %v3416, 0
        %3449 = vmatprep.subr.mxu0 0.0
        %3450 = vmatpush1.xpose.msra.mxu0 %v3433
        %3451 = vmatprep.subr.mxu0 0.0
        %3452 = vmatpush1.xpose.msra.mxu0 %v3435
        %3453 = vmatprep.subr.mxu0 0.0
        %3454 = vmatpush1.xpose.msra.mxu0 %v3437
        %3455 = vmatprep.subr.mxu0 0.0
        %3456 = vmatpush1.xpose.msra.mxu0 %v3439
        %3457 = vmatprep.subr.mxu0 0.0
        %3458 = vmatpush1.xpose.msra.mxu0 %v3441
        %3459 = vmatprep.subr.mxu0 0.0
        %3460 = vmatpush1.xpose.msra.mxu0 %v3443
        %3461 = vmatprep.subr.mxu0 0.0
        %3462 = vmatpush1.xpose.msra.mxu0 %v3445
        %3463 = vmatprep.subr.mxu0 0.0
        %3464 = vmatpush1.xpose.msra.mxu0 %v3447
        %3465 = vmatprep.subr.mxu0 0.0
        %3466 = vmatpush1.xpose.msra.mxu0 0.0
        %3467 = vmatprep.subr.mxu0 0.0
        %3468 = vmatpush1.xpose.msra.mxu0 0.0
        %3469 = vmatprep.subr.mxu0 0.0
        %3470 = vmatpush1.xpose.msra.mxu0 0.0
        %3471 = vmatprep.subr.mxu0 0.0
        %3472 = vmatpush1.xpose.msra.mxu0 0.0
        %3473 = vmatprep.subr.mxu0 0.0
        %3474 = vmatpush1.xpose.msra.mxu0 0.0
        %3475 = vmatprep.subr.mxu0 0.0
        %3476 = vmatpush1.xpose.msra.mxu0 0.0
        %3477 = vmatprep.subr.mxu0 0.0
        %3478 = vmatpush1.xpose.msra.mxu0 0.0
        %3479 = vmatprep.subr.mxu0 0.0
        %3480 = vmatpush1.xpose.msra.mxu0 0.0
        %3481 = vmatprep.subr.mxu0 0.0
        %3482 = vmatpush1.xpose.msra.mxu0 0.0
        %3483 = vmatprep.subr.mxu0 0.0
        %3484 = vmatpush1.xpose.msra.mxu0 0.0
        %3485 = vmatprep.subr.mxu0 0.0
        %3486 = vmatpush1.xpose.msra.mxu0 0.0
        %3487 = vmatprep.subr.mxu0 0.0
        %3488 = vmatpush1.xpose.msra.mxu0 0.0
        %3489 = vmatprep.subr.mxu0 0.0
        %3490 = vmatpush1.xpose.msra.mxu0 0.0
        %3491 = vmatprep.subr.mxu0 0.0
        %3492 = vmatpush1.xpose.msra.mxu0 0.0
        %3493 = vmatprep.subr.mxu0 0.0
        %3494 = vmatpush1.xpose.msra.mxu0 0.0
        %3495 = vmatprep.subr.mxu0 0.0
        %3496 = vmatpush1.xpose.msra.mxu0 0.0
        %3497 = vmatprep.subr.mxu0 0.0
        %3498 = vmatpush1.xpose.msra.mxu0 0.0
        %3499 = vmatprep.subr.mxu0 0.0
        %3500 = vmatpush1.xpose.msra.mxu0 0.0
        %3501 = vmatprep.subr.mxu0 0.0
        %3502 = vmatpush1.xpose.msra.mxu0 0.0
        %3503 = vmatprep.subr.mxu0 0.0
        %3504 = vmatpush1.xpose.msra.mxu0 0.0
        %3505 = vmatprep.subr.mxu0 0.0
        %3506 = vmatpush1.xpose.msra.mxu0 0.0
        %3507 = vmatprep.subr.mxu0 0.0
        %3508 = vmatpush1.xpose.msra.mxu0 0.0
        %3509 = vmatprep.subr.mxu0 0.0
        %3510 = vmatpush1.xpose.msra.mxu0 0.0
        %3511 = vmatprep.subr.mxu0 0.0
        %3512 = vmatpush1.xpose.msra.mxu0 0.0
        %3513 = vmatprep.mubr.f32.mxu0 0.0
        %3514 = vmatmul.mubr.f32.gmra.mrb[0].mxu0 %v3417
        %v3515 = vpop.f32.mrb[0].mxu0
        %v3516 = vadd.f32 %v3361, %v3515
        %v3517 = vpop.f32.mrb[0].mxu0
        %3518 = vmatprep.mubr.f32.mxu0 0.0
        %3519 = vmatmul.mubr.f32.gmra.mrb[0].mxu0 %v3419
        %v3520 = vpop.f32.mrb[0].mxu0
        %v3521 = vadd.f32 %v3362, %v3520
        %v3522 = vpop.f32.mrb[0].mxu0
        %3523 = vmatprep.mubr.f32.mxu0 0.0
        %3524 = vmatmul.mubr.f32.gmra.mrb[0].mxu0 %v3421
        %v3525 = vpop.f32.mrb[0].mxu0
        %v3526 = vadd.f32 %v3363, %v3525
        %v3527 = vpop.f32.mrb[0].mxu0
        %3528 = vmatprep.mubr.f32.mxu0 0.0
        %3529 = vmatmul.mubr.f32.gmra.mrb[0].mxu0 %v3423
        %v3530 = vpop.f32.mrb[0].mxu0
        %v3531 = vadd.f32 %v3364, %v3530
        %v3532 = vpop.f32.mrb[0].mxu0
        %3533 = vmatprep.mubr.f32.mxu0 0.0
        %3534 = vmatmul.mubr.f32.gmra.mrb[0].mxu0 %v3425
        %v3535 = vpop.f32.mrb[0].mxu0
        %v3536 = vadd.f32 %v3365, %v3535
        %v3537 = vpop.f32.mrb[0].mxu0
        %3538 = vmatprep.mubr.f32.mxu0 0.0
        %3539 = vmatmul.mubr.f32.gmra.mrb[0].mxu0 %v3427
        %v3540 = vpop.f32.mrb[0].mxu0
        %v3541 = vadd.f32 %v3366, %v3540
        %v3542 = vpop.f32.mrb[0].mxu0
        %3543 = vmatprep.mubr.f32.mxu0 0.0
        %3544 = vmatmul.mubr.f32.gmra.mrb[0].mxu0 %v3429
        %v3545 = vpop.f32.mrb[0].mxu0
        %v3546 = vadd.f32 %v3367, %v3545
        %v3547 = vpop.f32.mrb[0].mxu0
        %3548 = vmatprep.mubr.f32.mxu0 0.0
        %3549 = vmatmul.mubr.f32.gmra.mrb[0].mxu0 %v3431
        %v3550 = vpop.f32.mrb[0].mxu0
        %v3551 = vadd.f32 %v3368, %v3550
        %v3552 = vpop.f32.mrb[0].mxu0
        %3553 = vdwg.mxu0
        %v3554 = vsel %vm1177, %v3516, -inf
        %3555 = vmax.xlane.f32.xlu0 %v3554
        %v3556 = vpop.xlane.xlu0 %3555
        %v3557 = vsel %vm1177, %v3521, -inf
        %3558 = vmax.xlane.f32.xlu0 %v3557
        %v3559 = vpop.xlane.xlu0 %3558
        %v3560 = vsel %vm1177, %v3526, -inf
        %3561 = vmax.xlane.f32.xlu0 %v3560
        %v3562 = vpop.xlane.xlu0 %3561
        %v3563 = vsel %vm1177, %v3531, -inf
        %3564 = vmax.xlane.f32.xlu0 %v3563
        %v3565 = vpop.xlane.xlu0 %3564
        %v3566 = vsel %vm1177, %v3536, -inf
        %3567 = vmax.xlane.f32.xlu0 %v3566
        %v3568 = vpop.xlane.xlu0 %3567
        %v3569 = vsel %vm1177, %v3541, -inf
        %3570 = vmax.xlane.f32.xlu0 %v3569
        %v3571 = vpop.xlane.xlu0 %3570
        %v3572 = vsel %vm1177, %v3546, -inf
        %3573 = vmax.xlane.f32.xlu0 %v3572
        %v3574 = vpop.xlane.xlu0 %3573
        %v3575 = vsel %vm1177, %v3551, -inf
        %3576 = vmax.xlane.f32.xlu0 %v3575
        %v3577 = vpop.xlane.xlu0 %3576
        %v3578 = vsub.f32 %v3516, %v3556
        %v3579 = vsub.f32 %v3521, %v3559
        %v3580 = vsub.f32 %v3526, %v3562
        %v3581 = vsub.f32 %v3531, %v3565
        %v3582 = vsub.f32 %v3536, %v3568
        %v3583 = vsub.f32 %v3541, %v3571
        %v3584 = vsub.f32 %v3546, %v3574
        %v3585 = vsub.f32 %v3551, %v3577
        %v3586 = vmul.f32 %v3578, 1.442695
        %v3587 = vpow.pop %v3586
        %v3588 = vmul.f32 %v3579, 1.442695
        %v3589 = vpow.pop %v3588
        %v3590 = vmul.f32 %v3580, 1.442695
        %v3591 = vpow.pop %v3590
        %v3592 = vmul.f32 %v3581, 1.442695
        %v3593 = vpow.pop %v3592
        %v3594 = vmul.f32 %v3582, 1.442695
        %v3595 = vpow.pop %v3594
        %v3596 = vmul.f32 %v3583, 1.442695
        %v3597 = vpow.pop %v3596
        %v3598 = vmul.f32 %v3584, 1.442695
        %v3599 = vpow.pop %v3598
        %v3600 = vmul.f32 %v3585, 1.442695
        %v3601 = vpow.pop %v3600
        %v3602 = vsel %vm1177, %v3587, 0.0
        %3603 = vadd.xlane.f32.xlu0 %v3602
        %v3604 = vpop.xlane.xlu0 %3603
        %v3605 = vsel %vm1177, %v3589, 0.0
        %3606 = vadd.xlane.f32.xlu0 %v3605
        %v3607 = vpop.xlane.xlu0 %3606
        %v3608 = vsel %vm1177, %v3591, 0.0
        %3609 = vadd.xlane.f32.xlu0 %v3608
        %v3610 = vpop.xlane.xlu0 %3609
        %v3611 = vsel %vm1177, %v3593, 0.0
        %3612 = vadd.xlane.f32.xlu0 %v3611
        %v3613 = vpop.xlane.xlu0 %3612
        %v3614 = vsel %vm1177, %v3595, 0.0
        %3615 = vadd.xlane.f32.xlu0 %v3614
        %v3616 = vpop.xlane.xlu0 %3615
        %v3617 = vsel %vm1177, %v3597, 0.0
        %3618 = vadd.xlane.f32.xlu0 %v3617
        %v3619 = vpop.xlane.xlu0 %3618
        %v3620 = vsel %vm1177, %v3599, 0.0
        %3621 = vadd.xlane.f32.xlu0 %v3620
        %v3622 = vpop.xlane.xlu0 %3621
        %v3623 = vsel %vm1177, %v3601, 0.0
        %3624 = vadd.xlane.f32.xlu0 %v3623
        %v3625 = vpop.xlane.xlu0 %3624
        %v3626 = vrcp.pop %v3604
        %v3627 = vrcp.pop %v3607
        %v3628 = vrcp.pop %v3610
        %v3629 = vrcp.pop %v3613
        %v3630 = vrcp.pop %v3616
        %v3631 = vrcp.pop %v3619
        %v3632 = vrcp.pop %v3622
        %v3633 = vrcp.pop %v3625
        %v3634 = vmul.f32 %v3587, %v3626
        %v3635 = vmul.f32 %v3589, %v3627
        %v3636 = vmul.f32 %v3591, %v3628
        %v3637 = vmul.f32 %v3593, %v3629
        %v3638 = vmul.f32 %v3595, %v3630
        %v3639 = vmul.f32 %v3597, %v3631
        %v3640 = vmul.f32 %v3599, %v3632
        %v3641 = vmul.f32 %v3601, %v3633
        %3650 = vrot.lane.b32.xlu0 %v3353, 96
        %v3651 = vpop.permute.xlu0 %3650
        %3652 = vrot.lane.b32.xlu0 %v3354, 96
        %v3653 = vpop.permute.xlu0 %3652
        %3654 = vrot.lane.b32.xlu0 %v3355, 96
        %v3655 = vpop.permute.xlu0 %3654
        %3656 = vrot.lane.b32.xlu0 %v3356, 96
        %v3657 = vpop.permute.xlu0 %3656
        %3658 = vrot.lane.b32.xlu0 %v3357, 96
        %v3659 = vpop.permute.xlu0 %3658
        %3660 = vrot.lane.b32.xlu0 %v3358, 96
        %v3661 = vpop.permute.xlu0 %3660
        %3662 = vrot.lane.b32.xlu0 %v3359, 96
        %v3663 = vpop.permute.xlu0 %3662
        %3664 = vrot.lane.b32.xlu0 %v3360, 96
        %v3665 = vpop.permute.xlu0 %3664
        %v3675 = vsel %vm1177, %v3634, 0
        %v3678 = vsel %vm1177, %v3635, 0
        %v3681 = vsel %vm1177, %v3636, 0
        %v3684 = vsel %vm1177, %v3637, 0
        %v3687 = vsel %vm1177, %v3638, 0
        %v3690 = vsel %vm1177, %v3639, 0
        %v3693 = vsel %vm1177, %v3640, 0
        %v3696 = vsel %vm1177, %v3641, 0
        %3698 = vmatprep.subr.mxu0 0.0
        %3699 = vmatpush1.msra.mxu0 %v3651
        %3700 = vmatprep.subr.mxu0 0.0
        %3701 = vmatpush1.msra.mxu0 %v3653
        %3702 = vmatprep.subr.mxu0 0.0
        %3703 = vmatpush1.msra.mxu0 %v3655
        %3704 = vmatprep.subr.mxu0 0.0
        %3705 = vmatpush1.msra.mxu0 %v3657
        %3706 = vmatprep.subr.mxu0 0.0
        %3707 = vmatpush1.msra.mxu0 %v3659
        %3708 = vmatprep.subr.mxu0 0.0
        %3709 = vmatpush1.msra.mxu0 %v3661
        %3710 = vmatprep.subr.mxu0 0.0
        %3711 = vmatpush1.msra.mxu0 %v3663
        %3712 = vmatprep.subr.mxu0 0.0
        %3713 = vmatpush1.msra.mxu0 %v3665
        %3714 = vmatprep.subr.mxu0 0.0
        %3715 = vmatpush1.msra.mxu0 0.0
        %3716 = vmatprep.subr.mxu0 0.0
        %3717 = vmatpush1.msra.mxu0 0.0
        %3718 = vmatprep.subr.mxu0 0.0
        %3719 = vmatpush1.msra.mxu0 0.0
        %3720 = vmatprep.subr.mxu0 0.0
        %3721 = vmatpush1.msra.mxu0 0.0
        %3722 = vmatprep.subr.mxu0 0.0
        %3723 = vmatpush1.msra.mxu0 0.0
        %3724 = vmatprep.subr.mxu0 0.0
        %3725 = vmatpush1.msra.mxu0 0.0
        %3726 = vmatprep.subr.mxu0 0.0
        %3727 = vmatpush1.msra.mxu0 0.0
        %3728 = vmatprep.subr.mxu0 0.0
        %3729 = vmatpush1.msra.mxu0 0.0
        %3730 = vmatprep.subr.mxu0 0.0
        %3731 = vmatpush1.msra.mxu0 0.0
        %3732 = vmatprep.subr.mxu0 0.0
        %3733 = vmatpush1.msra.mxu0 0.0
        %3734 = vmatprep.subr.mxu0 0.0
        %3735 = vmatpush1.msra.mxu0 0.0
        %3736 = vmatprep.subr.mxu0 0.0
        %3737 = vmatpush1.msra.mxu0 0.0
        %3738 = vmatprep.subr.mxu0 0.0
        %3739 = vmatpush1.msra.mxu0 0.0
        %3740 = vmatprep.subr.mxu0 0.0
        %3741 = vmatpush1.msra.mxu0 0.0
        %3742 = vmatprep.subr.mxu0 0.0
        %3743 = vmatpush1.msra.mxu0 0.0
        %3744 = vmatprep.subr.mxu0 0.0
        %3745 = vmatpush1.msra.mxu0 0.0
        %3746 = vmatprep.subr.mxu0 0.0
        %3747 = vmatpush1.msra.mxu0 0.0
        %3748 = vmatprep.subr.mxu0 0.0
        %3749 = vmatpush1.msra.mxu0 0.0
        %3750 = vmatprep.subr.mxu0 0.0
        %3751 = vmatpush1.msra.mxu0 0.0
        %3752 = vmatprep.subr.mxu0 0.0
        %3753 = vmatpush1.msra.mxu0 0.0
        %3754 = vmatprep.subr.mxu0 0.0
        %3755 = vmatpush1.msra.mxu0 0.0
        %3756 = vmatprep.subr.mxu0 0.0
        %3757 = vmatpush1.msra.mxu0 0.0
        %3758 = vmatprep.subr.mxu0 0.0
        %3759 = vmatpush1.msra.mxu0 0.0
        %3760 = vmatprep.subr.mxu0 0.0
        %3761 = vmatpush1.msra.mxu0 0.0
        %3762 = vmatprep.mubr.f32.mxu0 0.0
        %3763 = vmatmul.mubr.f32.gmra.mrb[0].mxu0 %v3675
        %v3764 = vpop.f32.mrb[0].mxu0
        %v3765 = vadd.f32 0.0, %v3764
        %v3766 = vpop.f32.mrb[0].mxu0
        %3767 = vmatprep.mubr.f32.mxu0 0.0
        %3768 = vmatmul.mubr.f32.gmra.mrb[0].mxu0 %v3678
        %v3769 = vpop.f32.mrb[0].mxu0
        %v3770 = vadd.f32 0.0, %v3769
        %v3771 = vpop.f32.mrb[0].mxu0
        %3772 = vmatprep.mubr.f32.mxu0 0.0
        %3773 = vmatmul.mubr.f32.gmra.mrb[0].mxu0 %v3681
        %v3774 = vpop.f32.mrb[0].mxu0
        %v3775 = vadd.f32 0.0, %v3774
        %v3776 = vpop.f32.mrb[0].mxu0
        %3777 = vmatprep.mubr.f32.mxu0 0.0
        %3778 = vmatmul.mubr.f32.gmra.mrb[0].mxu0 %v3684
        %v3779 = vpop.f32.mrb[0].mxu0
        %v3780 = vadd.f32 0.0, %v3779
        %v3781 = vpop.f32.mrb[0].mxu0
        %3782 = vmatprep.mubr.f32.mxu0 0.0
        %3783 = vmatmul.mubr.f32.gmra.mrb[0].mxu0 %v3687
        %v3784 = vpop.f32.mrb[0].mxu0
        %v3785 = vadd.f32 0.0, %v3784
        %v3786 = vpop.f32.mrb[0].mxu0
        %3787 = vmatprep.mubr.f32.mxu0 0.0
        %3788 = vmatmul.mubr.f32.gmra.mrb[0].mxu0 %v3690
        %v3789 = vpop.f32.mrb[0].mxu0
        %v3790 = vadd.f32 0.0, %v3789
        %v3791 = vpop.f32.mrb[0].mxu0
        %3792 = vmatprep.mubr.f32.mxu0 0.0
        %3793 = vmatmul.mubr.f32.gmra.mrb[0].mxu0 %v3693
        %v3794 = vpop.f32.mrb[0].mxu0
        %v3795 = vadd.f32 0.0, %v3794
        %v3796 = vpop.f32.mrb[0].mxu0
        %3797 = vmatprep.mubr.f32.mxu0 0.0
        %3798 = vmatmul.mubr.f32.gmra.mrb[0].mxu0 %v3696
        %v3799 = vpop.f32.mrb[0].mxu0
        %v3800 = vadd.f32 0.0, %v3799
        %v3801 = vpop.f32.mrb[0].mxu0
        %3802 = vdwg.mxu0
        %3811 = vrot.lane.b32.xlu0 %v3765, 32
        %v3812 = vpop.permute.xlu0 %3811
        %3813 = vrot.lane.b32.xlu0 %v3770, 32
        %v3814 = vpop.permute.xlu0 %3813
        %3815 = vrot.lane.b32.xlu0 %v3775, 32
        %v3816 = vpop.permute.xlu0 %3815
        %3817 = vrot.lane.b32.xlu0 %v3780, 32
        %v3818 = vpop.permute.xlu0 %3817
        %3819 = vrot.lane.b32.xlu0 %v3785, 32
        %v3820 = vpop.permute.xlu0 %3819
        %3821 = vrot.lane.b32.xlu0 %v3790, 32
        %v3822 = vpop.permute.xlu0 %3821
        %3823 = vrot.lane.b32.xlu0 %v3795, 32
        %v3824 = vpop.permute.xlu0 %3823
        %3825 = vrot.lane.b32.xlu0 %v3800, 32
        %v3826 = vpop.permute.xlu0 %3825
        %3835 = vst.msk [vmem:[#allocation3 + $0x40] sm:$0xff] %vm1902, %v3812
        %3836 = vst.msk [vmem:[#allocation3 + $0x48] sm:$0xff] %vm1902, %v3814
        %3837 = vst.msk [vmem:[#allocation3 + $0x50] sm:$0xff] %vm1902, %v3816
        %3838 = vst.msk [vmem:[#allocation3 + $0x58] sm:$0xff] %vm1902, %v3818
        %3839 = vst.msk [vmem:[#allocation3 + $0x60] sm:$0xff] %vm1902, %v3820
        %3840 = vst.msk [vmem:[#allocation3 + $0x68] sm:$0xff] %vm1902, %v3822
        %3841 = vst.msk [vmem:[#allocation3 + $0x70] sm:$0xff] %vm1902, %v3824
        %3842 = vst.msk [vmem:[#allocation3 + $0x78] sm:$0xff] %vm1902, %v3826
        %v3843 = vld [vmem:[#allocation2 + $0xc0] sm:$0xff]
        %v3844 = vld [vmem:[#allocation2 + $0xd8] sm:$0xff]
        %v3845 = vld [vmem:[#allocation2 + $0xf0] sm:$0xff]
        %v3846 = vld [vmem:[#allocation2 + $0x108] sm:$0xff]
        %v3847 = vld [vmem:[#allocation2 + $0x120] sm:$0xff]
        %v3848 = vld [vmem:[#allocation2 + $0x138] sm:$0xff]
        %v3849 = vld [vmem:[#allocation2 + $0x150] sm:$0xff]
        %v3850 = vld [vmem:[#allocation2 + $0x168] sm:$0xff]
        %v3851 = vld [vmem:[#allocation2 + $0xc8] sm:$0xff]
        %v3852 = vld [vmem:[#allocation2 + $0xe0] sm:$0xff]
        %v3853 = vld [vmem:[#allocation2 + $0xf8] sm:$0xff]
        %v3854 = vld [vmem:[#allocation2 + $0x110] sm:$0xff]
        %v3855 = vld [vmem:[#allocation2 + $0x128] sm:$0xff]
        %v3856 = vld [vmem:[#allocation2 + $0x140] sm:$0xff]
        %v3857 = vld [vmem:[#allocation2 + $0x158] sm:$0xff]
        %v3858 = vld [vmem:[#allocation2 + $0x170] sm:$0xff]
        %v3859 = vld [vmem:[#allocation2 + $0xd0] sm:$0xff]
        %v3860 = vld [vmem:[#allocation2 + $0xe8] sm:$0xff]
        %v3861 = vld [vmem:[#allocation2 + $0x100] sm:$0xff]
        %v3862 = vld [vmem:[#allocation2 + $0x118] sm:$0xff]
        %v3863 = vld [vmem:[#allocation2 + $0x130] sm:$0xff]
        %v3864 = vld [vmem:[#allocation2 + $0x148] sm:$0xff]
        %v3865 = vld [vmem:[#allocation2 + $0x160] sm:$0xff]
        %v3866 = vld [vmem:[#allocation2 + $0x178] sm:$0xff]
        %v3867 = vld [vmem:[%s1935] sm:$0xff]
        %v3868 = vld [vmem:[%s1935 + $0x8] sm:$0xff]
        %v3869 = vld [vmem:[%s1935 + $0x10] sm:$0xff]
        %v3870 = vld [vmem:[%s1935 + $0x18] sm:$0xff]
        %v3871 = vld [vmem:[%s1935 + $0x20] sm:$0xff]
        %v3872 = vld [vmem:[%s1935 + $0x28] sm:$0xff]
        %v3873 = vld [vmem:[%s1935 + $0x30] sm:$0xff]
        %v3874 = vld [vmem:[%s1935 + $0x38] sm:$0xff]
        %3883 = vrot.lane.b32.xlu0 %v3843, 64
        %v3884 = vpop.permute.xlu0 %3883
        %3885 = vrot.lane.b32.xlu0 %v3844, 64
        %v3886 = vpop.permute.xlu0 %3885
        %3887 = vrot.lane.b32.xlu0 %v3845, 64
        %v3888 = vpop.permute.xlu0 %3887
        %3889 = vrot.lane.b32.xlu0 %v3846, 64
        %v3890 = vpop.permute.xlu0 %3889
        %3891 = vrot.lane.b32.xlu0 %v3847, 64
        %v3892 = vpop.permute.xlu0 %3891
        %3893 = vrot.lane.b32.xlu0 %v3848, 64
        %v3894 = vpop.permute.xlu0 %3893
        %3895 = vrot.lane.b32.xlu0 %v3849, 64
        %v3896 = vpop.permute.xlu0 %3895
        %3897 = vrot.lane.b32.xlu0 %v3850, 64
        %v3898 = vpop.permute.xlu0 %3897
        %3907 = vrot.lane.b32.xlu0 %v3851, 64
        %v3908 = vpop.permute.xlu0 %3907
        %3909 = vrot.lane.b32.xlu0 %v3852, 64
        %v3910 = vpop.permute.xlu0 %3909
        %3911 = vrot.lane.b32.xlu0 %v3853, 64
        %v3912 = vpop.permute.xlu0 %3911
        %3913 = vrot.lane.b32.xlu0 %v3854, 64
        %v3914 = vpop.permute.xlu0 %3913
        %3915 = vrot.lane.b32.xlu0 %v3855, 64
        %v3916 = vpop.permute.xlu0 %3915
        %3917 = vrot.lane.b32.xlu0 %v3856, 64
        %v3918 = vpop.permute.xlu0 %3917
        %3919 = vrot.lane.b32.xlu0 %v3857, 64
        %v3920 = vpop.permute.xlu0 %3919
        %3921 = vrot.lane.b32.xlu0 %v3858, 64
        %v3922 = vpop.permute.xlu0 %3921
        %v3923 = vsel %vm1023, %v3884, 0
        %v3925 = vsel %vm1023, %v3886, 0
        %v3927 = vsel %vm1023, %v3888, 0
        %v3929 = vsel %vm1023, %v3890, 0
        %v3931 = vsel %vm1023, %v3892, 0
        %v3933 = vsel %vm1023, %v3894, 0
        %v3935 = vsel %vm1023, %v3896, 0
        %v3937 = vsel %vm1023, %v3898, 0
        %v3939 = vsel %vm1023, %v3908, 0
        %v3941 = vsel %vm1023, %v3910, 0
        %v3943 = vsel %vm1023, %v3912, 0
        %v3945 = vsel %vm1023, %v3914, 0
        %v3947 = vsel %vm1023, %v3916, 0
        %v3949 = vsel %vm1023, %v3918, 0
        %v3951 = vsel %vm1023, %v3920, 0
        %v3953 = vsel %vm1023, %v3922, 0
        %3955 = vmatprep.subr.mxu0 0.0
        %3956 = vmatpush1.xpose.msra.mxu0 %v3939
        %3957 = vmatprep.subr.mxu0 0.0
        %3958 = vmatpush1.xpose.msra.mxu0 %v3941
        %3959 = vmatprep.subr.mxu0 0.0
        %3960 = vmatpush1.xpose.msra.mxu0 %v3943
        %3961 = vmatprep.subr.mxu0 0.0
        %3962 = vmatpush1.xpose.msra.mxu0 %v3945
        %3963 = vmatprep.subr.mxu0 0.0
        %3964 = vmatpush1.xpose.msra.mxu0 %v3947
        %3965 = vmatprep.subr.mxu0 0.0
        %3966 = vmatpush1.xpose.msra.mxu0 %v3949
        %3967 = vmatprep.subr.mxu0 0.0
        %3968 = vmatpush1.xpose.msra.mxu0 %v3951
        %3969 = vmatprep.subr.mxu0 0.0
        %3970 = vmatpush1.xpose.msra.mxu0 %v3953
        %3971 = vmatprep.subr.mxu0 0.0
        %3972 = vmatpush1.xpose.msra.mxu0 0.0
        %3973 = vmatprep.subr.mxu0 0.0
        %3974 = vmatpush1.xpose.msra.mxu0 0.0
        %3975 = vmatprep.subr.mxu0 0.0
        %3976 = vmatpush1.xpose.msra.mxu0 0.0
        %3977 = vmatprep.subr.mxu0 0.0
        %3978 = vmatpush1.xpose.msra.mxu0 0.0
        %3979 = vmatprep.subr.mxu0 0.0
        %3980 = vmatpush1.xpose.msra.mxu0 0.0
        %3981 = vmatprep.subr.mxu0 0.0
        %3982 = vmatpush1.xpose.msra.mxu0 0.0
        %3983 = vmatprep.subr.mxu0 0.0
        %3984 = vmatpush1.xpose.msra.mxu0 0.0
        %3985 = vmatprep.subr.mxu0 0.0
        %3986 = vmatpush1.xpose.msra.mxu0 0.0
        %3987 = vmatprep.subr.mxu0 0.0
        %3988 = vmatpush1.xpose.msra.mxu0 0.0
        %3989 = vmatprep.subr.mxu0 0.0
        %3990 = vmatpush1.xpose.msra.mxu0 0.0
        %3991 = vmatprep.subr.mxu0 0.0
        %3992 = vmatpush1.xpose.msra.mxu0 0.0
        %3993 = vmatprep.subr.mxu0 0.0
        %3994 = vmatpush1.xpose.msra.mxu0 0.0
        %3995 = vmatprep.subr.mxu0 0.0
        %3996 = vmatpush1.xpose.msra.mxu0 0.0
        %3997 = vmatprep.subr.mxu0 0.0
        %3998 = vmatpush1.xpose.msra.mxu0 0.0
        %3999 = vmatprep.subr.mxu0 0.0
        %4000 = vmatpush1.xpose.msra.mxu0 0.0
        %4001 = vmatprep.subr.mxu0 0.0
        %4002 = vmatpush1.xpose.msra.mxu0 0.0
        %4003 = vmatprep.subr.mxu0 0.0
        %4004 = vmatpush1.xpose.msra.mxu0 0.0
        %4005 = vmatprep.subr.mxu0 0.0
        %4006 = vmatpush1.xpose.msra.mxu0 0.0
        %4007 = vmatprep.subr.mxu0 0.0
        %4008 = vmatpush1.xpose.msra.mxu0 0.0
        %4009 = vmatprep.subr.mxu0 0.0
        %4010 = vmatpush1.xpose.msra.mxu0 0.0
        %4011 = vmatprep.subr.mxu0 0.0
        %4012 = vmatpush1.xpose.msra.mxu0 0.0
        %4013 = vmatprep.subr.mxu0 0.0
        %4014 = vmatpush1.xpose.msra.mxu0 0.0
        %4015 = vmatprep.subr.mxu0 0.0
        %4016 = vmatpush1.xpose.msra.mxu0 0.0
        %4017 = vmatprep.subr.mxu0 0.0
        %4018 = vmatpush1.xpose.msra.mxu0 0.0
        %4019 = vmatprep.mubr.f32.mxu0 0.0
        %4020 = vmatmul.mubr.f32.gmra.mrb[0].mxu0 %v3923
        %v4021 = vpop.f32.mrb[0].mxu0
        %v4022 = vadd.f32 %v3867, %v4021
        %v4023 = vpop.f32.mrb[0].mxu0
        %4024 = vmatprep.mubr.f32.mxu0 0.0
        %4025 = vmatmul.mubr.f32.gmra.mrb[0].mxu0 %v3925
        %v4026 = vpop.f32.mrb[0].mxu0
        %v4027 = vadd.f32 %v3868, %v4026
        %v4028 = vpop.f32.mrb[0].mxu0
        %4029 = vmatprep.mubr.f32.mxu0 0.0
        %4030 = vmatmul.mubr.f32.gmra.mrb[0].mxu0 %v3927
        %v4031 = vpop.f32.mrb[0].mxu0
        %v4032 = vadd.f32 %v3869, %v4031
        %v4033 = vpop.f32.mrb[0].mxu0
        %4034 = vmatprep.mubr.f32.mxu0 0.0
        %4035 = vmatmul.mubr.f32.gmra.mrb[0].mxu0 %v3929
        %v4036 = vpop.f32.mrb[0].mxu0
        %v4037 = vadd.f32 %v3870, %v4036
        %v4038 = vpop.f32.mrb[0].mxu0
        %4039 = vmatprep.mubr.f32.mxu0 0.0
        %4040 = vmatmul.mubr.f32.gmra.mrb[0].mxu0 %v3931
        %v4041 = vpop.f32.mrb[0].mxu0
        %v4042 = vadd.f32 %v3871, %v4041
        %v4043 = vpop.f32.mrb[0].mxu0
        %4044 = vmatprep.mubr.f32.mxu0 0.0
        %4045 = vmatmul.mubr.f32.gmra.mrb[0].mxu0 %v3933
        %v4046 = vpop.f32.mrb[0].mxu0
        %v4047 = vadd.f32 %v3872, %v4046
        %v4048 = vpop.f32.mrb[0].mxu0
        %4049 = vmatprep.mubr.f32.mxu0 0.0
        %4050 = vmatmul.mubr.f32.gmra.mrb[0].mxu0 %v3935
        %v4051 = vpop.f32.mrb[0].mxu0
        %v4052 = vadd.f32 %v3873, %v4051
        %v4053 = vpop.f32.mrb[0].mxu0
        %4054 = vmatprep.mubr.f32.mxu0 0.0
        %4055 = vmatmul.mubr.f32.gmra.mrb[0].mxu0 %v3937
        %v4056 = vpop.f32.mrb[0].mxu0
        %v4057 = vadd.f32 %v3874, %v4056
        %v4058 = vpop.f32.mrb[0].mxu0
        %4059 = vdwg.mxu0
        %v4060 = vsel %vm1177, %v4022, -inf
        %4061 = vmax.xlane.f32.xlu0 %v4060
        %v4062 = vpop.xlane.xlu0 %4061
        %v4063 = vsel %vm1177, %v4027, -inf
        %4064 = vmax.xlane.f32.xlu0 %v4063
        %v4065 = vpop.xlane.xlu0 %4064
        %v4066 = vsel %vm1177, %v4032, -inf
        %4067 = vmax.xlane.f32.xlu0 %v4066
        %v4068 = vpop.xlane.xlu0 %4067
        %v4069 = vsel %vm1177, %v4037, -inf
        %4070 = vmax.xlane.f32.xlu0 %v4069
        %v4071 = vpop.xlane.xlu0 %4070
        %v4072 = vsel %vm1177, %v4042, -inf
        %4073 = vmax.xlane.f32.xlu0 %v4072
        %v4074 = vpop.xlane.xlu0 %4073
        %v4075 = vsel %vm1177, %v4047, -inf
        %4076 = vmax.xlane.f32.xlu0 %v4075
        %v4077 = vpop.xlane.xlu0 %4076
        %v4078 = vsel %vm1177, %v4052, -inf
        %4079 = vmax.xlane.f32.xlu0 %v4078
        %v4080 = vpop.xlane.xlu0 %4079
        %v4081 = vsel %vm1177, %v4057, -inf
        %4082 = vmax.xlane.f32.xlu0 %v4081
        %v4083 = vpop.xlane.xlu0 %4082
        %v4084 = vsub.f32 %v4022, %v4062
        %v4085 = vsub.f32 %v4027, %v4065
        %v4086 = vsub.f32 %v4032, %v4068
        %v4087 = vsub.f32 %v4037, %v4071
        %v4088 = vsub.f32 %v4042, %v4074
        %v4089 = vsub.f32 %v4047, %v4077
        %v4090 = vsub.f32 %v4052, %v4080
        %v4091 = vsub.f32 %v4057, %v4083
        %v4092 = vmul.f32 %v4084, 1.442695
        %v4093 = vpow.pop %v4092
        %v4094 = vmul.f32 %v4085, 1.442695
        %v4095 = vpow.pop %v4094
        %v4096 = vmul.f32 %v4086, 1.442695
        %v4097 = vpow.pop %v4096
        %v4098 = vmul.f32 %v4087, 1.442695
        %v4099 = vpow.pop %v4098
        %v4100 = vmul.f32 %v4088, 1.442695
        %v4101 = vpow.pop %v4100
        %v4102 = vmul.f32 %v4089, 1.442695
        %v4103 = vpow.pop %v4102
        %v4104 = vmul.f32 %v4090, 1.442695
        %v4105 = vpow.pop %v4104
        %v4106 = vmul.f32 %v4091, 1.442695
        %v4107 = vpow.pop %v4106
        %v4108 = vsel %vm1177, %v4093, 0.0
        %4109 = vadd.xlane.f32.xlu0 %v4108
        %v4110 = vpop.xlane.xlu0 %4109
        %v4111 = vsel %vm1177, %v4095, 0.0
        %4112 = vadd.xlane.f32.xlu0 %v4111
        %v4113 = vpop.xlane.xlu0 %4112
        %v4114 = vsel %vm1177, %v4097, 0.0
        %4115 = vadd.xlane.f32.xlu0 %v4114
        %v4116 = vpop.xlane.xlu0 %4115
        %v4117 = vsel %vm1177, %v4099, 0.0
        %4118 = vadd.xlane.f32.xlu0 %v4117
        %v4119 = vpop.xlane.xlu0 %4118
        %v4120 = vsel %vm1177, %v4101, 0.0
        %4121 = vadd.xlane.f32.xlu0 %v4120
        %v4122 = vpop.xlane.xlu0 %4121
        %v4123 = vsel %vm1177, %v4103, 0.0
        %4124 = vadd.xlane.f32.xlu0 %v4123
        %v4125 = vpop.xlane.xlu0 %4124
        %v4126 = vsel %vm1177, %v4105, 0.0
        %4127 = vadd.xlane.f32.xlu0 %v4126
        %v4128 = vpop.xlane.xlu0 %4127
        %v4129 = vsel %vm1177, %v4107, 0.0
        %4130 = vadd.xlane.f32.xlu0 %v4129
        %v4131 = vpop.xlane.xlu0 %4130
        %v4132 = vrcp.pop %v4110
        %v4133 = vrcp.pop %v4113
        %v4134 = vrcp.pop %v4116
        %v4135 = vrcp.pop %v4119
        %v4136 = vrcp.pop %v4122
        %v4137 = vrcp.pop %v4125
        %v4138 = vrcp.pop %v4128
        %v4139 = vrcp.pop %v4131
        %v4140 = vmul.f32 %v4093, %v4132
        %v4141 = vmul.f32 %v4095, %v4133
        %v4142 = vmul.f32 %v4097, %v4134
        %v4143 = vmul.f32 %v4099, %v4135
        %v4144 = vmul.f32 %v4101, %v4136
        %v4145 = vmul.f32 %v4103, %v4137
        %v4146 = vmul.f32 %v4105, %v4138
        %v4147 = vmul.f32 %v4107, %v4139
        %4156 = vrot.lane.b32.xlu0 %v3859, 64
        %v4157 = vpop.permute.xlu0 %4156
        %4158 = vrot.lane.b32.xlu0 %v3860, 64
        %v4159 = vpop.permute.xlu0 %4158
        %4160 = vrot.lane.b32.xlu0 %v3861, 64
        %v4161 = vpop.permute.xlu0 %4160
        %4162 = vrot.lane.b32.xlu0 %v3862, 64
        %v4163 = vpop.permute.xlu0 %4162
        %4164 = vrot.lane.b32.xlu0 %v3863, 64
        %v4165 = vpop.permute.xlu0 %4164
        %4166 = vrot.lane.b32.xlu0 %v3864, 64
        %v4167 = vpop.permute.xlu0 %4166
        %4168 = vrot.lane.b32.xlu0 %v3865, 64
        %v4169 = vpop.permute.xlu0 %4168
        %4170 = vrot.lane.b32.xlu0 %v3866, 64
        %v4171 = vpop.permute.xlu0 %4170
        %v4181 = vsel %vm1177, %v4140, 0
        %v4184 = vsel %vm1177, %v4141, 0
        %v4187 = vsel %vm1177, %v4142, 0
        %v4190 = vsel %vm1177, %v4143, 0
        %v4193 = vsel %vm1177, %v4144, 0
        %v4196 = vsel %vm1177, %v4145, 0
        %v4199 = vsel %vm1177, %v4146, 0
        %v4202 = vsel %vm1177, %v4147, 0
        %4204 = vmatprep.subr.mxu0 0.0
        %4205 = vmatpush1.msra.mxu0 %v4157
        %4206 = vmatprep.subr.mxu0 0.0
        %4207 = vmatpush1.msra.mxu0 %v4159
        %4208 = vmatprep.subr.mxu0 0.0
        %4209 = vmatpush1.msra.mxu0 %v4161
        %4210 = vmatprep.subr.mxu0 0.0
        %4211 = vmatpush1.msra.mxu0 %v4163
        %4212 = vmatprep.subr.mxu0 0.0
        %4213 = vmatpush1.msra.mxu0 %v4165
        %4214 = vmatprep.subr.mxu0 0.0
        %4215 = vmatpush1.msra.mxu0 %v4167
        %4216 = vmatprep.subr.mxu0 0.0
        %4217 = vmatpush1.msra.mxu0 %v4169
        %4218 = vmatprep.subr.mxu0 0.0
        %4219 = vmatpush1.msra.mxu0 %v4171
        %4220 = vmatprep.subr.mxu0 0.0
        %4221 = vmatpush1.msra.mxu0 0.0
        %4222 = vmatprep.subr.mxu0 0.0
        %4223 = vmatpush1.msra.mxu0 0.0
        %4224 = vmatprep.subr.mxu0 0.0
        %4225 = vmatpush1.msra.mxu0 0.0
        %4226 = vmatprep.subr.mxu0 0.0
        %4227 = vmatpush1.msra.mxu0 0.0
        %4228 = vmatprep.subr.mxu0 0.0
        %4229 = vmatpush1.msra.mxu0 0.0
        %4230 = vmatprep.subr.mxu0 0.0
        %4231 = vmatpush1.msra.mxu0 0.0
        %4232 = vmatprep.subr.mxu0 0.0
        %4233 = vmatpush1.msra.mxu0 0.0
        %4234 = vmatprep.subr.mxu0 0.0
        %4235 = vmatpush1.msra.mxu0 0.0
        %4236 = vmatprep.subr.mxu0 0.0
        %4237 = vmatpush1.msra.mxu0 0.0
        %4238 = vmatprep.subr.mxu0 0.0
        %4239 = vmatpush1.msra.mxu0 0.0
        %4240 = vmatprep.subr.mxu0 0.0
        %4241 = vmatpush1.msra.mxu0 0.0
        %4242 = vmatprep.subr.mxu0 0.0
        %4243 = vmatpush1.msra.mxu0 0.0
        %4244 = vmatprep.subr.mxu0 0.0
        %4245 = vmatpush1.msra.mxu0 0.0
        %4246 = vmatprep.subr.mxu0 0.0
        %4247 = vmatpush1.msra.mxu0 0.0
        %4248 = vmatprep.subr.mxu0 0.0
        %4249 = vmatpush1.msra.mxu0 0.0
        %4250 = vmatprep.subr.mxu0 0.0
        %4251 = vmatpush1.msra.mxu0 0.0
        %4252 = vmatprep.subr.mxu0 0.0
        %4253 = vmatpush1.msra.mxu0 0.0
        %4254 = vmatprep.subr.mxu0 0.0
        %4255 = vmatpush1.msra.mxu0 0.0
        %4256 = vmatprep.subr.mxu0 0.0
        %4257 = vmatpush1.msra.mxu0 0.0
        %4258 = vmatprep.subr.mxu0 0.0
        %4259 = vmatpush1.msra.mxu0 0.0
        %4260 = vmatprep.subr.mxu0 0.0
        %4261 = vmatpush1.msra.mxu0 0.0
        %4262 = vmatprep.subr.mxu0 0.0
        %4263 = vmatpush1.msra.mxu0 0.0
        %4264 = vmatprep.subr.mxu0 0.0
        %4265 = vmatpush1.msra.mxu0 0.0
        %4266 = vmatprep.subr.mxu0 0.0
        %4267 = vmatpush1.msra.mxu0 0.0
        %4268 = vmatprep.mubr.f32.mxu0 0.0
        %4269 = vmatmul.mubr.f32.gmra.mrb[0].mxu0 %v4181
        %v4270 = vpop.f32.mrb[0].mxu0
        %v4271 = vadd.f32 0.0, %v4270
        %v4272 = vpop.f32.mrb[0].mxu0
        %4273 = vmatprep.mubr.f32.mxu0 0.0
        %4274 = vmatmul.mubr.f32.gmra.mrb[0].mxu0 %v4184
        %v4275 = vpop.f32.mrb[0].mxu0
        %v4276 = vadd.f32 0.0, %v4275
        %v4277 = vpop.f32.mrb[0].mxu0
        %4278 = vmatprep.mubr.f32.mxu0 0.0
        %4279 = vmatmul.mubr.f32.gmra.mrb[0].mxu0 %v4187
        %v4280 = vpop.f32.mrb[0].mxu0
        %v4281 = vadd.f32 0.0, %v4280
        %v4282 = vpop.f32.mrb[0].mxu0
        %4283 = vmatprep.mubr.f32.mxu0 0.0
        %4284 = vmatmul.mubr.f32.gmra.mrb[0].mxu0 %v4190
        %v4285 = vpop.f32.mrb[0].mxu0
        %v4286 = vadd.f32 0.0, %v4285
        %v4287 = vpop.f32.mrb[0].mxu0
        %4288 = vmatprep.mubr.f32.mxu0 0.0
        %4289 = vmatmul.mubr.f32.gmra.mrb[0].mxu0 %v4193
        %v4290 = vpop.f32.mrb[0].mxu0
        %v4291 = vadd.f32 0.0, %v4290
        %v4292 = vpop.f32.mrb[0].mxu0
        %4293 = vmatprep.mubr.f32.mxu0 0.0
        %4294 = vmatmul.mubr.f32.gmra.mrb[0].mxu0 %v4196
        %v4295 = vpop.f32.mrb[0].mxu0
        %v4296 = vadd.f32 0.0, %v4295
        %v4297 = vpop.f32.mrb[0].mxu0
        %4298 = vmatprep.mubr.f32.mxu0 0.0
        %4299 = vmatmul.mubr.f32.gmra.mrb[0].mxu0 %v4199
        %v4300 = vpop.f32.mrb[0].mxu0
        %v4301 = vadd.f32 0.0, %v4300
        %v4302 = vpop.f32.mrb[0].mxu0
        %4303 = vmatprep.mubr.f32.mxu0 0.0
        %4304 = vmatmul.mubr.f32.gmra.mrb[0].mxu0 %v4202
        %v4305 = vpop.f32.mrb[0].mxu0
        %v4306 = vadd.f32 0.0, %v4305
        %v4307 = vpop.f32.mrb[0].mxu0
        %4308 = vdwg.mxu0
        %4317 = vrot.lane.b32.xlu0 %v4271, 64
        %v4318 = vpop.permute.xlu0 %4317
        %4319 = vrot.lane.b32.xlu0 %v4276, 64
        %v4320 = vpop.permute.xlu0 %4319
        %4321 = vrot.lane.b32.xlu0 %v4281, 64
        %v4322 = vpop.permute.xlu0 %4321
        %4323 = vrot.lane.b32.xlu0 %v4286, 64
        %v4324 = vpop.permute.xlu0 %4323
        %4325 = vrot.lane.b32.xlu0 %v4291, 64
        %v4326 = vpop.permute.xlu0 %4325
        %4327 = vrot.lane.b32.xlu0 %v4296, 64
        %v4328 = vpop.permute.xlu0 %4327
        %4329 = vrot.lane.b32.xlu0 %v4301, 64
        %v4330 = vpop.permute.xlu0 %4329
        %4331 = vrot.lane.b32.xlu0 %v4306, 64
        %v4332 = vpop.permute.xlu0 %4331
        %4341 = vst.msk [vmem:[#allocation3 + $0x40] sm:$0xff] %vm2410, %v4318
        %4342 = vst.msk [vmem:[#allocation3 + $0x48] sm:$0xff] %vm2410, %v4320
        %4343 = vst.msk [vmem:[#allocation3 + $0x50] sm:$0xff] %vm2410, %v4322
        %4344 = vst.msk [vmem:[#allocation3 + $0x58] sm:$0xff] %vm2410, %v4324
        %4345 = vst.msk [vmem:[#allocation3 + $0x60] sm:$0xff] %vm2410, %v4326
        %4346 = vst.msk [vmem:[#allocation3 + $0x68] sm:$0xff] %vm2410, %v4328
        %4347 = vst.msk [vmem:[#allocation3 + $0x70] sm:$0xff] %vm2410, %v4330
        %4348 = vst.msk [vmem:[#allocation3 + $0x78] sm:$0xff] %vm2410, %v4332
        %v4349 = vld [vmem:[#allocation2 + $0xc0] sm:$0xff]
        %v4350 = vld [vmem:[#allocation2 + $0xd8] sm:$0xff]
        %v4351 = vld [vmem:[#allocation2 + $0xf0] sm:$0xff]
        %v4352 = vld [vmem:[#allocation2 + $0x108] sm:$0xff]
        %v4353 = vld [vmem:[#allocation2 + $0x120] sm:$0xff]
        %v4354 = vld [vmem:[#allocation2 + $0x138] sm:$0xff]
        %v4355 = vld [vmem:[#allocation2 + $0x150] sm:$0xff]
        %v4356 = vld [vmem:[#allocation2 + $0x168] sm:$0xff]
        %v4357 = vld [vmem:[#allocation2 + $0xc8] sm:$0xff]
        %v4358 = vld [vmem:[#allocation2 + $0xe0] sm:$0xff]
        %v4359 = vld [vmem:[#allocation2 + $0xf8] sm:$0xff]
        %v4360 = vld [vmem:[#allocation2 + $0x110] sm:$0xff]
        %v4361 = vld [vmem:[#allocation2 + $0x128] sm:$0xff]
        %v4362 = vld [vmem:[#allocation2 + $0x140] sm:$0xff]
        %v4363 = vld [vmem:[#allocation2 + $0x158] sm:$0xff]
        %v4364 = vld [vmem:[#allocation2 + $0x170] sm:$0xff]
        %v4365 = vld [vmem:[#allocation2 + $0xd0] sm:$0xff]
        %v4366 = vld [vmem:[#allocation2 + $0xe8] sm:$0xff]
        %v4367 = vld [vmem:[#allocation2 + $0x100] sm:$0xff]
        %v4368 = vld [vmem:[#allocation2 + $0x118] sm:$0xff]
        %v4369 = vld [vmem:[#allocation2 + $0x130] sm:$0xff]
        %v4370 = vld [vmem:[#allocation2 + $0x148] sm:$0xff]
        %v4371 = vld [vmem:[#allocation2 + $0x160] sm:$0xff]
        %v4372 = vld [vmem:[#allocation2 + $0x178] sm:$0xff]
        %v4373 = vld [vmem:[%s2443] sm:$0xff]
        %v4374 = vld [vmem:[%s2443 + $0x8] sm:$0xff]
        %v4375 = vld [vmem:[%s2443 + $0x10] sm:$0xff]
        %v4376 = vld [vmem:[%s2443 + $0x18] sm:$0xff]
        %v4377 = vld [vmem:[%s2443 + $0x20] sm:$0xff]
        %v4378 = vld [vmem:[%s2443 + $0x28] sm:$0xff]
        %v4379 = vld [vmem:[%s2443 + $0x30] sm:$0xff]
        %v4380 = vld [vmem:[%s2443 + $0x38] sm:$0xff]
        %4389 = vrot.lane.b32.xlu0 %v4349, 32
        %v4390 = vpop.permute.xlu0 %4389
        %4391 = vrot.lane.b32.xlu0 %v4350, 32
        %v4392 = vpop.permute.xlu0 %4391
        %4393 = vrot.lane.b32.xlu0 %v4351, 32
        %v4394 = vpop.permute.xlu0 %4393
        %4395 = vrot.lane.b32.xlu0 %v4352, 32
        %v4396 = vpop.permute.xlu0 %4395
        %4397 = vrot.lane.b32.xlu0 %v4353, 32
        %v4398 = vpop.permute.xlu0 %4397
        %4399 = vrot.lane.b32.xlu0 %v4354, 32
        %v4400 = vpop.permute.xlu0 %4399
        %4401 = vrot.lane.b32.xlu0 %v4355, 32
        %v4402 = vpop.permute.xlu0 %4401
        %4403 = vrot.lane.b32.xlu0 %v4356, 32
        %v4404 = vpop.permute.xlu0 %4403
        %4413 = vrot.lane.b32.xlu0 %v4357, 32
        %v4414 = vpop.permute.xlu0 %4413
        %4415 = vrot.lane.b32.xlu0 %v4358, 32
        %v4416 = vpop.permute.xlu0 %4415
        %4417 = vrot.lane.b32.xlu0 %v4359, 32
        %v4418 = vpop.permute.xlu0 %4417
        %4419 = vrot.lane.b32.xlu0 %v4360, 32
        %v4420 = vpop.permute.xlu0 %4419
        %4421 = vrot.lane.b32.xlu0 %v4361, 32
        %v4422 = vpop.permute.xlu0 %4421
        %4423 = vrot.lane.b32.xlu0 %v4362, 32
        %v4424 = vpop.permute.xlu0 %4423
        %4425 = vrot.lane.b32.xlu0 %v4363, 32
        %v4426 = vpop.permute.xlu0 %4425
        %4427 = vrot.lane.b32.xlu0 %v4364, 32
        %v4428 = vpop.permute.xlu0 %4427
        %v4429 = vsel %vm1023, %v4390, 0
        %v4431 = vsel %vm1023, %v4392, 0
        %v4433 = vsel %vm1023, %v4394, 0
        %v4435 = vsel %vm1023, %v4396, 0
        %v4437 = vsel %vm1023, %v4398, 0
        %v4439 = vsel %vm1023, %v4400, 0
        %v4441 = vsel %vm1023, %v4402, 0
        %v4443 = vsel %vm1023, %v4404, 0
        %v4445 = vsel %vm1023, %v4414, 0
        %v4447 = vsel %vm1023, %v4416, 0
        %v4449 = vsel %vm1023, %v4418, 0
        %v4451 = vsel %vm1023, %v4420, 0
        %v4453 = vsel %vm1023, %v4422, 0
        %v4455 = vsel %vm1023, %v4424, 0
        %v4457 = vsel %vm1023, %v4426, 0
        %v4459 = vsel %vm1023, %v4428, 0
        %4461 = vmatprep.subr.mxu0 0.0
        %4462 = vmatpush1.xpose.msra.mxu0 %v4445
        %4463 = vmatprep.subr.mxu0 0.0
        %4464 = vmatpush1.xpose.msra.mxu0 %v4447
        %4465 = vmatprep.subr.mxu0 0.0
        %4466 = vmatpush1.xpose.msra.mxu0 %v4449
        %4467 = vmatprep.subr.mxu0 0.0
        %4468 = vmatpush1.xpose.msra.mxu0 %v4451
        %4469 = vmatprep.subr.mxu0 0.0
        %4470 = vmatpush1.xpose.msra.mxu0 %v4453
        %4471 = vmatprep.subr.mxu0 0.0
        %4472 = vmatpush1.xpose.msra.mxu0 %v4455
        %4473 = vmatprep.subr.mxu0 0.0
        %4474 = vmatpush1.xpose.msra.mxu0 %v4457
        %4475 = vmatprep.subr.mxu0 0.0
        %4476 = vmatpush1.xpose.msra.mxu0 %v4459
        %4477 = vmatprep.subr.mxu0 0.0
        %4478 = vmatpush1.xpose.msra.mxu0 0.0
        %4479 = vmatprep.subr.mxu0 0.0
        %4480 = vmatpush1.xpose.msra.mxu0 0.0
        %4481 = vmatprep.subr.mxu0 0.0
        %4482 = vmatpush1.xpose.msra.mxu0 0.0
        %4483 = vmatprep.subr.mxu0 0.0
        %4484 = vmatpush1.xpose.msra.mxu0 0.0
        %4485 = vmatprep.subr.mxu0 0.0
        %4486 = vmatpush1.xpose.msra.mxu0 0.0
        %4487 = vmatprep.subr.mxu0 0.0
        %4488 = vmatpush1.xpose.msra.mxu0 0.0
        %4489 = vmatprep.subr.mxu0 0.0
        %4490 = vmatpush1.xpose.msra.mxu0 0.0
        %4491 = vmatprep.subr.mxu0 0.0
        %4492 = vmatpush1.xpose.msra.mxu0 0.0
        %4493 = vmatprep.subr.mxu0 0.0
        %4494 = vmatpush1.xpose.msra.mxu0 0.0
        %4495 = vmatprep.subr.mxu0 0.0
        %4496 = vmatpush1.xpose.msra.mxu0 0.0
        %4497 = vmatprep.subr.mxu0 0.0
        %4498 = vmatpush1.xpose.msra.mxu0 0.0
        %4499 = vmatprep.subr.mxu0 0.0
        %4500 = vmatpush1.xpose.msra.mxu0 0.0
        %4501 = vmatprep.subr.mxu0 0.0
        %4502 = vmatpush1.xpose.msra.mxu0 0.0
        %4503 = vmatprep.subr.mxu0 0.0
        %4504 = vmatpush1.xpose.msra.mxu0 0.0
        %4505 = vmatprep.subr.mxu0 0.0
        %4506 = vmatpush1.xpose.msra.mxu0 0.0
        %4507 = vmatprep.subr.mxu0 0.0
        %4508 = vmatpush1.xpose.msra.mxu0 0.0
        %4509 = vmatprep.subr.mxu0 0.0
        %4510 = vmatpush1.xpose.msra.mxu0 0.0
        %4511 = vmatprep.subr.mxu0 0.0
        %4512 = vmatpush1.xpose.msra.mxu0 0.0
        %4513 = vmatprep.subr.mxu0 0.0
        %4514 = vmatpush1.xpose.msra.mxu0 0.0
        %4515 = vmatprep.subr.mxu0 0.0
        %4516 = vmatpush1.xpose.msra.mxu0 0.0
        %4517 = vmatprep.subr.mxu0 0.0
        %4518 = vmatpush1.xpose.msra.mxu0 0.0
        %4519 = vmatprep.subr.mxu0 0.0
        %4520 = vmatpush1.xpose.msra.mxu0 0.0
        %4521 = vmatprep.subr.mxu0 0.0
        %4522 = vmatpush1.xpose.msra.mxu0 0.0
        %4523 = vmatprep.subr.mxu0 0.0
        %4524 = vmatpush1.xpose.msra.mxu0 0.0
        %4525 = vmatprep.mubr.f32.mxu0 0.0
        %4526 = vmatmul.mubr.f32.gmra.mrb[0].mxu0 %v4429
        %v4527 = vpop.f32.mrb[0].mxu0
        %v4528 = vadd.f32 %v4373, %v4527
        %v4529 = vpop.f32.mrb[0].mxu0
        %4530 = vmatprep.mubr.f32.mxu0 0.0
        %4531 = vmatmul.mubr.f32.gmra.mrb[0].mxu0 %v4431
        %v4532 = vpop.f32.mrb[0].mxu0
        %v4533 = vadd.f32 %v4374, %v4532
        %v4534 = vpop.f32.mrb[0].mxu0
        %4535 = vmatprep.mubr.f32.mxu0 0.0
        %4536 = vmatmul.mubr.f32.gmra.mrb[0].mxu0 %v4433
        %v4537 = vpop.f32.mrb[0].mxu0
        %v4538 = vadd.f32 %v4375, %v4537
        %v4539 = vpop.f32.mrb[0].mxu0
        %4540 = vmatprep.mubr.f32.mxu0 0.0
        %4541 = vmatmul.mubr.f32.gmra.mrb[0].mxu0 %v4435
        %v4542 = vpop.f32.mrb[0].mxu0
        %v4543 = vadd.f32 %v4376, %v4542
        %v4544 = vpop.f32.mrb[0].mxu0
        %4545 = vmatprep.mubr.f32.mxu0 0.0
        %4546 = vmatmul.mubr.f32.gmra.mrb[0].mxu0 %v4437
        %v4547 = vpop.f32.mrb[0].mxu0
        %v4548 = vadd.f32 %v4377, %v4547
        %v4549 = vpop.f32.mrb[0].mxu0
        %4550 = vmatprep.mubr.f32.mxu0 0.0
        %4551 = vmatmul.mubr.f32.gmra.mrb[0].mxu0 %v4439
        %v4552 = vpop.f32.mrb[0].mxu0
        %v4553 = vadd.f32 %v4378, %v4552
        %v4554 = vpop.f32.mrb[0].mxu0
        %4555 = vmatprep.mubr.f32.mxu0 0.0
        %4556 = vmatmul.mubr.f32.gmra.mrb[0].mxu0 %v4441
        %v4557 = vpop.f32.mrb[0].mxu0
        %v4558 = vadd.f32 %v4379, %v4557
        %v4559 = vpop.f32.mrb[0].mxu0
        %4560 = vmatprep.mubr.f32.mxu0 0.0
        %4561 = vmatmul.mubr.f32.gmra.mrb[0].mxu0 %v4443
        %v4562 = vpop.f32.mrb[0].mxu0
        %v4563 = vadd.f32 %v4380, %v4562
        %v4564 = vpop.f32.mrb[0].mxu0
        %4565 = vdwg.mxu0
        %v4566 = vsel %vm1177, %v4528, -inf
        %4567 = vmax.xlane.f32.xlu0 %v4566
        %v4568 = vpop.xlane.xlu0 %4567
        %v4569 = vsel %vm1177, %v4533, -inf
        %4570 = vmax.xlane.f32.xlu0 %v4569
        %v4571 = vpop.xlane.xlu0 %4570
        %v4572 = vsel %vm1177, %v4538, -inf
        %4573 = vmax.xlane.f32.xlu0 %v4572
        %v4574 = vpop.xlane.xlu0 %4573
        %v4575 = vsel %vm1177, %v4543, -inf
        %4576 = vmax.xlane.f32.xlu0 %v4575
        %v4577 = vpop.xlane.xlu0 %4576
        %v4578 = vsel %vm1177, %v4548, -inf
        %4579 = vmax.xlane.f32.xlu0 %v4578
        %v4580 = vpop.xlane.xlu0 %4579
        %v4581 = vsel %vm1177, %v4553, -inf
        %4582 = vmax.xlane.f32.xlu0 %v4581
        %v4583 = vpop.xlane.xlu0 %4582
        %v4584 = vsel %vm1177, %v4558, -inf
        %4585 = vmax.xlane.f32.xlu0 %v4584
        %v4586 = vpop.xlane.xlu0 %4585
        %v4587 = vsel %vm1177, %v4563, -inf
        %4588 = vmax.xlane.f32.xlu0 %v4587
        %v4589 = vpop.xlane.xlu0 %4588
        %v4590 = vsub.f32 %v4528, %v4568
        %v4591 = vsub.f32 %v4533, %v4571
        %v4592 = vsub.f32 %v4538, %v4574
        %v4593 = vsub.f32 %v4543, %v4577
        %v4594 = vsub.f32 %v4548, %v4580
        %v4595 = vsub.f32 %v4553, %v4583
        %v4596 = vsub.f32 %v4558, %v4586
        %v4597 = vsub.f32 %v4563, %v4589
        %v4598 = vmul.f32 %v4590, 1.442695
        %v4599 = vpow.pop %v4598
        %v4600 = vmul.f32 %v4591, 1.442695
        %v4601 = vpow.pop %v4600
        %v4602 = vmul.f32 %v4592, 1.442695
        %v4603 = vpow.pop %v4602
        %v4604 = vmul.f32 %v4593, 1.442695
        %v4605 = vpow.pop %v4604
        %v4606 = vmul.f32 %v4594, 1.442695
        %v4607 = vpow.pop %v4606
        %v4608 = vmul.f32 %v4595, 1.442695
        %v4609 = vpow.pop %v4608
        %v4610 = vmul.f32 %v4596, 1.442695
        %v4611 = vpow.pop %v4610
        %v4612 = vmul.f32 %v4597, 1.442695
        %v4613 = vpow.pop %v4612
        %v4614 = vsel %vm1177, %v4599, 0.0
        %4615 = vadd.xlane.f32.xlu0 %v4614
        %v4616 = vpop.xlane.xlu0 %4615
        %v4617 = vsel %vm1177, %v4601, 0.0
        %4618 = vadd.xlane.f32.xlu0 %v4617
        %v4619 = vpop.xlane.xlu0 %4618
        %v4620 = vsel %vm1177, %v4603, 0.0
        %4621 = vadd.xlane.f32.xlu0 %v4620
        %v4622 = vpop.xlane.xlu0 %4621
        %v4623 = vsel %vm1177, %v4605, 0.0
        %4624 = vadd.xlane.f32.xlu0 %v4623
        %v4625 = vpop.xlane.xlu0 %4624
        %v4626 = vsel %vm1177, %v4607, 0.0
        %4627 = vadd.xlane.f32.xlu0 %v4626
        %v4628 = vpop.xlane.xlu0 %4627
        %v4629 = vsel %vm1177, %v4609, 0.0
        %4630 = vadd.xlane.f32.xlu0 %v4629
        %v4631 = vpop.xlane.xlu0 %4630
        %v4632 = vsel %vm1177, %v4611, 0.0
        %4633 = vadd.xlane.f32.xlu0 %v4632
        %v4634 = vpop.xlane.xlu0 %4633
        %v4635 = vsel %vm1177, %v4613, 0.0
        %4636 = vadd.xlane.f32.xlu0 %v4635
        %v4637 = vpop.xlane.xlu0 %4636
        %v4638 = vrcp.pop %v4616
        %v4639 = vrcp.pop %v4619
        %v4640 = vrcp.pop %v4622
        %v4641 = vrcp.pop %v4625
        %v4642 = vrcp.pop %v4628
        %v4643 = vrcp.pop %v4631
        %v4644 = vrcp.pop %v4634
        %v4645 = vrcp.pop %v4637
        %v4646 = vmul.f32 %v4599, %v4638
        %v4647 = vmul.f32 %v4601, %v4639
        %v4648 = vmul.f32 %v4603, %v4640
        %v4649 = vmul.f32 %v4605, %v4641
        %v4650 = vmul.f32 %v4607, %v4642
        %v4651 = vmul.f32 %v4609, %v4643
        %v4652 = vmul.f32 %v4611, %v4644
        %v4653 = vmul.f32 %v4613, %v4645
        %4662 = vrot.lane.b32.xlu0 %v4365, 32
        %v4663 = vpop.permute.xlu0 %4662
        %4664 = vrot.lane.b32.xlu0 %v4366, 32
        %v4665 = vpop.permute.xlu0 %4664
        %4666 = vrot.lane.b32.xlu0 %v4367, 32
        %v4667 = vpop.permute.xlu0 %4666
        %4668 = vrot.lane.b32.xlu0 %v4368, 32
        %v4669 = vpop.permute.xlu0 %4668
        %4670 = vrot.lane.b32.xlu0 %v4369, 32
        %v4671 = vpop.permute.xlu0 %4670
        %4672 = vrot.lane.b32.xlu0 %v4370, 32
        %v4673 = vpop.permute.xlu0 %4672
        %4674 = vrot.lane.b32.xlu0 %v4371, 32
        %v4675 = vpop.permute.xlu0 %4674
        %4676 = vrot.lane.b32.xlu0 %v4372, 32
        %v4677 = vpop.permute.xlu0 %4676
        %v4687 = vsel %vm1177, %v4646, 0
        %v4690 = vsel %vm1177, %v4647, 0
        %v4693 = vsel %vm1177, %v4648, 0
        %v4696 = vsel %vm1177, %v4649, 0
        %v4699 = vsel %vm1177, %v4650, 0
        %v4702 = vsel %vm1177, %v4651, 0
        %v4705 = vsel %vm1177, %v4652, 0
        %v4708 = vsel %vm1177, %v4653, 0
        %4710 = vmatprep.subr.mxu0 0.0
        %4711 = vmatpush1.msra.mxu0 %v4663
        %4712 = vmatprep.subr.mxu0 0.0
        %4713 = vmatpush1.msra.mxu0 %v4665
        %4714 = vmatprep.subr.mxu0 0.0
        %4715 = vmatpush1.msra.mxu0 %v4667
        %4716 = vmatprep.subr.mxu0 0.0
        %4717 = vmatpush1.msra.mxu0 %v4669
        %4718 = vmatprep.subr.mxu0 0.0
        %4719 = vmatpush1.msra.mxu0 %v4671
        %4720 = vmatprep.subr.mxu0 0.0
        %4721 = vmatpush1.msra.mxu0 %v4673
        %4722 = vmatprep.subr.mxu0 0.0
        %4723 = vmatpush1.msra.mxu0 %v4675
        %4724 = vmatprep.subr.mxu0 0.0
        %4725 = vmatpush1.msra.mxu0 %v4677
        %4726 = vmatprep.subr.mxu0 0.0
        %4727 = vmatpush1.msra.mxu0 0.0
        %4728 = vmatprep.subr.mxu0 0.0
        %4729 = vmatpush1.msra.mxu0 0.0
        %4730 = vmatprep.subr.mxu0 0.0
        %4731 = vmatpush1.msra.mxu0 0.0
        %4732 = vmatprep.subr.mxu0 0.0
        %4733 = vmatpush1.msra.mxu0 0.0
        %4734 = vmatprep.subr.mxu0 0.0
        %4735 = vmatpush1.msra.mxu0 0.0
        %4736 = vmatprep.subr.mxu0 0.0
        %4737 = vmatpush1.msra.mxu0 0.0
        %4738 = vmatprep.subr.mxu0 0.0
        %4739 = vmatpush1.msra.mxu0 0.0
        %4740 = vmatprep.subr.mxu0 0.0
        %4741 = vmatpush1.msra.mxu0 0.0
        %4742 = vmatprep.subr.mxu0 0.0
        %4743 = vmatpush1.msra.mxu0 0.0
        %4744 = vmatprep.subr.mxu0 0.0
        %4745 = vmatpush1.msra.mxu0 0.0
        %4746 = vmatprep.subr.mxu0 0.0
        %4747 = vmatpush1.msra.mxu0 0.0
        %4748 = vmatprep.subr.mxu0 0.0
        %4749 = vmatpush1.msra.mxu0 0.0
        %4750 = vmatprep.subr.mxu0 0.0
        %4751 = vmatpush1.msra.mxu0 0.0
        %4752 = vmatprep.subr.mxu0 0.0
        %4753 = vmatpush1.msra.mxu0 0.0
        %4754 = vmatprep.subr.mxu0 0.0
        %4755 = vmatpush1.msra.mxu0 0.0
        %4756 = vmatprep.subr.mxu0 0.0
        %4757 = vmatpush1.msra.mxu0 0.0
        %4758 = vmatprep.subr.mxu0 0.0
        %4759 = vmatpush1.msra.mxu0 0.0
        %4760 = vmatprep.subr.mxu0 0.0
        %4761 = vmatpush1.msra.mxu0 0.0
        %4762 = vmatprep.subr.mxu0 0.0
        %4763 = vmatpush1.msra.mxu0 0.0
        %4764 = vmatprep.subr.mxu0 0.0
        %4765 = vmatpush1.msra.mxu0 0.0
        %4766 = vmatprep.subr.mxu0 0.0
        %4767 = vmatpush1.msra.mxu0 0.0
        %4768 = vmatprep.subr.mxu0 0.0
        %4769 = vmatpush1.msra.mxu0 0.0
        %4770 = vmatprep.subr.mxu0 0.0
        %4771 = vmatpush1.msra.mxu0 0.0
        %4772 = vmatprep.subr.mxu0 0.0
        %4773 = vmatpush1.msra.mxu0 0.0
        %4774 = vmatprep.mubr.f32.mxu0 0.0
        %4775 = vmatmul.mubr.f32.gmra.mrb[0].mxu0 %v4687
        %v4776 = vpop.f32.mrb[0].mxu0
        %v4777 = vadd.f32 0.0, %v4776
        %v4778 = vpop.f32.mrb[0].mxu0
        %4779 = vmatprep.mubr.f32.mxu0 0.0
        %4780 = vmatmul.mubr.f32.gmra.mrb[0].mxu0 %v4690
        %v4781 = vpop.f32.mrb[0].mxu0
        %v4782 = vadd.f32 0.0, %v4781
        %v4783 = vpop.f32.mrb[0].mxu0
        %4784 = vmatprep.mubr.f32.mxu0 0.0
        %4785 = vmatmul.mubr.f32.gmra.mrb[0].mxu0 %v4693
        %v4786 = vpop.f32.mrb[0].mxu0
        %v4787 = vadd.f32 0.0, %v4786
        %v4788 = vpop.f32.mrb[0].mxu0
        %4789 = vmatprep.mubr.f32.mxu0 0.0
        %4790 = vmatmul.mubr.f32.gmra.mrb[0].mxu0 %v4696
        %v4791 = vpop.f32.mrb[0].mxu0
        %v4792 = vadd.f32 0.0, %v4791
        %v4793 = vpop.f32.mrb[0].mxu0
        %4794 = vmatprep.mubr.f32.mxu0 0.0
        %4795 = vmatmul.mubr.f32.gmra.mrb[0].mxu0 %v4699
        %v4796 = vpop.f32.mrb[0].mxu0
        %v4797 = vadd.f32 0.0, %v4796
        %v4798 = vpop.f32.mrb[0].mxu0
        %4799 = vmatprep.mubr.f32.mxu0 0.0
        %4800 = vmatmul.mubr.f32.gmra.mrb[0].mxu0 %v4702
        %v4801 = vpop.f32.mrb[0].mxu0
        %v4802 = vadd.f32 0.0, %v4801
        %v4803 = vpop.f32.mrb[0].mxu0
        %4804 = vmatprep.mubr.f32.mxu0 0.0
        %4805 = vmatmul.mubr.f32.gmra.mrb[0].mxu0 %v4705
        %v4806 = vpop.f32.mrb[0].mxu0
        %v4807 = vadd.f32 0.0, %v4806
        %v4808 = vpop.f32.mrb[0].mxu0
        %4809 = vmatprep.mubr.f32.mxu0 0.0
        %4810 = vmatmul.mubr.f32.gmra.mrb[0].mxu0 %v4708
        %v4811 = vpop.f32.mrb[0].mxu0
        %v4812 = vadd.f32 0.0, %v4811
        %v4813 = vpop.f32.mrb[0].mxu0
        %4814 = vdwg.mxu0
        %4823 = vrot.lane.b32.xlu0 %v4777, 96
        %v4824 = vpop.permute.xlu0 %4823
        %4825 = vrot.lane.b32.xlu0 %v4782, 96
        %v4826 = vpop.permute.xlu0 %4825
        %4827 = vrot.lane.b32.xlu0 %v4787, 96
        %v4828 = vpop.permute.xlu0 %4827
        %4829 = vrot.lane.b32.xlu0 %v4792, 96
        %v4830 = vpop.permute.xlu0 %4829
        %4831 = vrot.lane.b32.xlu0 %v4797, 96
        %v4832 = vpop.permute.xlu0 %4831
        %4833 = vrot.lane.b32.xlu0 %v4802, 96
        %v4834 = vpop.permute.xlu0 %4833
        %4835 = vrot.lane.b32.xlu0 %v4807, 96
        %v4836 = vpop.permute.xlu0 %4835
        %4837 = vrot.lane.b32.xlu0 %v4812, 96
        %v4838 = vpop.permute.xlu0 %4837
        %4847 = vst.msk [vmem:[#allocation3 + $0x40] sm:$0xff] %vm2918, %v4824
        %4848 = vst.msk [vmem:[#allocation3 + $0x48] sm:$0xff] %vm2918, %v4826
        %4849 = vst.msk [vmem:[#allocation3 + $0x50] sm:$0xff] %vm2918, %v4828
        %4850 = vst.msk [vmem:[#allocation3 + $0x58] sm:$0xff] %vm2918, %v4830
        %4851 = vst.msk [vmem:[#allocation3 + $0x60] sm:$0xff] %vm2918, %v4832
        %4852 = vst.msk [vmem:[#allocation3 + $0x68] sm:$0xff] %vm2918, %v4834
        %4853 = vst.msk [vmem:[#allocation3 + $0x70] sm:$0xff] %vm2918, %v4836
        %4854 = vst.msk [vmem:[#allocation3 + $0x78] sm:$0xff] %vm2918, %v4838
        %v4855 = vld [vmem:[#allocation2 + $0x180] sm:$0xff]
        %v4856 = vld [vmem:[#allocation2 + $0x198] sm:$0xff]
        %v4857 = vld [vmem:[#allocation2 + $0x1b0] sm:$0xff]
        %v4858 = vld [vmem:[#allocation2 + $0x1c8] sm:$0xff]
        %v4859 = vld [vmem:[#allocation2 + $0x1e0] sm:$0xff]
        %v4860 = vld [vmem:[#allocation2 + $0x1f8] sm:$0xff]
        %v4861 = vld [vmem:[#allocation2 + $0x210] sm:$0xff]
        %v4862 = vld [vmem:[#allocation2 + $0x228] sm:$0xff]
        %v4863 = vld [vmem:[#allocation2 + $0x188] sm:$0xff]
        %v4864 = vld [vmem:[#allocation2 + $0x1a0] sm:$0xff]
        %v4865 = vld [vmem:[#allocation2 + $0x1b8] sm:$0xff]
        %v4866 = vld [vmem:[#allocation2 + $0x1d0] sm:$0xff]
        %v4867 = vld [vmem:[#allocation2 + $0x1e8] sm:$0xff]
        %v4868 = vld [vmem:[#allocation2 + $0x200] sm:$0xff]
        %v4869 = vld [vmem:[#allocation2 + $0x218] sm:$0xff]
        %v4870 = vld [vmem:[#allocation2 + $0x230] sm:$0xff]
        %v4871 = vld [vmem:[#allocation2 + $0x190] sm:$0xff]
        %v4872 = vld [vmem:[#allocation2 + $0x1a8] sm:$0xff]
        %v4873 = vld [vmem:[#allocation2 + $0x1c0] sm:$0xff]
        %v4874 = vld [vmem:[#allocation2 + $0x1d8] sm:$0xff]
        %v4875 = vld [vmem:[#allocation2 + $0x1f0] sm:$0xff]
        %v4876 = vld [vmem:[#allocation2 + $0x208] sm:$0xff]
        %v4877 = vld [vmem:[#allocation2 + $0x220] sm:$0xff]
        %v4878 = vld [vmem:[#allocation2 + $0x238] sm:$0xff]
        %v4879 = vld [vmem:[#allocation10] sm:$0xff]
        %v4880 = vld [vmem:[#allocation10 + $0x8] sm:$0xff]
        %v4881 = vld [vmem:[#allocation10 + $0x10] sm:$0xff]
        %v4882 = vld [vmem:[#allocation10 + $0x18] sm:$0xff]
        %v4883 = vld [vmem:[#allocation10 + $0x20] sm:$0xff]
        %v4884 = vld [vmem:[#allocation10 + $0x28] sm:$0xff]
        %v4885 = vld [vmem:[#allocation10 + $0x30] sm:$0xff]
        %v4886 = vld [vmem:[#allocation10 + $0x38] sm:$0xff]
        %v4888 = vsel %vm1023, %v4855, 0
        %v4891 = vsel %vm1023, %v4856, 0
        %v4894 = vsel %vm1023, %v4857, 0
        %v4897 = vsel %vm1023, %v4858, 0
        %v4900 = vsel %vm1023, %v4859, 0
        %v4903 = vsel %vm1023, %v4860, 0
        %v4906 = vsel %vm1023, %v4861, 0
        %v4909 = vsel %vm1023, %v4862, 0
        %v4912 = vsel %vm1023, %v4863, 0
        %v4915 = vsel %vm1023, %v4864, 0
        %v4918 = vsel %vm1023, %v4865, 0
        %v4921 = vsel %vm1023, %v4866, 0
        %v4924 = vsel %vm1023, %v4867, 0
        %v4927 = vsel %vm1023, %v4868, 0
        %v4930 = vsel %vm1023, %v4869, 0
        %v4933 = vsel %vm1023, %v4870, 0
        %4935 = vmatprep.subr.mxu0 0.0
        %4936 = vmatpush1.xpose.msra.mxu0 %v4912
        %4937 = vmatprep.subr.mxu0 0.0
        %4938 = vmatpush1.xpose.msra.mxu0 %v4915
        %4939 = vmatprep.subr.mxu0 0.0
        %4940 = vmatpush1.xpose.msra.mxu0 %v4918
        %4941 = vmatprep.subr.mxu0 0.0
        %4942 = vmatpush1.xpose.msra.mxu0 %v4921
        %4943 = vmatprep.subr.mxu0 0.0
        %4944 = vmatpush1.xpose.msra.mxu0 %v4924
        %4945 = vmatprep.subr.mxu0 0.0
        %4946 = vmatpush1.xpose.msra.mxu0 %v4927
        %4947 = vmatprep.subr.mxu0 0.0
        %4948 = vmatpush1.xpose.msra.mxu0 %v4930
        %4949 = vmatprep.subr.mxu0 0.0
        %4950 = vmatpush1.xpose.msra.mxu0 %v4933
        %4951 = vmatprep.subr.mxu0 0.0
        %4952 = vmatpush1.xpose.msra.mxu0 0.0
        %4953 = vmatprep.subr.mxu0 0.0
        %4954 = vmatpush1.xpose.msra.mxu0 0.0
        %4955 = vmatprep.subr.mxu0 0.0
        %4956 = vmatpush1.xpose.msra.mxu0 0.0
        %4957 = vmatprep.subr.mxu0 0.0
        %4958 = vmatpush1.xpose.msra.mxu0 0.0
        %4959 = vmatprep.subr.mxu0 0.0
        %4960 = vmatpush1.xpose.msra.mxu0 0.0
        %4961 = vmatprep.subr.mxu0 0.0
        %4962 = vmatpush1.xpose.msra.mxu0 0.0
        %4963 = vmatprep.subr.mxu0 0.0
        %4964 = vmatpush1.xpose.msra.mxu0 0.0
        %4965 = vmatprep.subr.mxu0 0.0
        %4966 = vmatpush1.xpose.msra.mxu0 0.0
        %4967 = vmatprep.subr.mxu0 0.0
        %4968 = vmatpush1.xpose.msra.mxu0 0.0
        %4969 = vmatprep.subr.mxu0 0.0
        %4970 = vmatpush1.xpose.msra.mxu0 0.0
        %4971 = vmatprep.subr.mxu0 0.0
        %4972 = vmatpush1.xpose.msra.mxu0 0.0
        %4973 = vmatprep.subr.mxu0 0.0
        %4974 = vmatpush1.xpose.msra.mxu0 0.0
        %4975 = vmatprep.subr.mxu0 0.0
        %4976 = vmatpush1.xpose.msra.mxu0 0.0
        %4977 = vmatprep.subr.mxu0 0.0
        %4978 = vmatpush1.xpose.msra.mxu0 0.0
        %4979 = vmatprep.subr.mxu0 0.0
        %4980 = vmatpush1.xpose.msra.mxu0 0.0
        %4981 = vmatprep.subr.mxu0 0.0
        %4982 = vmatpush1.xpose.msra.mxu0 0.0
        %4983 = vmatprep.subr.mxu0 0.0
        %4984 = vmatpush1.xpose.msra.mxu0 0.0
        %4985 = vmatprep.subr.mxu0 0.0
        %4986 = vmatpush1.xpose.msra.mxu0 0.0
        %4987 = vmatprep.subr.mxu0 0.0
        %4988 = vmatpush1.xpose.msra.mxu0 0.0
        %4989 = vmatprep.subr.mxu0 0.0
        %4990 = vmatpush1.xpose.msra.mxu0 0.0
        %4991 = vmatprep.subr.mxu0 0.0
        %4992 = vmatpush1.xpose.msra.mxu0 0.0
        %4993 = vmatprep.subr.mxu0 0.0
        %4994 = vmatpush1.xpose.msra.mxu0 0.0
        %4995 = vmatprep.subr.mxu0 0.0
        %4996 = vmatpush1.xpose.msra.mxu0 0.0
        %4997 = vmatprep.subr.mxu0 0.0
        %4998 = vmatpush1.xpose.msra.mxu0 0.0
        %4999 = vmatprep.mubr.f32.mxu0 0.0
        %5000 = vmatmul.mubr.f32.gmra.mrb[0].mxu0 %v4888
        %v5001 = vpop.f32.mrb[0].mxu0
        %v5002 = vadd.f32 %v4879, %v5001
        %v5003 = vpop.f32.mrb[0].mxu0
        %5004 = vmatprep.mubr.f32.mxu0 0.0
        %5005 = vmatmul.mubr.f32.gmra.mrb[0].mxu0 %v4891
        %v5006 = vpop.f32.mrb[0].mxu0
        %v5007 = vadd.f32 %v4880, %v5006
        %v5008 = vpop.f32.mrb[0].mxu0
        %5009 = vmatprep.mubr.f32.mxu0 0.0
        %5010 = vmatmul.mubr.f32.gmra.mrb[0].mxu0 %v4894
        %v5011 = vpop.f32.mrb[0].mxu0
        %v5012 = vadd.f32 %v4881, %v5011
        %v5013 = vpop.f32.mrb[0].mxu0
        %5014 = vmatprep.mubr.f32.mxu0 0.0
        %5015 = vmatmul.mubr.f32.gmra.mrb[0].mxu0 %v4897
        %v5016 = vpop.f32.mrb[0].mxu0
        %v5017 = vadd.f32 %v4882, %v5016
        %v5018 = vpop.f32.mrb[0].mxu0
        %5019 = vmatprep.mubr.f32.mxu0 0.0
        %5020 = vmatmul.mubr.f32.gmra.mrb[0].mxu0 %v4900
        %v5021 = vpop.f32.mrb[0].mxu0
        %v5022 = vadd.f32 %v4883, %v5021
        %v5023 = vpop.f32.mrb[0].mxu0
        %5024 = vmatprep.mubr.f32.mxu0 0.0
        %5025 = vmatmul.mubr.f32.gmra.mrb[0].mxu0 %v4903
        %v5026 = vpop.f32.mrb[0].mxu0
        %v5027 = vadd.f32 %v4884, %v5026
        %v5028 = vpop.f32.mrb[0].mxu0
        %5029 = vmatprep.mubr.f32.mxu0 0.0
        %5030 = vmatmul.mubr.f32.gmra.mrb[0].mxu0 %v4906
        %v5031 = vpop.f32.mrb[0].mxu0
        %v5032 = vadd.f32 %v4885, %v5031
        %v5033 = vpop.f32.mrb[0].mxu0
        %5034 = vmatprep.mubr.f32.mxu0 0.0
        %5035 = vmatmul.mubr.f32.gmra.mrb[0].mxu0 %v4909
        %v5036 = vpop.f32.mrb[0].mxu0
        %v5037 = vadd.f32 %v4886, %v5036
        %v5038 = vpop.f32.mrb[0].mxu0
        %5039 = vdwg.mxu0
        %v5040 = vsel %vm1177, %v5002, -inf
        %5041 = vmax.xlane.f32.xlu0 %v5040
        %v5042 = vpop.xlane.xlu0 %5041
        %v5043 = vsel %vm1177, %v5007, -inf
        %5044 = vmax.xlane.f32.xlu0 %v5043
        %v5045 = vpop.xlane.xlu0 %5044
        %v5046 = vsel %vm1177, %v5012, -inf
        %5047 = vmax.xlane.f32.xlu0 %v5046
        %v5048 = vpop.xlane.xlu0 %5047
        %v5049 = vsel %vm1177, %v5017, -inf
        %5050 = vmax.xlane.f32.xlu0 %v5049
        %v5051 = vpop.xlane.xlu0 %5050
        %v5052 = vsel %vm1177, %v5022, -inf
        %5053 = vmax.xlane.f32.xlu0 %v5052
        %v5054 = vpop.xlane.xlu0 %5053
        %v5055 = vsel %vm1177, %v5027, -inf
        %5056 = vmax.xlane.f32.xlu0 %v5055
        %v5057 = vpop.xlane.xlu0 %5056
        %v5058 = vsel %vm1177, %v5032, -inf
        %5059 = vmax.xlane.f32.xlu0 %v5058
        %v5060 = vpop.xlane.xlu0 %5059
        %v5061 = vsel %vm1177, %v5037, -inf
        %5062 = vmax.xlane.f32.xlu0 %v5061
        %v5063 = vpop.xlane.xlu0 %5062
        %v5064 = vsub.f32 %v5002, %v5042
        %v5065 = vsub.f32 %v5007, %v5045
        %v5066 = vsub.f32 %v5012, %v5048
        %v5067 = vsub.f32 %v5017, %v5051
        %v5068 = vsub.f32 %v5022, %v5054
        %v5069 = vsub.f32 %v5027, %v5057
        %v5070 = vsub.f32 %v5032, %v5060
        %v5071 = vsub.f32 %v5037, %v5063
        %v5072 = vmul.f32 %v5064, 1.442695
        %v5073 = vpow.pop %v5072
        %v5074 = vmul.f32 %v5065, 1.442695
        %v5075 = vpow.pop %v5074
        %v5076 = vmul.f32 %v5066, 1.442695
        %v5077 = vpow.pop %v5076
        %v5078 = vmul.f32 %v5067, 1.442695
        %v5079 = vpow.pop %v5078
        %v5080 = vmul.f32 %v5068, 1.442695
        %v5081 = vpow.pop %v5080
        %v5082 = vmul.f32 %v5069, 1.442695
        %v5083 = vpow.pop %v5082
        %v5084 = vmul.f32 %v5070, 1.442695
        %v5085 = vpow.pop %v5084
        %v5086 = vmul.f32 %v5071, 1.442695
        %v5087 = vpow.pop %v5086
        %v5088 = vsel %vm1177, %v5073, 0.0
        %5089 = vadd.xlane.f32.xlu0 %v5088
        %v5090 = vpop.xlane.xlu0 %5089
        %v5091 = vsel %vm1177, %v5075, 0.0
        %5092 = vadd.xlane.f32.xlu0 %v5091
        %v5093 = vpop.xlane.xlu0 %5092
        %v5094 = vsel %vm1177, %v5077, 0.0
        %5095 = vadd.xlane.f32.xlu0 %v5094
        %v5096 = vpop.xlane.xlu0 %5095
        %v5097 = vsel %vm1177, %v5079, 0.0
        %5098 = vadd.xlane.f32.xlu0 %v5097
        %v5099 = vpop.xlane.xlu0 %5098
        %v5100 = vsel %vm1177, %v5081, 0.0
        %5101 = vadd.xlane.f32.xlu0 %v5100
        %v5102 = vpop.xlane.xlu0 %5101
        %v5103 = vsel %vm1177, %v5083, 0.0
        %5104 = vadd.xlane.f32.xlu0 %v5103
        %v5105 = vpop.xlane.xlu0 %5104
        %v5106 = vsel %vm1177, %v5085, 0.0
        %5107 = vadd.xlane.f32.xlu0 %v5106
        %v5108 = vpop.xlane.xlu0 %5107
        %v5109 = vsel %vm1177, %v5087, 0.0
        %5110 = vadd.xlane.f32.xlu0 %v5109
        %v5111 = vpop.xlane.xlu0 %5110
        %v5112 = vrcp.pop %v5090
        %v5113 = vrcp.pop %v5093
        %v5114 = vrcp.pop %v5096
        %v5115 = vrcp.pop %v5099
        %v5116 = vrcp.pop %v5102
        %v5117 = vrcp.pop %v5105
        %v5118 = vrcp.pop %v5108
        %v5119 = vrcp.pop %v5111
        %v5120 = vmul.f32 %v5073, %v5112
        %v5121 = vmul.f32 %v5075, %v5113
        %v5122 = vmul.f32 %v5077, %v5114
        %v5123 = vmul.f32 %v5079, %v5115
        %v5124 = vmul.f32 %v5081, %v5116
        %v5125 = vmul.f32 %v5083, %v5117
        %v5126 = vmul.f32 %v5085, %v5118
        %v5127 = vmul.f32 %v5087, %v5119
        %v5129 = vsel %vm1177, %v5120, 0
        %v5132 = vsel %vm1177, %v5121, 0
        %v5135 = vsel %vm1177, %v5122, 0
        %v5138 = vsel %vm1177, %v5123, 0
        %v5141 = vsel %vm1177, %v5124, 0
        %v5144 = vsel %vm1177, %v5125, 0
        %v5147 = vsel %vm1177, %v5126, 0
        %v5150 = vsel %vm1177, %v5127, 0
        %5152 = vmatprep.subr.mxu0 0.0
        %5153 = vmatpush1.msra.mxu0 %v4871
        %5154 = vmatprep.subr.mxu0 0.0
        %5155 = vmatpush1.msra.mxu0 %v4872
        %5156 = vmatprep.subr.mxu0 0.0
        %5157 = vmatpush1.msra.mxu0 %v4873
        %5158 = vmatprep.subr.mxu0 0.0
        %5159 = vmatpush1.msra.mxu0 %v4874
        %5160 = vmatprep.subr.mxu0 0.0
        %5161 = vmatpush1.msra.mxu0 %v4875
        %5162 = vmatprep.subr.mxu0 0.0
        %5163 = vmatpush1.msra.mxu0 %v4876
        %5164 = vmatprep.subr.mxu0 0.0
        %5165 = vmatpush1.msra.mxu0 %v4877
        %5166 = vmatprep.subr.mxu0 0.0
        %5167 = vmatpush1.msra.mxu0 %v4878
        %5168 = vmatprep.subr.mxu0 0.0
        %5169 = vmatpush1.msra.mxu0 0.0
        %5170 = vmatprep.subr.mxu0 0.0
        %5171 = vmatpush1.msra.mxu0 0.0
        %5172 = vmatprep.subr.mxu0 0.0
        %5173 = vmatpush1.msra.mxu0 0.0
        %5174 = vmatprep.subr.mxu0 0.0
        %5175 = vmatpush1.msra.mxu0 0.0
        %5176 = vmatprep.subr.mxu0 0.0
        %5177 = vmatpush1.msra.mxu0 0.0
        %5178 = vmatprep.subr.mxu0 0.0
        %5179 = vmatpush1.msra.mxu0 0.0
        %5180 = vmatprep.subr.mxu0 0.0
        %5181 = vmatpush1.msra.mxu0 0.0
        %5182 = vmatprep.subr.mxu0 0.0
        %5183 = vmatpush1.msra.mxu0 0.0
        %5184 = vmatprep.subr.mxu0 0.0
        %5185 = vmatpush1.msra.mxu0 0.0
        %5186 = vmatprep.subr.mxu0 0.0
        %5187 = vmatpush1.msra.mxu0 0.0
        %5188 = vmatprep.subr.mxu0 0.0
        %5189 = vmatpush1.msra.mxu0 0.0
        %5190 = vmatprep.subr.mxu0 0.0
        %5191 = vmatpush1.msra.mxu0 0.0
        %5192 = vmatprep.subr.mxu0 0.0
        %5193 = vmatpush1.msra.mxu0 0.0
        %5194 = vmatprep.subr.mxu0 0.0
        %5195 = vmatpush1.msra.mxu0 0.0
        %5196 = vmatprep.subr.mxu0 0.0
        %5197 = vmatpush1.msra.mxu0 0.0
        %5198 = vmatprep.subr.mxu0 0.0
        %5199 = vmatpush1.msra.mxu0 0.0
        %5200 = vmatprep.subr.mxu0 0.0
        %5201 = vmatpush1.msra.mxu0 0.0
        %5202 = vmatprep.subr.mxu0 0.0
        %5203 = vmatpush1.msra.mxu0 0.0
        %5204 = vmatprep.subr.mxu0 0.0
        %5205 = vmatpush1.msra.mxu0 0.0
        %5206 = vmatprep.subr.mxu0 0.0
        %5207 = vmatpush1.msra.mxu0 0.0
        %5208 = vmatprep.subr.mxu0 0.0
        %5209 = vmatpush1.msra.mxu0 0.0
        %5210 = vmatprep.subr.mxu0 0.0
        %5211 = vmatpush1.msra.mxu0 0.0
        %5212 = vmatprep.subr.mxu0 0.0
        %5213 = vmatpush1.msra.mxu0 0.0
        %5214 = vmatprep.subr.mxu0 0.0
        %5215 = vmatpush1.msra.mxu0 0.0
        %5216 = vmatprep.mubr.f32.mxu0 0.0
        %5217 = vmatmul.mubr.f32.gmra.mrb[0].mxu0 %v5129
        %v5218 = vpop.f32.mrb[0].mxu0
        %v5219 = vadd.f32 0.0, %v5218
        %v5220 = vpop.f32.mrb[0].mxu0
        %5221 = vmatprep.mubr.f32.mxu0 0.0
        %5222 = vmatmul.mubr.f32.gmra.mrb[0].mxu0 %v5132
        %v5223 = vpop.f32.mrb[0].mxu0
        %v5224 = vadd.f32 0.0, %v5223
        %v5225 = vpop.f32.mrb[0].mxu0
        %5226 = vmatprep.mubr.f32.mxu0 0.0
        %5227 = vmatmul.mubr.f32.gmra.mrb[0].mxu0 %v5135
        %v5228 = vpop.f32.mrb[0].mxu0
        %v5229 = vadd.f32 0.0, %v5228
        %v5230 = vpop.f32.mrb[0].mxu0
        %5231 = vmatprep.mubr.f32.mxu0 0.0
        %5232 = vmatmul.mubr.f32.gmra.mrb[0].mxu0 %v5138
        %v5233 = vpop.f32.mrb[0].mxu0
        %v5234 = vadd.f32 0.0, %v5233
        %v5235 = vpop.f32.mrb[0].mxu0
        %5236 = vmatprep.mubr.f32.mxu0 0.0
        %5237 = vmatmul.mubr.f32.gmra.mrb[0].mxu0 %v5141
        %v5238 = vpop.f32.mrb[0].mxu0
        %v5239 = vadd.f32 0.0, %v5238
        %v5240 = vpop.f32.mrb[0].mxu0
        %5241 = vmatprep.mubr.f32.mxu0 0.0
        %5242 = vmatmul.mubr.f32.gmra.mrb[0].mxu0 %v5144
        %v5243 = vpop.f32.mrb[0].mxu0
        %v5244 = vadd.f32 0.0, %v5243
        %v5245 = vpop.f32.mrb[0].mxu0
        %5246 = vmatprep.mubr.f32.mxu0 0.0
        %5247 = vmatmul.mubr.f32.gmra.mrb[0].mxu0 %v5147
        %v5248 = vpop.f32.mrb[0].mxu0
        %v5249 = vadd.f32 0.0, %v5248
        %v5250 = vpop.f32.mrb[0].mxu0
        %5251 = vmatprep.mubr.f32.mxu0 0.0
        %5252 = vmatmul.mubr.f32.gmra.mrb[0].mxu0 %v5150
        %v5253 = vpop.f32.mrb[0].mxu0
        %v5254 = vadd.f32 0.0, %v5253
        %v5255 = vpop.f32.mrb[0].mxu0
        %5256 = vdwg.mxu0
        %5257 = vst.msk [vmem:[#allocation3 + $0x80] sm:$0xff] %vm1023, %v5219
        %5258 = vst.msk [vmem:[#allocation3 + $0x88] sm:$0xff] %vm1023, %v5224
        %5259 = vst.msk [vmem:[#allocation3 + $0x90] sm:$0xff] %vm1023, %v5229
        %5260 = vst.msk [vmem:[#allocation3 + $0x98] sm:$0xff] %vm1023, %v5234
        %5261 = vst.msk [vmem:[#allocation3 + $0xa0] sm:$0xff] %vm1023, %v5239
        %5262 = vst.msk [vmem:[#allocation3 + $0xa8] sm:$0xff] %vm1023, %v5244
        %5263 = vst.msk [vmem:[#allocation3 + $0xb0] sm:$0xff] %vm1023, %v5249
        %5264 = vst.msk [vmem:[#allocation3 + $0xb8] sm:$0xff] %vm1023, %v5254
        %v5265 = vld [vmem:[#allocation2 + $0x180] sm:$0xff]
        %v5266 = vld [vmem:[#allocation2 + $0x198] sm:$0xff]
        %v5267 = vld [vmem:[#allocation2 + $0x1b0] sm:$0xff]
        %v5268 = vld [vmem:[#allocation2 + $0x1c8] sm:$0xff]
        %v5269 = vld [vmem:[#allocation2 + $0x1e0] sm:$0xff]
        %v5270 = vld [vmem:[#allocation2 + $0x1f8] sm:$0xff]
        %v5271 = vld [vmem:[#allocation2 + $0x210] sm:$0xff]
        %v5272 = vld [vmem:[#allocation2 + $0x228] sm:$0xff]
        %v5273 = vld [vmem:[#allocation2 + $0x188] sm:$0xff]
        %v5274 = vld [vmem:[#allocation2 + $0x1a0] sm:$0xff]
        %v5275 = vld [vmem:[#allocation2 + $0x1b8] sm:$0xff]
        %v5276 = vld [vmem:[#allocation2 + $0x1d0] sm:$0xff]
        %v5277 = vld [vmem:[#allocation2 + $0x1e8] sm:$0xff]
        %v5278 = vld [vmem:[#allocation2 + $0x200] sm:$0xff]
        %v5279 = vld [vmem:[#allocation2 + $0x218] sm:$0xff]
        %v5280 = vld [vmem:[#allocation2 + $0x230] sm:$0xff]
        %v5281 = vld [vmem:[#allocation2 + $0x190] sm:$0xff]
        %v5282 = vld [vmem:[#allocation2 + $0x1a8] sm:$0xff]
        %v5283 = vld [vmem:[#allocation2 + $0x1c0] sm:$0xff]
        %v5284 = vld [vmem:[#allocation2 + $0x1d8] sm:$0xff]
        %v5285 = vld [vmem:[#allocation2 + $0x1f0] sm:$0xff]
        %v5286 = vld [vmem:[#allocation2 + $0x208] sm:$0xff]
        %v5287 = vld [vmem:[#allocation2 + $0x220] sm:$0xff]
        %v5288 = vld [vmem:[#allocation2 + $0x238] sm:$0xff]
        %v5289 = vld [vmem:[%s1427] sm:$0xff]
        %v5290 = vld [vmem:[%s1427 + $0x8] sm:$0xff]
        %v5291 = vld [vmem:[%s1427 + $0x10] sm:$0xff]
        %v5292 = vld [vmem:[%s1427 + $0x18] sm:$0xff]
        %v5293 = vld [vmem:[%s1427 + $0x20] sm:$0xff]
        %v5294 = vld [vmem:[%s1427 + $0x28] sm:$0xff]
        %v5295 = vld [vmem:[%s1427 + $0x30] sm:$0xff]
        %v5296 = vld [vmem:[%s1427 + $0x38] sm:$0xff]
        %5305 = vrot.lane.b32.xlu0 %v5265, 96
        %v5306 = vpop.permute.xlu0 %5305
        %5307 = vrot.lane.b32.xlu0 %v5266, 96
        %v5308 = vpop.permute.xlu0 %5307
        %5309 = vrot.lane.b32.xlu0 %v5267, 96
        %v5310 = vpop.permute.xlu0 %5309
        %5311 = vrot.lane.b32.xlu0 %v5268, 96
        %v5312 = vpop.permute.xlu0 %5311
        %5313 = vrot.lane.b32.xlu0 %v5269, 96
        %v5314 = vpop.permute.xlu0 %5313
        %5315 = vrot.lane.b32.xlu0 %v5270, 96
        %v5316 = vpop.permute.xlu0 %5315
        %5317 = vrot.lane.b32.xlu0 %v5271, 96
        %v5318 = vpop.permute.xlu0 %5317
        %5319 = vrot.lane.b32.xlu0 %v5272, 96
        %v5320 = vpop.permute.xlu0 %5319
        %5329 = vrot.lane.b32.xlu0 %v5273, 96
        %v5330 = vpop.permute.xlu0 %5329
        %5331 = vrot.lane.b32.xlu0 %v5274, 96
        %v5332 = vpop.permute.xlu0 %5331
        %5333 = vrot.lane.b32.xlu0 %v5275, 96
        %v5334 = vpop.permute.xlu0 %5333
        %5335 = vrot.lane.b32.xlu0 %v5276, 96
        %v5336 = vpop.permute.xlu0 %5335
        %5337 = vrot.lane.b32.xlu0 %v5277, 96
        %v5338 = vpop.permute.xlu0 %5337
        %5339 = vrot.lane.b32.xlu0 %v5278, 96
        %v5340 = vpop.permute.xlu0 %5339
        %5341 = vrot.lane.b32.xlu0 %v5279, 96
        %v5342 = vpop.permute.xlu0 %5341
        %5343 = vrot.lane.b32.xlu0 %v5280, 96
        %v5344 = vpop.permute.xlu0 %5343
        %v5345 = vsel %vm1023, %v5306, 0
        %v5347 = vsel %vm1023, %v5308, 0
        %v5349 = vsel %vm1023, %v5310, 0
        %v5351 = vsel %vm1023, %v5312, 0
        %v5353 = vsel %vm1023, %v5314, 0
        %v5355 = vsel %vm1023, %v5316, 0
        %v5357 = vsel %vm1023, %v5318, 0
        %v5359 = vsel %vm1023, %v5320, 0
        %v5361 = vsel %vm1023, %v5330, 0
        %v5363 = vsel %vm1023, %v5332, 0
        %v5365 = vsel %vm1023, %v5334, 0
        %v5367 = vsel %vm1023, %v5336, 0
        %v5369 = vsel %vm1023, %v5338, 0
        %v5371 = vsel %vm1023, %v5340, 0
        %v5373 = vsel %vm1023, %v5342, 0
        %v5375 = vsel %vm1023, %v5344, 0
        %5377 = vmatprep.subr.mxu0 0.0
        %5378 = vmatpush1.xpose.msra.mxu0 %v5361
        %5379 = vmatprep.subr.mxu0 0.0
        %5380 = vmatpush1.xpose.msra.mxu0 %v5363
        %5381 = vmatprep.subr.mxu0 0.0
        %5382 = vmatpush1.xpose.msra.mxu0 %v5365
        %5383 = vmatprep.subr.mxu0 0.0
        %5384 = vmatpush1.xpose.msra.mxu0 %v5367
        %5385 = vmatprep.subr.mxu0 0.0
        %5386 = vmatpush1.xpose.msra.mxu0 %v5369
        %5387 = vmatprep.subr.mxu0 0.0
        %5388 = vmatpush1.xpose.msra.mxu0 %v5371
        %5389 = vmatprep.subr.mxu0 0.0
        %5390 = vmatpush1.xpose.msra.mxu0 %v5373
        %5391 = vmatprep.subr.mxu0 0.0
        %5392 = vmatpush1.xpose.msra.mxu0 %v5375
        %5393 = vmatprep.subr.mxu0 0.0
        %5394 = vmatpush1.xpose.msra.mxu0 0.0
        %5395 = vmatprep.subr.mxu0 0.0
        %5396 = vmatpush1.xpose.msra.mxu0 0.0
        %5397 = vmatprep.subr.mxu0 0.0
        %5398 = vmatpush1.xpose.msra.mxu0 0.0
        %5399 = vmatprep.subr.mxu0 0.0
        %5400 = vmatpush1.xpose.msra.mxu0 0.0
        %5401 = vmatprep.subr.mxu0 0.0
        %5402 = vmatpush1.xpose.msra.mxu0 0.0
        %5403 = vmatprep.subr.mxu0 0.0
        %5404 = vmatpush1.xpose.msra.mxu0 0.0
        %5405 = vmatprep.subr.mxu0 0.0
        %5406 = vmatpush1.xpose.msra.mxu0 0.0
        %5407 = vmatprep.subr.mxu0 0.0
        %5408 = vmatpush1.xpose.msra.mxu0 0.0
        %5409 = vmatprep.subr.mxu0 0.0
        %5410 = vmatpush1.xpose.msra.mxu0 0.0
        %5411 = vmatprep.subr.mxu0 0.0
        %5412 = vmatpush1.xpose.msra.mxu0 0.0
        %5413 = vmatprep.subr.mxu0 0.0
        %5414 = vmatpush1.xpose.msra.mxu0 0.0
        %5415 = vmatprep.subr.mxu0 0.0
        %5416 = vmatpush1.xpose.msra.mxu0 0.0
        %5417 = vmatprep.subr.mxu0 0.0
        %5418 = vmatpush1.xpose.msra.mxu0 0.0
        %5419 = vmatprep.subr.mxu0 0.0
        %5420 = vmatpush1.xpose.msra.mxu0 0.0
        %5421 = vmatprep.subr.mxu0 0.0
        %5422 = vmatpush1.xpose.msra.mxu0 0.0
        %5423 = vmatprep.subr.mxu0 0.0
        %5424 = vmatpush1.xpose.msra.mxu0 0.0
        %5425 = vmatprep.subr.mxu0 0.0
        %5426 = vmatpush1.xpose.msra.mxu0 0.0
        %5427 = vmatprep.subr.mxu0 0.0
        %5428 = vmatpush1.xpose.msra.mxu0 0.0
        %5429 = vmatprep.subr.mxu0 0.0
        %5430 = vmatpush1.xpose.msra.mxu0 0.0
        %5431 = vmatprep.subr.mxu0 0.0
        %5432 = vmatpush1.xpose.msra.mxu0 0.0
        %5433 = vmatprep.subr.mxu0 0.0
        %5434 = vmatpush1.xpose.msra.mxu0 0.0
        %5435 = vmatprep.subr.mxu0 0.0
        %5436 = vmatpush1.xpose.msra.mxu0 0.0
        %5437 = vmatprep.subr.mxu0 0.0
        %5438 = vmatpush1.xpose.msra.mxu0 0.0
        %5439 = vmatprep.subr.mxu0 0.0
        %5440 = vmatpush1.xpose.msra.mxu0 0.0
        %5441 = vmatprep.mubr.f32.mxu0 0.0
        %5442 = vmatmul.mubr.f32.gmra.mrb[0].mxu0 %v5345
        %v5443 = vpop.f32.mrb[0].mxu0
        %v5444 = vadd.f32 %v5289, %v5443
        %v5445 = vpop.f32.mrb[0].mxu0
        %5446 = vmatprep.mubr.f32.mxu0 0.0
        %5447 = vmatmul.mubr.f32.gmra.mrb[0].mxu0 %v5347
        %v5448 = vpop.f32.mrb[0].mxu0
        %v5449 = vadd.f32 %v5290, %v5448
        %v5450 = vpop.f32.mrb[0].mxu0
        %5451 = vmatprep.mubr.f32.mxu0 0.0
        %5452 = vmatmul.mubr.f32.gmra.mrb[0].mxu0 %v5349
        %v5453 = vpop.f32.mrb[0].mxu0
        %v5454 = vadd.f32 %v5291, %v5453
        %v5455 = vpop.f32.mrb[0].mxu0
        %5456 = vmatprep.mubr.f32.mxu0 0.0
        %5457 = vmatmul.mubr.f32.gmra.mrb[0].mxu0 %v5351
        %v5458 = vpop.f32.mrb[0].mxu0
        %v5459 = vadd.f32 %v5292, %v5458
        %v5460 = vpop.f32.mrb[0].mxu0
        %5461 = vmatprep.mubr.f32.mxu0 0.0
        %5462 = vmatmul.mubr.f32.gmra.mrb[0].mxu0 %v5353
        %v5463 = vpop.f32.mrb[0].mxu0
        %v5464 = vadd.f32 %v5293, %v5463
        %v5465 = vpop.f32.mrb[0].mxu0
        %5466 = vmatprep.mubr.f32.mxu0 0.0
        %5467 = vmatmul.mubr.f32.gmra.mrb[0].mxu0 %v5355
        %v5468 = vpop.f32.mrb[0].mxu0
        %v5469 = vadd.f32 %v5294, %v5468
        %v5470 = vpop.f32.mrb[0].mxu0
        %5471 = vmatprep.mubr.f32.mxu0 0.0
        %5472 = vmatmul.mubr.f32.gmra.mrb[0].mxu0 %v5357
        %v5473 = vpop.f32.mrb[0].mxu0
        %v5474 = vadd.f32 %v5295, %v5473
        %v5475 = vpop.f32.mrb[0].mxu0
        %5476 = vmatprep.mubr.f32.mxu0 0.0
        %5477 = vmatmul.mubr.f32.gmra.mrb[0].mxu0 %v5359
        %v5478 = vpop.f32.mrb[0].mxu0
        %v5479 = vadd.f32 %v5296, %v5478
        %v5480 = vpop.f32.mrb[0].mxu0
        %5481 = vdwg.mxu0
        %v5482 = vsel %vm1177, %v5444, -inf
        %5483 = vmax.xlane.f32.xlu0 %v5482
        %v5484 = vpop.xlane.xlu0 %5483
        %v5485 = vsel %vm1177, %v5449, -inf
        %5486 = vmax.xlane.f32.xlu0 %v5485
        %v5487 = vpop.xlane.xlu0 %5486
        %v5488 = vsel %vm1177, %v5454, -inf
        %5489 = vmax.xlane.f32.xlu0 %v5488
        %v5490 = vpop.xlane.xlu0 %5489
        %v5491 = vsel %vm1177, %v5459, -inf
        %5492 = vmax.xlane.f32.xlu0 %v5491
        %v5493 = vpop.xlane.xlu0 %5492
        %v5494 = vsel %vm1177, %v5464, -inf
        %5495 = vmax.xlane.f32.xlu0 %v5494
        %v5496 = vpop.xlane.xlu0 %5495
        %v5497 = vsel %vm1177, %v5469, -inf
        %5498 = vmax.xlane.f32.xlu0 %v5497
        %v5499 = vpop.xlane.xlu0 %5498
        %v5500 = vsel %vm1177, %v5474, -inf
        %5501 = vmax.xlane.f32.xlu0 %v5500
        %v5502 = vpop.xlane.xlu0 %5501
        %v5503 = vsel %vm1177, %v5479, -inf
        %5504 = vmax.xlane.f32.xlu0 %v5503
        %v5505 = vpop.xlane.xlu0 %5504
        %v5506 = vsub.f32 %v5444, %v5484
        %v5507 = vsub.f32 %v5449, %v5487
        %v5508 = vsub.f32 %v5454, %v5490
        %v5509 = vsub.f32 %v5459, %v5493
        %v5510 = vsub.f32 %v5464, %v5496
        %v5511 = vsub.f32 %v5469, %v5499
        %v5512 = vsub.f32 %v5474, %v5502
        %v5513 = vsub.f32 %v5479, %v5505
        %v5514 = vmul.f32 %v5506, 1.442695
        %v5515 = vpow.pop %v5514
        %v5516 = vmul.f32 %v5507, 1.442695
        %v5517 = vpow.pop %v5516
        %v5518 = vmul.f32 %v5508, 1.442695
        %v5519 = vpow.pop %v5518
        %v5520 = vmul.f32 %v5509, 1.442695
        %v5521 = vpow.pop %v5520
        %v5522 = vmul.f32 %v5510, 1.442695
        %v5523 = vpow.pop %v5522
        %v5524 = vmul.f32 %v5511, 1.442695
        %v5525 = vpow.pop %v5524
        %v5526 = vmul.f32 %v5512, 1.442695
        %v5527 = vpow.pop %v5526
        %v5528 = vmul.f32 %v5513, 1.442695
        %v5529 = vpow.pop %v5528
        %v5530 = vsel %vm1177, %v5515, 0.0
        %5531 = vadd.xlane.f32.xlu0 %v5530
        %v5532 = vpop.xlane.xlu0 %5531
        %v5533 = vsel %vm1177, %v5517, 0.0
        %5534 = vadd.xlane.f32.xlu0 %v5533
        %v5535 = vpop.xlane.xlu0 %5534
        %v5536 = vsel %vm1177, %v5519, 0.0
        %5537 = vadd.xlane.f32.xlu0 %v5536
        %v5538 = vpop.xlane.xlu0 %5537
        %v5539 = vsel %vm1177, %v5521, 0.0
        %5540 = vadd.xlane.f32.xlu0 %v5539
        %v5541 = vpop.xlane.xlu0 %5540
        %v5542 = vsel %vm1177, %v5523, 0.0
        %5543 = vadd.xlane.f32.xlu0 %v5542
        %v5544 = vpop.xlane.xlu0 %5543
        %v5545 = vsel %vm1177, %v5525, 0.0
        %5546 = vadd.xlane.f32.xlu0 %v5545
        %v5547 = vpop.xlane.xlu0 %5546
        %v5548 = vsel %vm1177, %v5527, 0.0
        %5549 = vadd.xlane.f32.xlu0 %v5548
        %v5550 = vpop.xlane.xlu0 %5549
        %v5551 = vsel %vm1177, %v5529, 0.0
        %5552 = vadd.xlane.f32.xlu0 %v5551
        %v5553 = vpop.xlane.xlu0 %5552
        %v5554 = vrcp.pop %v5532
        %v5555 = vrcp.pop %v5535
        %v5556 = vrcp.pop %v5538
        %v5557 = vrcp.pop %v5541
        %v5558 = vrcp.pop %v5544
        %v5559 = vrcp.pop %v5547
        %v5560 = vrcp.pop %v5550
        %v5561 = vrcp.pop %v5553
        %v5562 = vmul.f32 %v5515, %v5554
        %v5563 = vmul.f32 %v5517, %v5555
        %v5564 = vmul.f32 %v5519, %v5556
        %v5565 = vmul.f32 %v5521, %v5557
        %v5566 = vmul.f32 %v5523, %v5558
        %v5567 = vmul.f32 %v5525, %v5559
        %v5568 = vmul.f32 %v5527, %v5560
        %v5569 = vmul.f32 %v5529, %v5561
        %5578 = vrot.lane.b32.xlu0 %v5281, 96
        %v5579 = vpop.permute.xlu0 %5578
        %5580 = vrot.lane.b32.xlu0 %v5282, 96
        %v5581 = vpop.permute.xlu0 %5580
        %5582 = vrot.lane.b32.xlu0 %v5283, 96
        %v5583 = vpop.permute.xlu0 %5582
        %5584 = vrot.lane.b32.xlu0 %v5284, 96
        %v5585 = vpop.permute.xlu0 %5584
        %5586 = vrot.lane.b32.xlu0 %v5285, 96
        %v5587 = vpop.permute.xlu0 %5586
        %5588 = vrot.lane.b32.xlu0 %v5286, 96
        %v5589 = vpop.permute.xlu0 %5588
        %5590 = vrot.lane.b32.xlu0 %v5287, 96
        %v5591 = vpop.permute.xlu0 %5590
        %5592 = vrot.lane.b32.xlu0 %v5288, 96
        %v5593 = vpop.permute.xlu0 %5592
        %v5603 = vsel %vm1177, %v5562, 0
        %v5606 = vsel %vm1177, %v5563, 0
        %v5609 = vsel %vm1177, %v5564, 0
        %v5612 = vsel %vm1177, %v5565, 0
        %v5615 = vsel %vm1177, %v5566, 0
        %v5618 = vsel %vm1177, %v5567, 0
        %v5621 = vsel %vm1177, %v5568, 0
        %v5624 = vsel %vm1177, %v5569, 0
        %5626 = vmatprep.subr.mxu0 0.0
        %5627 = vmatpush1.msra.mxu0 %v5579
        %5628 = vmatprep.subr.mxu0 0.0
        %5629 = vmatpush1.msra.mxu0 %v5581
        %5630 = vmatprep.subr.mxu0 0.0
        %5631 = vmatpush1.msra.mxu0 %v5583
        %5632 = vmatprep.subr.mxu0 0.0
        %5633 = vmatpush1.msra.mxu0 %v5585
        %5634 = vmatprep.subr.mxu0 0.0
        %5635 = vmatpush1.msra.mxu0 %v5587
        %5636 = vmatprep.subr.mxu0 0.0
        %5637 = vmatpush1.msra.mxu0 %v5589
        %5638 = vmatprep.subr.mxu0 0.0
        %5639 = vmatpush1.msra.mxu0 %v5591
        %5640 = vmatprep.subr.mxu0 0.0
        %5641 = vmatpush1.msra.mxu0 %v5593
        %5642 = vmatprep.subr.mxu0 0.0
        %5643 = vmatpush1.msra.mxu0 0.0
        %5644 = vmatprep.subr.mxu0 0.0
        %5645 = vmatpush1.msra.mxu0 0.0
        %5646 = vmatprep.subr.mxu0 0.0
        %5647 = vmatpush1.msra.mxu0 0.0
        %5648 = vmatprep.subr.mxu0 0.0
        %5649 = vmatpush1.msra.mxu0 0.0
        %5650 = vmatprep.subr.mxu0 0.0
        %5651 = vmatpush1.msra.mxu0 0.0
        %5652 = vmatprep.subr.mxu0 0.0
        %5653 = vmatpush1.msra.mxu0 0.0
        %5654 = vmatprep.subr.mxu0 0.0
        %5655 = vmatpush1.msra.mxu0 0.0
        %5656 = vmatprep.subr.mxu0 0.0
        %5657 = vmatpush1.msra.mxu0 0.0
        %5658 = vmatprep.subr.mxu0 0.0
        %5659 = vmatpush1.msra.mxu0 0.0
        %5660 = vmatprep.subr.mxu0 0.0
        %5661 = vmatpush1.msra.mxu0 0.0
        %5662 = vmatprep.subr.mxu0 0.0
        %5663 = vmatpush1.msra.mxu0 0.0
        %5664 = vmatprep.subr.mxu0 0.0
        %5665 = vmatpush1.msra.mxu0 0.0
        %5666 = vmatprep.subr.mxu0 0.0
        %5667 = vmatpush1.msra.mxu0 0.0
        %5668 = vmatprep.subr.mxu0 0.0
        %5669 = vmatpush1.msra.mxu0 0.0
        %5670 = vmatprep.subr.mxu0 0.0
        %5671 = vmatpush1.msra.mxu0 0.0
        %5672 = vmatprep.subr.mxu0 0.0
        %5673 = vmatpush1.msra.mxu0 0.0
        %5674 = vmatprep.subr.mxu0 0.0
        %5675 = vmatpush1.msra.mxu0 0.0
        %5676 = vmatprep.subr.mxu0 0.0
        %5677 = vmatpush1.msra.mxu0 0.0
        %5678 = vmatprep.subr.mxu0 0.0
        %5679 = vmatpush1.msra.mxu0 0.0
        %5680 = vmatprep.subr.mxu0 0.0
        %5681 = vmatpush1.msra.mxu0 0.0
        %5682 = vmatprep.subr.mxu0 0.0
        %5683 = vmatpush1.msra.mxu0 0.0
        %5684 = vmatprep.subr.mxu0 0.0
        %5685 = vmatpush1.msra.mxu0 0.0
        %5686 = vmatprep.subr.mxu0 0.0
        %5687 = vmatpush1.msra.mxu0 0.0
        %5688 = vmatprep.subr.mxu0 0.0
        %5689 = vmatpush1.msra.mxu0 0.0
        %5690 = vmatprep.mubr.f32.mxu0 0.0
        %5691 = vmatmul.mubr.f32.gmra.mrb[0].mxu0 %v5603
        %v5692 = vpop.f32.mrb[0].mxu0
        %v5693 = vadd.f32 0.0, %v5692
        %v5694 = vpop.f32.mrb[0].mxu0
        %5695 = vmatprep.mubr.f32.mxu0 0.0
        %5696 = vmatmul.mubr.f32.gmra.mrb[0].mxu0 %v5606
        %v5697 = vpop.f32.mrb[0].mxu0
        %v5698 = vadd.f32 0.0, %v5697
        %v5699 = vpop.f32.mrb[0].mxu0
        %5700 = vmatprep.mubr.f32.mxu0 0.0
        %5701 = vmatmul.mubr.f32.gmra.mrb[0].mxu0 %v5609
        %v5702 = vpop.f32.mrb[0].mxu0
        %v5703 = vadd.f32 0.0, %v5702
        %v5704 = vpop.f32.mrb[0].mxu0
        %5705 = vmatprep.mubr.f32.mxu0 0.0
        %5706 = vmatmul.mubr.f32.gmra.mrb[0].mxu0 %v5612
        %v5707 = vpop.f32.mrb[0].mxu0
        %v5708 = vadd.f32 0.0, %v5707
        %v5709 = vpop.f32.mrb[0].mxu0
        %5710 = vmatprep.mubr.f32.mxu0 0.0
        %5711 = vmatmul.mubr.f32.gmra.mrb[0].mxu0 %v5615
        %v5712 = vpop.f32.mrb[0].mxu0
        %v5713 = vadd.f32 0.0, %v5712
        %v5714 = vpop.f32.mrb[0].mxu0
        %5715 = vmatprep.mubr.f32.mxu0 0.0
        %5716 = vmatmul.mubr.f32.gmra.mrb[0].mxu0 %v5618
        %v5717 = vpop.f32.mrb[0].mxu0
        %v5718 = vadd.f32 0.0, %v5717
        %v5719 = vpop.f32.mrb[0].mxu0
        %5720 = vmatprep.mubr.f32.mxu0 0.0
        %5721 = vmatmul.mubr.f32.gmra.mrb[0].mxu0 %v5621
        %v5722 = vpop.f32.mrb[0].mxu0
        %v5723 = vadd.f32 0.0, %v5722
        %v5724 = vpop.f32.mrb[0].mxu0
        %5725 = vmatprep.mubr.f32.mxu0 0.0
        %5726 = vmatmul.mubr.f32.gmra.mrb[0].mxu0 %v5624
        %v5727 = vpop.f32.mrb[0].mxu0
        %v5728 = vadd.f32 0.0, %v5727
        %v5729 = vpop.f32.mrb[0].mxu0
        %5730 = vdwg.mxu0
        %5739 = vrot.lane.b32.xlu0 %v5693, 32
        %v5740 = vpop.permute.xlu0 %5739
        %5741 = vrot.lane.b32.xlu0 %v5698, 32
        %v5742 = vpop.permute.xlu0 %5741
        %5743 = vrot.lane.b32.xlu0 %v5703, 32
        %v5744 = vpop.permute.xlu0 %5743
        %5745 = vrot.lane.b32.xlu0 %v5708, 32
        %v5746 = vpop.permute.xlu0 %5745
        %5747 = vrot.lane.b32.xlu0 %v5713, 32
        %v5748 = vpop.permute.xlu0 %5747
        %5749 = vrot.lane.b32.xlu0 %v5718, 32
        %v5750 = vpop.permute.xlu0 %5749
        %5751 = vrot.lane.b32.xlu0 %v5723, 32
        %v5752 = vpop.permute.xlu0 %5751
        %5753 = vrot.lane.b32.xlu0 %v5728, 32
        %v5754 = vpop.permute.xlu0 %5753
        %5763 = vst.msk [vmem:[#allocation3 + $0x80] sm:$0xff] %vm1902, %v5740
        %5764 = vst.msk [vmem:[#allocation3 + $0x88] sm:$0xff] %vm1902, %v5742
        %5765 = vst.msk [vmem:[#allocation3 + $0x90] sm:$0xff] %vm1902, %v5744
        %5766 = vst.msk [vmem:[#allocation3 + $0x98] sm:$0xff] %vm1902, %v5746
        %5767 = vst.msk [vmem:[#allocation3 + $0xa0] sm:$0xff] %vm1902, %v5748
        %5768 = vst.msk [vmem:[#allocation3 + $0xa8] sm:$0xff] %vm1902, %v5750
        %5769 = vst.msk [vmem:[#allocation3 + $0xb0] sm:$0xff] %vm1902, %v5752
        %5770 = vst.msk [vmem:[#allocation3 + $0xb8] sm:$0xff] %vm1902, %v5754
        %v5771 = vld [vmem:[#allocation2 + $0x180] sm:$0xff]
        %v5772 = vld [vmem:[#allocation2 + $0x198] sm:$0xff]
        %v5773 = vld [vmem:[#allocation2 + $0x1b0] sm:$0xff]
        %v5774 = vld [vmem:[#allocation2 + $0x1c8] sm:$0xff]
        %v5775 = vld [vmem:[#allocation2 + $0x1e0] sm:$0xff]
        %v5776 = vld [vmem:[#allocation2 + $0x1f8] sm:$0xff]
        %v5777 = vld [vmem:[#allocation2 + $0x210] sm:$0xff]
        %v5778 = vld [vmem:[#allocation2 + $0x228] sm:$0xff]
        %v5779 = vld [vmem:[#allocation2 + $0x188] sm:$0xff]
        %v5780 = vld [vmem:[#allocation2 + $0x1a0] sm:$0xff]
        %v5781 = vld [vmem:[#allocation2 + $0x1b8] sm:$0xff]
        %v5782 = vld [vmem:[#allocation2 + $0x1d0] sm:$0xff]
        %v5783 = vld [vmem:[#allocation2 + $0x1e8] sm:$0xff]
        %v5784 = vld [vmem:[#allocation2 + $0x200] sm:$0xff]
        %v5785 = vld [vmem:[#allocation2 + $0x218] sm:$0xff]
        %v5786 = vld [vmem:[#allocation2 + $0x230] sm:$0xff]
        %v5787 = vld [vmem:[#allocation2 + $0x190] sm:$0xff]
        %v5788 = vld [vmem:[#allocation2 + $0x1a8] sm:$0xff]
        %v5789 = vld [vmem:[#allocation2 + $0x1c0] sm:$0xff]
        %v5790 = vld [vmem:[#allocation2 + $0x1d8] sm:$0xff]
        %v5791 = vld [vmem:[#allocation2 + $0x1f0] sm:$0xff]
        %v5792 = vld [vmem:[#allocation2 + $0x208] sm:$0xff]
        %v5793 = vld [vmem:[#allocation2 + $0x220] sm:$0xff]
        %v5794 = vld [vmem:[#allocation2 + $0x238] sm:$0xff]
        %v5795 = vld [vmem:[%s1935] sm:$0xff]
        %v5796 = vld [vmem:[%s1935 + $0x8] sm:$0xff]
        %v5797 = vld [vmem:[%s1935 + $0x10] sm:$0xff]
        %v5798 = vld [vmem:[%s1935 + $0x18] sm:$0xff]
        %v5799 = vld [vmem:[%s1935 + $0x20] sm:$0xff]
        %v5800 = vld [vmem:[%s1935 + $0x28] sm:$0xff]
        %v5801 = vld [vmem:[%s1935 + $0x30] sm:$0xff]
        %v5802 = vld [vmem:[%s1935 + $0x38] sm:$0xff]
        %5811 = vrot.lane.b32.xlu0 %v5771, 64
        %v5812 = vpop.permute.xlu0 %5811
        %5813 = vrot.lane.b32.xlu0 %v5772, 64
        %v5814 = vpop.permute.xlu0 %5813
        %5815 = vrot.lane.b32.xlu0 %v5773, 64
        %v5816 = vpop.permute.xlu0 %5815
        %5817 = vrot.lane.b32.xlu0 %v5774, 64
        %v5818 = vpop.permute.xlu0 %5817
        %5819 = vrot.lane.b32.xlu0 %v5775, 64
        %v5820 = vpop.permute.xlu0 %5819
        %5821 = vrot.lane.b32.xlu0 %v5776, 64
        %v5822 = vpop.permute.xlu0 %5821
        %5823 = vrot.lane.b32.xlu0 %v5777, 64
        %v5824 = vpop.permute.xlu0 %5823
        %5825 = vrot.lane.b32.xlu0 %v5778, 64
        %v5826 = vpop.permute.xlu0 %5825
        %5835 = vrot.lane.b32.xlu0 %v5779, 64
        %v5836 = vpop.permute.xlu0 %5835
        %5837 = vrot.lane.b32.xlu0 %v5780, 64
        %v5838 = vpop.permute.xlu0 %5837
        %5839 = vrot.lane.b32.xlu0 %v5781, 64
        %v5840 = vpop.permute.xlu0 %5839
        %5841 = vrot.lane.b32.xlu0 %v5782, 64
        %v5842 = vpop.permute.xlu0 %5841
        %5843 = vrot.lane.b32.xlu0 %v5783, 64
        %v5844 = vpop.permute.xlu0 %5843
        %5845 = vrot.lane.b32.xlu0 %v5784, 64
        %v5846 = vpop.permute.xlu0 %5845
        %5847 = vrot.lane.b32.xlu0 %v5785, 64
        %v5848 = vpop.permute.xlu0 %5847
        %5849 = vrot.lane.b32.xlu0 %v5786, 64
        %v5850 = vpop.permute.xlu0 %5849
        %v5851 = vsel %vm1023, %v5812, 0
        %v5853 = vsel %vm1023, %v5814, 0
        %v5855 = vsel %vm1023, %v5816, 0
        %v5857 = vsel %vm1023, %v5818, 0
        %v5859 = vsel %vm1023, %v5820, 0
        %v5861 = vsel %vm1023, %v5822, 0
        %v5863 = vsel %vm1023, %v5824, 0
        %v5865 = vsel %vm1023, %v5826, 0
        %v5867 = vsel %vm1023, %v5836, 0
        %v5869 = vsel %vm1023, %v5838, 0
        %v5871 = vsel %vm1023, %v5840, 0
        %v5873 = vsel %vm1023, %v5842, 0
        %v5875 = vsel %vm1023, %v5844, 0
        %v5877 = vsel %vm1023, %v5846, 0
        %v5879 = vsel %vm1023, %v5848, 0
        %v5881 = vsel %vm1023, %v5850, 0
        %5883 = vmatprep.subr.mxu0 0.0
        %5884 = vmatpush1.xpose.msra.mxu0 %v5867
        %5885 = vmatprep.subr.mxu0 0.0
        %5886 = vmatpush1.xpose.msra.mxu0 %v5869
        %5887 = vmatprep.subr.mxu0 0.0
        %5888 = vmatpush1.xpose.msra.mxu0 %v5871
        %5889 = vmatprep.subr.mxu0 0.0
        %5890 = vmatpush1.xpose.msra.mxu0 %v5873
        %5891 = vmatprep.subr.mxu0 0.0
        %5892 = vmatpush1.xpose.msra.mxu0 %v5875
        %5893 = vmatprep.subr.mxu0 0.0
        %5894 = vmatpush1.xpose.msra.mxu0 %v5877
        %5895 = vmatprep.subr.mxu0 0.0
        %5896 = vmatpush1.xpose.msra.mxu0 %v5879
        %5897 = vmatprep.subr.mxu0 0.0
        %5898 = vmatpush1.xpose.msra.mxu0 %v5881
        %5899 = vmatprep.subr.mxu0 0.0
        %5900 = vmatpush1.xpose.msra.mxu0 0.0
        %5901 = vmatprep.subr.mxu0 0.0
        %5902 = vmatpush1.xpose.msra.mxu0 0.0
        %5903 = vmatprep.subr.mxu0 0.0
        %5904 = vmatpush1.xpose.msra.mxu0 0.0
        %5905 = vmatprep.subr.mxu0 0.0
        %5906 = vmatpush1.xpose.msra.mxu0 0.0
        %5907 = vmatprep.subr.mxu0 0.0
        %5908 = vmatpush1.xpose.msra.mxu0 0.0
        %5909 = vmatprep.subr.mxu0 0.0
        %5910 = vmatpush1.xpose.msra.mxu0 0.0
        %5911 = vmatprep.subr.mxu0 0.0
        %5912 = vmatpush1.xpose.msra.mxu0 0.0
        %5913 = vmatprep.subr.mxu0 0.0
        %5914 = vmatpush1.xpose.msra.mxu0 0.0
        %5915 = vmatprep.subr.mxu0 0.0
        %5916 = vmatpush1.xpose.msra.mxu0 0.0
        %5917 = vmatprep.subr.mxu0 0.0
        %5918 = vmatpush1.xpose.msra.mxu0 0.0
        %5919 = vmatprep.subr.mxu0 0.0
        %5920 = vmatpush1.xpose.msra.mxu0 0.0
        %5921 = vmatprep.subr.mxu0 0.0
        %5922 = vmatpush1.xpose.msra.mxu0 0.0
        %5923 = vmatprep.subr.mxu0 0.0
        %5924 = vmatpush1.xpose.msra.mxu0 0.0
        %5925 = vmatprep.subr.mxu0 0.0
        %5926 = vmatpush1.xpose.msra.mxu0 0.0
        %5927 = vmatprep.subr.mxu0 0.0
        %5928 = vmatpush1.xpose.msra.mxu0 0.0
        %5929 = vmatprep.subr.mxu0 0.0
        %5930 = vmatpush1.xpose.msra.mxu0 0.0
        %5931 = vmatprep.subr.mxu0 0.0
        %5932 = vmatpush1.xpose.msra.mxu0 0.0
        %5933 = vmatprep.subr.mxu0 0.0
        %5934 = vmatpush1.xpose.msra.mxu0 0.0
        %5935 = vmatprep.subr.mxu0 0.0
        %5936 = vmatpush1.xpose.msra.mxu0 0.0
        %5937 = vmatprep.subr.mxu0 0.0
        %5938 = vmatpush1.xpose.msra.mxu0 0.0
        %5939 = vmatprep.subr.mxu0 0.0
        %5940 = vmatpush1.xpose.msra.mxu0 0.0
        %5941 = vmatprep.subr.mxu0 0.0
        %5942 = vmatpush1.xpose.msra.mxu0 0.0
        %5943 = vmatprep.subr.mxu0 0.0
        %5944 = vmatpush1.xpose.msra.mxu0 0.0
        %5945 = vmatprep.subr.mxu0 0.0
        %5946 = vmatpush1.xpose.msra.mxu0 0.0
        %5947 = vmatprep.mubr.f32.mxu0 0.0
        %5948 = vmatmul.mubr.f32.gmra.mrb[0].mxu0 %v5851
        %v5949 = vpop.f32.mrb[0].mxu0
        %v5950 = vadd.f32 %v5795, %v5949
        %v5951 = vpop.f32.mrb[0].mxu0
        %5952 = vmatprep.mubr.f32.mxu0 0.0
        %5953 = vmatmul.mubr.f32.gmra.mrb[0].mxu0 %v5853
        %v5954 = vpop.f32.mrb[0].mxu0
        %v5955 = vadd.f32 %v5796, %v5954
        %v5956 = vpop.f32.mrb[0].mxu0
        %5957 = vmatprep.mubr.f32.mxu0 0.0
        %5958 = vmatmul.mubr.f32.gmra.mrb[0].mxu0 %v5855
        %v5959 = vpop.f32.mrb[0].mxu0
        %v5960 = vadd.f32 %v5797, %v5959
        %v5961 = vpop.f32.mrb[0].mxu0
        %5962 = vmatprep.mubr.f32.mxu0 0.0
        %5963 = vmatmul.mubr.f32.gmra.mrb[0].mxu0 %v5857
        %v5964 = vpop.f32.mrb[0].mxu0
        %v5965 = vadd.f32 %v5798, %v5964
        %v5966 = vpop.f32.mrb[0].mxu0
        %5967 = vmatprep.mubr.f32.mxu0 0.0
        %5968 = vmatmul.mubr.f32.gmra.mrb[0].mxu0 %v5859
        %v5969 = vpop.f32.mrb[0].mxu0
        %v5970 = vadd.f32 %v5799, %v5969
        %v5971 = vpop.f32.mrb[0].mxu0
        %5972 = vmatprep.mubr.f32.mxu0 0.0
        %5973 = vmatmul.mubr.f32.gmra.mrb[0].mxu0 %v5861
        %v5974 = vpop.f32.mrb[0].mxu0
        %v5975 = vadd.f32 %v5800, %v5974
        %v5976 = vpop.f32.mrb[0].mxu0
        %5977 = vmatprep.mubr.f32.mxu0 0.0
        %5978 = vmatmul.mubr.f32.gmra.mrb[0].mxu0 %v5863
        %v5979 = vpop.f32.mrb[0].mxu0
        %v5980 = vadd.f32 %v5801, %v5979
        %v5981 = vpop.f32.mrb[0].mxu0
        %5982 = vmatprep.mubr.f32.mxu0 0.0
        %5983 = vmatmul.mubr.f32.gmra.mrb[0].mxu0 %v5865
        %v5984 = vpop.f32.mrb[0].mxu0
        %v5985 = vadd.f32 %v5802, %v5984
        %v5986 = vpop.f32.mrb[0].mxu0
        %5987 = vdwg.mxu0
        %v5988 = vsel %vm1177, %v5950, -inf
        %5989 = vmax.xlane.f32.xlu0 %v5988
        %v5990 = vpop.xlane.xlu0 %5989
        %v5991 = vsel %vm1177, %v5955, -inf
        %5992 = vmax.xlane.f32.xlu0 %v5991
        %v5993 = vpop.xlane.xlu0 %5992
        %v5994 = vsel %vm1177, %v5960, -inf
        %5995 = vmax.xlane.f32.xlu0 %v5994
        %v5996 = vpop.xlane.xlu0 %5995
        %v5997 = vsel %vm1177, %v5965, -inf
        %5998 = vmax.xlane.f32.xlu0 %v5997
        %v5999 = vpop.xlane.xlu0 %5998
        %v6000 = vsel %vm1177, %v5970, -inf
        %6001 = vmax.xlane.f32.xlu0 %v6000
        %v6002 = vpop.xlane.xlu0 %6001
        %v6003 = vsel %vm1177, %v5975, -inf
        %6004 = vmax.xlane.f32.xlu0 %v6003
        %v6005 = vpop.xlane.xlu0 %6004
        %v6006 = vsel %vm1177, %v5980, -inf
        %6007 = vmax.xlane.f32.xlu0 %v6006
        %v6008 = vpop.xlane.xlu0 %6007
        %v6009 = vsel %vm1177, %v5985, -inf
        %6010 = vmax.xlane.f32.xlu0 %v6009
        %v6011 = vpop.xlane.xlu0 %6010
        %v6012 = vsub.f32 %v5950, %v5990
        %v6013 = vsub.f32 %v5955, %v5993
        %v6014 = vsub.f32 %v5960, %v5996
        %v6015 = vsub.f32 %v5965, %v5999
        %v6016 = vsub.f32 %v5970, %v6002
        %v6017 = vsub.f32 %v5975, %v6005
        %v6018 = vsub.f32 %v5980, %v6008
        %v6019 = vsub.f32 %v5985, %v6011
        %v6020 = vmul.f32 %v6012, 1.442695
        %v6021 = vpow.pop %v6020
        %v6022 = vmul.f32 %v6013, 1.442695
        %v6023 = vpow.pop %v6022
        %v6024 = vmul.f32 %v6014, 1.442695
        %v6025 = vpow.pop %v6024
        %v6026 = vmul.f32 %v6015, 1.442695
        %v6027 = vpow.pop %v6026
        %v6028 = vmul.f32 %v6016, 1.442695
        %v6029 = vpow.pop %v6028
        %v6030 = vmul.f32 %v6017, 1.442695
        %v6031 = vpow.pop %v6030
        %v6032 = vmul.f32 %v6018, 1.442695
        %v6033 = vpow.pop %v6032
        %v6034 = vmul.f32 %v6019, 1.442695
        %v6035 = vpow.pop %v6034
        %v6036 = vsel %vm1177, %v6021, 0.0
        %6037 = vadd.xlane.f32.xlu0 %v6036
        %v6038 = vpop.xlane.xlu0 %6037
        %v6039 = vsel %vm1177, %v6023, 0.0
        %6040 = vadd.xlane.f32.xlu0 %v6039
        %v6041 = vpop.xlane.xlu0 %6040
        %v6042 = vsel %vm1177, %v6025, 0.0
        %6043 = vadd.xlane.f32.xlu0 %v6042
        %v6044 = vpop.xlane.xlu0 %6043
        %v6045 = vsel %vm1177, %v6027, 0.0
        %6046 = vadd.xlane.f32.xlu0 %v6045
        %v6047 = vpop.xlane.xlu0 %6046
        %v6048 = vsel %vm1177, %v6029, 0.0
        %6049 = vadd.xlane.f32.xlu0 %v6048
        %v6050 = vpop.xlane.xlu0 %6049
        %v6051 = vsel %vm1177, %v6031, 0.0
        %6052 = vadd.xlane.f32.xlu0 %v6051
        %v6053 = vpop.xlane.xlu0 %6052
        %v6054 = vsel %vm1177, %v6033, 0.0
        %6055 = vadd.xlane.f32.xlu0 %v6054
        %v6056 = vpop.xlane.xlu0 %6055
        %v6057 = vsel %vm1177, %v6035, 0.0
        %6058 = vadd.xlane.f32.xlu0 %v6057
        %v6059 = vpop.xlane.xlu0 %6058
        %v6060 = vrcp.pop %v6038
        %v6061 = vrcp.pop %v6041
        %v6062 = vrcp.pop %v6044
        %v6063 = vrcp.pop %v6047
        %v6064 = vrcp.pop %v6050
        %v6065 = vrcp.pop %v6053
        %v6066 = vrcp.pop %v6056
        %v6067 = vrcp.pop %v6059
        %v6068 = vmul.f32 %v6021, %v6060
        %v6069 = vmul.f32 %v6023, %v6061
        %v6070 = vmul.f32 %v6025, %v6062
        %v6071 = vmul.f32 %v6027, %v6063
        %v6072 = vmul.f32 %v6029, %v6064
        %v6073 = vmul.f32 %v6031, %v6065
        %v6074 = vmul.f32 %v6033, %v6066
        %v6075 = vmul.f32 %v6035, %v6067
        %6084 = vrot.lane.b32.xlu0 %v5787, 64
        %v6085 = vpop.permute.xlu0 %6084
        %6086 = vrot.lane.b32.xlu0 %v5788, 64
        %v6087 = vpop.permute.xlu0 %6086
        %6088 = vrot.lane.b32.xlu0 %v5789, 64
        %v6089 = vpop.permute.xlu0 %6088
        %6090 = vrot.lane.b32.xlu0 %v5790, 64
        %v6091 = vpop.permute.xlu0 %6090
        %6092 = vrot.lane.b32.xlu0 %v5791, 64
        %v6093 = vpop.permute.xlu0 %6092
        %6094 = vrot.lane.b32.xlu0 %v5792, 64
        %v6095 = vpop.permute.xlu0 %6094
        %6096 = vrot.lane.b32.xlu0 %v5793, 64
        %v6097 = vpop.permute.xlu0 %6096
        %6098 = vrot.lane.b32.xlu0 %v5794, 64
        %v6099 = vpop.permute.xlu0 %6098
        %v6109 = vsel %vm1177, %v6068, 0
        %v6112 = vsel %vm1177, %v6069, 0
        %v6115 = vsel %vm1177, %v6070, 0
        %v6118 = vsel %vm1177, %v6071, 0
        %v6121 = vsel %vm1177, %v6072, 0
        %v6124 = vsel %vm1177, %v6073, 0
        %v6127 = vsel %vm1177, %v6074, 0
        %v6130 = vsel %vm1177, %v6075, 0
        %6132 = vmatprep.subr.mxu0 0.0
        %6133 = vmatpush1.msra.mxu0 %v6085
        %6134 = vmatprep.subr.mxu0 0.0
        %6135 = vmatpush1.msra.mxu0 %v6087
        %6136 = vmatprep.subr.mxu0 0.0
        %6137 = vmatpush1.msra.mxu0 %v6089
        %6138 = vmatprep.subr.mxu0 0.0
        %6139 = vmatpush1.msra.mxu0 %v6091
        %6140 = vmatprep.subr.mxu0 0.0
        %6141 = vmatpush1.msra.mxu0 %v6093
        %6142 = vmatprep.subr.mxu0 0.0
        %6143 = vmatpush1.msra.mxu0 %v6095
        %6144 = vmatprep.subr.mxu0 0.0
        %6145 = vmatpush1.msra.mxu0 %v6097
        %6146 = vmatprep.subr.mxu0 0.0
        %6147 = vmatpush1.msra.mxu0 %v6099
        %6148 = vmatprep.subr.mxu0 0.0
        %6149 = vmatpush1.msra.mxu0 0.0
        %6150 = vmatprep.subr.mxu0 0.0
        %6151 = vmatpush1.msra.mxu0 0.0
        %6152 = vmatprep.subr.mxu0 0.0
        %6153 = vmatpush1.msra.mxu0 0.0
        %6154 = vmatprep.subr.mxu0 0.0
        %6155 = vmatpush1.msra.mxu0 0.0
        %6156 = vmatprep.subr.mxu0 0.0
        %6157 = vmatpush1.msra.mxu0 0.0
        %6158 = vmatprep.subr.mxu0 0.0
        %6159 = vmatpush1.msra.mxu0 0.0
        %6160 = vmatprep.subr.mxu0 0.0
        %6161 = vmatpush1.msra.mxu0 0.0
        %6162 = vmatprep.subr.mxu0 0.0
        %6163 = vmatpush1.msra.mxu0 0.0
        %6164 = vmatprep.subr.mxu0 0.0
        %6165 = vmatpush1.msra.mxu0 0.0
        %6166 = vmatprep.subr.mxu0 0.0
        %6167 = vmatpush1.msra.mxu0 0.0
        %6168 = vmatprep.subr.mxu0 0.0
        %6169 = vmatpush1.msra.mxu0 0.0
        %6170 = vmatprep.subr.mxu0 0.0
        %6171 = vmatpush1.msra.mxu0 0.0
        %6172 = vmatprep.subr.mxu0 0.0
        %6173 = vmatpush1.msra.mxu0 0.0
        %6174 = vmatprep.subr.mxu0 0.0
        %6175 = vmatpush1.msra.mxu0 0.0
        %6176 = vmatprep.subr.mxu0 0.0
        %6177 = vmatpush1.msra.mxu0 0.0
        %6178 = vmatprep.subr.mxu0 0.0
        %6179 = vmatpush1.msra.mxu0 0.0
        %6180 = vmatprep.subr.mxu0 0.0
        %6181 = vmatpush1.msra.mxu0 0.0
        %6182 = vmatprep.subr.mxu0 0.0
        %6183 = vmatpush1.msra.mxu0 0.0
        %6184 = vmatprep.subr.mxu0 0.0
        %6185 = vmatpush1.msra.mxu0 0.0
        %6186 = vmatprep.subr.mxu0 0.0
        %6187 = vmatpush1.msra.mxu0 0.0
        %6188 = vmatprep.subr.mxu0 0.0
        %6189 = vmatpush1.msra.mxu0 0.0
        %6190 = vmatprep.subr.mxu0 0.0
        %6191 = vmatpush1.msra.mxu0 0.0
        %6192 = vmatprep.subr.mxu0 0.0
        %6193 = vmatpush1.msra.mxu0 0.0
        %6194 = vmatprep.subr.mxu0 0.0
        %6195 = vmatpush1.msra.mxu0 0.0
        %6196 = vmatprep.mubr.f32.mxu0 0.0
        %6197 = vmatmul.mubr.f32.gmra.mrb[0].mxu0 %v6109
        %v6198 = vpop.f32.mrb[0].mxu0
        %v6199 = vadd.f32 0.0, %v6198
        %v6200 = vpop.f32.mrb[0].mxu0
        %6201 = vmatprep.mubr.f32.mxu0 0.0
        %6202 = vmatmul.mubr.f32.gmra.mrb[0].mxu0 %v6112
        %v6203 = vpop.f32.mrb[0].mxu0
        %v6204 = vadd.f32 0.0, %v6203
        %v6205 = vpop.f32.mrb[0].mxu0
        %6206 = vmatprep.mubr.f32.mxu0 0.0
        %6207 = vmatmul.mubr.f32.gmra.mrb[0].mxu0 %v6115
        %v6208 = vpop.f32.mrb[0].mxu0
        %v6209 = vadd.f32 0.0, %v6208
        %v6210 = vpop.f32.mrb[0].mxu0
        %6211 = vmatprep.mubr.f32.mxu0 0.0
        %6212 = vmatmul.mubr.f32.gmra.mrb[0].mxu0 %v6118
        %v6213 = vpop.f32.mrb[0].mxu0
        %v6214 = vadd.f32 0.0, %v6213
        %v6215 = vpop.f32.mrb[0].mxu0
        %6216 = vmatprep.mubr.f32.mxu0 0.0
        %6217 = vmatmul.mubr.f32.gmra.mrb[0].mxu0 %v6121
        %v6218 = vpop.f32.mrb[0].mxu0
        %v6219 = vadd.f32 0.0, %v6218
        %v6220 = vpop.f32.mrb[0].mxu0
        %6221 = vmatprep.mubr.f32.mxu0 0.0
        %6222 = vmatmul.mubr.f32.gmra.mrb[0].mxu0 %v6124
        %v6223 = vpop.f32.mrb[0].mxu0
        %v6224 = vadd.f32 0.0, %v6223
        %v6225 = vpop.f32.mrb[0].mxu0
        %6226 = vmatprep.mubr.f32.mxu0 0.0
        %6227 = vmatmul.mubr.f32.gmra.mrb[0].mxu0 %v6127
        %v6228 = vpop.f32.mrb[0].mxu0
        %v6229 = vadd.f32 0.0, %v6228
        %v6230 = vpop.f32.mrb[0].mxu0
        %6231 = vmatprep.mubr.f32.mxu0 0.0
        %6232 = vmatmul.mubr.f32.gmra.mrb[0].mxu0 %v6130
        %v6233 = vpop.f32.mrb[0].mxu0
        %v6234 = vadd.f32 0.0, %v6233
        %v6235 = vpop.f32.mrb[0].mxu0
        %6236 = vdwg.mxu0
        %6245 = vrot.lane.b32.xlu0 %v6199, 64
        %v6246 = vpop.permute.xlu0 %6245
        %6247 = vrot.lane.b32.xlu0 %v6204, 64
        %v6248 = vpop.permute.xlu0 %6247
        %6249 = vrot.lane.b32.xlu0 %v6209, 64
        %v6250 = vpop.permute.xlu0 %6249
        %6251 = vrot.lane.b32.xlu0 %v6214, 64
        %v6252 = vpop.permute.xlu0 %6251
        %6253 = vrot.lane.b32.xlu0 %v6219, 64
        %v6254 = vpop.permute.xlu0 %6253
        %6255 = vrot.lane.b32.xlu0 %v6224, 64
        %v6256 = vpop.permute.xlu0 %6255
        %6257 = vrot.lane.b32.xlu0 %v6229, 64
        %v6258 = vpop.permute.xlu0 %6257
        %6259 = vrot.lane.b32.xlu0 %v6234, 64
        %v6260 = vpop.permute.xlu0 %6259
        %6269 = vst.msk [vmem:[#allocation3 + $0x80] sm:$0xff] %vm2410, %v6246
        %6270 = vst.msk [vmem:[#allocation3 + $0x88] sm:$0xff] %vm2410, %v6248
        %6271 = vst.msk [vmem:[#allocation3 + $0x90] sm:$0xff] %vm2410, %v6250
        %6272 = vst.msk [vmem:[#allocation3 + $0x98] sm:$0xff] %vm2410, %v6252
        %6273 = vst.msk [vmem:[#allocation3 + $0xa0] sm:$0xff] %vm2410, %v6254
        %6274 = vst.msk [vmem:[#allocation3 + $0xa8] sm:$0xff] %vm2410, %v6256
        %6275 = vst.msk [vmem:[#allocation3 + $0xb0] sm:$0xff] %vm2410, %v6258
        %6276 = vst.msk [vmem:[#allocation3 + $0xb8] sm:$0xff] %vm2410, %v6260
        %v6277 = vld [vmem:[#allocation2 + $0x180] sm:$0xff]
        %v6278 = vld [vmem:[#allocation2 + $0x198] sm:$0xff]
        %v6279 = vld [vmem:[#allocation2 + $0x1b0] sm:$0xff]
        %v6280 = vld [vmem:[#allocation2 + $0x1c8] sm:$0xff]
        %v6281 = vld [vmem:[#allocation2 + $0x1e0] sm:$0xff]
        %v6282 = vld [vmem:[#allocation2 + $0x1f8] sm:$0xff]
        %v6283 = vld [vmem:[#allocation2 + $0x210] sm:$0xff]
        %v6284 = vld [vmem:[#allocation2 + $0x228] sm:$0xff]
        %v6285 = vld [vmem:[#allocation2 + $0x188] sm:$0xff]
        %v6286 = vld [vmem:[#allocation2 + $0x1a0] sm:$0xff]
        %v6287 = vld [vmem:[#allocation2 + $0x1b8] sm:$0xff]
        %v6288 = vld [vmem:[#allocation2 + $0x1d0] sm:$0xff]
        %v6289 = vld [vmem:[#allocation2 + $0x1e8] sm:$0xff]
        %v6290 = vld [vmem:[#allocation2 + $0x200] sm:$0xff]
        %v6291 = vld [vmem:[#allocation2 + $0x218] sm:$0xff]
        %v6292 = vld [vmem:[#allocation2 + $0x230] sm:$0xff]
        %v6293 = vld [vmem:[#allocation2 + $0x190] sm:$0xff]
        %v6294 = vld [vmem:[#allocation2 + $0x1a8] sm:$0xff]
        %v6295 = vld [vmem:[#allocation2 + $0x1c0] sm:$0xff]
        %v6296 = vld [vmem:[#allocation2 + $0x1d8] sm:$0xff]
        %v6297 = vld [vmem:[#allocation2 + $0x1f0] sm:$0xff]
        %v6298 = vld [vmem:[#allocation2 + $0x208] sm:$0xff]
        %v6299 = vld [vmem:[#allocation2 + $0x220] sm:$0xff]
        %v6300 = vld [vmem:[#allocation2 + $0x238] sm:$0xff]
        %v6301 = vld [vmem:[%s2443] sm:$0xff]
        %v6302 = vld [vmem:[%s2443 + $0x8] sm:$0xff]
        %v6303 = vld [vmem:[%s2443 + $0x10] sm:$0xff]
        %v6304 = vld [vmem:[%s2443 + $0x18] sm:$0xff]
        %v6305 = vld [vmem:[%s2443 + $0x20] sm:$0xff]
        %v6306 = vld [vmem:[%s2443 + $0x28] sm:$0xff]
        %v6307 = vld [vmem:[%s2443 + $0x30] sm:$0xff]
        %v6308 = vld [vmem:[%s2443 + $0x38] sm:$0xff]
        %6317 = vrot.lane.b32.xlu0 %v6277, 32
        %v6318 = vpop.permute.xlu0 %6317
        %6319 = vrot.lane.b32.xlu0 %v6278, 32
        %v6320 = vpop.permute.xlu0 %6319
        %6321 = vrot.lane.b32.xlu0 %v6279, 32
        %v6322 = vpop.permute.xlu0 %6321
        %6323 = vrot.lane.b32.xlu0 %v6280, 32
        %v6324 = vpop.permute.xlu0 %6323
        %6325 = vrot.lane.b32.xlu0 %v6281, 32
        %v6326 = vpop.permute.xlu0 %6325
        %6327 = vrot.lane.b32.xlu0 %v6282, 32
        %v6328 = vpop.permute.xlu0 %6327
        %6329 = vrot.lane.b32.xlu0 %v6283, 32
        %v6330 = vpop.permute.xlu0 %6329
        %6331 = vrot.lane.b32.xlu0 %v6284, 32
        %v6332 = vpop.permute.xlu0 %6331
        %6341 = vrot.lane.b32.xlu0 %v6285, 32
        %v6342 = vpop.permute.xlu0 %6341
        %6343 = vrot.lane.b32.xlu0 %v6286, 32
        %v6344 = vpop.permute.xlu0 %6343
        %6345 = vrot.lane.b32.xlu0 %v6287, 32
        %v6346 = vpop.permute.xlu0 %6345
        %6347 = vrot.lane.b32.xlu0 %v6288, 32
        %v6348 = vpop.permute.xlu0 %6347
        %6349 = vrot.lane.b32.xlu0 %v6289, 32
        %v6350 = vpop.permute.xlu0 %6349
        %6351 = vrot.lane.b32.xlu0 %v6290, 32
        %v6352 = vpop.permute.xlu0 %6351
        %6353 = vrot.lane.b32.xlu0 %v6291, 32
        %v6354 = vpop.permute.xlu0 %6353
        %6355 = vrot.lane.b32.xlu0 %v6292, 32
        %v6356 = vpop.permute.xlu0 %6355
        %v6357 = vsel %vm1023, %v6318, 0
        %v6359 = vsel %vm1023, %v6320, 0
        %v6361 = vsel %vm1023, %v6322, 0
        %v6363 = vsel %vm1023, %v6324, 0
        %v6365 = vsel %vm1023, %v6326, 0
        %v6367 = vsel %vm1023, %v6328, 0
        %v6369 = vsel %vm1023, %v6330, 0
        %v6371 = vsel %vm1023, %v6332, 0
        %v6373 = vsel %vm1023, %v6342, 0
        %v6375 = vsel %vm1023, %v6344, 0
        %v6377 = vsel %vm1023, %v6346, 0
        %v6379 = vsel %vm1023, %v6348, 0
        %v6381 = vsel %vm1023, %v6350, 0
        %v6383 = vsel %vm1023, %v6352, 0
        %v6385 = vsel %vm1023, %v6354, 0
        %v6387 = vsel %vm1023, %v6356, 0
        %6389 = vmatprep.subr.mxu0 0.0
        %6390 = vmatpush1.xpose.msra.mxu0 %v6373
        %6391 = vmatprep.subr.mxu0 0.0
        %6392 = vmatpush1.xpose.msra.mxu0 %v6375
        %6393 = vmatprep.subr.mxu0 0.0
        %6394 = vmatpush1.xpose.msra.mxu0 %v6377
        %6395 = vmatprep.subr.mxu0 0.0
        %6396 = vmatpush1.xpose.msra.mxu0 %v6379
        %6397 = vmatprep.subr.mxu0 0.0
        %6398 = vmatpush1.xpose.msra.mxu0 %v6381
        %6399 = vmatprep.subr.mxu0 0.0
        %6400 = vmatpush1.xpose.msra.mxu0 %v6383
        %6401 = vmatprep.subr.mxu0 0.0
        %6402 = vmatpush1.xpose.msra.mxu0 %v6385
        %6403 = vmatprep.subr.mxu0 0.0
        %6404 = vmatpush1.xpose.msra.mxu0 %v6387
        %6405 = vmatprep.subr.mxu0 0.0
        %6406 = vmatpush1.xpose.msra.mxu0 0.0
        %6407 = vmatprep.subr.mxu0 0.0
        %6408 = vmatpush1.xpose.msra.mxu0 0.0
        %6409 = vmatprep.subr.mxu0 0.0
        %6410 = vmatpush1.xpose.msra.mxu0 0.0
        %6411 = vmatprep.subr.mxu0 0.0
        %6412 = vmatpush1.xpose.msra.mxu0 0.0
        %6413 = vmatprep.subr.mxu0 0.0
        %6414 = vmatpush1.xpose.msra.mxu0 0.0
        %6415 = vmatprep.subr.mxu0 0.0
        %6416 = vmatpush1.xpose.msra.mxu0 0.0
        %6417 = vmatprep.subr.mxu0 0.0
        %6418 = vmatpush1.xpose.msra.mxu0 0.0
        %6419 = vmatprep.subr.mxu0 0.0
        %6420 = vmatpush1.xpose.msra.mxu0 0.0
        %6421 = vmatprep.subr.mxu0 0.0
        %6422 = vmatpush1.xpose.msra.mxu0 0.0
        %6423 = vmatprep.subr.mxu0 0.0
        %6424 = vmatpush1.xpose.msra.mxu0 0.0
        %6425 = vmatprep.subr.mxu0 0.0
        %6426 = vmatpush1.xpose.msra.mxu0 0.0
        %6427 = vmatprep.subr.mxu0 0.0
        %6428 = vmatpush1.xpose.msra.mxu0 0.0
        %6429 = vmatprep.subr.mxu0 0.0
        %6430 = vmatpush1.xpose.msra.mxu0 0.0
        %6431 = vmatprep.subr.mxu0 0.0
        %6432 = vmatpush1.xpose.msra.mxu0 0.0
        %6433 = vmatprep.subr.mxu0 0.0
        %6434 = vmatpush1.xpose.msra.mxu0 0.0
        %6435 = vmatprep.subr.mxu0 0.0
        %6436 = vmatpush1.xpose.msra.mxu0 0.0
        %6437 = vmatprep.subr.mxu0 0.0
        %6438 = vmatpush1.xpose.msra.mxu0 0.0
        %6439 = vmatprep.subr.mxu0 0.0
        %6440 = vmatpush1.xpose.msra.mxu0 0.0
        %6441 = vmatprep.subr.mxu0 0.0
        %6442 = vmatpush1.xpose.msra.mxu0 0.0
        %6443 = vmatprep.subr.mxu0 0.0
        %6444 = vmatpush1.xpose.msra.mxu0 0.0
        %6445 = vmatprep.subr.mxu0 0.0
        %6446 = vmatpush1.xpose.msra.mxu0 0.0
        %6447 = vmatprep.subr.mxu0 0.0
        %6448 = vmatpush1.xpose.msra.mxu0 0.0
        %6449 = vmatprep.subr.mxu0 0.0
        %6450 = vmatpush1.xpose.msra.mxu0 0.0
        %6451 = vmatprep.subr.mxu0 0.0
        %6452 = vmatpush1.xpose.msra.mxu0 0.0
        %6453 = vmatprep.mubr.f32.mxu0 0.0
        %6454 = vmatmul.mubr.f32.gmra.mrb[0].mxu0 %v6357
        %v6455 = vpop.f32.mrb[0].mxu0
        %v6456 = vadd.f32 %v6301, %v6455
        %v6457 = vpop.f32.mrb[0].mxu0
        %6458 = vmatprep.mubr.f32.mxu0 0.0
        %6459 = vmatmul.mubr.f32.gmra.mrb[0].mxu0 %v6359
        %v6460 = vpop.f32.mrb[0].mxu0
        %v6461 = vadd.f32 %v6302, %v6460
        %v6462 = vpop.f32.mrb[0].mxu0
        %6463 = vmatprep.mubr.f32.mxu0 0.0
        %6464 = vmatmul.mubr.f32.gmra.mrb[0].mxu0 %v6361
        %v6465 = vpop.f32.mrb[0].mxu0
        %v6466 = vadd.f32 %v6303, %v6465
        %v6467 = vpop.f32.mrb[0].mxu0
        %6468 = vmatprep.mubr.f32.mxu0 0.0
        %6469 = vmatmul.mubr.f32.gmra.mrb[0].mxu0 %v6363
        %v6470 = vpop.f32.mrb[0].mxu0
        %v6471 = vadd.f32 %v6304, %v6470
        %v6472 = vpop.f32.mrb[0].mxu0
        %6473 = vmatprep.mubr.f32.mxu0 0.0
        %6474 = vmatmul.mubr.f32.gmra.mrb[0].mxu0 %v6365
        %v6475 = vpop.f32.mrb[0].mxu0
        %v6476 = vadd.f32 %v6305, %v6475
        %v6477 = vpop.f32.mrb[0].mxu0
        %6478 = vmatprep.mubr.f32.mxu0 0.0
        %6479 = vmatmul.mubr.f32.gmra.mrb[0].mxu0 %v6367
        %v6480 = vpop.f32.mrb[0].mxu0
        %v6481 = vadd.f32 %v6306, %v6480
        %v6482 = vpop.f32.mrb[0].mxu0
        %6483 = vmatprep.mubr.f32.mxu0 0.0
        %6484 = vmatmul.mubr.f32.gmra.mrb[0].mxu0 %v6369
        %v6485 = vpop.f32.mrb[0].mxu0
        %v6486 = vadd.f32 %v6307, %v6485
        %v6487 = vpop.f32.mrb[0].mxu0
        %6488 = vmatprep.mubr.f32.mxu0 0.0
        %6489 = vmatmul.mubr.f32.gmra.mrb[0].mxu0 %v6371
        %v6490 = vpop.f32.mrb[0].mxu0
        %v6491 = vadd.f32 %v6308, %v6490
        %v6492 = vpop.f32.mrb[0].mxu0
        %6493 = vdwg.mxu0
        %v6494 = vsel %vm1177, %v6456, -inf
        %6495 = vmax.xlane.f32.xlu0 %v6494
        %v6496 = vpop.xlane.xlu0 %6495
        %v6497 = vsel %vm1177, %v6461, -inf
        %6498 = vmax.xlane.f32.xlu0 %v6497
        %v6499 = vpop.xlane.xlu0 %6498
        %v6500 = vsel %vm1177, %v6466, -inf
        %6501 = vmax.xlane.f32.xlu0 %v6500
        %v6502 = vpop.xlane.xlu0 %6501
        %v6503 = vsel %vm1177, %v6471, -inf
        %6504 = vmax.xlane.f32.xlu0 %v6503
        %v6505 = vpop.xlane.xlu0 %6504
        %v6506 = vsel %vm1177, %v6476, -inf
        %6507 = vmax.xlane.f32.xlu0 %v6506
        %v6508 = vpop.xlane.xlu0 %6507
        %v6509 = vsel %vm1177, %v6481, -inf
        %6510 = vmax.xlane.f32.xlu0 %v6509
        %v6511 = vpop.xlane.xlu0 %6510
        %v6512 = vsel %vm1177, %v6486, -inf
        %6513 = vmax.xlane.f32.xlu0 %v6512
        %v6514 = vpop.xlane.xlu0 %6513
        %v6515 = vsel %vm1177, %v6491, -inf
        %6516 = vmax.xlane.f32.xlu0 %v6515
        %v6517 = vpop.xlane.xlu0 %6516
        %v6518 = vsub.f32 %v6456, %v6496
        %v6519 = vsub.f32 %v6461, %v6499
        %v6520 = vsub.f32 %v6466, %v6502
        %v6521 = vsub.f32 %v6471, %v6505
        %v6522 = vsub.f32 %v6476, %v6508
        %v6523 = vsub.f32 %v6481, %v6511
        %v6524 = vsub.f32 %v6486, %v6514
        %v6525 = vsub.f32 %v6491, %v6517
        %v6526 = vmul.f32 %v6518, 1.442695
        %v6527 = vpow.pop %v6526
        %v6528 = vmul.f32 %v6519, 1.442695
        %v6529 = vpow.pop %v6528
        %v6530 = vmul.f32 %v6520, 1.442695
        %v6531 = vpow.pop %v6530
        %v6532 = vmul.f32 %v6521, 1.442695
        %v6533 = vpow.pop %v6532
        %v6534 = vmul.f32 %v6522, 1.442695
        %v6535 = vpow.pop %v6534
        %v6536 = vmul.f32 %v6523, 1.442695
        %v6537 = vpow.pop %v6536
        %v6538 = vmul.f32 %v6524, 1.442695
        %v6539 = vpow.pop %v6538
        %v6540 = vmul.f32 %v6525, 1.442695
        %v6541 = vpow.pop %v6540
        %v6542 = vsel %vm1177, %v6527, 0.0
        %6543 = vadd.xlane.f32.xlu0 %v6542
        %v6544 = vpop.xlane.xlu0 %6543
        %v6545 = vsel %vm1177, %v6529, 0.0
        %6546 = vadd.xlane.f32.xlu0 %v6545
        %v6547 = vpop.xlane.xlu0 %6546
        %v6548 = vsel %vm1177, %v6531, 0.0
        %6549 = vadd.xlane.f32.xlu0 %v6548
        %v6550 = vpop.xlane.xlu0 %6549
        %v6551 = vsel %vm1177, %v6533, 0.0
        %6552 = vadd.xlane.f32.xlu0 %v6551
        %v6553 = vpop.xlane.xlu0 %6552
        %v6554 = vsel %vm1177, %v6535, 0.0
        %6555 = vadd.xlane.f32.xlu0 %v6554
        %v6556 = vpop.xlane.xlu0 %6555
        %v6557 = vsel %vm1177, %v6537, 0.0
        %6558 = vadd.xlane.f32.xlu0 %v6557
        %v6559 = vpop.xlane.xlu0 %6558
        %v6560 = vsel %vm1177, %v6539, 0.0
        %6561 = vadd.xlane.f32.xlu0 %v6560
        %v6562 = vpop.xlane.xlu0 %6561
        %v6563 = vsel %vm1177, %v6541, 0.0
        %6564 = vadd.xlane.f32.xlu0 %v6563
        %v6565 = vpop.xlane.xlu0 %6564
        %v6566 = vrcp.pop %v6544
        %v6567 = vrcp.pop %v6547
        %v6568 = vrcp.pop %v6550
        %v6569 = vrcp.pop %v6553
        %v6570 = vrcp.pop %v6556
        %v6571 = vrcp.pop %v6559
        %v6572 = vrcp.pop %v6562
        %v6573 = vrcp.pop %v6565
        %v6574 = vmul.f32 %v6527, %v6566
        %v6575 = vmul.f32 %v6529, %v6567
        %v6576 = vmul.f32 %v6531, %v6568
        %v6577 = vmul.f32 %v6533, %v6569
        %v6578 = vmul.f32 %v6535, %v6570
        %v6579 = vmul.f32 %v6537, %v6571
        %v6580 = vmul.f32 %v6539, %v6572
        %v6581 = vmul.f32 %v6541, %v6573
        %6590 = vrot.lane.b32.xlu0 %v6293, 32
        %v6591 = vpop.permute.xlu0 %6590
        %6592 = vrot.lane.b32.xlu0 %v6294, 32
        %v6593 = vpop.permute.xlu0 %6592
        %6594 = vrot.lane.b32.xlu0 %v6295, 32
        %v6595 = vpop.permute.xlu0 %6594
        %6596 = vrot.lane.b32.xlu0 %v6296, 32
        %v6597 = vpop.permute.xlu0 %6596
        %6598 = vrot.lane.b32.xlu0 %v6297, 32
        %v6599 = vpop.permute.xlu0 %6598
        %6600 = vrot.lane.b32.xlu0 %v6298, 32
        %v6601 = vpop.permute.xlu0 %6600
        %6602 = vrot.lane.b32.xlu0 %v6299, 32
        %v6603 = vpop.permute.xlu0 %6602
        %6604 = vrot.lane.b32.xlu0 %v6300, 32
        %v6605 = vpop.permute.xlu0 %6604
        %v6615 = vsel %vm1177, %v6574, 0
        %v6618 = vsel %vm1177, %v6575, 0
        %v6621 = vsel %vm1177, %v6576, 0
        %v6624 = vsel %vm1177, %v6577, 0
        %v6627 = vsel %vm1177, %v6578, 0
        %v6630 = vsel %vm1177, %v6579, 0
        %v6633 = vsel %vm1177, %v6580, 0
        %v6636 = vsel %vm1177, %v6581, 0
        %6638 = vmatprep.subr.mxu0 0.0
        %6639 = vmatpush1.msra.mxu0 %v6591
        %6640 = vmatprep.subr.mxu0 0.0
        %6641 = vmatpush1.msra.mxu0 %v6593
        %6642 = vmatprep.subr.mxu0 0.0
        %6643 = vmatpush1.msra.mxu0 %v6595
        %6644 = vmatprep.subr.mxu0 0.0
        %6645 = vmatpush1.msra.mxu0 %v6597
        %6646 = vmatprep.subr.mxu0 0.0
        %6647 = vmatpush1.msra.mxu0 %v6599
        %6648 = vmatprep.subr.mxu0 0.0
        %6649 = vmatpush1.msra.mxu0 %v6601
        %6650 = vmatprep.subr.mxu0 0.0
        %6651 = vmatpush1.msra.mxu0 %v6603
        %6652 = vmatprep.subr.mxu0 0.0
        %6653 = vmatpush1.msra.mxu0 %v6605
        %6654 = vmatprep.subr.mxu0 0.0
        %6655 = vmatpush1.msra.mxu0 0.0
        %6656 = vmatprep.subr.mxu0 0.0
        %6657 = vmatpush1.msra.mxu0 0.0
        %6658 = vmatprep.subr.mxu0 0.0
        %6659 = vmatpush1.msra.mxu0 0.0
        %6660 = vmatprep.subr.mxu0 0.0
        %6661 = vmatpush1.msra.mxu0 0.0
        %6662 = vmatprep.subr.mxu0 0.0
        %6663 = vmatpush1.msra.mxu0 0.0
        %6664 = vmatprep.subr.mxu0 0.0
        %6665 = vmatpush1.msra.mxu0 0.0
        %6666 = vmatprep.subr.mxu0 0.0
        %6667 = vmatpush1.msra.mxu0 0.0
        %6668 = vmatprep.subr.mxu0 0.0
        %6669 = vmatpush1.msra.mxu0 0.0
        %6670 = vmatprep.subr.mxu0 0.0
        %6671 = vmatpush1.msra.mxu0 0.0
        %6672 = vmatprep.subr.mxu0 0.0
        %6673 = vmatpush1.msra.mxu0 0.0
        %6674 = vmatprep.subr.mxu0 0.0
        %6675 = vmatpush1.msra.mxu0 0.0
        %6676 = vmatprep.subr.mxu0 0.0
        %6677 = vmatpush1.msra.mxu0 0.0
        %6678 = vmatprep.subr.mxu0 0.0
        %6679 = vmatpush1.msra.mxu0 0.0
        %6680 = vmatprep.subr.mxu0 0.0
        %6681 = vmatpush1.msra.mxu0 0.0
        %6682 = vmatprep.subr.mxu0 0.0
        %6683 = vmatpush1.msra.mxu0 0.0
        %6684 = vmatprep.subr.mxu0 0.0
        %6685 = vmatpush1.msra.mxu0 0.0
        %6686 = vmatprep.subr.mxu0 0.0
        %6687 = vmatpush1.msra.mxu0 0.0
        %6688 = vmatprep.subr.mxu0 0.0
        %6689 = vmatpush1.msra.mxu0 0.0
        %6690 = vmatprep.subr.mxu0 0.0
        %6691 = vmatpush1.msra.mxu0 0.0
        %6692 = vmatprep.subr.mxu0 0.0
        %6693 = vmatpush1.msra.mxu0 0.0
        %6694 = vmatprep.subr.mxu0 0.0
        %6695 = vmatpush1.msra.mxu0 0.0
        %6696 = vmatprep.subr.mxu0 0.0
        %6697 = vmatpush1.msra.mxu0 0.0
        %6698 = vmatprep.subr.mxu0 0.0
        %6699 = vmatpush1.msra.mxu0 0.0
        %6700 = vmatprep.subr.mxu0 0.0
        %6701 = vmatpush1.msra.mxu0 0.0
        %6702 = vmatprep.mubr.f32.mxu0 0.0
        %6703 = vmatmul.mubr.f32.gmra.mrb[0].mxu0 %v6615
        %v6704 = vpop.f32.mrb[0].mxu0
        %v6705 = vadd.f32 0.0, %v6704
        %v6706 = vpop.f32.mrb[0].mxu0
        %6707 = vmatprep.mubr.f32.mxu0 0.0
        %6708 = vmatmul.mubr.f32.gmra.mrb[0].mxu0 %v6618
        %v6709 = vpop.f32.mrb[0].mxu0
        %v6710 = vadd.f32 0.0, %v6709
        %v6711 = vpop.f32.mrb[0].mxu0
        %6712 = vmatprep.mubr.f32.mxu0 0.0
        %6713 = vmatmul.mubr.f32.gmra.mrb[0].mxu0 %v6621
        %v6714 = vpop.f32.mrb[0].mxu0
        %v6715 = vadd.f32 0.0, %v6714
        %v6716 = vpop.f32.mrb[0].mxu0
        %6717 = vmatprep.mubr.f32.mxu0 0.0
        %6718 = vmatmul.mubr.f32.gmra.mrb[0].mxu0 %v6624
        %v6719 = vpop.f32.mrb[0].mxu0
        %v6720 = vadd.f32 0.0, %v6719
        %v6721 = vpop.f32.mrb[0].mxu0
        %6722 = vmatprep.mubr.f32.mxu0 0.0
        %6723 = vmatmul.mubr.f32.gmra.mrb[0].mxu0 %v6627
        %v6724 = vpop.f32.mrb[0].mxu0
        %v6725 = vadd.f32 0.0, %v6724
        %v6726 = vpop.f32.mrb[0].mxu0
        %6727 = vmatprep.mubr.f32.mxu0 0.0
        %6728 = vmatmul.mubr.f32.gmra.mrb[0].mxu0 %v6630
        %v6729 = vpop.f32.mrb[0].mxu0
        %v6730 = vadd.f32 0.0, %v6729
        %v6731 = vpop.f32.mrb[0].mxu0
        %6732 = vmatprep.mubr.f32.mxu0 0.0
        %6733 = vmatmul.mubr.f32.gmra.mrb[0].mxu0 %v6633
        %v6734 = vpop.f32.mrb[0].mxu0
        %v6735 = vadd.f32 0.0, %v6734
        %v6736 = vpop.f32.mrb[0].mxu0
        %6737 = vmatprep.mubr.f32.mxu0 0.0
        %6738 = vmatmul.mubr.f32.gmra.mrb[0].mxu0 %v6636
        %v6739 = vpop.f32.mrb[0].mxu0
        %v6740 = vadd.f32 0.0, %v6739
        %v6741 = vpop.f32.mrb[0].mxu0
        %6742 = vdwg.mxu0
        %6751 = vrot.lane.b32.xlu0 %v6705, 96
        %v6752 = vpop.permute.xlu0 %6751
        %6753 = vrot.lane.b32.xlu0 %v6710, 96
        %v6754 = vpop.permute.xlu0 %6753
        %6755 = vrot.lane.b32.xlu0 %v6715, 96
        %v6756 = vpop.permute.xlu0 %6755
        %6757 = vrot.lane.b32.xlu0 %v6720, 96
        %v6758 = vpop.permute.xlu0 %6757
        %6759 = vrot.lane.b32.xlu0 %v6725, 96
        %v6760 = vpop.permute.xlu0 %6759
        %6761 = vrot.lane.b32.xlu0 %v6730, 96
        %v6762 = vpop.permute.xlu0 %6761
        %6763 = vrot.lane.b32.xlu0 %v6735, 96
        %v6764 = vpop.permute.xlu0 %6763
        %6765 = vrot.lane.b32.xlu0 %v6740, 96
        %v6766 = vpop.permute.xlu0 %6765
        %6775 = vst.msk [vmem:[#allocation3 + $0x80] sm:$0xff] %vm2918, %v6752
        %6776 = vst.msk [vmem:[#allocation3 + $0x88] sm:$0xff] %vm2918, %v6754
        %6777 = vst.msk [vmem:[#allocation3 + $0x90] sm:$0xff] %vm2918, %v6756
        %6778 = vst.msk [vmem:[#allocation3 + $0x98] sm:$0xff] %vm2918, %v6758
        %6779 = vst.msk [vmem:[#allocation3 + $0xa0] sm:$0xff] %vm2918, %v6760
        %6780 = vst.msk [vmem:[#allocation3 + $0xa8] sm:$0xff] %vm2918, %v6762
        %6781 = vst.msk [vmem:[#allocation3 + $0xb0] sm:$0xff] %vm2918, %v6764
        %6782 = vst.msk [vmem:[#allocation3 + $0xb8] sm:$0xff] %vm2918, %v6766
        %v6783 = vld [vmem:[#allocation2 + $0x240] sm:$0xff]
        %v6784 = vld [vmem:[#allocation2 + $0x258] sm:$0xff]
        %v6785 = vld [vmem:[#allocation2 + $0x270] sm:$0xff]
        %v6786 = vld [vmem:[#allocation2 + $0x288] sm:$0xff]
        %v6787 = vld [vmem:[#allocation2 + $0x2a0] sm:$0xff]
        %v6788 = vld [vmem:[#allocation2 + $0x2b8] sm:$0xff]
        %v6789 = vld [vmem:[#allocation2 + $0x2d0] sm:$0xff]
        %v6790 = vld [vmem:[#allocation2 + $0x2e8] sm:$0xff]
        %v6791 = vld [vmem:[#allocation2 + $0x248] sm:$0xff]
        %v6792 = vld [vmem:[#allocation2 + $0x260] sm:$0xff]
        %v6793 = vld [vmem:[#allocation2 + $0x278] sm:$0xff]
        %v6794 = vld [vmem:[#allocation2 + $0x290] sm:$0xff]
        %v6795 = vld [vmem:[#allocation2 + $0x2a8] sm:$0xff]
        %v6796 = vld [vmem:[#allocation2 + $0x2c0] sm:$0xff]
        %v6797 = vld [vmem:[#allocation2 + $0x2d8] sm:$0xff]
        %v6798 = vld [vmem:[#allocation2 + $0x2f0] sm:$0xff]
        %v6799 = vld [vmem:[#allocation2 + $0x250] sm:$0xff]
        %v6800 = vld [vmem:[#allocation2 + $0x268] sm:$0xff]
        %v6801 = vld [vmem:[#allocation2 + $0x280] sm:$0xff]
        %v6802 = vld [vmem:[#allocation2 + $0x298] sm:$0xff]
        %v6803 = vld [vmem:[#allocation2 + $0x2b0] sm:$0xff]
        %v6804 = vld [vmem:[#allocation2 + $0x2c8] sm:$0xff]
        %v6805 = vld [vmem:[#allocation2 + $0x2e0] sm:$0xff]
        %v6806 = vld [vmem:[#allocation2 + $0x2f8] sm:$0xff]
        %v6807 = vld [vmem:[#allocation10] sm:$0xff]
        %v6808 = vld [vmem:[#allocation10 + $0x8] sm:$0xff]
        %v6809 = vld [vmem:[#allocation10 + $0x10] sm:$0xff]
        %v6810 = vld [vmem:[#allocation10 + $0x18] sm:$0xff]
        %v6811 = vld [vmem:[#allocation10 + $0x20] sm:$0xff]
        %v6812 = vld [vmem:[#allocation10 + $0x28] sm:$0xff]
        %v6813 = vld [vmem:[#allocation10 + $0x30] sm:$0xff]
        %v6814 = vld [vmem:[#allocation10 + $0x38] sm:$0xff]
        %v6816 = vsel %vm1023, %v6783, 0
        %v6819 = vsel %vm1023, %v6784, 0
        %v6822 = vsel %vm1023, %v6785, 0
        %v6825 = vsel %vm1023, %v6786, 0
        %v6828 = vsel %vm1023, %v6787, 0
        %v6831 = vsel %vm1023, %v6788, 0
        %v6834 = vsel %vm1023, %v6789, 0
        %v6837 = vsel %vm1023, %v6790, 0
        %v6840 = vsel %vm1023, %v6791, 0
        %v6843 = vsel %vm1023, %v6792, 0
        %v6846 = vsel %vm1023, %v6793, 0
        %v6849 = vsel %vm1023, %v6794, 0
        %v6852 = vsel %vm1023, %v6795, 0
        %v6855 = vsel %vm1023, %v6796, 0
        %v6858 = vsel %vm1023, %v6797, 0
        %v6861 = vsel %vm1023, %v6798, 0
        %6863 = vmatprep.subr.mxu0 0.0
        %6864 = vmatpush1.xpose.msra.mxu0 %v6840
        %6865 = vmatprep.subr.mxu0 0.0
        %6866 = vmatpush1.xpose.msra.mxu0 %v6843
        %6867 = vmatprep.subr.mxu0 0.0
        %6868 = vmatpush1.xpose.msra.mxu0 %v6846
        %6869 = vmatprep.subr.mxu0 0.0
        %6870 = vmatpush1.xpose.msra.mxu0 %v6849
        %6871 = vmatprep.subr.mxu0 0.0
        %6872 = vmatpush1.xpose.msra.mxu0 %v6852
        %6873 = vmatprep.subr.mxu0 0.0
        %6874 = vmatpush1.xpose.msra.mxu0 %v6855
        %6875 = vmatprep.subr.mxu0 0.0
        %6876 = vmatpush1.xpose.msra.mxu0 %v6858
        %6877 = vmatprep.subr.mxu0 0.0
        %6878 = vmatpush1.xpose.msra.mxu0 %v6861
        %6879 = vmatprep.subr.mxu0 0.0
        %6880 = vmatpush1.xpose.msra.mxu0 0.0
        %6881 = vmatprep.subr.mxu0 0.0
        %6882 = vmatpush1.xpose.msra.mxu0 0.0
        %6883 = vmatprep.subr.mxu0 0.0
        %6884 = vmatpush1.xpose.msra.mxu0 0.0
        %6885 = vmatprep.subr.mxu0 0.0
        %6886 = vmatpush1.xpose.msra.mxu0 0.0
        %6887 = vmatprep.subr.mxu0 0.0
        %6888 = vmatpush1.xpose.msra.mxu0 0.0
        %6889 = vmatprep.subr.mxu0 0.0
        %6890 = vmatpush1.xpose.msra.mxu0 0.0
        %6891 = vmatprep.subr.mxu0 0.0
        %6892 = vmatpush1.xpose.msra.mxu0 0.0
        %6893 = vmatprep.subr.mxu0 0.0
        %6894 = vmatpush1.xpose.msra.mxu0 0.0
        %6895 = vmatprep.subr.mxu0 0.0
        %6896 = vmatpush1.xpose.msra.mxu0 0.0
        %6897 = vmatprep.subr.mxu0 0.0
        %6898 = vmatpush1.xpose.msra.mxu0 0.0
        %6899 = vmatprep.subr.mxu0 0.0
        %6900 = vmatpush1.xpose.msra.mxu0 0.0
        %6901 = vmatprep.subr.mxu0 0.0
        %6902 = vmatpush1.xpose.msra.mxu0 0.0
        %6903 = vmatprep.subr.mxu0 0.0
        %6904 = vmatpush1.xpose.msra.mxu0 0.0
        %6905 = vmatprep.subr.mxu0 0.0
        %6906 = vmatpush1.xpose.msra.mxu0 0.0
        %6907 = vmatprep.subr.mxu0 0.0
        %6908 = vmatpush1.xpose.msra.mxu0 0.0
        %6909 = vmatprep.subr.mxu0 0.0
        %6910 = vmatpush1.xpose.msra.mxu0 0.0
        %6911 = vmatprep.subr.mxu0 0.0
        %6912 = vmatpush1.xpose.msra.mxu0 0.0
        %6913 = vmatprep.subr.mxu0 0.0
        %6914 = vmatpush1.xpose.msra.mxu0 0.0
        %6915 = vmatprep.subr.mxu0 0.0
        %6916 = vmatpush1.xpose.msra.mxu0 0.0
        %6917 = vmatprep.subr.mxu0 0.0
        %6918 = vmatpush1.xpose.msra.mxu0 0.0
        %6919 = vmatprep.subr.mxu0 0.0
        %6920 = vmatpush1.xpose.msra.mxu0 0.0
        %6921 = vmatprep.subr.mxu0 0.0
        %6922 = vmatpush1.xpose.msra.mxu0 0.0
        %6923 = vmatprep.subr.mxu0 0.0
        %6924 = vmatpush1.xpose.msra.mxu0 0.0
        %6925 = vmatprep.subr.mxu0 0.0
        %6926 = vmatpush1.xpose.msra.mxu0 0.0
        %6927 = vmatprep.mubr.f32.mxu0 0.0
        %6928 = vmatmul.mubr.f32.gmra.mrb[0].mxu0 %v6816
        %v6929 = vpop.f32.mrb[0].mxu0
        %v6930 = vadd.f32 %v6807, %v6929
        %v6931 = vpop.f32.mrb[0].mxu0
        %6932 = vmatprep.mubr.f32.mxu0 0.0
        %6933 = vmatmul.mubr.f32.gmra.mrb[0].mxu0 %v6819
        %v6934 = vpop.f32.mrb[0].mxu0
        %v6935 = vadd.f32 %v6808, %v6934
        %v6936 = vpop.f32.mrb[0].mxu0
        %6937 = vmatprep.mubr.f32.mxu0 0.0
        %6938 = vmatmul.mubr.f32.gmra.mrb[0].mxu0 %v6822
        %v6939 = vpop.f32.mrb[0].mxu0
        %v6940 = vadd.f32 %v6809, %v6939
        %v6941 = vpop.f32.mrb[0].mxu0
        %6942 = vmatprep.mubr.f32.mxu0 0.0
        %6943 = vmatmul.mubr.f32.gmra.mrb[0].mxu0 %v6825
        %v6944 = vpop.f32.mrb[0].mxu0
        %v6945 = vadd.f32 %v6810, %v6944
        %v6946 = vpop.f32.mrb[0].mxu0
        %6947 = vmatprep.mubr.f32.mxu0 0.0
        %6948 = vmatmul.mubr.f32.gmra.mrb[0].mxu0 %v6828
        %v6949 = vpop.f32.mrb[0].mxu0
        %v6950 = vadd.f32 %v6811, %v6949
        %v6951 = vpop.f32.mrb[0].mxu0
        %6952 = vmatprep.mubr.f32.mxu0 0.0
        %6953 = vmatmul.mubr.f32.gmra.mrb[0].mxu0 %v6831
        %v6954 = vpop.f32.mrb[0].mxu0
        %v6955 = vadd.f32 %v6812, %v6954
        %v6956 = vpop.f32.mrb[0].mxu0
        %6957 = vmatprep.mubr.f32.mxu0 0.0
        %6958 = vmatmul.mubr.f32.gmra.mrb[0].mxu0 %v6834
        %v6959 = vpop.f32.mrb[0].mxu0
        %v6960 = vadd.f32 %v6813, %v6959
        %v6961 = vpop.f32.mrb[0].mxu0
        %6962 = vmatprep.mubr.f32.mxu0 0.0
        %6963 = vmatmul.mubr.f32.gmra.mrb[0].mxu0 %v6837
        %v6964 = vpop.f32.mrb[0].mxu0
        %v6965 = vadd.f32 %v6814, %v6964
        %v6966 = vpop.f32.mrb[0].mxu0
        %6967 = vdwg.mxu0
        %v6968 = vsel %vm1177, %v6930, -inf
        %6969 = vmax.xlane.f32.xlu0 %v6968
        %v6970 = vpop.xlane.xlu0 %6969
        %v6971 = vsel %vm1177, %v6935, -inf
        %6972 = vmax.xlane.f32.xlu0 %v6971
        %v6973 = vpop.xlane.xlu0 %6972
        %v6974 = vsel %vm1177, %v6940, -inf
        %6975 = vmax.xlane.f32.xlu0 %v6974
        %v6976 = vpop.xlane.xlu0 %6975
        %v6977 = vsel %vm1177, %v6945, -inf
        %6978 = vmax.xlane.f32.xlu0 %v6977
        %v6979 = vpop.xlane.xlu0 %6978
        %v6980 = vsel %vm1177, %v6950, -inf
        %6981 = vmax.xlane.f32.xlu0 %v6980
        %v6982 = vpop.xlane.xlu0 %6981
        %v6983 = vsel %vm1177, %v6955, -inf
        %6984 = vmax.xlane.f32.xlu0 %v6983
        %v6985 = vpop.xlane.xlu0 %6984
        %v6986 = vsel %vm1177, %v6960, -inf
        %6987 = vmax.xlane.f32.xlu0 %v6986
        %v6988 = vpop.xlane.xlu0 %6987
        %v6989 = vsel %vm1177, %v6965, -inf
        %6990 = vmax.xlane.f32.xlu0 %v6989
        %v6991 = vpop.xlane.xlu0 %6990
        %v6992 = vsub.f32 %v6930, %v6970
        %v6993 = vsub.f32 %v6935, %v6973
        %v6994 = vsub.f32 %v6940, %v6976
        %v6995 = vsub.f32 %v6945, %v6979
        %v6996 = vsub.f32 %v6950, %v6982
        %v6997 = vsub.f32 %v6955, %v6985
        %v6998 = vsub.f32 %v6960, %v6988
        %v6999 = vsub.f32 %v6965, %v6991
        %v7000 = vmul.f32 %v6992, 1.442695
        %v7001 = vpow.pop %v7000
        %v7002 = vmul.f32 %v6993, 1.442695
        %v7003 = vpow.pop %v7002
        %v7004 = vmul.f32 %v6994, 1.442695
        %v7005 = vpow.pop %v7004
        %v7006 = vmul.f32 %v6995, 1.442695
        %v7007 = vpow.pop %v7006
        %v7008 = vmul.f32 %v6996, 1.442695
        %v7009 = vpow.pop %v7008
        %v7010 = vmul.f32 %v6997, 1.442695
        %v7011 = vpow.pop %v7010
        %v7012 = vmul.f32 %v6998, 1.442695
        %v7013 = vpow.pop %v7012
        %v7014 = vmul.f32 %v6999, 1.442695
        %v7015 = vpow.pop %v7014
        %v7016 = vsel %vm1177, %v7001, 0.0
        %7017 = vadd.xlane.f32.xlu0 %v7016
        %v7018 = vpop.xlane.xlu0 %7017
        %v7019 = vsel %vm1177, %v7003, 0.0
        %7020 = vadd.xlane.f32.xlu0 %v7019
        %v7021 = vpop.xlane.xlu0 %7020
        %v7022 = vsel %vm1177, %v7005, 0.0
        %7023 = vadd.xlane.f32.xlu0 %v7022
        %v7024 = vpop.xlane.xlu0 %7023
        %v7025 = vsel %vm1177, %v7007, 0.0
        %7026 = vadd.xlane.f32.xlu0 %v7025
        %v7027 = vpop.xlane.xlu0 %7026
        %v7028 = vsel %vm1177, %v7009, 0.0
        %7029 = vadd.xlane.f32.xlu0 %v7028
        %v7030 = vpop.xlane.xlu0 %7029
        %v7031 = vsel %vm1177, %v7011, 0.0
        %7032 = vadd.xlane.f32.xlu0 %v7031
        %v7033 = vpop.xlane.xlu0 %7032
        %v7034 = vsel %vm1177, %v7013, 0.0
        %7035 = vadd.xlane.f32.xlu0 %v7034
        %v7036 = vpop.xlane.xlu0 %7035
        %v7037 = vsel %vm1177, %v7015, 0.0
        %7038 = vadd.xlane.f32.xlu0 %v7037
        %v7039 = vpop.xlane.xlu0 %7038
        %v7040 = vrcp.pop %v7018
        %v7041 = vrcp.pop %v7021
        %v7042 = vrcp.pop %v7024
        %v7043 = vrcp.pop %v7027
        %v7044 = vrcp.pop %v7030
        %v7045 = vrcp.pop %v7033
        %v7046 = vrcp.pop %v7036
        %v7047 = vrcp.pop %v7039
        %v7048 = vmul.f32 %v7001, %v7040
        %v7049 = vmul.f32 %v7003, %v7041
        %v7050 = vmul.f32 %v7005, %v7042
        %v7051 = vmul.f32 %v7007, %v7043
        %v7052 = vmul.f32 %v7009, %v7044
        %v7053 = vmul.f32 %v7011, %v7045
        %v7054 = vmul.f32 %v7013, %v7046
        %v7055 = vmul.f32 %v7015, %v7047
        %v7057 = vsel %vm1177, %v7048, 0
        %v7060 = vsel %vm1177, %v7049, 0
        %v7063 = vsel %vm1177, %v7050, 0
        %v7066 = vsel %vm1177, %v7051, 0
        %v7069 = vsel %vm1177, %v7052, 0
        %v7072 = vsel %vm1177, %v7053, 0
        %v7075 = vsel %vm1177, %v7054, 0
        %v7078 = vsel %vm1177, %v7055, 0
        %7080 = vmatprep.subr.mxu0 0.0
        %7081 = vmatpush1.msra.mxu0 %v6799
        %7082 = vmatprep.subr.mxu0 0.0
        %7083 = vmatpush1.msra.mxu0 %v6800
        %7084 = vmatprep.subr.mxu0 0.0
        %7085 = vmatpush1.msra.mxu0 %v6801
        %7086 = vmatprep.subr.mxu0 0.0
        %7087 = vmatpush1.msra.mxu0 %v6802
        %7088 = vmatprep.subr.mxu0 0.0
        %7089 = vmatpush1.msra.mxu0 %v6803
        %7090 = vmatprep.subr.mxu0 0.0
        %7091 = vmatpush1.msra.mxu0 %v6804
        %7092 = vmatprep.subr.mxu0 0.0
        %7093 = vmatpush1.msra.mxu0 %v6805
        %7094 = vmatprep.subr.mxu0 0.0
        %7095 = vmatpush1.msra.mxu0 %v6806
        %7096 = vmatprep.subr.mxu0 0.0
        %7097 = vmatpush1.msra.mxu0 0.0
        %7098 = vmatprep.subr.mxu0 0.0
        %7099 = vmatpush1.msra.mxu0 0.0
        %7100 = vmatprep.subr.mxu0 0.0
        %7101 = vmatpush1.msra.mxu0 0.0
        %7102 = vmatprep.subr.mxu0 0.0
        %7103 = vmatpush1.msra.mxu0 0.0
        %7104 = vmatprep.subr.mxu0 0.0
        %7105 = vmatpush1.msra.mxu0 0.0
        %7106 = vmatprep.subr.mxu0 0.0
        %7107 = vmatpush1.msra.mxu0 0.0
        %7108 = vmatprep.subr.mxu0 0.0
        %7109 = vmatpush1.msra.mxu0 0.0
        %7110 = vmatprep.subr.mxu0 0.0
        %7111 = vmatpush1.msra.mxu0 0.0
        %7112 = vmatprep.subr.mxu0 0.0
        %7113 = vmatpush1.msra.mxu0 0.0
        %7114 = vmatprep.subr.mxu0 0.0
        %7115 = vmatpush1.msra.mxu0 0.0
        %7116 = vmatprep.subr.mxu0 0.0
        %7117 = vmatpush1.msra.mxu0 0.0
        %7118 = vmatprep.subr.mxu0 0.0
        %7119 = vmatpush1.msra.mxu0 0.0
        %7120 = vmatprep.subr.mxu0 0.0
        %7121 = vmatpush1.msra.mxu0 0.0
        %7122 = vmatprep.subr.mxu0 0.0
        %7123 = vmatpush1.msra.mxu0 0.0
        %7124 = vmatprep.subr.mxu0 0.0
        %7125 = vmatpush1.msra.mxu0 0.0
        %7126 = vmatprep.subr.mxu0 0.0
        %7127 = vmatpush1.msra.mxu0 0.0
        %7128 = vmatprep.subr.mxu0 0.0
        %7129 = vmatpush1.msra.mxu0 0.0
        %7130 = vmatprep.subr.mxu0 0.0
        %7131 = vmatpush1.msra.mxu0 0.0
        %7132 = vmatprep.subr.mxu0 0.0
        %7133 = vmatpush1.msra.mxu0 0.0
        %7134 = vmatprep.subr.mxu0 0.0
        %7135 = vmatpush1.msra.mxu0 0.0
        %7136 = vmatprep.subr.mxu0 0.0
        %7137 = vmatpush1.msra.mxu0 0.0
        %7138 = vmatprep.subr.mxu0 0.0
        %7139 = vmatpush1.msra.mxu0 0.0
        %7140 = vmatprep.subr.mxu0 0.0
        %7141 = vmatpush1.msra.mxu0 0.0
        %7142 = vmatprep.subr.mxu0 0.0
        %7143 = vmatpush1.msra.mxu0 0.0
        %7144 = vmatprep.mubr.f32.mxu0 0.0
        %7145 = vmatmul.mubr.f32.gmra.mrb[0].mxu0 %v7057
        %v7146 = vpop.f32.mrb[0].mxu0
        %v7147 = vadd.f32 0.0, %v7146
        %v7148 = vpop.f32.mrb[0].mxu0
        %7149 = vmatprep.mubr.f32.mxu0 0.0
        %7150 = vmatmul.mubr.f32.gmra.mrb[0].mxu0 %v7060
        %v7151 = vpop.f32.mrb[0].mxu0
        %v7152 = vadd.f32 0.0, %v7151
        %v7153 = vpop.f32.mrb[0].mxu0
        %7154 = vmatprep.mubr.f32.mxu0 0.0
        %7155 = vmatmul.mubr.f32.gmra.mrb[0].mxu0 %v7063
        %v7156 = vpop.f32.mrb[0].mxu0
        %v7157 = vadd.f32 0.0, %v7156
        %v7158 = vpop.f32.mrb[0].mxu0
        %7159 = vmatprep.mubr.f32.mxu0 0.0
        %7160 = vmatmul.mubr.f32.gmra.mrb[0].mxu0 %v7066
        %v7161 = vpop.f32.mrb[0].mxu0
        %v7162 = vadd.f32 0.0, %v7161
        %v7163 = vpop.f32.mrb[0].mxu0
        %7164 = vmatprep.mubr.f32.mxu0 0.0
        %7165 = vmatmul.mubr.f32.gmra.mrb[0].mxu0 %v7069
        %v7166 = vpop.f32.mrb[0].mxu0
        %v7167 = vadd.f32 0.0, %v7166
        %v7168 = vpop.f32.mrb[0].mxu0
        %7169 = vmatprep.mubr.f32.mxu0 0.0
        %7170 = vmatmul.mubr.f32.gmra.mrb[0].mxu0 %v7072
        %v7171 = vpop.f32.mrb[0].mxu0
        %v7172 = vadd.f32 0.0, %v7171
        %v7173 = vpop.f32.mrb[0].mxu0
        %7174 = vmatprep.mubr.f32.mxu0 0.0
        %7175 = vmatmul.mubr.f32.gmra.mrb[0].mxu0 %v7075
        %v7176 = vpop.f32.mrb[0].mxu0
        %v7177 = vadd.f32 0.0, %v7176
        %v7178 = vpop.f32.mrb[0].mxu0
        %7179 = vmatprep.mubr.f32.mxu0 0.0
        %7180 = vmatmul.mubr.f32.gmra.mrb[0].mxu0 %v7078
        %v7181 = vpop.f32.mrb[0].mxu0
        %v7182 = vadd.f32 0.0, %v7181
        %v7183 = vpop.f32.mrb[0].mxu0
        %7184 = vdwg.mxu0
        %7185 = vst.msk [vmem:[#allocation3 + $0xc0] sm:$0xff] %vm1023, %v7147
        %7186 = vst.msk [vmem:[#allocation3 + $0xc8] sm:$0xff] %vm1023, %v7152
        %7187 = vst.msk [vmem:[#allocation3 + $0xd0] sm:$0xff] %vm1023, %v7157
        %7188 = vst.msk [vmem:[#allocation3 + $0xd8] sm:$0xff] %vm1023, %v7162
        %7189 = vst.msk [vmem:[#allocation3 + $0xe0] sm:$0xff] %vm1023, %v7167
        %7190 = vst.msk [vmem:[#allocation3 + $0xe8] sm:$0xff] %vm1023, %v7172
        %7191 = vst.msk [vmem:[#allocation3 + $0xf0] sm:$0xff] %vm1023, %v7177
        %7192 = vst.msk [vmem:[#allocation3 + $0xf8] sm:$0xff] %vm1023, %v7182
        %v7193 = vld [vmem:[#allocation2 + $0x240] sm:$0xff]
        %v7194 = vld [vmem:[#allocation2 + $0x258] sm:$0xff]
        %v7195 = vld [vmem:[#allocation2 + $0x270] sm:$0xff]
        %v7196 = vld [vmem:[#allocation2 + $0x288] sm:$0xff]
        %v7197 = vld [vmem:[#allocation2 + $0x2a0] sm:$0xff]
        %v7198 = vld [vmem:[#allocation2 + $0x2b8] sm:$0xff]
        %v7199 = vld [vmem:[#allocation2 + $0x2d0] sm:$0xff]
        %v7200 = vld [vmem:[#allocation2 + $0x2e8] sm:$0xff]
        %v7201 = vld [vmem:[#allocation2 + $0x248] sm:$0xff]
        %v7202 = vld [vmem:[#allocation2 + $0x260] sm:$0xff]
        %v7203 = vld [vmem:[#allocation2 + $0x278] sm:$0xff]
        %v7204 = vld [vmem:[#allocation2 + $0x290] sm:$0xff]
        %v7205 = vld [vmem:[#allocation2 + $0x2a8] sm:$0xff]
        %v7206 = vld [vmem:[#allocation2 + $0x2c0] sm:$0xff]
        %v7207 = vld [vmem:[#allocation2 + $0x2d8] sm:$0xff]
        %v7208 = vld [vmem:[#allocation2 + $0x2f0] sm:$0xff]
        %v7209 = vld [vmem:[#allocation2 + $0x250] sm:$0xff]
        %v7210 = vld [vmem:[#allocation2 + $0x268] sm:$0xff]
        %v7211 = vld [vmem:[#allocation2 + $0x280] sm:$0xff]
        %v7212 = vld [vmem:[#allocation2 + $0x298] sm:$0xff]
        %v7213 = vld [vmem:[#allocation2 + $0x2b0] sm:$0xff]
        %v7214 = vld [vmem:[#allocation2 + $0x2c8] sm:$0xff]
        %v7215 = vld [vmem:[#allocation2 + $0x2e0] sm:$0xff]
        %v7216 = vld [vmem:[#allocation2 + $0x2f8] sm:$0xff]
        %v7217 = vld [vmem:[%s1427] sm:$0xff]
        %v7218 = vld [vmem:[%s1427 + $0x8] sm:$0xff]
        %v7219 = vld [vmem:[%s1427 + $0x10] sm:$0xff]
        %v7220 = vld [vmem:[%s1427 + $0x18] sm:$0xff]
        %v7221 = vld [vmem:[%s1427 + $0x20] sm:$0xff]
        %v7222 = vld [vmem:[%s1427 + $0x28] sm:$0xff]
        %v7223 = vld [vmem:[%s1427 + $0x30] sm:$0xff]
        %v7224 = vld [vmem:[%s1427 + $0x38] sm:$0xff]
        %7233 = vrot.lane.b32.xlu0 %v7193, 96
        %v7234 = vpop.permute.xlu0 %7233
        %7235 = vrot.lane.b32.xlu0 %v7194, 96
        %v7236 = vpop.permute.xlu0 %7235
        %7237 = vrot.lane.b32.xlu0 %v7195, 96
        %v7238 = vpop.permute.xlu0 %7237
        %7239 = vrot.lane.b32.xlu0 %v7196, 96
        %v7240 = vpop.permute.xlu0 %7239
        %7241 = vrot.lane.b32.xlu0 %v7197, 96
        %v7242 = vpop.permute.xlu0 %7241
        %7243 = vrot.lane.b32.xlu0 %v7198, 96
        %v7244 = vpop.permute.xlu0 %7243
        %7245 = vrot.lane.b32.xlu0 %v7199, 96
        %v7246 = vpop.permute.xlu0 %7245
        %7247 = vrot.lane.b32.xlu0 %v7200, 96
        %v7248 = vpop.permute.xlu0 %7247
        %7257 = vrot.lane.b32.xlu0 %v7201, 96
        %v7258 = vpop.permute.xlu0 %7257
        %7259 = vrot.lane.b32.xlu0 %v7202, 96
        %v7260 = vpop.permute.xlu0 %7259
        %7261 = vrot.lane.b32.xlu0 %v7203, 96
        %v7262 = vpop.permute.xlu0 %7261
        %7263 = vrot.lane.b32.xlu0 %v7204, 96
        %v7264 = vpop.permute.xlu0 %7263
        %7265 = vrot.lane.b32.xlu0 %v7205, 96
        %v7266 = vpop.permute.xlu0 %7265
        %7267 = vrot.lane.b32.xlu0 %v7206, 96
        %v7268 = vpop.permute.xlu0 %7267
        %7269 = vrot.lane.b32.xlu0 %v7207, 96
        %v7270 = vpop.permute.xlu0 %7269
        %7271 = vrot.lane.b32.xlu0 %v7208, 96
        %v7272 = vpop.permute.xlu0 %7271
        %v7273 = vsel %vm1023, %v7234, 0
        %v7275 = vsel %vm1023, %v7236, 0
        %v7277 = vsel %vm1023, %v7238, 0
        %v7279 = vsel %vm1023, %v7240, 0
        %v7281 = vsel %vm1023, %v7242, 0
        %v7283 = vsel %vm1023, %v7244, 0
        %v7285 = vsel %vm1023, %v7246, 0
        %v7287 = vsel %vm1023, %v7248, 0
        %v7289 = vsel %vm1023, %v7258, 0
        %v7291 = vsel %vm1023, %v7260, 0
        %v7293 = vsel %vm1023, %v7262, 0
        %v7295 = vsel %vm1023, %v7264, 0
        %v7297 = vsel %vm1023, %v7266, 0
        %v7299 = vsel %vm1023, %v7268, 0
        %v7301 = vsel %vm1023, %v7270, 0
        %v7303 = vsel %vm1023, %v7272, 0
        %7305 = vmatprep.subr.mxu0 0.0
        %7306 = vmatpush1.xpose.msra.mxu0 %v7289
        %7307 = vmatprep.subr.mxu0 0.0
        %7308 = vmatpush1.xpose.msra.mxu0 %v7291
        %7309 = vmatprep.subr.mxu0 0.0
        %7310 = vmatpush1.xpose.msra.mxu0 %v7293
        %7311 = vmatprep.subr.mxu0 0.0
        %7312 = vmatpush1.xpose.msra.mxu0 %v7295
        %7313 = vmatprep.subr.mxu0 0.0
        %7314 = vmatpush1.xpose.msra.mxu0 %v7297
        %7315 = vmatprep.subr.mxu0 0.0
        %7316 = vmatpush1.xpose.msra.mxu0 %v7299
        %7317 = vmatprep.subr.mxu0 0.0
        %7318 = vmatpush1.xpose.msra.mxu0 %v7301
        %7319 = vmatprep.subr.mxu0 0.0
        %7320 = vmatpush1.xpose.msra.mxu0 %v7303
        %7321 = vmatprep.subr.mxu0 0.0
        %7322 = vmatpush1.xpose.msra.mxu0 0.0
        %7323 = vmatprep.subr.mxu0 0.0
        %7324 = vmatpush1.xpose.msra.mxu0 0.0
        %7325 = vmatprep.subr.mxu0 0.0
        %7326 = vmatpush1.xpose.msra.mxu0 0.0
        %7327 = vmatprep.subr.mxu0 0.0
        %7328 = vmatpush1.xpose.msra.mxu0 0.0
        %7329 = vmatprep.subr.mxu0 0.0
        %7330 = vmatpush1.xpose.msra.mxu0 0.0
        %7331 = vmatprep.subr.mxu0 0.0
        %7332 = vmatpush1.xpose.msra.mxu0 0.0
        %7333 = vmatprep.subr.mxu0 0.0
        %7334 = vmatpush1.xpose.msra.mxu0 0.0
        %7335 = vmatprep.subr.mxu0 0.0
        %7336 = vmatpush1.xpose.msra.mxu0 0.0
        %7337 = vmatprep.subr.mxu0 0.0
        %7338 = vmatpush1.xpose.msra.mxu0 0.0
        %7339 = vmatprep.subr.mxu0 0.0
        %7340 = vmatpush1.xpose.msra.mxu0 0.0
        %7341 = vmatprep.subr.mxu0 0.0
        %7342 = vmatpush1.xpose.msra.mxu0 0.0
        %7343 = vmatprep.subr.mxu0 0.0
        %7344 = vmatpush1.xpose.msra.mxu0 0.0
        %7345 = vmatprep.subr.mxu0 0.0
        %7346 = vmatpush1.xpose.msra.mxu0 0.0
        %7347 = vmatprep.subr.mxu0 0.0
        %7348 = vmatpush1.xpose.msra.mxu0 0.0
        %7349 = vmatprep.subr.mxu0 0.0
        %7350 = vmatpush1.xpose.msra.mxu0 0.0
        %7351 = vmatprep.subr.mxu0 0.0
        %7352 = vmatpush1.xpose.msra.mxu0 0.0
        %7353 = vmatprep.subr.mxu0 0.0
        %7354 = vmatpush1.xpose.msra.mxu0 0.0
        %7355 = vmatprep.subr.mxu0 0.0
        %7356 = vmatpush1.xpose.msra.mxu0 0.0
        %7357 = vmatprep.subr.mxu0 0.0
        %7358 = vmatpush1.xpose.msra.mxu0 0.0
        %7359 = vmatprep.subr.mxu0 0.0
        %7360 = vmatpush1.xpose.msra.mxu0 0.0
        %7361 = vmatprep.subr.mxu0 0.0
        %7362 = vmatpush1.xpose.msra.mxu0 0.0
        %7363 = vmatprep.subr.mxu0 0.0
        %7364 = vmatpush1.xpose.msra.mxu0 0.0
        %7365 = vmatprep.subr.mxu0 0.0
        %7366 = vmatpush1.xpose.msra.mxu0 0.0
        %7367 = vmatprep.subr.mxu0 0.0
        %7368 = vmatpush1.xpose.msra.mxu0 0.0
        %7369 = vmatprep.mubr.f32.mxu0 0.0
        %7370 = vmatmul.mubr.f32.gmra.mrb[0].mxu0 %v7273
        %v7371 = vpop.f32.mrb[0].mxu0
        %v7372 = vadd.f32 %v7217, %v7371
        %v7373 = vpop.f32.mrb[0].mxu0
        %7374 = vmatprep.mubr.f32.mxu0 0.0
        %7375 = vmatmul.mubr.f32.gmra.mrb[0].mxu0 %v7275
        %v7376 = vpop.f32.mrb[0].mxu0
        %v7377 = vadd.f32 %v7218, %v7376
        %v7378 = vpop.f32.mrb[0].mxu0
        %7379 = vmatprep.mubr.f32.mxu0 0.0
        %7380 = vmatmul.mubr.f32.gmra.mrb[0].mxu0 %v7277
        %v7381 = vpop.f32.mrb[0].mxu0
        %v7382 = vadd.f32 %v7219, %v7381
        %v7383 = vpop.f32.mrb[0].mxu0
        %7384 = vmatprep.mubr.f32.mxu0 0.0
        %7385 = vmatmul.mubr.f32.gmra.mrb[0].mxu0 %v7279
        %v7386 = vpop.f32.mrb[0].mxu0
        %v7387 = vadd.f32 %v7220, %v7386
        %v7388 = vpop.f32.mrb[0].mxu0
        %7389 = vmatprep.mubr.f32.mxu0 0.0
        %7390 = vmatmul.mubr.f32.gmra.mrb[0].mxu0 %v7281
        %v7391 = vpop.f32.mrb[0].mxu0
        %v7392 = vadd.f32 %v7221, %v7391
        %v7393 = vpop.f32.mrb[0].mxu0
        %7394 = vmatprep.mubr.f32.mxu0 0.0
        %7395 = vmatmul.mubr.f32.gmra.mrb[0].mxu0 %v7283
        %v7396 = vpop.f32.mrb[0].mxu0
        %v7397 = vadd.f32 %v7222, %v7396
        %v7398 = vpop.f32.mrb[0].mxu0
        %7399 = vmatprep.mubr.f32.mxu0 0.0
        %7400 = vmatmul.mubr.f32.gmra.mrb[0].mxu0 %v7285
        %v7401 = vpop.f32.mrb[0].mxu0
        %v7402 = vadd.f32 %v7223, %v7401
        %v7403 = vpop.f32.mrb[0].mxu0
        %7404 = vmatprep.mubr.f32.mxu0 0.0
        %7405 = vmatmul.mubr.f32.gmra.mrb[0].mxu0 %v7287
        %v7406 = vpop.f32.mrb[0].mxu0
        %v7407 = vadd.f32 %v7224, %v7406
        %v7408 = vpop.f32.mrb[0].mxu0
        %7409 = vdwg.mxu0
        %v7410 = vsel %vm1177, %v7372, -inf
        %7411 = vmax.xlane.f32.xlu0 %v7410
        %v7412 = vpop.xlane.xlu0 %7411
        %v7413 = vsel %vm1177, %v7377, -inf
        %7414 = vmax.xlane.f32.xlu0 %v7413
        %v7415 = vpop.xlane.xlu0 %7414
        %v7416 = vsel %vm1177, %v7382, -inf
        %7417 = vmax.xlane.f32.xlu0 %v7416
        %v7418 = vpop.xlane.xlu0 %7417
        %v7419 = vsel %vm1177, %v7387, -inf
        %7420 = vmax.xlane.f32.xlu0 %v7419
        %v7421 = vpop.xlane.xlu0 %7420
        %v7422 = vsel %vm1177, %v7392, -inf
        %7423 = vmax.xlane.f32.xlu0 %v7422
        %v7424 = vpop.xlane.xlu0 %7423
        %v7425 = vsel %vm1177, %v7397, -inf
        %7426 = vmax.xlane.f32.xlu0 %v7425
        %v7427 = vpop.xlane.xlu0 %7426
        %v7428 = vsel %vm1177, %v7402, -inf
        %7429 = vmax.xlane.f32.xlu0 %v7428
        %v7430 = vpop.xlane.xlu0 %7429
        %v7431 = vsel %vm1177, %v7407, -inf
        %7432 = vmax.xlane.f32.xlu0 %v7431
        %v7433 = vpop.xlane.xlu0 %7432
        %v7434 = vsub.f32 %v7372, %v7412
        %v7435 = vsub.f32 %v7377, %v7415
        %v7436 = vsub.f32 %v7382, %v7418
        %v7437 = vsub.f32 %v7387, %v7421
        %v7438 = vsub.f32 %v7392, %v7424
        %v7439 = vsub.f32 %v7397, %v7427
        %v7440 = vsub.f32 %v7402, %v7430
        %v7441 = vsub.f32 %v7407, %v7433
        %v7442 = vmul.f32 %v7434, 1.442695
        %v7443 = vpow.pop %v7442
        %v7444 = vmul.f32 %v7435, 1.442695
        %v7445 = vpow.pop %v7444
        %v7446 = vmul.f32 %v7436, 1.442695
        %v7447 = vpow.pop %v7446
        %v7448 = vmul.f32 %v7437, 1.442695
        %v7449 = vpow.pop %v7448
        %v7450 = vmul.f32 %v7438, 1.442695
        %v7451 = vpow.pop %v7450
        %v7452 = vmul.f32 %v7439, 1.442695
        %v7453 = vpow.pop %v7452
        %v7454 = vmul.f32 %v7440, 1.442695
        %v7455 = vpow.pop %v7454
        %v7456 = vmul.f32 %v7441, 1.442695
        %v7457 = vpow.pop %v7456
        %v7458 = vsel %vm1177, %v7443, 0.0
        %7459 = vadd.xlane.f32.xlu0 %v7458
        %v7460 = vpop.xlane.xlu0 %7459
        %v7461 = vsel %vm1177, %v7445, 0.0
        %7462 = vadd.xlane.f32.xlu0 %v7461
        %v7463 = vpop.xlane.xlu0 %7462
        %v7464 = vsel %vm1177, %v7447, 0.0
        %7465 = vadd.xlane.f32.xlu0 %v7464
        %v7466 = vpop.xlane.xlu0 %7465
        %v7467 = vsel %vm1177, %v7449, 0.0
        %7468 = vadd.xlane.f32.xlu0 %v7467
        %v7469 = vpop.xlane.xlu0 %7468
        %v7470 = vsel %vm1177, %v7451, 0.0
        %7471 = vadd.xlane.f32.xlu0 %v7470
        %v7472 = vpop.xlane.xlu0 %7471
        %v7473 = vsel %vm1177, %v7453, 0.0
        %7474 = vadd.xlane.f32.xlu0 %v7473
        %v7475 = vpop.xlane.xlu0 %7474
        %v7476 = vsel %vm1177, %v7455, 0.0
        %7477 = vadd.xlane.f32.xlu0 %v7476
        %v7478 = vpop.xlane.xlu0 %7477
        %v7479 = vsel %vm1177, %v7457, 0.0
        %7480 = vadd.xlane.f32.xlu0 %v7479
        %v7481 = vpop.xlane.xlu0 %7480
        %v7482 = vrcp.pop %v7460
        %v7483 = vrcp.pop %v7463
        %v7484 = vrcp.pop %v7466
        %v7485 = vrcp.pop %v7469
        %v7486 = vrcp.pop %v7472
        %v7487 = vrcp.pop %v7475
        %v7488 = vrcp.pop %v7478
        %v7489 = vrcp.pop %v7481
        %v7490 = vmul.f32 %v7443, %v7482
        %v7491 = vmul.f32 %v7445, %v7483
        %v7492 = vmul.f32 %v7447, %v7484
        %v7493 = vmul.f32 %v7449, %v7485
        %v7494 = vmul.f32 %v7451, %v7486
        %v7495 = vmul.f32 %v7453, %v7487
        %v7496 = vmul.f32 %v7455, %v7488
        %v7497 = vmul.f32 %v7457, %v7489
        %7506 = vrot.lane.b32.xlu0 %v7209, 96
        %v7507 = vpop.permute.xlu0 %7506
        %7508 = vrot.lane.b32.xlu0 %v7210, 96
        %v7509 = vpop.permute.xlu0 %7508
        %7510 = vrot.lane.b32.xlu0 %v7211, 96
        %v7511 = vpop.permute.xlu0 %7510
        %7512 = vrot.lane.b32.xlu0 %v7212, 96
        %v7513 = vpop.permute.xlu0 %7512
        %7514 = vrot.lane.b32.xlu0 %v7213, 96
        %v7515 = vpop.permute.xlu0 %7514
        %7516 = vrot.lane.b32.xlu0 %v7214, 96
        %v7517 = vpop.permute.xlu0 %7516
        %7518 = vrot.lane.b32.xlu0 %v7215, 96
        %v7519 = vpop.permute.xlu0 %7518
        %7520 = vrot.lane.b32.xlu0 %v7216, 96
        %v7521 = vpop.permute.xlu0 %7520
        %v7531 = vsel %vm1177, %v7490, 0
        %v7534 = vsel %vm1177, %v7491, 0
        %v7537 = vsel %vm1177, %v7492, 0
        %v7540 = vsel %vm1177, %v7493, 0
        %v7543 = vsel %vm1177, %v7494, 0
        %v7546 = vsel %vm1177, %v7495, 0
        %v7549 = vsel %vm1177, %v7496, 0
        %v7552 = vsel %vm1177, %v7497, 0
        %7554 = vmatprep.subr.mxu0 0.0
        %7555 = vmatpush1.msra.mxu0 %v7507
        %7556 = vmatprep.subr.mxu0 0.0
        %7557 = vmatpush1.msra.mxu0 %v7509
        %7558 = vmatprep.subr.mxu0 0.0
        %7559 = vmatpush1.msra.mxu0 %v7511
        %7560 = vmatprep.subr.mxu0 0.0
        %7561 = vmatpush1.msra.mxu0 %v7513
        %7562 = vmatprep.subr.mxu0 0.0
        %7563 = vmatpush1.msra.mxu0 %v7515
        %7564 = vmatprep.subr.mxu0 0.0
        %7565 = vmatpush1.msra.mxu0 %v7517
        %7566 = vmatprep.subr.mxu0 0.0
        %7567 = vmatpush1.msra.mxu0 %v7519
        %7568 = vmatprep.subr.mxu0 0.0
        %7569 = vmatpush1.msra.mxu0 %v7521
        %7570 = vmatprep.subr.mxu0 0.0
        %7571 = vmatpush1.msra.mxu0 0.0
        %7572 = vmatprep.subr.mxu0 0.0
        %7573 = vmatpush1.msra.mxu0 0.0
        %7574 = vmatprep.subr.mxu0 0.0
        %7575 = vmatpush1.msra.mxu0 0.0
        %7576 = vmatprep.subr.mxu0 0.0
        %7577 = vmatpush1.msra.mxu0 0.0
        %7578 = vmatprep.subr.mxu0 0.0
        %7579 = vmatpush1.msra.mxu0 0.0
        %7580 = vmatprep.subr.mxu0 0.0
        %7581 = vmatpush1.msra.mxu0 0.0
        %7582 = vmatprep.subr.mxu0 0.0
        %7583 = vmatpush1.msra.mxu0 0.0
        %7584 = vmatprep.subr.mxu0 0.0
        %7585 = vmatpush1.msra.mxu0 0.0
        %7586 = vmatprep.subr.mxu0 0.0
        %7587 = vmatpush1.msra.mxu0 0.0
        %7588 = vmatprep.subr.mxu0 0.0
        %7589 = vmatpush1.msra.mxu0 0.0
        %7590 = vmatprep.subr.mxu0 0.0
        %7591 = vmatpush1.msra.mxu0 0.0
        %7592 = vmatprep.subr.mxu0 0.0
        %7593 = vmatpush1.msra.mxu0 0.0
        %7594 = vmatprep.subr.mxu0 0.0
        %7595 = vmatpush1.msra.mxu0 0.0
        %7596 = vmatprep.subr.mxu0 0.0
        %7597 = vmatpush1.msra.mxu0 0.0
        %7598 = vmatprep.subr.mxu0 0.0
        %7599 = vmatpush1.msra.mxu0 0.0
        %7600 = vmatprep.subr.mxu0 0.0
        %7601 = vmatpush1.msra.mxu0 0.0
        %7602 = vmatprep.subr.mxu0 0.0
        %7603 = vmatpush1.msra.mxu0 0.0
        %7604 = vmatprep.subr.mxu0 0.0
        %7605 = vmatpush1.msra.mxu0 0.0
        %7606 = vmatprep.subr.mxu0 0.0
        %7607 = vmatpush1.msra.mxu0 0.0
        %7608 = vmatprep.subr.mxu0 0.0
        %7609 = vmatpush1.msra.mxu0 0.0
        %7610 = vmatprep.subr.mxu0 0.0
        %7611 = vmatpush1.msra.mxu0 0.0
        %7612 = vmatprep.subr.mxu0 0.0
        %7613 = vmatpush1.msra.mxu0 0.0
        %7614 = vmatprep.subr.mxu0 0.0
        %7615 = vmatpush1.msra.mxu0 0.0
        %7616 = vmatprep.subr.mxu0 0.0
        %7617 = vmatpush1.msra.mxu0 0.0
        %7618 = vmatprep.mubr.f32.mxu0 0.0
        %7619 = vmatmul.mubr.f32.gmra.mrb[0].mxu0 %v7531
        %v7620 = vpop.f32.mrb[0].mxu0
        %v7621 = vadd.f32 0.0, %v7620
        %v7622 = vpop.f32.mrb[0].mxu0
        %7623 = vmatprep.mubr.f32.mxu0 0.0
        %7624 = vmatmul.mubr.f32.gmra.mrb[0].mxu0 %v7534
        %v7625 = vpop.f32.mrb[0].mxu0
        %v7626 = vadd.f32 0.0, %v7625
        %v7627 = vpop.f32.mrb[0].mxu0
        %7628 = vmatprep.mubr.f32.mxu0 0.0
        %7629 = vmatmul.mubr.f32.gmra.mrb[0].mxu0 %v7537
        %v7630 = vpop.f32.mrb[0].mxu0
        %v7631 = vadd.f32 0.0, %v7630
        %v7632 = vpop.f32.mrb[0].mxu0
        %7633 = vmatprep.mubr.f32.mxu0 0.0
        %7634 = vmatmul.mubr.f32.gmra.mrb[0].mxu0 %v7540
        %v7635 = vpop.f32.mrb[0].mxu0
        %v7636 = vadd.f32 0.0, %v7635
        %v7637 = vpop.f32.mrb[0].mxu0
        %7638 = vmatprep.mubr.f32.mxu0 0.0
        %7639 = vmatmul.mubr.f32.gmra.mrb[0].mxu0 %v7543
        %v7640 = vpop.f32.mrb[0].mxu0
        %v7641 = vadd.f32 0.0, %v7640
        %v7642 = vpop.f32.mrb[0].mxu0
        %7643 = vmatprep.mubr.f32.mxu0 0.0
        %7644 = vmatmul.mubr.f32.gmra.mrb[0].mxu0 %v7546
        %v7645 = vpop.f32.mrb[0].mxu0
        %v7646 = vadd.f32 0.0, %v7645
        %v7647 = vpop.f32.mrb[0].mxu0
        %7648 = vmatprep.mubr.f32.mxu0 0.0
        %7649 = vmatmul.mubr.f32.gmra.mrb[0].mxu0 %v7549
        %v7650 = vpop.f32.mrb[0].mxu0
        %v7651 = vadd.f32 0.0, %v7650
        %v7652 = vpop.f32.mrb[0].mxu0
        %7653 = vmatprep.mubr.f32.mxu0 0.0
        %7654 = vmatmul.mubr.f32.gmra.mrb[0].mxu0 %v7552
        %v7655 = vpop.f32.mrb[0].mxu0
        %v7656 = vadd.f32 0.0, %v7655
        %v7657 = vpop.f32.mrb[0].mxu0
        %7658 = vdwg.mxu0
        %7667 = vrot.lane.b32.xlu0 %v7621, 32
        %v7668 = vpop.permute.xlu0 %7667
        %7669 = vrot.lane.b32.xlu0 %v7626, 32
        %v7670 = vpop.permute.xlu0 %7669
        %7671 = vrot.lane.b32.xlu0 %v7631, 32
        %v7672 = vpop.permute.xlu0 %7671
        %7673 = vrot.lane.b32.xlu0 %v7636, 32
        %v7674 = vpop.permute.xlu0 %7673
        %7675 = vrot.lane.b32.xlu0 %v7641, 32
        %v7676 = vpop.permute.xlu0 %7675
        %7677 = vrot.lane.b32.xlu0 %v7646, 32
        %v7678 = vpop.permute.xlu0 %7677
        %7679 = vrot.lane.b32.xlu0 %v7651, 32
        %v7680 = vpop.permute.xlu0 %7679
        %7681 = vrot.lane.b32.xlu0 %v7656, 32
        %v7682 = vpop.permute.xlu0 %7681
        %7691 = vst.msk [vmem:[#allocation3 + $0xc0] sm:$0xff] %vm1902, %v7668
        %7692 = vst.msk [vmem:[#allocation3 + $0xc8] sm:$0xff] %vm1902, %v7670
        %7693 = vst.msk [vmem:[#allocation3 + $0xd0] sm:$0xff] %vm1902, %v7672
        %7694 = vst.msk [vmem:[#allocation3 + $0xd8] sm:$0xff] %vm1902, %v7674
        %7695 = vst.msk [vmem:[#allocation3 + $0xe0] sm:$0xff] %vm1902, %v7676
        %7696 = vst.msk [vmem:[#allocation3 + $0xe8] sm:$0xff] %vm1902, %v7678
        %7697 = vst.msk [vmem:[#allocation3 + $0xf0] sm:$0xff] %vm1902, %v7680
        %7698 = vst.msk [vmem:[#allocation3 + $0xf8] sm:$0xff] %vm1902, %v7682
        %v7699 = vld [vmem:[#allocation2 + $0x240] sm:$0xff]
        %v7700 = vld [vmem:[#allocation2 + $0x258] sm:$0xff]
        %v7701 = vld [vmem:[#allocation2 + $0x270] sm:$0xff]
        %v7702 = vld [vmem:[#allocation2 + $0x288] sm:$0xff]
        %v7703 = vld [vmem:[#allocation2 + $0x2a0] sm:$0xff]
        %v7704 = vld [vmem:[#allocation2 + $0x2b8] sm:$0xff]
        %v7705 = vld [vmem:[#allocation2 + $0x2d0] sm:$0xff]
        %v7706 = vld [vmem:[#allocation2 + $0x2e8] sm:$0xff]
        %v7707 = vld [vmem:[#allocation2 + $0x248] sm:$0xff]
        %v7708 = vld [vmem:[#allocation2 + $0x260] sm:$0xff]
        %v7709 = vld [vmem:[#allocation2 + $0x278] sm:$0xff]
        %v7710 = vld [vmem:[#allocation2 + $0x290] sm:$0xff]
        %v7711 = vld [vmem:[#allocation2 + $0x2a8] sm:$0xff]
        %v7712 = vld [vmem:[#allocation2 + $0x2c0] sm:$0xff]
        %v7713 = vld [vmem:[#allocation2 + $0x2d8] sm:$0xff]
        %v7714 = vld [vmem:[#allocation2 + $0x2f0] sm:$0xff]
        %v7715 = vld [vmem:[#allocation2 + $0x250] sm:$0xff]
        %v7716 = vld [vmem:[#allocation2 + $0x268] sm:$0xff]
        %v7717 = vld [vmem:[#allocation2 + $0x280] sm:$0xff]
        %v7718 = vld [vmem:[#allocation2 + $0x298] sm:$0xff]
        %v7719 = vld [vmem:[#allocation2 + $0x2b0] sm:$0xff]
        %v7720 = vld [vmem:[#allocation2 + $0x2c8] sm:$0xff]
        %v7721 = vld [vmem:[#allocation2 + $0x2e0] sm:$0xff]
        %v7722 = vld [vmem:[#allocation2 + $0x2f8] sm:$0xff]
        %v7723 = vld [vmem:[%s1935] sm:$0xff]
        %v7724 = vld [vmem:[%s1935 + $0x8] sm:$0xff]
        %v7725 = vld [vmem:[%s1935 + $0x10] sm:$0xff]
        %v7726 = vld [vmem:[%s1935 + $0x18] sm:$0xff]
        %v7727 = vld [vmem:[%s1935 + $0x20] sm:$0xff]
        %v7728 = vld [vmem:[%s1935 + $0x28] sm:$0xff]
        %v7729 = vld [vmem:[%s1935 + $0x30] sm:$0xff]
        %v7730 = vld [vmem:[%s1935 + $0x38] sm:$0xff]
        %7739 = vrot.lane.b32.xlu0 %v7699, 64
        %v7740 = vpop.permute.xlu0 %7739
        %7741 = vrot.lane.b32.xlu0 %v7700, 64
        %v7742 = vpop.permute.xlu0 %7741
        %7743 = vrot.lane.b32.xlu0 %v7701, 64
        %v7744 = vpop.permute.xlu0 %7743
        %7745 = vrot.lane.b32.xlu0 %v7702, 64
        %v7746 = vpop.permute.xlu0 %7745
        %7747 = vrot.lane.b32.xlu0 %v7703, 64
        %v7748 = vpop.permute.xlu0 %7747
        %7749 = vrot.lane.b32.xlu0 %v7704, 64
        %v7750 = vpop.permute.xlu0 %7749
        %7751 = vrot.lane.b32.xlu0 %v7705, 64
        %v7752 = vpop.permute.xlu0 %7751
        %7753 = vrot.lane.b32.xlu0 %v7706, 64
        %v7754 = vpop.permute.xlu0 %7753
        %7763 = vrot.lane.b32.xlu0 %v7707, 64
        %v7764 = vpop.permute.xlu0 %7763
        %7765 = vrot.lane.b32.xlu0 %v7708, 64
        %v7766 = vpop.permute.xlu0 %7765
        %7767 = vrot.lane.b32.xlu0 %v7709, 64
        %v7768 = vpop.permute.xlu0 %7767
        %7769 = vrot.lane.b32.xlu0 %v7710, 64
        %v7770 = vpop.permute.xlu0 %7769
        %7771 = vrot.lane.b32.xlu0 %v7711, 64
        %v7772 = vpop.permute.xlu0 %7771
        %7773 = vrot.lane.b32.xlu0 %v7712, 64
        %v7774 = vpop.permute.xlu0 %7773
        %7775 = vrot.lane.b32.xlu0 %v7713, 64
        %v7776 = vpop.permute.xlu0 %7775
        %7777 = vrot.lane.b32.xlu0 %v7714, 64
        %v7778 = vpop.permute.xlu0 %7777
        %v7779 = vsel %vm1023, %v7740, 0
        %v7781 = vsel %vm1023, %v7742, 0
        %v7783 = vsel %vm1023, %v7744, 0
        %v7785 = vsel %vm1023, %v7746, 0
        %v7787 = vsel %vm1023, %v7748, 0
        %v7789 = vsel %vm1023, %v7750, 0
        %v7791 = vsel %vm1023, %v7752, 0
        %v7793 = vsel %vm1023, %v7754, 0
        %v7795 = vsel %vm1023, %v7764, 0
        %v7797 = vsel %vm1023, %v7766, 0
        %v7799 = vsel %vm1023, %v7768, 0
        %v7801 = vsel %vm1023, %v7770, 0
        %v7803 = vsel %vm1023, %v7772, 0
        %v7805 = vsel %vm1023, %v7774, 0
        %v7807 = vsel %vm1023, %v7776, 0
        %v7809 = vsel %vm1023, %v7778, 0
        %7811 = vmatprep.subr.mxu0 0.0
        %7812 = vmatpush1.xpose.msra.mxu0 %v7795
        %7813 = vmatprep.subr.mxu0 0.0
        %7814 = vmatpush1.xpose.msra.mxu0 %v7797
        %7815 = vmatprep.subr.mxu0 0.0
        %7816 = vmatpush1.xpose.msra.mxu0 %v7799
        %7817 = vmatprep.subr.mxu0 0.0
        %7818 = vmatpush1.xpose.msra.mxu0 %v7801
        %7819 = vmatprep.subr.mxu0 0.0
        %7820 = vmatpush1.xpose.msra.mxu0 %v7803
        %7821 = vmatprep.subr.mxu0 0.0
        %7822 = vmatpush1.xpose.msra.mxu0 %v7805
        %7823 = vmatprep.subr.mxu0 0.0
        %7824 = vmatpush1.xpose.msra.mxu0 %v7807
        %7825 = vmatprep.subr.mxu0 0.0
        %7826 = vmatpush1.xpose.msra.mxu0 %v7809
        %7827 = vmatprep.subr.mxu0 0.0
        %7828 = vmatpush1.xpose.msra.mxu0 0.0
        %7829 = vmatprep.subr.mxu0 0.0
        %7830 = vmatpush1.xpose.msra.mxu0 0.0
        %7831 = vmatprep.subr.mxu0 0.0
        %7832 = vmatpush1.xpose.msra.mxu0 0.0
        %7833 = vmatprep.subr.mxu0 0.0
        %7834 = vmatpush1.xpose.msra.mxu0 0.0
        %7835 = vmatprep.subr.mxu0 0.0
        %7836 = vmatpush1.xpose.msra.mxu0 0.0
        %7837 = vmatprep.subr.mxu0 0.0
        %7838 = vmatpush1.xpose.msra.mxu0 0.0
        %7839 = vmatprep.subr.mxu0 0.0
        %7840 = vmatpush1.xpose.msra.mxu0 0.0
        %7841 = vmatprep.subr.mxu0 0.0
        %7842 = vmatpush1.xpose.msra.mxu0 0.0
        %7843 = vmatprep.subr.mxu0 0.0
        %7844 = vmatpush1.xpose.msra.mxu0 0.0
        %7845 = vmatprep.subr.mxu0 0.0
        %7846 = vmatpush1.xpose.msra.mxu0 0.0
        %7847 = vmatprep.subr.mxu0 0.0
        %7848 = vmatpush1.xpose.msra.mxu0 0.0
        %7849 = vmatprep.subr.mxu0 0.0
        %7850 = vmatpush1.xpose.msra.mxu0 0.0
        %7851 = vmatprep.subr.mxu0 0.0
        %7852 = vmatpush1.xpose.msra.mxu0 0.0
        %7853 = vmatprep.subr.mxu0 0.0
        %7854 = vmatpush1.xpose.msra.mxu0 0.0
        %7855 = vmatprep.subr.mxu0 0.0
        %7856 = vmatpush1.xpose.msra.mxu0 0.0
        %7857 = vmatprep.subr.mxu0 0.0
        %7858 = vmatpush1.xpose.msra.mxu0 0.0
        %7859 = vmatprep.subr.mxu0 0.0
        %7860 = vmatpush1.xpose.msra.mxu0 0.0
        %7861 = vmatprep.subr.mxu0 0.0
        %7862 = vmatpush1.xpose.msra.mxu0 0.0
        %7863 = vmatprep.subr.mxu0 0.0
        %7864 = vmatpush1.xpose.msra.mxu0 0.0
        %7865 = vmatprep.subr.mxu0 0.0
        %7866 = vmatpush1.xpose.msra.mxu0 0.0
        %7867 = vmatprep.subr.mxu0 0.0
        %7868 = vmatpush1.xpose.msra.mxu0 0.0
        %7869 = vmatprep.subr.mxu0 0.0
        %7870 = vmatpush1.xpose.msra.mxu0 0.0
        %7871 = vmatprep.subr.mxu0 0.0
        %7872 = vmatpush1.xpose.msra.mxu0 0.0
        %7873 = vmatprep.subr.mxu0 0.0
        %7874 = vmatpush1.xpose.msra.mxu0 0.0
        %7875 = vmatprep.mubr.f32.mxu0 0.0
        %7876 = vmatmul.mubr.f32.gmra.mrb[0].mxu0 %v7779
        %v7877 = vpop.f32.mrb[0].mxu0
        %v7878 = vadd.f32 %v7723, %v7877
        %v7879 = vpop.f32.mrb[0].mxu0
        %7880 = vmatprep.mubr.f32.mxu0 0.0
        %7881 = vmatmul.mubr.f32.gmra.mrb[0].mxu0 %v7781
        %v7882 = vpop.f32.mrb[0].mxu0
        %v7883 = vadd.f32 %v7724, %v7882
        %v7884 = vpop.f32.mrb[0].mxu0
        %7885 = vmatprep.mubr.f32.mxu0 0.0
        %7886 = vmatmul.mubr.f32.gmra.mrb[0].mxu0 %v7783
        %v7887 = vpop.f32.mrb[0].mxu0
        %v7888 = vadd.f32 %v7725, %v7887
        %v7889 = vpop.f32.mrb[0].mxu0
        %7890 = vmatprep.mubr.f32.mxu0 0.0
        %7891 = vmatmul.mubr.f32.gmra.mrb[0].mxu0 %v7785
        %v7892 = vpop.f32.mrb[0].mxu0
        %v7893 = vadd.f32 %v7726, %v7892
        %v7894 = vpop.f32.mrb[0].mxu0
        %7895 = vmatprep.mubr.f32.mxu0 0.0
        %7896 = vmatmul.mubr.f32.gmra.mrb[0].mxu0 %v7787
        %v7897 = vpop.f32.mrb[0].mxu0
        %v7898 = vadd.f32 %v7727, %v7897
        %v7899 = vpop.f32.mrb[0].mxu0
        %7900 = vmatprep.mubr.f32.mxu0 0.0
        %7901 = vmatmul.mubr.f32.gmra.mrb[0].mxu0 %v7789
        %v7902 = vpop.f32.mrb[0].mxu0
        %v7903 = vadd.f32 %v7728, %v7902
        %v7904 = vpop.f32.mrb[0].mxu0
        %7905 = vmatprep.mubr.f32.mxu0 0.0
        %7906 = vmatmul.mubr.f32.gmra.mrb[0].mxu0 %v7791
        %v7907 = vpop.f32.mrb[0].mxu0
        %v7908 = vadd.f32 %v7729, %v7907
        %v7909 = vpop.f32.mrb[0].mxu0
        %7910 = vmatprep.mubr.f32.mxu0 0.0
        %7911 = vmatmul.mubr.f32.gmra.mrb[0].mxu0 %v7793
        %v7912 = vpop.f32.mrb[0].mxu0
        %v7913 = vadd.f32 %v7730, %v7912
        %v7914 = vpop.f32.mrb[0].mxu0
        %7915 = vdwg.mxu0
        %v7916 = vsel %vm1177, %v7878, -inf
        %7917 = vmax.xlane.f32.xlu0 %v7916
        %v7918 = vpop.xlane.xlu0 %7917
        %v7919 = vsel %vm1177, %v7883, -inf
        %7920 = vmax.xlane.f32.xlu0 %v7919
        %v7921 = vpop.xlane.xlu0 %7920
        %v7922 = vsel %vm1177, %v7888, -inf
        %7923 = vmax.xlane.f32.xlu0 %v7922
        %v7924 = vpop.xlane.xlu0 %7923
        %v7925 = vsel %vm1177, %v7893, -inf
        %7926 = vmax.xlane.f32.xlu0 %v7925
        %v7927 = vpop.xlane.xlu0 %7926
        %v7928 = vsel %vm1177, %v7898, -inf
        %7929 = vmax.xlane.f32.xlu0 %v7928
        %v7930 = vpop.xlane.xlu0 %7929
        %v7931 = vsel %vm1177, %v7903, -inf
        %7932 = vmax.xlane.f32.xlu0 %v7931
        %v7933 = vpop.xlane.xlu0 %7932
        %v7934 = vsel %vm1177, %v7908, -inf
        %7935 = vmax.xlane.f32.xlu0 %v7934
        %v7936 = vpop.xlane.xlu0 %7935
        %v7937 = vsel %vm1177, %v7913, -inf
        %7938 = vmax.xlane.f32.xlu0 %v7937
        %v7939 = vpop.xlane.xlu0 %7938
        %v7940 = vsub.f32 %v7878, %v7918
        %v7941 = vsub.f32 %v7883, %v7921
        %v7942 = vsub.f32 %v7888, %v7924
        %v7943 = vsub.f32 %v7893, %v7927
        %v7944 = vsub.f32 %v7898, %v7930
        %v7945 = vsub.f32 %v7903, %v7933
        %v7946 = vsub.f32 %v7908, %v7936
        %v7947 = vsub.f32 %v7913, %v7939
        %v7948 = vmul.f32 %v7940, 1.442695
        %v7949 = vpow.pop %v7948
        %v7950 = vmul.f32 %v7941, 1.442695
        %v7951 = vpow.pop %v7950
        %v7952 = vmul.f32 %v7942, 1.442695
        %v7953 = vpow.pop %v7952
        %v7954 = vmul.f32 %v7943, 1.442695
        %v7955 = vpow.pop %v7954
        %v7956 = vmul.f32 %v7944, 1.442695
        %v7957 = vpow.pop %v7956
        %v7958 = vmul.f32 %v7945, 1.442695
        %v7959 = vpow.pop %v7958
        %v7960 = vmul.f32 %v7946, 1.442695
        %v7961 = vpow.pop %v7960
        %v7962 = vmul.f32 %v7947, 1.442695
        %v7963 = vpow.pop %v7962
        %v7964 = vsel %vm1177, %v7949, 0.0
        %7965 = vadd.xlane.f32.xlu0 %v7964
        %v7966 = vpop.xlane.xlu0 %7965
        %v7967 = vsel %vm1177, %v7951, 0.0
        %7968 = vadd.xlane.f32.xlu0 %v7967
        %v7969 = vpop.xlane.xlu0 %7968
        %v7970 = vsel %vm1177, %v7953, 0.0
        %7971 = vadd.xlane.f32.xlu0 %v7970
        %v7972 = vpop.xlane.xlu0 %7971
        %v7973 = vsel %vm1177, %v7955, 0.0
        %7974 = vadd.xlane.f32.xlu0 %v7973
        %v7975 = vpop.xlane.xlu0 %7974
        %v7976 = vsel %vm1177, %v7957, 0.0
        %7977 = vadd.xlane.f32.xlu0 %v7976
        %v7978 = vpop.xlane.xlu0 %7977
        %v7979 = vsel %vm1177, %v7959, 0.0
        %7980 = vadd.xlane.f32.xlu0 %v7979
        %v7981 = vpop.xlane.xlu0 %7980
        %v7982 = vsel %vm1177, %v7961, 0.0
        %7983 = vadd.xlane.f32.xlu0 %v7982
        %v7984 = vpop.xlane.xlu0 %7983
        %v7985 = vsel %vm1177, %v7963, 0.0
        %7986 = vadd.xlane.f32.xlu0 %v7985
        %v7987 = vpop.xlane.xlu0 %7986
        %v7988 = vrcp.pop %v7966
        %v7989 = vrcp.pop %v7969
        %v7990 = vrcp.pop %v7972
        %v7991 = vrcp.pop %v7975
        %v7992 = vrcp.pop %v7978
        %v7993 = vrcp.pop %v7981
        %v7994 = vrcp.pop %v7984
        %v7995 = vrcp.pop %v7987
        %v7996 = vmul.f32 %v7949, %v7988
        %v7997 = vmul.f32 %v7951, %v7989
        %v7998 = vmul.f32 %v7953, %v7990
        %v7999 = vmul.f32 %v7955, %v7991
        %v8000 = vmul.f32 %v7957, %v7992
        %v8001 = vmul.f32 %v7959, %v7993
        %v8002 = vmul.f32 %v7961, %v7994
        %v8003 = vmul.f32 %v7963, %v7995
        %8012 = vrot.lane.b32.xlu0 %v7715, 64
        %v8013 = vpop.permute.xlu0 %8012
        %8014 = vrot.lane.b32.xlu0 %v7716, 64
        %v8015 = vpop.permute.xlu0 %8014
        %8016 = vrot.lane.b32.xlu0 %v7717, 64
        %v8017 = vpop.permute.xlu0 %8016
        %8018 = vrot.lane.b32.xlu0 %v7718, 64
        %v8019 = vpop.permute.xlu0 %8018
        %8020 = vrot.lane.b32.xlu0 %v7719, 64
        %v8021 = vpop.permute.xlu0 %8020
        %8022 = vrot.lane.b32.xlu0 %v7720, 64
        %v8023 = vpop.permute.xlu0 %8022
        %8024 = vrot.lane.b32.xlu0 %v7721, 64
        %v8025 = vpop.permute.xlu0 %8024
        %8026 = vrot.lane.b32.xlu0 %v7722, 64
        %v8027 = vpop.permute.xlu0 %8026
        %v8037 = vsel %vm1177, %v7996, 0
        %v8040 = vsel %vm1177, %v7997, 0
        %v8043 = vsel %vm1177, %v7998, 0
        %v8046 = vsel %vm1177, %v7999, 0
        %v8049 = vsel %vm1177, %v8000, 0
        %v8052 = vsel %vm1177, %v8001, 0
        %v8055 = vsel %vm1177, %v8002, 0
        %v8058 = vsel %vm1177, %v8003, 0
        %8060 = vmatprep.subr.mxu0 0.0
        %8061 = vmatpush1.msra.mxu0 %v8013
        %8062 = vmatprep.subr.mxu0 0.0
        %8063 = vmatpush1.msra.mxu0 %v8015
        %8064 = vmatprep.subr.mxu0 0.0
        %8065 = vmatpush1.msra.mxu0 %v8017
        %8066 = vmatprep.subr.mxu0 0.0
        %8067 = vmatpush1.msra.mxu0 %v8019
        %8068 = vmatprep.subr.mxu0 0.0
        %8069 = vmatpush1.msra.mxu0 %v8021
        %8070 = vmatprep.subr.mxu0 0.0
        %8071 = vmatpush1.msra.mxu0 %v8023
        %8072 = vmatprep.subr.mxu0 0.0
        %8073 = vmatpush1.msra.mxu0 %v8025
        %8074 = vmatprep.subr.mxu0 0.0
        %8075 = vmatpush1.msra.mxu0 %v8027
        %8076 = vmatprep.subr.mxu0 0.0
        %8077 = vmatpush1.msra.mxu0 0.0
        %8078 = vmatprep.subr.mxu0 0.0
        %8079 = vmatpush1.msra.mxu0 0.0
        %8080 = vmatprep.subr.mxu0 0.0
        %8081 = vmatpush1.msra.mxu0 0.0
        %8082 = vmatprep.subr.mxu0 0.0
        %8083 = vmatpush1.msra.mxu0 0.0
        %8084 = vmatprep.subr.mxu0 0.0
        %8085 = vmatpush1.msra.mxu0 0.0
        %8086 = vmatprep.subr.mxu0 0.0
        %8087 = vmatpush1.msra.mxu0 0.0
        %8088 = vmatprep.subr.mxu0 0.0
        %8089 = vmatpush1.msra.mxu0 0.0
        %8090 = vmatprep.subr.mxu0 0.0
        %8091 = vmatpush1.msra.mxu0 0.0
        %8092 = vmatprep.subr.mxu0 0.0
        %8093 = vmatpush1.msra.mxu0 0.0
        %8094 = vmatprep.subr.mxu0 0.0
        %8095 = vmatpush1.msra.mxu0 0.0
        %8096 = vmatprep.subr.mxu0 0.0
        %8097 = vmatpush1.msra.mxu0 0.0
        %8098 = vmatprep.subr.mxu0 0.0
        %8099 = vmatpush1.msra.mxu0 0.0
        %8100 = vmatprep.subr.mxu0 0.0
        %8101 = vmatpush1.msra.mxu0 0.0
        %8102 = vmatprep.subr.mxu0 0.0
        %8103 = vmatpush1.msra.mxu0 0.0
        %8104 = vmatprep.subr.mxu0 0.0
        %8105 = vmatpush1.msra.mxu0 0.0
        %8106 = vmatprep.subr.mxu0 0.0
        %8107 = vmatpush1.msra.mxu0 0.0
        %8108 = vmatprep.subr.mxu0 0.0
        %8109 = vmatpush1.msra.mxu0 0.0
        %8110 = vmatprep.subr.mxu0 0.0
        %8111 = vmatpush1.msra.mxu0 0.0
        %8112 = vmatprep.subr.mxu0 0.0
        %8113 = vmatpush1.msra.mxu0 0.0
        %8114 = vmatprep.subr.mxu0 0.0
        %8115 = vmatpush1.msra.mxu0 0.0
        %8116 = vmatprep.subr.mxu0 0.0
        %8117 = vmatpush1.msra.mxu0 0.0
        %8118 = vmatprep.subr.mxu0 0.0
        %8119 = vmatpush1.msra.mxu0 0.0
        %8120 = vmatprep.subr.mxu0 0.0
        %8121 = vmatpush1.msra.mxu0 0.0
        %8122 = vmatprep.subr.mxu0 0.0
        %8123 = vmatpush1.msra.mxu0 0.0
        %8124 = vmatprep.mubr.f32.mxu0 0.0
        %8125 = vmatmul.mubr.f32.gmra.mrb[0].mxu0 %v8037
        %v8126 = vpop.f32.mrb[0].mxu0
        %v8127 = vadd.f32 0.0, %v8126
        %v8128 = vpop.f32.mrb[0].mxu0
        %8129 = vmatprep.mubr.f32.mxu0 0.0
        %8130 = vmatmul.mubr.f32.gmra.mrb[0].mxu0 %v8040
        %v8131 = vpop.f32.mrb[0].mxu0
        %v8132 = vadd.f32 0.0, %v8131
        %v8133 = vpop.f32.mrb[0].mxu0
        %8134 = vmatprep.mubr.f32.mxu0 0.0
        %8135 = vmatmul.mubr.f32.gmra.mrb[0].mxu0 %v8043
        %v8136 = vpop.f32.mrb[0].mxu0
        %v8137 = vadd.f32 0.0, %v8136
        %v8138 = vpop.f32.mrb[0].mxu0
        %8139 = vmatprep.mubr.f32.mxu0 0.0
        %8140 = vmatmul.mubr.f32.gmra.mrb[0].mxu0 %v8046
        %v8141 = vpop.f32.mrb[0].mxu0
        %v8142 = vadd.f32 0.0, %v8141
        %v8143 = vpop.f32.mrb[0].mxu0
        %8144 = vmatprep.mubr.f32.mxu0 0.0
        %8145 = vmatmul.mubr.f32.gmra.mrb[0].mxu0 %v8049
        %v8146 = vpop.f32.mrb[0].mxu0
        %v8147 = vadd.f32 0.0, %v8146
        %v8148 = vpop.f32.mrb[0].mxu0
        %8149 = vmatprep.mubr.f32.mxu0 0.0
        %8150 = vmatmul.mubr.f32.gmra.mrb[0].mxu0 %v8052
        %v8151 = vpop.f32.mrb[0].mxu0
        %v8152 = vadd.f32 0.0, %v8151
        %v8153 = vpop.f32.mrb[0].mxu0
        %8154 = vmatprep.mubr.f32.mxu0 0.0
        %8155 = vmatmul.mubr.f32.gmra.mrb[0].mxu0 %v8055
        %v8156 = vpop.f32.mrb[0].mxu0
        %v8157 = vadd.f32 0.0, %v8156
        %v8158 = vpop.f32.mrb[0].mxu0
        %8159 = vmatprep.mubr.f32.mxu0 0.0
        %8160 = vmatmul.mubr.f32.gmra.mrb[0].mxu0 %v8058
        %v8161 = vpop.f32.mrb[0].mxu0
        %v8162 = vadd.f32 0.0, %v8161
        %v8163 = vpop.f32.mrb[0].mxu0
        %8164 = vdwg.mxu0
        %8173 = vrot.lane.b32.xlu0 %v8127, 64
        %v8174 = vpop.permute.xlu0 %8173
        %8175 = vrot.lane.b32.xlu0 %v8132, 64
        %v8176 = vpop.permute.xlu0 %8175
        %8177 = vrot.lane.b32.xlu0 %v8137, 64
        %v8178 = vpop.permute.xlu0 %8177
        %8179 = vrot.lane.b32.xlu0 %v8142, 64
        %v8180 = vpop.permute.xlu0 %8179
        %8181 = vrot.lane.b32.xlu0 %v8147, 64
        %v8182 = vpop.permute.xlu0 %8181
        %8183 = vrot.lane.b32.xlu0 %v8152, 64
        %v8184 = vpop.permute.xlu0 %8183
        %8185 = vrot.lane.b32.xlu0 %v8157, 64
        %v8186 = vpop.permute.xlu0 %8185
        %8187 = vrot.lane.b32.xlu0 %v8162, 64
        %v8188 = vpop.permute.xlu0 %8187
        %8197 = vst.msk [vmem:[#allocation3 + $0xc0] sm:$0xff] %vm2410, %v8174
        %8198 = vst.msk [vmem:[#allocation3 + $0xc8] sm:$0xff] %vm2410, %v8176
        %8199 = vst.msk [vmem:[#allocation3 + $0xd0] sm:$0xff] %vm2410, %v8178
        %8200 = vst.msk [vmem:[#allocation3 + $0xd8] sm:$0xff] %vm2410, %v8180
        %8201 = vst.msk [vmem:[#allocation3 + $0xe0] sm:$0xff] %vm2410, %v8182
        %8202 = vst.msk [vmem:[#allocation3 + $0xe8] sm:$0xff] %vm2410, %v8184
        %8203 = vst.msk [vmem:[#allocation3 + $0xf0] sm:$0xff] %vm2410, %v8186
        %8204 = vst.msk [vmem:[#allocation3 + $0xf8] sm:$0xff] %vm2410, %v8188
        %v8205 = vld [vmem:[#allocation2 + $0x240] sm:$0xff]
        %v8206 = vld [vmem:[#allocation2 + $0x258] sm:$0xff]
        %v8207 = vld [vmem:[#allocation2 + $0x270] sm:$0xff]
        %v8208 = vld [vmem:[#allocation2 + $0x288] sm:$0xff]
        %v8209 = vld [vmem:[#allocation2 + $0x2a0] sm:$0xff]
        %v8210 = vld [vmem:[#allocation2 + $0x2b8] sm:$0xff]
        %v8211 = vld [vmem:[#allocation2 + $0x2d0] sm:$0xff]
        %v8212 = vld [vmem:[#allocation2 + $0x2e8] sm:$0xff]
        %v8213 = vld [vmem:[#allocation2 + $0x248] sm:$0xff]
        %v8214 = vld [vmem:[#allocation2 + $0x260] sm:$0xff]
        %v8215 = vld [vmem:[#allocation2 + $0x278] sm:$0xff]
        %v8216 = vld [vmem:[#allocation2 + $0x290] sm:$0xff]
        %v8217 = vld [vmem:[#allocation2 + $0x2a8] sm:$0xff]
        %v8218 = vld [vmem:[#allocation2 + $0x2c0] sm:$0xff]
        %v8219 = vld [vmem:[#allocation2 + $0x2d8] sm:$0xff]
        %v8220 = vld [vmem:[#allocation2 + $0x2f0] sm:$0xff]
        %v8221 = vld [vmem:[#allocation2 + $0x250] sm:$0xff]
        %v8222 = vld [vmem:[#allocation2 + $0x268] sm:$0xff]
        %v8223 = vld [vmem:[#allocation2 + $0x280] sm:$0xff]
        %v8224 = vld [vmem:[#allocation2 + $0x298] sm:$0xff]
        %v8225 = vld [vmem:[#allocation2 + $0x2b0] sm:$0xff]
        %v8226 = vld [vmem:[#allocation2 + $0x2c8] sm:$0xff]
        %v8227 = vld [vmem:[#allocation2 + $0x2e0] sm:$0xff]
        %v8228 = vld [vmem:[#allocation2 + $0x2f8] sm:$0xff]
        %v8229 = vld [vmem:[%s2443] sm:$0xff]
        %v8230 = vld [vmem:[%s2443 + $0x8] sm:$0xff]
        %v8231 = vld [vmem:[%s2443 + $0x10] sm:$0xff]
        %v8232 = vld [vmem:[%s2443 + $0x18] sm:$0xff]
        %v8233 = vld [vmem:[%s2443 + $0x20] sm:$0xff]
        %v8234 = vld [vmem:[%s2443 + $0x28] sm:$0xff]
        %v8235 = vld [vmem:[%s2443 + $0x30] sm:$0xff]
        %v8236 = vld [vmem:[%s2443 + $0x38] sm:$0xff]
        %8245 = vrot.lane.b32.xlu0 %v8205, 32
        %v8246 = vpop.permute.xlu0 %8245
        %8247 = vrot.lane.b32.xlu0 %v8206, 32
        %v8248 = vpop.permute.xlu0 %8247
        %8249 = vrot.lane.b32.xlu0 %v8207, 32
        %v8250 = vpop.permute.xlu0 %8249
        %8251 = vrot.lane.b32.xlu0 %v8208, 32
        %v8252 = vpop.permute.xlu0 %8251
        %8253 = vrot.lane.b32.xlu0 %v8209, 32
        %v8254 = vpop.permute.xlu0 %8253
        %8255 = vrot.lane.b32.xlu0 %v8210, 32
        %v8256 = vpop.permute.xlu0 %8255
        %8257 = vrot.lane.b32.xlu0 %v8211, 32
        %v8258 = vpop.permute.xlu0 %8257
        %8259 = vrot.lane.b32.xlu0 %v8212, 32
        %v8260 = vpop.permute.xlu0 %8259
        %8269 = vrot.lane.b32.xlu0 %v8213, 32
        %v8270 = vpop.permute.xlu0 %8269
        %8271 = vrot.lane.b32.xlu0 %v8214, 32
        %v8272 = vpop.permute.xlu0 %8271
        %8273 = vrot.lane.b32.xlu0 %v8215, 32
        %v8274 = vpop.permute.xlu0 %8273
        %8275 = vrot.lane.b32.xlu0 %v8216, 32
        %v8276 = vpop.permute.xlu0 %8275
        %8277 = vrot.lane.b32.xlu0 %v8217, 32
        %v8278 = vpop.permute.xlu0 %8277
        %8279 = vrot.lane.b32.xlu0 %v8218, 32
        %v8280 = vpop.permute.xlu0 %8279
        %8281 = vrot.lane.b32.xlu0 %v8219, 32
        %v8282 = vpop.permute.xlu0 %8281
        %8283 = vrot.lane.b32.xlu0 %v8220, 32
        %v8284 = vpop.permute.xlu0 %8283
        %v8285 = vsel %vm1023, %v8246, 0
        %v8287 = vsel %vm1023, %v8248, 0
        %v8289 = vsel %vm1023, %v8250, 0
        %v8291 = vsel %vm1023, %v8252, 0
        %v8293 = vsel %vm1023, %v8254, 0
        %v8295 = vsel %vm1023, %v8256, 0
        %v8297 = vsel %vm1023, %v8258, 0
        %v8299 = vsel %vm1023, %v8260, 0
        %v8301 = vsel %vm1023, %v8270, 0
        %v8303 = vsel %vm1023, %v8272, 0
        %v8305 = vsel %vm1023, %v8274, 0
        %v8307 = vsel %vm1023, %v8276, 0
        %v8309 = vsel %vm1023, %v8278, 0
        %v8311 = vsel %vm1023, %v8280, 0
        %v8313 = vsel %vm1023, %v8282, 0
        %v8315 = vsel %vm1023, %v8284, 0
        %8317 = vmatprep.subr.mxu0 0.0
        %8318 = vmatpush1.xpose.msra.mxu0 %v8301
        %8319 = vmatprep.subr.mxu0 0.0
        %8320 = vmatpush1.xpose.msra.mxu0 %v8303
        %8321 = vmatprep.subr.mxu0 0.0
        %8322 = vmatpush1.xpose.msra.mxu0 %v8305
        %8323 = vmatprep.subr.mxu0 0.0
        %8324 = vmatpush1.xpose.msra.mxu0 %v8307
        %8325 = vmatprep.subr.mxu0 0.0
        %8326 = vmatpush1.xpose.msra.mxu0 %v8309
        %8327 = vmatprep.subr.mxu0 0.0
        %8328 = vmatpush1.xpose.msra.mxu0 %v8311
        %8329 = vmatprep.subr.mxu0 0.0
        %8330 = vmatpush1.xpose.msra.mxu0 %v8313
        %8331 = vmatprep.subr.mxu0 0.0
        %8332 = vmatpush1.xpose.msra.mxu0 %v8315
        %8333 = vmatprep.subr.mxu0 0.0
        %8334 = vmatpush1.xpose.msra.mxu0 0.0
        %8335 = vmatprep.subr.mxu0 0.0
        %8336 = vmatpush1.xpose.msra.mxu0 0.0
        %8337 = vmatprep.subr.mxu0 0.0
        %8338 = vmatpush1.xpose.msra.mxu0 0.0
        %8339 = vmatprep.subr.mxu0 0.0
        %8340 = vmatpush1.xpose.msra.mxu0 0.0
        %8341 = vmatprep.subr.mxu0 0.0
        %8342 = vmatpush1.xpose.msra.mxu0 0.0
        %8343 = vmatprep.subr.mxu0 0.0
        %8344 = vmatpush1.xpose.msra.mxu0 0.0
        %8345 = vmatprep.subr.mxu0 0.0
        %8346 = vmatpush1.xpose.msra.mxu0 0.0
        %8347 = vmatprep.subr.mxu0 0.0
        %8348 = vmatpush1.xpose.msra.mxu0 0.0
        %8349 = vmatprep.subr.mxu0 0.0
        %8350 = vmatpush1.xpose.msra.mxu0 0.0
        %8351 = vmatprep.subr.mxu0 0.0
        %8352 = vmatpush1.xpose.msra.mxu0 0.0
        %8353 = vmatprep.subr.mxu0 0.0
        %8354 = vmatpush1.xpose.msra.mxu0 0.0
        %8355 = vmatprep.subr.mxu0 0.0
        %8356 = vmatpush1.xpose.msra.mxu0 0.0
        %8357 = vmatprep.subr.mxu0 0.0
        %8358 = vmatpush1.xpose.msra.mxu0 0.0
        %8359 = vmatprep.subr.mxu0 0.0
        %8360 = vmatpush1.xpose.msra.mxu0 0.0
        %8361 = vmatprep.subr.mxu0 0.0
        %8362 = vmatpush1.xpose.msra.mxu0 0.0
        %8363 = vmatprep.subr.mxu0 0.0
        %8364 = vmatpush1.xpose.msra.mxu0 0.0
        %8365 = vmatprep.subr.mxu0 0.0
        %8366 = vmatpush1.xpose.msra.mxu0 0.0
        %8367 = vmatprep.subr.mxu0 0.0
        %8368 = vmatpush1.xpose.msra.mxu0 0.0
        %8369 = vmatprep.subr.mxu0 0.0
        %8370 = vmatpush1.xpose.msra.mxu0 0.0
        %8371 = vmatprep.subr.mxu0 0.0
        %8372 = vmatpush1.xpose.msra.mxu0 0.0
        %8373 = vmatprep.subr.mxu0 0.0
        %8374 = vmatpush1.xpose.msra.mxu0 0.0
        %8375 = vmatprep.subr.mxu0 0.0
        %8376 = vmatpush1.xpose.msra.mxu0 0.0
        %8377 = vmatprep.subr.mxu0 0.0
        %8378 = vmatpush1.xpose.msra.mxu0 0.0
        %8379 = vmatprep.subr.mxu0 0.0
        %8380 = vmatpush1.xpose.msra.mxu0 0.0
        %8381 = vmatprep.mubr.f32.mxu0 0.0
        %8382 = vmatmul.mubr.f32.gmra.mrb[0].mxu0 %v8285
        %v8383 = vpop.f32.mrb[0].mxu0
        %v8384 = vadd.f32 %v8229, %v8383
        %v8385 = vpop.f32.mrb[0].mxu0
        %8386 = vmatprep.mubr.f32.mxu0 0.0
        %8387 = vmatmul.mubr.f32.gmra.mrb[0].mxu0 %v8287
        %v8388 = vpop.f32.mrb[0].mxu0
        %v8389 = vadd.f32 %v8230, %v8388
        %v8390 = vpop.f32.mrb[0].mxu0
        %8391 = vmatprep.mubr.f32.mxu0 0.0
        %8392 = vmatmul.mubr.f32.gmra.mrb[0].mxu0 %v8289
        %v8393 = vpop.f32.mrb[0].mxu0
        %v8394 = vadd.f32 %v8231, %v8393
        %v8395 = vpop.f32.mrb[0].mxu0
        %8396 = vmatprep.mubr.f32.mxu0 0.0
        %8397 = vmatmul.mubr.f32.gmra.mrb[0].mxu0 %v8291
        %v8398 = vpop.f32.mrb[0].mxu0
        %v8399 = vadd.f32 %v8232, %v8398
        %v8400 = vpop.f32.mrb[0].mxu0
        %8401 = vmatprep.mubr.f32.mxu0 0.0
        %8402 = vmatmul.mubr.f32.gmra.mrb[0].mxu0 %v8293
        %v8403 = vpop.f32.mrb[0].mxu0
        %v8404 = vadd.f32 %v8233, %v8403
        %v8405 = vpop.f32.mrb[0].mxu0
        %8406 = vmatprep.mubr.f32.mxu0 0.0
        %8407 = vmatmul.mubr.f32.gmra.mrb[0].mxu0 %v8295
        %v8408 = vpop.f32.mrb[0].mxu0
        %v8409 = vadd.f32 %v8234, %v8408
        %v8410 = vpop.f32.mrb[0].mxu0
        %8411 = vmatprep.mubr.f32.mxu0 0.0
        %8412 = vmatmul.mubr.f32.gmra.mrb[0].mxu0 %v8297
        %v8413 = vpop.f32.mrb[0].mxu0
        %v8414 = vadd.f32 %v8235, %v8413
        %v8415 = vpop.f32.mrb[0].mxu0
        %8416 = vmatprep.mubr.f32.mxu0 0.0
        %8417 = vmatmul.mubr.f32.gmra.mrb[0].mxu0 %v8299
        %v8418 = vpop.f32.mrb[0].mxu0
        %v8419 = vadd.f32 %v8236, %v8418
        %v8420 = vpop.f32.mrb[0].mxu0
        %8421 = vdwg.mxu0
        %v8422 = vsel %vm1177, %v8384, -inf
        %8423 = vmax.xlane.f32.xlu0 %v8422
        %v8424 = vpop.xlane.xlu0 %8423
        %v8425 = vsel %vm1177, %v8389, -inf
        %8426 = vmax.xlane.f32.xlu0 %v8425
        %v8427 = vpop.xlane.xlu0 %8426
        %v8428 = vsel %vm1177, %v8394, -inf
        %8429 = vmax.xlane.f32.xlu0 %v8428
        %v8430 = vpop.xlane.xlu0 %8429
        %v8431 = vsel %vm1177, %v8399, -inf
        %8432 = vmax.xlane.f32.xlu0 %v8431
        %v8433 = vpop.xlane.xlu0 %8432
        %v8434 = vsel %vm1177, %v8404, -inf
        %8435 = vmax.xlane.f32.xlu0 %v8434
        %v8436 = vpop.xlane.xlu0 %8435
        %v8437 = vsel %vm1177, %v8409, -inf
        %8438 = vmax.xlane.f32.xlu0 %v8437
        %v8439 = vpop.xlane.xlu0 %8438
        %v8440 = vsel %vm1177, %v8414, -inf
        %8441 = vmax.xlane.f32.xlu0 %v8440
        %v8442 = vpop.xlane.xlu0 %8441
        %v8443 = vsel %vm1177, %v8419, -inf
        %8444 = vmax.xlane.f32.xlu0 %v8443
        %v8445 = vpop.xlane.xlu0 %8444
        %v8446 = vsub.f32 %v8384, %v8424
        %v8447 = vsub.f32 %v8389, %v8427
        %v8448 = vsub.f32 %v8394, %v8430
        %v8449 = vsub.f32 %v8399, %v8433
        %v8450 = vsub.f32 %v8404, %v8436
        %v8451 = vsub.f32 %v8409, %v8439
        %v8452 = vsub.f32 %v8414, %v8442
        %v8453 = vsub.f32 %v8419, %v8445
        %v8454 = vmul.f32 %v8446, 1.442695
        %v8455 = vpow.pop %v8454
        %v8456 = vmul.f32 %v8447, 1.442695
        %v8457 = vpow.pop %v8456
        %v8458 = vmul.f32 %v8448, 1.442695
        %v8459 = vpow.pop %v8458
        %v8460 = vmul.f32 %v8449, 1.442695
        %v8461 = vpow.pop %v8460
        %v8462 = vmul.f32 %v8450, 1.442695
        %v8463 = vpow.pop %v8462
        %v8464 = vmul.f32 %v8451, 1.442695
        %v8465 = vpow.pop %v8464
        %v8466 = vmul.f32 %v8452, 1.442695
        %v8467 = vpow.pop %v8466
        %v8468 = vmul.f32 %v8453, 1.442695
        %v8469 = vpow.pop %v8468
        %v8470 = vsel %vm1177, %v8455, 0.0
        %8471 = vadd.xlane.f32.xlu0 %v8470
        %v8472 = vpop.xlane.xlu0 %8471
        %v8473 = vsel %vm1177, %v8457, 0.0
        %8474 = vadd.xlane.f32.xlu0 %v8473
        %v8475 = vpop.xlane.xlu0 %8474
        %v8476 = vsel %vm1177, %v8459, 0.0
        %8477 = vadd.xlane.f32.xlu0 %v8476
        %v8478 = vpop.xlane.xlu0 %8477
        %v8479 = vsel %vm1177, %v8461, 0.0
        %8480 = vadd.xlane.f32.xlu0 %v8479
        %v8481 = vpop.xlane.xlu0 %8480
        %v8482 = vsel %vm1177, %v8463, 0.0
        %8483 = vadd.xlane.f32.xlu0 %v8482
        %v8484 = vpop.xlane.xlu0 %8483
        %v8485 = vsel %vm1177, %v8465, 0.0
        %8486 = vadd.xlane.f32.xlu0 %v8485
        %v8487 = vpop.xlane.xlu0 %8486
        %v8488 = vsel %vm1177, %v8467, 0.0
        %8489 = vadd.xlane.f32.xlu0 %v8488
        %v8490 = vpop.xlane.xlu0 %8489
        %v8491 = vsel %vm1177, %v8469, 0.0
        %8492 = vadd.xlane.f32.xlu0 %v8491
        %v8493 = vpop.xlane.xlu0 %8492
        %v8494 = vrcp.pop %v8472
        %v8495 = vrcp.pop %v8475
        %v8496 = vrcp.pop %v8478
        %v8497 = vrcp.pop %v8481
        %v8498 = vrcp.pop %v8484
        %v8499 = vrcp.pop %v8487
        %v8500 = vrcp.pop %v8490
        %v8501 = vrcp.pop %v8493
        %v8502 = vmul.f32 %v8455, %v8494
        %v8503 = vmul.f32 %v8457, %v8495
        %v8504 = vmul.f32 %v8459, %v8496
        %v8505 = vmul.f32 %v8461, %v8497
        %v8506 = vmul.f32 %v8463, %v8498
        %v8507 = vmul.f32 %v8465, %v8499
        %v8508 = vmul.f32 %v8467, %v8500
        %v8509 = vmul.f32 %v8469, %v8501
        %8518 = vrot.lane.b32.xlu0 %v8221, 32
        %v8519 = vpop.permute.xlu0 %8518
        %8520 = vrot.lane.b32.xlu0 %v8222, 32
        %v8521 = vpop.permute.xlu0 %8520
        %8522 = vrot.lane.b32.xlu0 %v8223, 32
        %v8523 = vpop.permute.xlu0 %8522
        %8524 = vrot.lane.b32.xlu0 %v8224, 32
        %v8525 = vpop.permute.xlu0 %8524
        %8526 = vrot.lane.b32.xlu0 %v8225, 32
        %v8527 = vpop.permute.xlu0 %8526
        %8528 = vrot.lane.b32.xlu0 %v8226, 32
        %v8529 = vpop.permute.xlu0 %8528
        %8530 = vrot.lane.b32.xlu0 %v8227, 32
        %v8531 = vpop.permute.xlu0 %8530
        %8532 = vrot.lane.b32.xlu0 %v8228, 32
        %v8533 = vpop.permute.xlu0 %8532
        %v8543 = vsel %vm1177, %v8502, 0
        %v8546 = vsel %vm1177, %v8503, 0
        %v8549 = vsel %vm1177, %v8504, 0
        %v8552 = vsel %vm1177, %v8505, 0
        %v8555 = vsel %vm1177, %v8506, 0
        %v8558 = vsel %vm1177, %v8507, 0
        %v8561 = vsel %vm1177, %v8508, 0
        %v8564 = vsel %vm1177, %v8509, 0
        %8566 = vmatprep.subr.mxu0 0.0
        %8567 = vmatpush1.msra.mxu0 %v8519
        %8568 = vmatprep.subr.mxu0 0.0
        %8569 = vmatpush1.msra.mxu0 %v8521
        %8570 = vmatprep.subr.mxu0 0.0
        %8571 = vmatpush1.msra.mxu0 %v8523
        %8572 = vmatprep.subr.mxu0 0.0
        %8573 = vmatpush1.msra.mxu0 %v8525
        %8574 = vmatprep.subr.mxu0 0.0
        %8575 = vmatpush1.msra.mxu0 %v8527
        %8576 = vmatprep.subr.mxu0 0.0
        %8577 = vmatpush1.msra.mxu0 %v8529
        %8578 = vmatprep.subr.mxu0 0.0
        %8579 = vmatpush1.msra.mxu0 %v8531
        %8580 = vmatprep.subr.mxu0 0.0
        %8581 = vmatpush1.msra.mxu0 %v8533
        %8582 = vmatprep.subr.mxu0 0.0
        %8583 = vmatpush1.msra.mxu0 0.0
        %8584 = vmatprep.subr.mxu0 0.0
        %8585 = vmatpush1.msra.mxu0 0.0
        %8586 = vmatprep.subr.mxu0 0.0
        %8587 = vmatpush1.msra.mxu0 0.0
        %8588 = vmatprep.subr.mxu0 0.0
        %8589 = vmatpush1.msra.mxu0 0.0
        %8590 = vmatprep.subr.mxu0 0.0
        %8591 = vmatpush1.msra.mxu0 0.0
        %8592 = vmatprep.subr.mxu0 0.0
        %8593 = vmatpush1.msra.mxu0 0.0
        %8594 = vmatprep.subr.mxu0 0.0
        %8595 = vmatpush1.msra.mxu0 0.0
        %8596 = vmatprep.subr.mxu0 0.0
        %8597 = vmatpush1.msra.mxu0 0.0
        %8598 = vmatprep.subr.mxu0 0.0
        %8599 = vmatpush1.msra.mxu0 0.0
        %8600 = vmatprep.subr.mxu0 0.0
        %8601 = vmatpush1.msra.mxu0 0.0
        %8602 = vmatprep.subr.mxu0 0.0
        %8603 = vmatpush1.msra.mxu0 0.0
        %8604 = vmatprep.subr.mxu0 0.0
        %8605 = vmatpush1.msra.mxu0 0.0
        %8606 = vmatprep.subr.mxu0 0.0
        %8607 = vmatpush1.msra.mxu0 0.0
        %8608 = vmatprep.subr.mxu0 0.0
        %8609 = vmatpush1.msra.mxu0 0.0
        %8610 = vmatprep.subr.mxu0 0.0
        %8611 = vmatpush1.msra.mxu0 0.0
        %8612 = vmatprep.subr.mxu0 0.0
        %8613 = vmatpush1.msra.mxu0 0.0
        %8614 = vmatprep.subr.mxu0 0.0
        %8615 = vmatpush1.msra.mxu0 0.0
        %8616 = vmatprep.subr.mxu0 0.0
        %8617 = vmatpush1.msra.mxu0 0.0
        %8618 = vmatprep.subr.mxu0 0.0
        %8619 = vmatpush1.msra.mxu0 0.0
        %8620 = vmatprep.subr.mxu0 0.0
        %8621 = vmatpush1.msra.mxu0 0.0
        %8622 = vmatprep.subr.mxu0 0.0
        %8623 = vmatpush1.msra.mxu0 0.0
        %8624 = vmatprep.subr.mxu0 0.0
        %8625 = vmatpush1.msra.mxu0 0.0
        %8626 = vmatprep.subr.mxu0 0.0
        %8627 = vmatpush1.msra.mxu0 0.0
        %8628 = vmatprep.subr.mxu0 0.0
        %8629 = vmatpush1.msra.mxu0 0.0
        %8630 = vmatprep.mubr.f32.mxu0 0.0
        %8631 = vmatmul.mubr.f32.gmra.mrb[0].mxu0 %v8543
        %v8632 = vpop.f32.mrb[0].mxu0
        %v8633 = vadd.f32 0.0, %v8632
        %v8634 = vpop.f32.mrb[0].mxu0
        %8635 = vmatprep.mubr.f32.mxu0 0.0
        %8636 = vmatmul.mubr.f32.gmra.mrb[0].mxu0 %v8546
        %v8637 = vpop.f32.mrb[0].mxu0
        %v8638 = vadd.f32 0.0, %v8637
        %v8639 = vpop.f32.mrb[0].mxu0
        %8640 = vmatprep.mubr.f32.mxu0 0.0
        %8641 = vmatmul.mubr.f32.gmra.mrb[0].mxu0 %v8549
        %v8642 = vpop.f32.mrb[0].mxu0
        %v8643 = vadd.f32 0.0, %v8642
        %v8644 = vpop.f32.mrb[0].mxu0
        %8645 = vmatprep.mubr.f32.mxu0 0.0
        %8646 = vmatmul.mubr.f32.gmra.mrb[0].mxu0 %v8552
        %v8647 = vpop.f32.mrb[0].mxu0
        %v8648 = vadd.f32 0.0, %v8647
        %v8649 = vpop.f32.mrb[0].mxu0
        %8650 = vmatprep.mubr.f32.mxu0 0.0
        %8651 = vmatmul.mubr.f32.gmra.mrb[0].mxu0 %v8555
        %v8652 = vpop.f32.mrb[0].mxu0
        %v8653 = vadd.f32 0.0, %v8652
        %v8654 = vpop.f32.mrb[0].mxu0
        %8655 = vmatprep.mubr.f32.mxu0 0.0
        %8656 = vmatmul.mubr.f32.gmra.mrb[0].mxu0 %v8558
        %v8657 = vpop.f32.mrb[0].mxu0
        %v8658 = vadd.f32 0.0, %v8657
        %v8659 = vpop.f32.mrb[0].mxu0
        %8660 = vmatprep.mubr.f32.mxu0 0.0
        %8661 = vmatmul.mubr.f32.gmra.mrb[0].mxu0 %v8561
        %v8662 = vpop.f32.mrb[0].mxu0
        %v8663 = vadd.f32 0.0, %v8662
        %v8664 = vpop.f32.mrb[0].mxu0
        %8665 = vmatprep.mubr.f32.mxu0 0.0
        %8666 = vmatmul.mubr.f32.gmra.mrb[0].mxu0 %v8564
        %v8667 = vpop.f32.mrb[0].mxu0
        %v8668 = vadd.f32 0.0, %v8667
        %v8669 = vpop.f32.mrb[0].mxu0
        %8670 = vdwg.mxu0
        %8679 = vrot.lane.b32.xlu0 %v8633, 96
        %v8680 = vpop.permute.xlu0 %8679
        %8681 = vrot.lane.b32.xlu0 %v8638, 96
        %v8682 = vpop.permute.xlu0 %8681
        %8683 = vrot.lane.b32.xlu0 %v8643, 96
        %v8684 = vpop.permute.xlu0 %8683
        %8685 = vrot.lane.b32.xlu0 %v8648, 96
        %v8686 = vpop.permute.xlu0 %8685
        %8687 = vrot.lane.b32.xlu0 %v8653, 96
        %v8688 = vpop.permute.xlu0 %8687
        %8689 = vrot.lane.b32.xlu0 %v8658, 96
        %v8690 = vpop.permute.xlu0 %8689
        %8691 = vrot.lane.b32.xlu0 %v8663, 96
        %v8692 = vpop.permute.xlu0 %8691
        %8693 = vrot.lane.b32.xlu0 %v8668, 96
        %v8694 = vpop.permute.xlu0 %8693
        %8703 = vst.msk [vmem:[#allocation3 + $0xc0] sm:$0xff] %vm2918, %v8680
        %8704 = vst.msk [vmem:[#allocation3 + $0xc8] sm:$0xff] %vm2918, %v8682
        %8705 = vst.msk [vmem:[#allocation3 + $0xd0] sm:$0xff] %vm2918, %v8684
        %8706 = vst.msk [vmem:[#allocation3 + $0xd8] sm:$0xff] %vm2918, %v8686
        %8707 = vst.msk [vmem:[#allocation3 + $0xe0] sm:$0xff] %vm2918, %v8688
        %8708 = vst.msk [vmem:[#allocation3 + $0xe8] sm:$0xff] %vm2918, %v8690
        %8709 = vst.msk [vmem:[#allocation3 + $0xf0] sm:$0xff] %vm2918, %v8692
        %8710 = vst.msk [vmem:[#allocation3 + $0xf8] sm:$0xff] %vm2918, %v8694
        %v8711 = vld [vmem:[#allocation3] sm:$0xff]
        %v8712 = vld [vmem:[#allocation3 + $0x8] sm:$0xff]
        %v8713 = vld [vmem:[#allocation3 + $0x10] sm:$0xff]
        %v8714 = vld [vmem:[#allocation3 + $0x18] sm:$0xff]
        %v8715 = vld [vmem:[#allocation3 + $0x20] sm:$0xff]
        %v8716 = vld [vmem:[#allocation3 + $0x28] sm:$0xff]
        %v8717 = vld [vmem:[#allocation3 + $0x30] sm:$0xff]
        %v8718 = vld [vmem:[#allocation3 + $0x38] sm:$0xff]
        %v8719 = vld [vmem:[#allocation3 + $0x40] sm:$0xff]
        %v8720 = vld [vmem:[#allocation3 + $0x48] sm:$0xff]
        %v8721 = vld [vmem:[#allocation3 + $0x50] sm:$0xff]
        %v8722 = vld [vmem:[#allocation3 + $0x58] sm:$0xff]
        %v8723 = vld [vmem:[#allocation3 + $0x60] sm:$0xff]
        %v8724 = vld [vmem:[#allocation3 + $0x68] sm:$0xff]
        %v8725 = vld [vmem:[#allocation3 + $0x70] sm:$0xff]
        %v8726 = vld [vmem:[#allocation3 + $0x78] sm:$0xff]
        %v8727 = vld [vmem:[#allocation3 + $0x80] sm:$0xff]
        %v8728 = vld [vmem:[#allocation3 + $0x88] sm:$0xff]
        %v8729 = vld [vmem:[#allocation3 + $0x90] sm:$0xff]
        %v8730 = vld [vmem:[#allocation3 + $0x98] sm:$0xff]
        %v8731 = vld [vmem:[#allocation3 + $0xa0] sm:$0xff]
        %v8732 = vld [vmem:[#allocation3 + $0xa8] sm:$0xff]
        %v8733 = vld [vmem:[#allocation3 + $0xb0] sm:$0xff]
        %v8734 = vld [vmem:[#allocation3 + $0xb8] sm:$0xff]
        %v8735 = vld [vmem:[#allocation3 + $0xc0] sm:$0xff]
        %v8736 = vld [vmem:[#allocation3 + $0xc8] sm:$0xff]
        %v8737 = vld [vmem:[#allocation3 + $0xd0] sm:$0xff]
        %v8738 = vld [vmem:[#allocation3 + $0xd8] sm:$0xff]
        %v8739 = vld [vmem:[#allocation3 + $0xe0] sm:$0xff]
        %v8740 = vld [vmem:[#allocation3 + $0xe8] sm:$0xff]
        %v8741 = vld [vmem:[#allocation3 + $0xf0] sm:$0xff]
        %v8742 = vld [vmem:[#allocation3 + $0xf8] sm:$0xff]
        %v8743 = vld [vmem:[#allocation9] sm:$0xff]
        %v8744 = vld [vmem:[#allocation9 + $0x8] sm:$0xff]
        %v8745 = vld [vmem:[#allocation9 + $0x10] sm:$0xff]
        %v8746 = vld [vmem:[#allocation9 + $0x18] sm:$0xff]
        %v8747 = vld [vmem:[#allocation9 + $0x20] sm:$0xff]
        %v8748 = vld [vmem:[#allocation9 + $0x28] sm:$0xff]
        %v8749 = vld [vmem:[#allocation9 + $0x30] sm:$0xff]
        %v8750 = vld [vmem:[#allocation9 + $0x38] sm:$0xff]
        %v8751 = vld [vmem:[#allocation9 + $0x40] sm:$0xff]
        %v8752 = vld [vmem:[#allocation9 + $0x48] sm:$0xff]
        %v8753 = vld [vmem:[#allocation9 + $0x50] sm:$0xff]
        %v8754 = vld [vmem:[#allocation9 + $0x58] sm:$0xff]
        %v8755 = vld [vmem:[#allocation9 + $0x60] sm:$0xff]
        %v8756 = vld [vmem:[#allocation9 + $0x68] sm:$0xff]
        %v8757 = vld [vmem:[#allocation9 + $0x70] sm:$0xff]
        %v8758 = vld [vmem:[#allocation9 + $0x78] sm:$0xff]
        %v8759 = vld [vmem:[%s4] sm:$0x1]
        %v8761 = vlaneseq
        %v8762 = vshrl.u32 %v8761, 7
        %v8763 = vsub.s32 0, %v8762
        %v8764 = vrot.slane %v8759, %v8763
        %8766 = vmatprep.subr.mxu0 0.0
        %8767 = vmatpush1.msra.mxu0 %v8743
        %8768 = vmatprep.subr.mxu0 0.0
        %8769 = vmatpush1.msra.mxu0 %v8744
        %8770 = vmatprep.subr.mxu0 0.0
        %8771 = vmatpush1.msra.mxu0 %v8745
        %8772 = vmatprep.subr.mxu0 0.0
        %8773 = vmatpush1.msra.mxu0 %v8746
        %8774 = vmatprep.subr.mxu0 0.0
        %8775 = vmatpush1.msra.mxu0 %v8747
        %8776 = vmatprep.subr.mxu0 0.0
        %8777 = vmatpush1.msra.mxu0 %v8748
        %8778 = vmatprep.subr.mxu0 0.0
        %8779 = vmatpush1.msra.mxu0 %v8749
        %8780 = vmatprep.subr.mxu0 0.0
        %8781 = vmatpush1.msra.mxu0 %v8750
        %8782 = vmatprep.subr.mxu0 0.0
        %8783 = vmatpush1.msra.mxu0 %v8751
        %8784 = vmatprep.subr.mxu0 0.0
        %8785 = vmatpush1.msra.mxu0 %v8752
        %8786 = vmatprep.subr.mxu0 0.0
        %8787 = vmatpush1.msra.mxu0 %v8753
        %8788 = vmatprep.subr.mxu0 0.0
        %8789 = vmatpush1.msra.mxu0 %v8754
        %8790 = vmatprep.subr.mxu0 0.0
        %8791 = vmatpush1.msra.mxu0 %v8755
        %8792 = vmatprep.subr.mxu0 0.0
        %8793 = vmatpush1.msra.mxu0 %v8756
        %8794 = vmatprep.subr.mxu0 0.0
        %8795 = vmatpush1.msra.mxu0 %v8757
        %8796 = vmatprep.subr.mxu0 0.0
        %8797 = vmatpush1.msra.mxu0 %v8758
        %8798 = vmatprep.subr.mxu0 0.0
        %8799 = vmatpush1.msra.mxu0 0.0
        %8800 = vmatprep.subr.mxu0 0.0
        %8801 = vmatpush1.msra.mxu0 0.0
        %8802 = vmatprep.subr.mxu0 0.0
        %8803 = vmatpush1.msra.mxu0 0.0
        %8804 = vmatprep.subr.mxu0 0.0
        %8805 = vmatpush1.msra.mxu0 0.0
        %8806 = vmatprep.subr.mxu0 0.0
        %8807 = vmatpush1.msra.mxu0 0.0
        %8808 = vmatprep.subr.mxu0 0.0
        %8809 = vmatpush1.msra.mxu0 0.0
        %8810 = vmatprep.subr.mxu0 0.0
        %8811 = vmatpush1.msra.mxu0 0.0
        %8812 = vmatprep.subr.mxu0 0.0
        %8813 = vmatpush1.msra.mxu0 0.0
        %8814 = vmatprep.subr.mxu0 0.0
        %8815 = vmatpush1.msra.mxu0 0.0
        %8816 = vmatprep.subr.mxu0 0.0
        %8817 = vmatpush1.msra.mxu0 0.0
        %8818 = vmatprep.subr.mxu0 0.0
        %8819 = vmatpush1.msra.mxu0 0.0
        %8820 = vmatprep.subr.mxu0 0.0
        %8821 = vmatpush1.msra.mxu0 0.0
        %8822 = vmatprep.subr.mxu0 0.0
        %8823 = vmatpush1.msra.mxu0 0.0
        %8824 = vmatprep.subr.mxu0 0.0
        %8825 = vmatpush1.msra.mxu0 0.0
        %8826 = vmatprep.subr.mxu0 0.0
        %8827 = vmatpush1.msra.mxu0 0.0
        %8828 = vmatprep.subr.mxu0 0.0
        %8829 = vmatpush1.msra.mxu0 0.0
        %8830 = vmatprep.mubr.f32.mxu0 0.0
        %8831 = vmatmul.mubr.f32.gmra.mrb[0].mxu0 %v8711
        %v8832 = vpop.f32.mrb[0].mxu0
        %v8833 = vadd.f32 %v8764, %v8832
        %v8834 = vpop.f32.mrb[0].mxu0
        %8835 = vmatprep.mubr.f32.mxu0 0.0
        %8836 = vmatmul.mubr.f32.gmra.mrb[0].mxu0 %v8712
        %v8837 = vpop.f32.mrb[0].mxu0
        %v8838 = vadd.f32 %v8764, %v8837
        %v8839 = vpop.f32.mrb[0].mxu0
        %8840 = vmatprep.mubr.f32.mxu0 0.0
        %8841 = vmatmul.mubr.f32.gmra.mrb[0].mxu0 %v8713
        %v8842 = vpop.f32.mrb[0].mxu0
        %v8843 = vadd.f32 %v8764, %v8842
        %v8844 = vpop.f32.mrb[0].mxu0
        %8845 = vmatprep.mubr.f32.mxu0 0.0
        %8846 = vmatmul.mubr.f32.gmra.mrb[0].mxu0 %v8714
        %v8847 = vpop.f32.mrb[0].mxu0
        %v8848 = vadd.f32 %v8764, %v8847
        %v8849 = vpop.f32.mrb[0].mxu0
        %8850 = vmatprep.mubr.f32.mxu0 0.0
        %8851 = vmatmul.mubr.f32.gmra.mrb[0].mxu0 %v8715
        %v8852 = vpop.f32.mrb[0].mxu0
        %v8853 = vadd.f32 %v8764, %v8852
        %v8854 = vpop.f32.mrb[0].mxu0
        %8855 = vmatprep.mubr.f32.mxu0 0.0
        %8856 = vmatmul.mubr.f32.gmra.mrb[0].mxu0 %v8716
        %v8857 = vpop.f32.mrb[0].mxu0
        %v8858 = vadd.f32 %v8764, %v8857
        %v8859 = vpop.f32.mrb[0].mxu0
        %8860 = vmatprep.mubr.f32.mxu0 0.0
        %8861 = vmatmul.mubr.f32.gmra.mrb[0].mxu0 %v8717
        %v8862 = vpop.f32.mrb[0].mxu0
        %v8863 = vadd.f32 %v8764, %v8862
        %v8864 = vpop.f32.mrb[0].mxu0
        %8865 = vmatprep.mubr.f32.mxu0 0.0
        %8866 = vmatmul.mubr.f32.gmra.mrb[0].mxu0 %v8718
        %v8867 = vpop.f32.mrb[0].mxu0
        %v8868 = vadd.f32 %v8764, %v8867
        %v8869 = vpop.f32.mrb[0].mxu0
        %8870 = vmatprep.mubr.f32.mxu0 0.0
        %8871 = vmatmul.mubr.f32.gmra.mrb[0].mxu0 %v8719
        %v8872 = vpop.f32.mrb[0].mxu0
        %v8873 = vadd.f32 %v8764, %v8872
        %v8874 = vpop.f32.mrb[0].mxu0
        %8875 = vmatprep.mubr.f32.mxu0 0.0
        %8876 = vmatmul.mubr.f32.gmra.mrb[0].mxu0 %v8720
        %v8877 = vpop.f32.mrb[0].mxu0
        %v8878 = vadd.f32 %v8764, %v8877
        %v8879 = vpop.f32.mrb[0].mxu0
        %8880 = vmatprep.mubr.f32.mxu0 0.0
        %8881 = vmatmul.mubr.f32.gmra.mrb[0].mxu0 %v8721
        %v8882 = vpop.f32.mrb[0].mxu0
        %v8883 = vadd.f32 %v8764, %v8882
        %v8884 = vpop.f32.mrb[0].mxu0
        %8885 = vmatprep.mubr.f32.mxu0 0.0
        %8886 = vmatmul.mubr.f32.gmra.mrb[0].mxu0 %v8722
        %v8887 = vpop.f32.mrb[0].mxu0
        %v8888 = vadd.f32 %v8764, %v8887
        %v8889 = vpop.f32.mrb[0].mxu0
        %8890 = vmatprep.mubr.f32.mxu0 0.0
        %8891 = vmatmul.mubr.f32.gmra.mrb[0].mxu0 %v8723
        %v8892 = vpop.f32.mrb[0].mxu0
        %v8893 = vadd.f32 %v8764, %v8892
        %v8894 = vpop.f32.mrb[0].mxu0
        %8895 = vmatprep.mubr.f32.mxu0 0.0
        %8896 = vmatmul.mubr.f32.gmra.mrb[0].mxu0 %v8724
        %v8897 = vpop.f32.mrb[0].mxu0
        %v8898 = vadd.f32 %v8764, %v8897
        %v8899 = vpop.f32.mrb[0].mxu0
        %8900 = vmatprep.mubr.f32.mxu0 0.0
        %8901 = vmatmul.mubr.f32.gmra.mrb[0].mxu0 %v8725
        %v8902 = vpop.f32.mrb[0].mxu0
        %v8903 = vadd.f32 %v8764, %v8902
        %v8904 = vpop.f32.mrb[0].mxu0
        %8905 = vmatprep.mubr.f32.mxu0 0.0
        %8906 = vmatmul.mubr.f32.gmra.mrb[0].mxu0 %v8726
        %v8907 = vpop.f32.mrb[0].mxu0
        %v8908 = vadd.f32 %v8764, %v8907
        %v8909 = vpop.f32.mrb[0].mxu0
        %8910 = vmatprep.mubr.f32.mxu0 0.0
        %8911 = vmatmul.mubr.f32.gmra.mrb[0].mxu0 %v8727
        %v8912 = vpop.f32.mrb[0].mxu0
        %v8913 = vadd.f32 %v8764, %v8912
        %v8914 = vpop.f32.mrb[0].mxu0
        %8915 = vmatprep.mubr.f32.mxu0 0.0
        %8916 = vmatmul.mubr.f32.gmra.mrb[0].mxu0 %v8728
        %v8917 = vpop.f32.mrb[0].mxu0
        %v8918 = vadd.f32 %v8764, %v8917
        %v8919 = vpop.f32.mrb[0].mxu0
        %8920 = vmatprep.mubr.f32.mxu0 0.0
        %8921 = vmatmul.mubr.f32.gmra.mrb[0].mxu0 %v8729
        %v8922 = vpop.f32.mrb[0].mxu0
        %v8923 = vadd.f32 %v8764, %v8922
        %v8924 = vpop.f32.mrb[0].mxu0
        %8925 = vmatprep.mubr.f32.mxu0 0.0
        %8926 = vmatmul.mubr.f32.gmra.mrb[0].mxu0 %v8730
        %v8927 = vpop.f32.mrb[0].mxu0
        %v8928 = vadd.f32 %v8764, %v8927
        %v8929 = vpop.f32.mrb[0].mxu0
        %8930 = vmatprep.mubr.f32.mxu0 0.0
        %8931 = vmatmul.mubr.f32.gmra.mrb[0].mxu0 %v8731
        %v8932 = vpop.f32.mrb[0].mxu0
        %v8933 = vadd.f32 %v8764, %v8932
        %v8934 = vpop.f32.mrb[0].mxu0
        %8935 = vmatprep.mubr.f32.mxu0 0.0
        %8936 = vmatmul.mubr.f32.gmra.mrb[0].mxu0 %v8732
        %v8937 = vpop.f32.mrb[0].mxu0
        %v8938 = vadd.f32 %v8764, %v8937
        %v8939 = vpop.f32.mrb[0].mxu0
        %8940 = vmatprep.mubr.f32.mxu0 0.0
        %8941 = vmatmul.mubr.f32.gmra.mrb[0].mxu0 %v8733
        %v8942 = vpop.f32.mrb[0].mxu0
        %v8943 = vadd.f32 %v8764, %v8942
        %v8944 = vpop.f32.mrb[0].mxu0
        %8945 = vmatprep.mubr.f32.mxu0 0.0
        %8946 = vmatmul.mubr.f32.gmra.mrb[0].mxu0 %v8734
        %v8947 = vpop.f32.mrb[0].mxu0
        %v8948 = vadd.f32 %v8764, %v8947
        %v8949 = vpop.f32.mrb[0].mxu0
        %8950 = vmatprep.mubr.f32.mxu0 0.0
        %8951 = vmatmul.mubr.f32.gmra.mrb[0].mxu0 %v8735
        %v8952 = vpop.f32.mrb[0].mxu0
        %v8953 = vadd.f32 %v8764, %v8952
        %v8954 = vpop.f32.mrb[0].mxu0
        %8955 = vmatprep.mubr.f32.mxu0 0.0
        %8956 = vmatmul.mubr.f32.gmra.mrb[0].mxu0 %v8736
        %v8957 = vpop.f32.mrb[0].mxu0
        %v8958 = vadd.f32 %v8764, %v8957
        %v8959 = vpop.f32.mrb[0].mxu0
        %8960 = vmatprep.mubr.f32.mxu0 0.0
        %8961 = vmatmul.mubr.f32.gmra.mrb[0].mxu0 %v8737
        %v8962 = vpop.f32.mrb[0].mxu0
        %v8963 = vadd.f32 %v8764, %v8962
        %v8964 = vpop.f32.mrb[0].mxu0
        %8965 = vmatprep.mubr.f32.mxu0 0.0
        %8966 = vmatmul.mubr.f32.gmra.mrb[0].mxu0 %v8738
        %v8967 = vpop.f32.mrb[0].mxu0
        %v8968 = vadd.f32 %v8764, %v8967
        %v8969 = vpop.f32.mrb[0].mxu0
        %8970 = vmatprep.mubr.f32.mxu0 0.0
        %8971 = vmatmul.mubr.f32.gmra.mrb[0].mxu0 %v8739
        %v8972 = vpop.f32.mrb[0].mxu0
        %v8973 = vadd.f32 %v8764, %v8972
        %v8974 = vpop.f32.mrb[0].mxu0
        %8975 = vmatprep.mubr.f32.mxu0 0.0
        %8976 = vmatmul.mubr.f32.gmra.mrb[0].mxu0 %v8740
        %v8977 = vpop.f32.mrb[0].mxu0
        %v8978 = vadd.f32 %v8764, %v8977
        %v8979 = vpop.f32.mrb[0].mxu0
        %8980 = vmatprep.mubr.f32.mxu0 0.0
        %8981 = vmatmul.mubr.f32.gmra.mrb[0].mxu0 %v8741
        %v8982 = vpop.f32.mrb[0].mxu0
        %v8983 = vadd.f32 %v8764, %v8982
        %v8984 = vpop.f32.mrb[0].mxu0
        %8985 = vmatprep.mubr.f32.mxu0 0.0
        %8986 = vmatmul.mubr.f32.gmra.mrb[0].mxu0 %v8742
        %v8987 = vpop.f32.mrb[0].mxu0
        %v8988 = vadd.f32 %v8764, %v8987
        %v8989 = vpop.f32.mrb[0].mxu0
        %8990 = vdwg.mxu0
        %8991 = vst [vmem:[%s313] sm:$0xff] %v8833
        %8992 = vst [vmem:[%s313 + $0x8] sm:$0xff] %v8838
        %8993 = vst [vmem:[%s313 + $0x10] sm:$0xff] %v8843
        %8994 = vst [vmem:[%s313 + $0x18] sm:$0xff] %v8848
        %8995 = vst [vmem:[%s313 + $0x20] sm:$0xff] %v8853
        %8996 = vst [vmem:[%s313 + $0x28] sm:$0xff] %v8858
        %8997 = vst [vmem:[%s313 + $0x30] sm:$0xff] %v8863
        %8998 = vst [vmem:[%s313 + $0x38] sm:$0xff] %v8868
        %8999 = vst [vmem:[%s313 + $0x40] sm:$0xff] %v8873
        %9000 = vst [vmem:[%s313 + $0x48] sm:$0xff] %v8878
        %9001 = vst [vmem:[%s313 + $0x50] sm:$0xff] %v8883
        %9002 = vst [vmem:[%s313 + $0x58] sm:$0xff] %v8888
        %9003 = vst [vmem:[%s313 + $0x60] sm:$0xff] %v8893
        %9004 = vst [vmem:[%s313 + $0x68] sm:$0xff] %v8898
        %9005 = vst [vmem:[%s313 + $0x70] sm:$0xff] %v8903
        %9006 = vst [vmem:[%s313 + $0x78] sm:$0xff] %v8908
        %9007 = vst [vmem:[%s313 + $0x80] sm:$0xff] %v8913
        %9008 = vst [vmem:[%s313 + $0x88] sm:$0xff] %v8918
        %9009 = vst [vmem:[%s313 + $0x90] sm:$0xff] %v8923
        %9010 = vst [vmem:[%s313 + $0x98] sm:$0xff] %v8928
        %9011 = vst [vmem:[%s313 + $0xa0] sm:$0xff] %v8933
        %9012 = vst [vmem:[%s313 + $0xa8] sm:$0xff] %v8938
        %9013 = vst [vmem:[%s313 + $0xb0] sm:$0xff] %v8943
        %9014 = vst [vmem:[%s313 + $0xb8] sm:$0xff] %v8948
        %9015 = vst [vmem:[%s313 + $0xc0] sm:$0xff] %v8953
        %9016 = vst [vmem:[%s313 + $0xc8] sm:$0xff] %v8958
        %9017 = vst [vmem:[%s313 + $0xd0] sm:$0xff] %v8963
        %9018 = vst [vmem:[%s313 + $0xd8] sm:$0xff] %v8968
        %9019 = vst [vmem:[%s313 + $0xe0] sm:$0xff] %v8973
        %9020 = vst [vmem:[%s313 + $0xe8] sm:$0xff] %v8978
        %9021 = vst [vmem:[%s313 + $0xf0] sm:$0xff] %v8983
        %9022 = vst [vmem:[%s313 + $0xf8] sm:$0xff] %v8988
        %s9023 = sand.u32 %s164, 1
        %s9024 = scalar_lea.sflag [#allocation6], %s9023
        %s9025 = sand.u32 %s164, 1
        %s9026 = smul.addr %s9025, 256
        %s9027 = scalar_lea.vmem [#allocation12], %s9026
        // Predicated region
        $region61: #{tpu_custom_call.1} parent=43 // pred_check
          %p9028 = pneg %p174
        $region62: #{tpu_custom_call.1} parent=43 // pred_check_branch
          %9030 = sbr.rel (%p9028) target = $region64
        $region63: #{tpu_custom_call.1} parent=43 // pred_region
          %s9031 = smul.u32 32, %s25
          %s9033 = ssub.s32 4096, 4096
          %9034 = vsyncadd %s9024, %s9033
          %s9035 = smul.addr %s9031, 128
          %s9036 = scalar_lea.hbm %s6, %s9035
          %s9037 = sshll.u32 %s9027, 4
          %s9038 = int_to_ptr.vmem [resolvable:$true] %s9037
          %9043 = dma.vmem_to_hbm [thread:$0]  %s9038, 4096, %s9036, %s9024, 128, 128, 8
        $region64: #{tpu_custom_call.1} parent=43 // pred_fallthru
          _
      $region44: #{tpu_custom_call.1} parent=5 // pred_fallthru
        _
      %p9044 = scmp.le.s32.totalorder 2, %s20
      // Predicated region
      $region65: #{tpu_custom_call.1} parent=5 // pred_check
        %p9045 = pneg %p9044
      $region66: #{tpu_custom_call.1} parent=5 // pred_check_branch
        %9047 = sbr.rel (%p9045) target = $region68
      $region67: #{tpu_custom_call.1} parent=5 // pred_region
        %s9048 = ssub.s32 %s20, 2
        // Predicated region
        $region69: #{tpu_custom_call.1} parent=67 // pred_check
          %p9049 = pneg %p180
        $region70: #{tpu_custom_call.1} parent=67 // pred_check_branch
          %9051 = sbr.rel (%p9049) target = $region72
        $region71: #{tpu_custom_call.1} parent=67 // pred_region
          %s9052 = sand.u32 %s165, 1
          %s9053 = scalar_lea.sflag [#allocation6], %s9052
          %s9054 = sand.u32 %s165, 1
          %s9055 = smul.addr %s9054, 256
          %s9056 = scalar_lea.vmem [#allocation12], %s9055
          %9057 = dma.done %s9053, 4096
        $region72: #{tpu_custom_call.1} parent=67 // pred_fallthru
          _
      $region68: #{tpu_custom_call.1} parent=5 // pred_fallthru
        _
    $region6: #{tpu_custom_call.1} parent=1 // loop_footer
      %s24 = sadd.s32 1, %s20
    $region7: #{tpu_custom_call.1} parent=1 // loop_footer_branch
      %19 = sbr.rel target = $region3
    $region8: #{tpu_custom_call.1} parent=1 // loop_exit
      _
    %9058 = vsyncpa [#allocation5], 1
    %s9059 = scalar_lea.sflag [#allocation5], 1
    %9060 = vsyncpa %s9059, 1
    %9061 = vsyncpa [#allocation8], 1
    %9062 = vsyncpa [#allocation11], 1
    %9063 = vsyncpa [#allocation6], 1
    %s9064 = scalar_lea.sflag [#allocation6], 1
    %9065 = vsyncpa %s9064, 1

</llo_original>
